<compile_context>
chip_gen: v7x
topology: tpu7x:2x2x1
jax: 0.10.0
libtpu: 0.0.40
codegen_flags: <defaults>
</compile_context>

<pallas_src>
import math

import jax
import jax.numpy as jnp
from jax.experimental import pallas as pl
from jax.experimental.pallas import tpu as pltpu

EPS = 1e-5

# Encoder layer widths: 2400 -> 512 -> 512 -> 256 -> 256 -> 128 -> 64 -> 32 -> 32
ENC_DIMS = [20 * 40 * 3, 512, 512, 256, 256, 128, 64, 32, 32]
N_LAYERS = len(ENC_DIMS) - 1


def _pad128(n: int) -> int:
    return ((n + 127) // 128) * 128


# Lane-padded layer widths (inputs keep the first layer's raw 2400).
PAD_IN = [ENC_DIMS[0]] + [_pad128(d) for d in ENC_DIMS[1:-1]]
PAD_OUT = [_pad128(d) for d in ENC_DIMS[1:]]


def fused_encoder_kernel(*refs):
    """refs = (x, [w, b, gamma, beta] * N_LAYERS, out).  All resident in VMEM."""
    x_ref = refs[0]
    o_ref = refs[-1]

    h = x_ref[...].astype(jnp.float32)               # (B, 2400)
    for i in range(N_LAYERS):
        w_ref, b_ref, g_ref, beta_ref = refs[1 + 4 * i: 1 + 4 * (i + 1)]

        # MXU matmul: bf16 x bf16 -> f32 accumulation.
        y = jnp.dot(h.astype(jnp.bfloat16), w_ref[...],
                    preferred_element_type=jnp.float32)   # (B, out_p)
        y = y + b_ref[...]                                 # Linear bias

        # BatchNorm1d, training mode (batch mean, biased variance), folded:
        #   out = y * scale + (beta - mean * scale);  scale = gamma * rsqrt(var+eps)
        mean = jnp.mean(y, axis=0, keepdims=True)          # (1, out_p)
        var = jnp.maximum(
            jnp.mean(y * y, axis=0, keepdims=True) - mean * mean, 0.0)
        scale = g_ref[...] * jax.lax.rsqrt(var + EPS)      # EUP rsqrt
        shift = beta_ref[...] - mean * scale

        h = jnp.maximum(y * scale + shift, 0.0)            # ReLU

    o_ref[...] = h                                         # (B, 128) lane-dense store


def init_encoder_params(key):
    """Synthetic params matching PyTorch shapes, zero-padded to lane-dense widths.

    Weights stored pre-transposed (in_f, out_f) and in bf16; BN affine in f32.
    Padded rows/columns are zero so padded channels stay exactly 0.
    """
    params = []
    for i in range(N_LAYERS):
        in_f, out_f = ENC_DIMS[i], ENC_DIMS[i + 1]
        in_p, out_p = PAD_IN[i], PAD_OUT[i]
        key, kw, kb = jax.random.split(key, 3)
        bound = 1.0 / math.sqrt(in_f)
        w = jax.random.uniform(kw, (in_f, out_f), jnp.float32, -bound, bound)
        b = jax.random.uniform(kb, (out_f,), jnp.float32, -bound, bound)

        w_p = jnp.zeros((in_p, out_p), jnp.bfloat16).at[:in_f, :out_f].set(
            w.astype(jnp.bfloat16))
        b_p = jnp.zeros((1, out_p), jnp.float32).at[0, :out_f].set(b)
        gamma_p = jnp.zeros((1, out_p), jnp.float32).at[0, :out_f].set(1.0)
        beta_p = jnp.zeros((1, out_p), jnp.float32)
        params.append((w_p, b_p, gamma_p, beta_p))
    return params


def encoder_v2_forward(x, params):
    """Equivalent of Encoder_v2.forward: flatten, then one fused encoder kernel."""
    B = x.shape[0]
    h = x.reshape(B, -1).astype(jnp.float32)          # x.view(x.size(0), -1)

    flat_args = [h]
    for p in params:
        flat_args.extend(p)

    vmem = pl.BlockSpec(memory_space=pltpu.MemorySpace.VMEM)
    out_padded = pl.pallas_call(
        fused_encoder_kernel,
        out_shape=jax.ShapeDtypeStruct((B, PAD_OUT[-1]), jnp.float32),
        in_specs=[vmem] * len(flat_args),
        out_specs=vmem,
        compiler_params=pltpu.CompilerParams(vmem_limit_bytes=32 * 1024 * 1024),
    )(*flat_args)

    # Strip the lane padding of the last (32-wide) layer.
    return out_padded[:, :ENC_DIMS[-1]]


# TODO(synk): BatchNorm running-statistics buffers (momentum / eval mode) are not
# modeled; this matches PyTorch training-mode normalization only.

if __name__ == "__main__":
    key = jax.random.PRNGKey(0)
    key, kx, kp = jax.random.split(key, 3)

    # Small batch; feature dims are fixed by the module (3 * 20 * 40 = 2400).
    B = 8
    x = jax.random.normal(kx, (B, 3, 20, 40), jnp.float32)

    params = init_encoder_params(kp)

    fwd = jax.jit(encoder_v2_forward)
    out = fwd(x, params)
    out = jax.block_until_ready(out)

    assert out.shape == (B, 32), out.shape
    assert bool(jnp.all(jnp.isfinite(out)))
    print("KERNEL_OK")
</pallas_src>

<mosaic_0001>
module attributes {stable_mosaic.version = 11 : i64} {
  func.func @fused_encoder_kernel(%arg0: memref<8x2400xf32, #tpu.memory_space<vmem>>, %arg1: memref<2400x512xbf16, #tpu.memory_space<vmem>>, %arg2: memref<1x512xf32, #tpu.memory_space<vmem>>, %arg3: memref<1x512xf32, #tpu.memory_space<vmem>>, %arg4: memref<1x512xf32, #tpu.memory_space<vmem>>, %arg5: memref<512x512xbf16, #tpu.memory_space<vmem>>, %arg6: memref<1x512xf32, #tpu.memory_space<vmem>>, %arg7: memref<1x512xf32, #tpu.memory_space<vmem>>, %arg8: memref<1x512xf32, #tpu.memory_space<vmem>>, %arg9: memref<512x256xbf16, #tpu.memory_space<vmem>>, %arg10: memref<1x256xf32, #tpu.memory_space<vmem>>, %arg11: memref<1x256xf32, #tpu.memory_space<vmem>>, %arg12: memref<1x256xf32, #tpu.memory_space<vmem>>, %arg13: memref<256x256xbf16, #tpu.memory_space<vmem>>, %arg14: memref<1x256xf32, #tpu.memory_space<vmem>>, %arg15: memref<1x256xf32, #tpu.memory_space<vmem>>, %arg16: memref<1x256xf32, #tpu.memory_space<vmem>>, %arg17: memref<256x128xbf16, #tpu.memory_space<vmem>>, %arg18: memref<1x128xf32, #tpu.memory_space<vmem>>, %arg19: memref<1x128xf32, #tpu.memory_space<vmem>>, %arg20: memref<1x128xf32, #tpu.memory_space<vmem>>, %arg21: memref<128x128xbf16, #tpu.memory_space<vmem>>, %arg22: memref<1x128xf32, #tpu.memory_space<vmem>>, %arg23: memref<1x128xf32, #tpu.memory_space<vmem>>, %arg24: memref<1x128xf32, #tpu.memory_space<vmem>>, %arg25: memref<128x128xbf16, #tpu.memory_space<vmem>>, %arg26: memref<1x128xf32, #tpu.memory_space<vmem>>, %arg27: memref<1x128xf32, #tpu.memory_space<vmem>>, %arg28: memref<1x128xf32, #tpu.memory_space<vmem>>, %arg29: memref<128x128xbf16, #tpu.memory_space<vmem>>, %arg30: memref<1x128xf32, #tpu.memory_space<vmem>>, %arg31: memref<1x128xf32, #tpu.memory_space<vmem>>, %arg32: memref<1x128xf32, #tpu.memory_space<vmem>>, %arg33: memref<8x128xf32, #tpu.memory_space<vmem>>) attributes {dimension_semantics = [], scalar_prefetch = 0 : i64, scratch_operands = 0 : i64, tpu.core_type = #tpu.core_type<tc>} {
    %c0 = arith.constant 0 : index
    %c0_0 = arith.constant 0 : index
    %0 = vector.load %arg0[%c0, %c0_0] : memref<8x2400xf32, #tpu.memory_space<vmem>>, vector<8x2400xf32>
    %1 = arith.truncf %0 : vector<8x2400xf32> to vector<8x2400xbf16>
    %c0_1 = arith.constant 0 : index
    %c0_2 = arith.constant 0 : index
    %2 = vector.load %arg1[%c0_1, %c0_2] : memref<2400x512xbf16, #tpu.memory_space<vmem>>, vector<2400x512xbf16>
    %cst = arith.constant dense<0.000000e+00> : vector<8x512xf32>
    %3 = tpu.matmul %1, %2, %cst {dimension_numbers = #tpu.dot_dimension_numbers<[1], [0], [0], [1], [0, 0, 1, 1], [], []>} : vector<8x2400xbf16>, vector<2400x512xbf16>, vector<8x512xf32> -> vector<8x512xf32>
    %c0_3 = arith.constant 0 : index
    %c0_4 = arith.constant 0 : index
    %4 = vector.load %arg2[%c0_3, %c0_4] : memref<1x512xf32, #tpu.memory_space<vmem>>, vector<1x512xf32>
    %5 = vector.broadcast %4 : vector<1x512xf32> to vector<8x512xf32>
    %6 = arith.addf %3, %5 : vector<8x512xf32>
    %cst_5 = arith.constant dense<0.000000e+00> : vector<512xf32>
    %7 = vector.multi_reduction <add>, %6, %cst_5 [0] : vector<8x512xf32> to vector<512xf32>
    %8 = vector.shape_cast %7 : vector<512xf32> to vector<1x512xf32>
    %cst_6 = arith.constant 8.000000e+00 : f32
    %9 = vector.broadcast %cst_6 : f32 to vector<1x512xf32>
    %10 = arith.divf %8, %9 : vector<1x512xf32>
    %11 = arith.mulf %6, %6 : vector<8x512xf32>
    %cst_7 = arith.constant dense<0.000000e+00> : vector<512xf32>
    %12 = vector.multi_reduction <add>, %11, %cst_7 [0] : vector<8x512xf32> to vector<512xf32>
    %13 = vector.shape_cast %12 : vector<512xf32> to vector<1x512xf32>
    %cst_8 = arith.constant 8.000000e+00 : f32
    %14 = vector.broadcast %cst_8 : f32 to vector<1x512xf32>
    %15 = arith.divf %13, %14 : vector<1x512xf32>
    %16 = arith.mulf %10, %10 : vector<1x512xf32>
    %17 = arith.subf %15, %16 : vector<1x512xf32>
    %cst_9 = arith.constant 0.000000e+00 : f32
    %18 = vector.broadcast %cst_9 : f32 to vector<1x512xf32>
    %19 = arith.maximumf %17, %18 : vector<1x512xf32>
    %c0_10 = arith.constant 0 : index
    %c0_11 = arith.constant 0 : index
    %20 = vector.load %arg3[%c0_10, %c0_11] : memref<1x512xf32, #tpu.memory_space<vmem>>, vector<1x512xf32>
    %cst_12 = arith.constant 9.99999974E-6 : f32
    %21 = vector.broadcast %cst_12 : f32 to vector<1x512xf32>
    %22 = arith.addf %19, %21 : vector<1x512xf32>
    %23 = math.rsqrt %22 : vector<1x512xf32>
    %24 = arith.mulf %20, %23 : vector<1x512xf32>
    %c0_13 = arith.constant 0 : index
    %c0_14 = arith.constant 0 : index
    %25 = vector.load %arg4[%c0_13, %c0_14] : memref<1x512xf32, #tpu.memory_space<vmem>>, vector<1x512xf32>
    %26 = arith.mulf %10, %24 : vector<1x512xf32>
    %27 = arith.subf %25, %26 : vector<1x512xf32>
    %28 = vector.broadcast %24 : vector<1x512xf32> to vector<8x512xf32>
    %29 = arith.mulf %6, %28 : vector<8x512xf32>
    %30 = vector.broadcast %27 : vector<1x512xf32> to vector<8x512xf32>
    %31 = arith.addf %29, %30 : vector<8x512xf32>
    %cst_15 = arith.constant 0.000000e+00 : f32
    %32 = vector.broadcast %cst_15 : f32 to vector<8x512xf32>
    %33 = arith.maximumf %31, %32 : vector<8x512xf32>
    %34 = arith.truncf %33 : vector<8x512xf32> to vector<8x512xbf16>
    %c0_16 = arith.constant 0 : index
    %c0_17 = arith.constant 0 : index
    %35 = vector.load %arg5[%c0_16, %c0_17] : memref<512x512xbf16, #tpu.memory_space<vmem>>, vector<512x512xbf16>
    %cst_18 = arith.constant dense<0.000000e+00> : vector<8x512xf32>
    %36 = tpu.matmul %34, %35, %cst_18 {dimension_numbers = #tpu.dot_dimension_numbers<[1], [0], [0], [1], [0, 0, 1, 1], [], []>} : vector<8x512xbf16>, vector<512x512xbf16>, vector<8x512xf32> -> vector<8x512xf32>
    %c0_19 = arith.constant 0 : index
    %c0_20 = arith.constant 0 : index
    %37 = vector.load %arg6[%c0_19, %c0_20] : memref<1x512xf32, #tpu.memory_space<vmem>>, vector<1x512xf32>
    %38 = vector.broadcast %37 : vector<1x512xf32> to vector<8x512xf32>
    %39 = arith.addf %36, %38 : vector<8x512xf32>
    %cst_21 = arith.constant dense<0.000000e+00> : vector<512xf32>
    %40 = vector.multi_reduction <add>, %39, %cst_21 [0] : vector<8x512xf32> to vector<512xf32>
    %41 = vector.shape_cast %40 : vector<512xf32> to vector<1x512xf32>
    %cst_22 = arith.constant 8.000000e+00 : f32
    %42 = vector.broadcast %cst_22 : f32 to vector<1x512xf32>
    %43 = arith.divf %41, %42 : vector<1x512xf32>
    %44 = arith.mulf %39, %39 : vector<8x512xf32>
    %cst_23 = arith.constant dense<0.000000e+00> : vector<512xf32>
    %45 = vector.multi_reduction <add>, %44, %cst_23 [0] : vector<8x512xf32> to vector<512xf32>
    %46 = vector.shape_cast %45 : vector<512xf32> to vector<1x512xf32>
    %cst_24 = arith.constant 8.000000e+00 : f32
    %47 = vector.broadcast %cst_24 : f32 to vector<1x512xf32>
    %48 = arith.divf %46, %47 : vector<1x512xf32>
    %49 = arith.mulf %43, %43 : vector<1x512xf32>
    %50 = arith.subf %48, %49 : vector<1x512xf32>
    %cst_25 = arith.constant 0.000000e+00 : f32
    %51 = vector.broadcast %cst_25 : f32 to vector<1x512xf32>
    %52 = arith.maximumf %50, %51 : vector<1x512xf32>
    %c0_26 = arith.constant 0 : index
    %c0_27 = arith.constant 0 : index
    %53 = vector.load %arg7[%c0_26, %c0_27] : memref<1x512xf32, #tpu.memory_space<vmem>>, vector<1x512xf32>
    %cst_28 = arith.constant 9.99999974E-6 : f32
    %54 = vector.broadcast %cst_28 : f32 to vector<1x512xf32>
    %55 = arith.addf %52, %54 : vector<1x512xf32>
    %56 = math.rsqrt %55 : vector<1x512xf32>
    %57 = arith.mulf %53, %56 : vector<1x512xf32>
    %c0_29 = arith.constant 0 : index
    %c0_30 = arith.constant 0 : index
    %58 = vector.load %arg8[%c0_29, %c0_30] : memref<1x512xf32, #tpu.memory_space<vmem>>, vector<1x512xf32>
    %59 = arith.mulf %43, %57 : vector<1x512xf32>
    %60 = arith.subf %58, %59 : vector<1x512xf32>
    %61 = vector.broadcast %57 : vector<1x512xf32> to vector<8x512xf32>
    %62 = arith.mulf %39, %61 : vector<8x512xf32>
    %63 = vector.broadcast %60 : vector<1x512xf32> to vector<8x512xf32>
    %64 = arith.addf %62, %63 : vector<8x512xf32>
    %cst_31 = arith.constant 0.000000e+00 : f32
    %65 = vector.broadcast %cst_31 : f32 to vector<8x512xf32>
    %66 = arith.maximumf %64, %65 : vector<8x512xf32>
    %67 = arith.truncf %66 : vector<8x512xf32> to vector<8x512xbf16>
    %c0_32 = arith.constant 0 : index
    %c0_33 = arith.constant 0 : index
    %68 = vector.load %arg9[%c0_32, %c0_33] : memref<512x256xbf16, #tpu.memory_space<vmem>>, vector<512x256xbf16>
    %cst_34 = arith.constant dense<0.000000e+00> : vector<8x256xf32>
    %69 = tpu.matmul %67, %68, %cst_34 {dimension_numbers = #tpu.dot_dimension_numbers<[1], [0], [0], [1], [0, 0, 1, 1], [], []>} : vector<8x512xbf16>, vector<512x256xbf16>, vector<8x256xf32> -> vector<8x256xf32>
    %c0_35 = arith.constant 0 : index
    %c0_36 = arith.constant 0 : index
    %70 = vector.load %arg10[%c0_35, %c0_36] : memref<1x256xf32, #tpu.memory_space<vmem>>, vector<1x256xf32>
    %71 = vector.broadcast %70 : vector<1x256xf32> to vector<8x256xf32>
    %72 = arith.addf %69, %71 : vector<8x256xf32>
    %cst_37 = arith.constant dense<0.000000e+00> : vector<256xf32>
    %73 = vector.multi_reduction <add>, %72, %cst_37 [0] : vector<8x256xf32> to vector<256xf32>
    %74 = vector.shape_cast %73 : vector<256xf32> to vector<1x256xf32>
    %cst_38 = arith.constant 8.000000e+00 : f32
    %75 = vector.broadcast %cst_38 : f32 to vector<1x256xf32>
    %76 = arith.divf %74, %75 : vector<1x256xf32>
    %77 = arith.mulf %72, %72 : vector<8x256xf32>
    %cst_39 = arith.constant dense<0.000000e+00> : vector<256xf32>
    %78 = vector.multi_reduction <add>, %77, %cst_39 [0] : vector<8x256xf32> to vector<256xf32>
    %79 = vector.shape_cast %78 : vector<256xf32> to vector<1x256xf32>
    %cst_40 = arith.constant 8.000000e+00 : f32
    %80 = vector.broadcast %cst_40 : f32 to vector<1x256xf32>
    %81 = arith.divf %79, %80 : vector<1x256xf32>
    %82 = arith.mulf %76, %76 : vector<1x256xf32>
    %83 = arith.subf %81, %82 : vector<1x256xf32>
    %cst_41 = arith.constant 0.000000e+00 : f32
    %84 = vector.broadcast %cst_41 : f32 to vector<1x256xf32>
    %85 = arith.maximumf %83, %84 : vector<1x256xf32>
    %c0_42 = arith.constant 0 : index
    %c0_43 = arith.constant 0 : index
    %86 = vector.load %arg11[%c0_42, %c0_43] : memref<1x256xf32, #tpu.memory_space<vmem>>, vector<1x256xf32>
    %cst_44 = arith.constant 9.99999974E-6 : f32
    %87 = vector.broadcast %cst_44 : f32 to vector<1x256xf32>
    %88 = arith.addf %85, %87 : vector<1x256xf32>
    %89 = math.rsqrt %88 : vector<1x256xf32>
    %90 = arith.mulf %86, %89 : vector<1x256xf32>
    %c0_45 = arith.constant 0 : index
    %c0_46 = arith.constant 0 : index
    %91 = vector.load %arg12[%c0_45, %c0_46] : memref<1x256xf32, #tpu.memory_space<vmem>>, vector<1x256xf32>
    %92 = arith.mulf %76, %90 : vector<1x256xf32>
    %93 = arith.subf %91, %92 : vector<1x256xf32>
    %94 = vector.broadcast %90 : vector<1x256xf32> to vector<8x256xf32>
    %95 = arith.mulf %72, %94 : vector<8x256xf32>
    %96 = vector.broadcast %93 : vector<1x256xf32> to vector<8x256xf32>
    %97 = arith.addf %95, %96 : vector<8x256xf32>
    %cst_47 = arith.constant 0.000000e+00 : f32
    %98 = vector.broadcast %cst_47 : f32 to vector<8x256xf32>
    %99 = arith.maximumf %97, %98 : vector<8x256xf32>
    %100 = arith.truncf %99 : vector<8x256xf32> to vector<8x256xbf16>
    %c0_48 = arith.constant 0 : index
    %c0_49 = arith.constant 0 : index
    %101 = vector.load %arg13[%c0_48, %c0_49] : memref<256x256xbf16, #tpu.memory_space<vmem>>, vector<256x256xbf16>
    %cst_50 = arith.constant dense<0.000000e+00> : vector<8x256xf32>
    %102 = tpu.matmul %100, %101, %cst_50 {dimension_numbers = #tpu.dot_dimension_numbers<[1], [0], [0], [1], [0, 0, 1, 1], [], []>} : vector<8x256xbf16>, vector<256x256xbf16>, vector<8x256xf32> -> vector<8x256xf32>
    %c0_51 = arith.constant 0 : index
    %c0_52 = arith.constant 0 : index
    %103 = vector.load %arg14[%c0_51, %c0_52] : memref<1x256xf32, #tpu.memory_space<vmem>>, vector<1x256xf32>
    %104 = vector.broadcast %103 : vector<1x256xf32> to vector<8x256xf32>
    %105 = arith.addf %102, %104 : vector<8x256xf32>
    %cst_53 = arith.constant dense<0.000000e+00> : vector<256xf32>
    %106 = vector.multi_reduction <add>, %105, %cst_53 [0] : vector<8x256xf32> to vector<256xf32>
    %107 = vector.shape_cast %106 : vector<256xf32> to vector<1x256xf32>
    %cst_54 = arith.constant 8.000000e+00 : f32
    %108 = vector.broadcast %cst_54 : f32 to vector<1x256xf32>
    %109 = arith.divf %107, %108 : vector<1x256xf32>
    %110 = arith.mulf %105, %105 : vector<8x256xf32>
    %cst_55 = arith.constant dense<0.000000e+00> : vector<256xf32>
    %111 = vector.multi_reduction <add>, %110, %cst_55 [0] : vector<8x256xf32> to vector<256xf32>
    %112 = vector.shape_cast %111 : vector<256xf32> to vector<1x256xf32>
    %cst_56 = arith.constant 8.000000e+00 : f32
    %113 = vector.broadcast %cst_56 : f32 to vector<1x256xf32>
    %114 = arith.divf %112, %113 : vector<1x256xf32>
    %115 = arith.mulf %109, %109 : vector<1x256xf32>
    %116 = arith.subf %114, %115 : vector<1x256xf32>
    %cst_57 = arith.constant 0.000000e+00 : f32
    %117 = vector.broadcast %cst_57 : f32 to vector<1x256xf32>
    %118 = arith.maximumf %116, %117 : vector<1x256xf32>
    %c0_58 = arith.constant 0 : index
    %c0_59 = arith.constant 0 : index
    %119 = vector.load %arg15[%c0_58, %c0_59] : memref<1x256xf32, #tpu.memory_space<vmem>>, vector<1x256xf32>
    %cst_60 = arith.constant 9.99999974E-6 : f32
    %120 = vector.broadcast %cst_60 : f32 to vector<1x256xf32>
    %121 = arith.addf %118, %120 : vector<1x256xf32>
    %122 = math.rsqrt %121 : vector<1x256xf32>
    %123 = arith.mulf %119, %122 : vector<1x256xf32>
    %c0_61 = arith.constant 0 : index
    %c0_62 = arith.constant 0 : index
    %124 = vector.load %arg16[%c0_61, %c0_62] : memref<1x256xf32, #tpu.memory_space<vmem>>, vector<1x256xf32>
    %125 = arith.mulf %109, %123 : vector<1x256xf32>
    %126 = arith.subf %124, %125 : vector<1x256xf32>
    %127 = vector.broadcast %123 : vector<1x256xf32> to vector<8x256xf32>
    %128 = arith.mulf %105, %127 : vector<8x256xf32>
    %129 = vector.broadcast %126 : vector<1x256xf32> to vector<8x256xf32>
    %130 = arith.addf %128, %129 : vector<8x256xf32>
    %cst_63 = arith.constant 0.000000e+00 : f32
    %131 = vector.broadcast %cst_63 : f32 to vector<8x256xf32>
    %132 = arith.maximumf %130, %131 : vector<8x256xf32>
    %133 = arith.truncf %132 : vector<8x256xf32> to vector<8x256xbf16>
    %c0_64 = arith.constant 0 : index
    %c0_65 = arith.constant 0 : index
    %134 = vector.load %arg17[%c0_64, %c0_65] : memref<256x128xbf16, #tpu.memory_space<vmem>>, vector<256x128xbf16>
    %cst_66 = arith.constant dense<0.000000e+00> : vector<8x128xf32>
    %135 = tpu.matmul %133, %134, %cst_66 {dimension_numbers = #tpu.dot_dimension_numbers<[1], [0], [0], [1], [0, 0, 1, 1], [], []>} : vector<8x256xbf16>, vector<256x128xbf16>, vector<8x128xf32> -> vector<8x128xf32>
    %c0_67 = arith.constant 0 : index
    %c0_68 = arith.constant 0 : index
    %136 = vector.load %arg18[%c0_67, %c0_68] : memref<1x128xf32, #tpu.memory_space<vmem>>, vector<1x128xf32>
    %137 = vector.broadcast %136 : vector<1x128xf32> to vector<8x128xf32>
    %138 = arith.addf %135, %137 : vector<8x128xf32>
    %cst_69 = arith.constant dense<0.000000e+00> : vector<128xf32>
    %139 = vector.multi_reduction <add>, %138, %cst_69 [0] : vector<8x128xf32> to vector<128xf32>
    %140 = vector.shape_cast %139 : vector<128xf32> to vector<1x128xf32>
    %cst_70 = arith.constant 8.000000e+00 : f32
    %141 = vector.broadcast %cst_70 : f32 to vector<1x128xf32>
    %142 = arith.divf %140, %141 : vector<1x128xf32>
    %143 = arith.mulf %138, %138 : vector<8x128xf32>
    %cst_71 = arith.constant dense<0.000000e+00> : vector<128xf32>
    %144 = vector.multi_reduction <add>, %143, %cst_71 [0] : vector<8x128xf32> to vector<128xf32>
    %145 = vector.shape_cast %144 : vector<128xf32> to vector<1x128xf32>
    %cst_72 = arith.constant 8.000000e+00 : f32
    %146 = vector.broadcast %cst_72 : f32 to vector<1x128xf32>
    %147 = arith.divf %145, %146 : vector<1x128xf32>
    %148 = arith.mulf %142, %142 : vector<1x128xf32>
    %149 = arith.subf %147, %148 : vector<1x128xf32>
    %cst_73 = arith.constant 0.000000e+00 : f32
    %150 = vector.broadcast %cst_73 : f32 to vector<1x128xf32>
    %151 = arith.maximumf %149, %150 : vector<1x128xf32>
    %c0_74 = arith.constant 0 : index
    %c0_75 = arith.constant 0 : index
    %152 = vector.load %arg19[%c0_74, %c0_75] : memref<1x128xf32, #tpu.memory_space<vmem>>, vector<1x128xf32>
    %cst_76 = arith.constant 9.99999974E-6 : f32
    %153 = vector.broadcast %cst_76 : f32 to vector<1x128xf32>
    %154 = arith.addf %151, %153 : vector<1x128xf32>
    %155 = math.rsqrt %154 : vector<1x128xf32>
    %156 = arith.mulf %152, %155 : vector<1x128xf32>
    %c0_77 = arith.constant 0 : index
    %c0_78 = arith.constant 0 : index
    %157 = vector.load %arg20[%c0_77, %c0_78] : memref<1x128xf32, #tpu.memory_space<vmem>>, vector<1x128xf32>
    %158 = arith.mulf %142, %156 : vector<1x128xf32>
    %159 = arith.subf %157, %158 : vector<1x128xf32>
    %160 = vector.broadcast %156 : vector<1x128xf32> to vector<8x128xf32>
    %161 = arith.mulf %138, %160 : vector<8x128xf32>
    %162 = vector.broadcast %159 : vector<1x128xf32> to vector<8x128xf32>
    %163 = arith.addf %161, %162 : vector<8x128xf32>
    %cst_79 = arith.constant 0.000000e+00 : f32
    %164 = vector.broadcast %cst_79 : f32 to vector<8x128xf32>
    %165 = arith.maximumf %163, %164 : vector<8x128xf32>
    %166 = arith.truncf %165 : vector<8x128xf32> to vector<8x128xbf16>
    %c0_80 = arith.constant 0 : index
    %c0_81 = arith.constant 0 : index
    %167 = vector.load %arg21[%c0_80, %c0_81] : memref<128x128xbf16, #tpu.memory_space<vmem>>, vector<128x128xbf16>
    %cst_82 = arith.constant dense<0.000000e+00> : vector<8x128xf32>
    %168 = tpu.matmul %166, %167, %cst_82 {dimension_numbers = #tpu.dot_dimension_numbers<[1], [0], [0], [1], [0, 0, 1, 1], [], []>} : vector<8x128xbf16>, vector<128x128xbf16>, vector<8x128xf32> -> vector<8x128xf32>
    %c0_83 = arith.constant 0 : index
    %c0_84 = arith.constant 0 : index
    %169 = vector.load %arg22[%c0_83, %c0_84] : memref<1x128xf32, #tpu.memory_space<vmem>>, vector<1x128xf32>
    %170 = vector.broadcast %169 : vector<1x128xf32> to vector<8x128xf32>
    %171 = arith.addf %168, %170 : vector<8x128xf32>
    %cst_85 = arith.constant dense<0.000000e+00> : vector<128xf32>
    %172 = vector.multi_reduction <add>, %171, %cst_85 [0] : vector<8x128xf32> to vector<128xf32>
    %173 = vector.shape_cast %172 : vector<128xf32> to vector<1x128xf32>
    %cst_86 = arith.constant 8.000000e+00 : f32
    %174 = vector.broadcast %cst_86 : f32 to vector<1x128xf32>
    %175 = arith.divf %173, %174 : vector<1x128xf32>
    %176 = arith.mulf %171, %171 : vector<8x128xf32>
    %cst_87 = arith.constant dense<0.000000e+00> : vector<128xf32>
    %177 = vector.multi_reduction <add>, %176, %cst_87 [0] : vector<8x128xf32> to vector<128xf32>
    %178 = vector.shape_cast %177 : vector<128xf32> to vector<1x128xf32>
    %cst_88 = arith.constant 8.000000e+00 : f32
    %179 = vector.broadcast %cst_88 : f32 to vector<1x128xf32>
    %180 = arith.divf %178, %179 : vector<1x128xf32>
    %181 = arith.mulf %175, %175 : vector<1x128xf32>
    %182 = arith.subf %180, %181 : vector<1x128xf32>
    %cst_89 = arith.constant 0.000000e+00 : f32
    %183 = vector.broadcast %cst_89 : f32 to vector<1x128xf32>
    %184 = arith.maximumf %182, %183 : vector<1x128xf32>
    %c0_90 = arith.constant 0 : index
    %c0_91 = arith.constant 0 : index
    %185 = vector.load %arg23[%c0_90, %c0_91] : memref<1x128xf32, #tpu.memory_space<vmem>>, vector<1x128xf32>
    %cst_92 = arith.constant 9.99999974E-6 : f32
    %186 = vector.broadcast %cst_92 : f32 to vector<1x128xf32>
    %187 = arith.addf %184, %186 : vector<1x128xf32>
    %188 = math.rsqrt %187 : vector<1x128xf32>
    %189 = arith.mulf %185, %188 : vector<1x128xf32>
    %c0_93 = arith.constant 0 : index
    %c0_94 = arith.constant 0 : index
    %190 = vector.load %arg24[%c0_93, %c0_94] : memref<1x128xf32, #tpu.memory_space<vmem>>, vector<1x128xf32>
    %191 = arith.mulf %175, %189 : vector<1x128xf32>
    %192 = arith.subf %190, %191 : vector<1x128xf32>
    %193 = vector.broadcast %189 : vector<1x128xf32> to vector<8x128xf32>
    %194 = arith.mulf %171, %193 : vector<8x128xf32>
    %195 = vector.broadcast %192 : vector<1x128xf32> to vector<8x128xf32>
    %196 = arith.addf %194, %195 : vector<8x128xf32>
    %cst_95 = arith.constant 0.000000e+00 : f32
    %197 = vector.broadcast %cst_95 : f32 to vector<8x128xf32>
    %198 = arith.maximumf %196, %197 : vector<8x128xf32>
    %199 = arith.truncf %198 : vector<8x128xf32> to vector<8x128xbf16>
    %c0_96 = arith.constant 0 : index
    %c0_97 = arith.constant 0 : index
    %200 = vector.load %arg25[%c0_96, %c0_97] : memref<128x128xbf16, #tpu.memory_space<vmem>>, vector<128x128xbf16>
    %cst_98 = arith.constant dense<0.000000e+00> : vector<8x128xf32>
    %201 = tpu.matmul %199, %200, %cst_98 {dimension_numbers = #tpu.dot_dimension_numbers<[1], [0], [0], [1], [0, 0, 1, 1], [], []>} : vector<8x128xbf16>, vector<128x128xbf16>, vector<8x128xf32> -> vector<8x128xf32>
    %c0_99 = arith.constant 0 : index
    %c0_100 = arith.constant 0 : index
    %202 = vector.load %arg26[%c0_99, %c0_100] : memref<1x128xf32, #tpu.memory_space<vmem>>, vector<1x128xf32>
    %203 = vector.broadcast %202 : vector<1x128xf32> to vector<8x128xf32>
    %204 = arith.addf %201, %203 : vector<8x128xf32>
    %cst_101 = arith.constant dense<0.000000e+00> : vector<128xf32>
    %205 = vector.multi_reduction <add>, %204, %cst_101 [0] : vector<8x128xf32> to vector<128xf32>
    %206 = vector.shape_cast %205 : vector<128xf32> to vector<1x128xf32>
    %cst_102 = arith.constant 8.000000e+00 : f32
    %207 = vector.broadcast %cst_102 : f32 to vector<1x128xf32>
    %208 = arith.divf %206, %207 : vector<1x128xf32>
    %209 = arith.mulf %204, %204 : vector<8x128xf32>
    %cst_103 = arith.constant dense<0.000000e+00> : vector<128xf32>
    %210 = vector.multi_reduction <add>, %209, %cst_103 [0] : vector<8x128xf32> to vector<128xf32>
    %211 = vector.shape_cast %210 : vector<128xf32> to vector<1x128xf32>
    %cst_104 = arith.constant 8.000000e+00 : f32
    %212 = vector.broadcast %cst_104 : f32 to vector<1x128xf32>
    %213 = arith.divf %211, %212 : vector<1x128xf32>
    %214 = arith.mulf %208, %208 : vector<1x128xf32>
    %215 = arith.subf %213, %214 : vector<1x128xf32>
    %cst_105 = arith.constant 0.000000e+00 : f32
    %216 = vector.broadcast %cst_105 : f32 to vector<1x128xf32>
    %217 = arith.maximumf %215, %216 : vector<1x128xf32>
    %c0_106 = arith.constant 0 : index
    %c0_107 = arith.constant 0 : index
    %218 = vector.load %arg27[%c0_106, %c0_107] : memref<1x128xf32, #tpu.memory_space<vmem>>, vector<1x128xf32>
    %cst_108 = arith.constant 9.99999974E-6 : f32
    %219 = vector.broadcast %cst_108 : f32 to vector<1x128xf32>
    %220 = arith.addf %217, %219 : vector<1x128xf32>
    %221 = math.rsqrt %220 : vector<1x128xf32>
    %222 = arith.mulf %218, %221 : vector<1x128xf32>
    %c0_109 = arith.constant 0 : index
    %c0_110 = arith.constant 0 : index
    %223 = vector.load %arg28[%c0_109, %c0_110] : memref<1x128xf32, #tpu.memory_space<vmem>>, vector<1x128xf32>
    %224 = arith.mulf %208, %222 : vector<1x128xf32>
    %225 = arith.subf %223, %224 : vector<1x128xf32>
    %226 = vector.broadcast %222 : vector<1x128xf32> to vector<8x128xf32>
    %227 = arith.mulf %204, %226 : vector<8x128xf32>
    %228 = vector.broadcast %225 : vector<1x128xf32> to vector<8x128xf32>
    %229 = arith.addf %227, %228 : vector<8x128xf32>
    %cst_111 = arith.constant 0.000000e+00 : f32
    %230 = vector.broadcast %cst_111 : f32 to vector<8x128xf32>
    %231 = arith.maximumf %229, %230 : vector<8x128xf32>
    %232 = arith.truncf %231 : vector<8x128xf32> to vector<8x128xbf16>
    %c0_112 = arith.constant 0 : index
    %c0_113 = arith.constant 0 : index
    %233 = vector.load %arg29[%c0_112, %c0_113] : memref<128x128xbf16, #tpu.memory_space<vmem>>, vector<128x128xbf16>
    %cst_114 = arith.constant dense<0.000000e+00> : vector<8x128xf32>
    %234 = tpu.matmul %232, %233, %cst_114 {dimension_numbers = #tpu.dot_dimension_numbers<[1], [0], [0], [1], [0, 0, 1, 1], [], []>} : vector<8x128xbf16>, vector<128x128xbf16>, vector<8x128xf32> -> vector<8x128xf32>
    %c0_115 = arith.constant 0 : index
    %c0_116 = arith.constant 0 : index
    %235 = vector.load %arg30[%c0_115, %c0_116] : memref<1x128xf32, #tpu.memory_space<vmem>>, vector<1x128xf32>
    %236 = vector.broadcast %235 : vector<1x128xf32> to vector<8x128xf32>
    %237 = arith.addf %234, %236 : vector<8x128xf32>
    %cst_117 = arith.constant dense<0.000000e+00> : vector<128xf32>
    %238 = vector.multi_reduction <add>, %237, %cst_117 [0] : vector<8x128xf32> to vector<128xf32>
    %239 = vector.shape_cast %238 : vector<128xf32> to vector<1x128xf32>
    %cst_118 = arith.constant 8.000000e+00 : f32
    %240 = vector.broadcast %cst_118 : f32 to vector<1x128xf32>
    %241 = arith.divf %239, %240 : vector<1x128xf32>
    %242 = arith.mulf %237, %237 : vector<8x128xf32>
    %cst_119 = arith.constant dense<0.000000e+00> : vector<128xf32>
    %243 = vector.multi_reduction <add>, %242, %cst_119 [0] : vector<8x128xf32> to vector<128xf32>
    %244 = vector.shape_cast %243 : vector<128xf32> to vector<1x128xf32>
    %cst_120 = arith.constant 8.000000e+00 : f32
    %245 = vector.broadcast %cst_120 : f32 to vector<1x128xf32>
    %246 = arith.divf %244, %245 : vector<1x128xf32>
    %247 = arith.mulf %241, %241 : vector<1x128xf32>
    %248 = arith.subf %246, %247 : vector<1x128xf32>
    %cst_121 = arith.constant 0.000000e+00 : f32
    %249 = vector.broadcast %cst_121 : f32 to vector<1x128xf32>
    %250 = arith.maximumf %248, %249 : vector<1x128xf32>
    %c0_122 = arith.constant 0 : index
    %c0_123 = arith.constant 0 : index
    %251 = vector.load %arg31[%c0_122, %c0_123] : memref<1x128xf32, #tpu.memory_space<vmem>>, vector<1x128xf32>
    %cst_124 = arith.constant 9.99999974E-6 : f32
    %252 = vector.broadcast %cst_124 : f32 to vector<1x128xf32>
    %253 = arith.addf %250, %252 : vector<1x128xf32>
    %254 = math.rsqrt %253 : vector<1x128xf32>
    %255 = arith.mulf %251, %254 : vector<1x128xf32>
    %c0_125 = arith.constant 0 : index
    %c0_126 = arith.constant 0 : index
    %256 = vector.load %arg32[%c0_125, %c0_126] : memref<1x128xf32, #tpu.memory_space<vmem>>, vector<1x128xf32>
    %257 = arith.mulf %241, %255 : vector<1x128xf32>
    %258 = arith.subf %256, %257 : vector<1x128xf32>
    %259 = vector.broadcast %255 : vector<1x128xf32> to vector<8x128xf32>
    %260 = arith.mulf %237, %259 : vector<8x128xf32>
    %261 = vector.broadcast %258 : vector<1x128xf32> to vector<8x128xf32>
    %262 = arith.addf %260, %261 : vector<8x128xf32>
    %cst_127 = arith.constant 0.000000e+00 : f32
    %263 = vector.broadcast %cst_127 : f32 to vector<8x128xf32>
    %264 = arith.maximumf %262, %263 : vector<8x128xf32>
    %c0_128 = arith.constant 0 : index
    %c0_129 = arith.constant 0 : index
    %265 = vector.load %arg33[%c0_128, %c0_129] : memref<8x128xf32, #tpu.memory_space<vmem>>, vector<8x128xf32>
    tpu.vector_store %arg33[%c0_128, %c0_129], %264 {strides = array<i32>} : memref<8x128xf32, #tpu.memory_space<vmem>>, vector<8x128xf32>,
    return
  }
}

</mosaic_0001>

<llo_original>
// kernel: encoder_v2_forward.1
$region0: #{encoder_v2_forward.1}
  #allocation0 [shape = 'u32[]', space=smem, size = 0x4, offset = 0x4, fixed_abs, tag = 'smem constant byte address 0x4 - core index']
  #allocation1 [shape = 'u32[144,128]{1,0:T(1,128)}', space=vmem, size = 0x12000, scoped, tag = 'internal scratch']
  %s0 = inlined_call_operand.smem [shape: u32[34], index: -1, kind: input, shape index: {}]
  %s1 = sld [smem:[%s0]]
  %s2 = scalar_lea.smem %s0, 1
  %s3 = sld [smem:[%s2]]
  %s4 = scalar_lea.smem %s0, 2
  %s5 = sld [smem:[%s4]]
  %s6 = scalar_lea.smem %s0, 3
  %s7 = sld [smem:[%s6]]
  %s8 = scalar_lea.smem %s0, 4
  %s9 = sld [smem:[%s8]]
  %s10 = scalar_lea.smem %s0, 5
  %s11 = sld [smem:[%s10]]
  %s12 = scalar_lea.smem %s0, 6
  %s13 = sld [smem:[%s12]]
  %s14 = scalar_lea.smem %s0, 7
  %s15 = sld [smem:[%s14]]
  %s16 = scalar_lea.smem %s0, 8
  %s17 = sld [smem:[%s16]]
  %s18 = scalar_lea.smem %s0, 9
  %s19 = sld [smem:[%s18]]
  %s20 = scalar_lea.smem %s0, 10
  %s21 = sld [smem:[%s20]]
  %s22 = scalar_lea.smem %s0, 11
  %s23 = sld [smem:[%s22]]
  %s24 = scalar_lea.smem %s0, 12
  %s25 = sld [smem:[%s24]]
  %s26 = scalar_lea.smem %s0, 13
  %s27 = sld [smem:[%s26]]
  %s28 = scalar_lea.smem %s0, 14
  %s29 = sld [smem:[%s28]]
  %s30 = scalar_lea.smem %s0, 15
  %s31 = sld [smem:[%s30]]
  %s32 = scalar_lea.smem %s0, 16
  %s33 = sld [smem:[%s32]]
  %s34 = scalar_lea.smem %s0, 17
  %s35 = sld [smem:[%s34]]
  %s36 = scalar_lea.smem %s0, 18
  %s37 = sld [smem:[%s36]]
  %s38 = scalar_lea.smem %s0, 19
  %s39 = sld [smem:[%s38]]
  %s40 = scalar_lea.smem %s0, 20
  %s41 = sld [smem:[%s40]]
  %s42 = scalar_lea.smem %s0, 21
  %s43 = sld [smem:[%s42]]
  %s44 = scalar_lea.smem %s0, 22
  %s45 = sld [smem:[%s44]]
  %s46 = scalar_lea.smem %s0, 23
  %s47 = sld [smem:[%s46]]
  %s48 = scalar_lea.smem %s0, 24
  %s49 = sld [smem:[%s48]]
  %s50 = scalar_lea.smem %s0, 25
  %s51 = sld [smem:[%s50]]
  %s52 = scalar_lea.smem %s0, 26
  %s53 = sld [smem:[%s52]]
  %s54 = scalar_lea.smem %s0, 27
  %s55 = sld [smem:[%s54]]
  %s56 = scalar_lea.smem %s0, 28
  %s57 = sld [smem:[%s56]]
  %s58 = scalar_lea.smem %s0, 29
  %s59 = sld [smem:[%s58]]
  %s60 = scalar_lea.smem %s0, 30
  %s61 = sld [smem:[%s60]]
  %s62 = scalar_lea.smem %s0, 31
  %s63 = sld [smem:[%s62]]
  %s64 = scalar_lea.smem %s0, 32
  %s65 = sld [smem:[%s64]]
  %s66 = scalar_lea.smem %s0, 33
  %s67 = sld [smem:[%s66]]
  %s68 = sld [smem:[#allocation0]]
  $region270: #{encoder_v2_forward.1} parent=0
    _
  %s70 = ssub.s32 1, %s68
  %s71 = scalar_select 0, %s70, %s68
  $region1: #{encoder_v2_forward.1} parent=0
    #allocation2 [shape = 'u8[2457600]{0}', space=vmem, size = 0x258000, scoped, tag = 'input window, operand 1, single buffered']
    #allocation3 [shape = 's32[1]{0}', space=sflag, size = 0x4, scoped, tag = 'scoped memory for encoder_v2_forward.1']
    #allocation4 [shape = 's32[1]{0}', space=sflag, size = 0x4, scoped, tag = 'scoped memory for encoder_v2_forward.1']
    #allocation5 [shape = 'u8[2048]{0}', space=vmem, size = 0x800, scoped, tag = 'input window, operand 2, single buffered']
    #allocation6 [shape = 's32[1]{0}', space=sflag, size = 0x4, scoped, tag = 'scoped memory for encoder_v2_forward.1']
    #allocation7 [shape = 'u8[2048]{0}', space=vmem, size = 0x800, scoped, tag = 'input window, operand 3, single buffered']
    #allocation8 [shape = 'u8[2048]{0}', space=vmem, size = 0x800, scoped, tag = 'input window, operand 4, single buffered']
    #allocation9 [shape = 's32[1]{0}', space=sflag, size = 0x4, scoped, tag = 'scoped memory for encoder_v2_forward.1']
    #allocation10 [shape = 'u8[524288]{0}', space=vmem, size = 0x80000, scoped, tag = 'input window, operand 5, single buffered']
    #allocation11 [shape = 'u8[2048]{0}', space=vmem, size = 0x800, scoped, tag = 'input window, operand 6, single buffered']
    #allocation12 [shape = 's32[1]{0}', space=sflag, size = 0x4, scoped, tag = 'scoped memory for encoder_v2_forward.1']
    #allocation13 [shape = 'u8[2048]{0}', space=vmem, size = 0x800, scoped, tag = 'input window, operand 7, single buffered']
    #allocation14 [shape = 'u8[2048]{0}', space=vmem, size = 0x800, scoped, tag = 'input window, operand 8, single buffered']
    #allocation15 [shape = 's32[1]{0}', space=sflag, size = 0x4, scoped, tag = 'scoped memory for encoder_v2_forward.1']
    #allocation16 [shape = 'u8[262144]{0}', space=vmem, size = 0x40000, scoped, tag = 'input window, operand 9, single buffered']
    #allocation17 [shape = 'u8[1024]{0}', space=vmem, size = 0x400, scoped, tag = 'input window, operand 10, single buffered']
    #allocation18 [shape = 's32[1]{0}', space=sflag, size = 0x4, scoped, tag = 'scoped memory for encoder_v2_forward.1']
    #allocation19 [shape = 'u8[1024]{0}', space=vmem, size = 0x400, scoped, tag = 'input window, operand 11, single buffered']
    #allocation20 [shape = 'u8[1024]{0}', space=vmem, size = 0x400, scoped, tag = 'input window, operand 12, single buffered']
    #allocation21 [shape = 's32[1]{0}', space=sflag, size = 0x4, scoped, tag = 'scoped memory for encoder_v2_forward.1']
    #allocation22 [shape = 'u8[131072]{0}', space=vmem, size = 0x20000, scoped, tag = 'input window, operand 13, single buffered']
    #allocation23 [shape = 'u8[1024]{0}', space=vmem, size = 0x400, scoped, tag = 'input window, operand 14, single buffered']
    #allocation24 [shape = 's32[1]{0}', space=sflag, size = 0x4, scoped, tag = 'scoped memory for encoder_v2_forward.1']
    #allocation25 [shape = 'u8[1024]{0}', space=vmem, size = 0x400, scoped, tag = 'input window, operand 15, single buffered']
    #allocation26 [shape = 'u8[1024]{0}', space=vmem, size = 0x400, scoped, tag = 'input window, operand 16, single buffered']
    #allocation27 [shape = 's32[1]{0}', space=sflag, size = 0x4, scoped, tag = 'scoped memory for encoder_v2_forward.1']
    #allocation28 [shape = 'u8[65536]{0}', space=vmem, size = 0x10000, scoped, tag = 'input window, operand 17, single buffered']
    #allocation29 [shape = 'u8[512]{0}', space=vmem, size = 0x400, scoped, tag = 'input window, operand 18, single buffered']
    #allocation30 [shape = 's32[1]{0}', space=sflag, size = 0x4, scoped, tag = 'scoped memory for encoder_v2_forward.1']
    #allocation31 [shape = 'u8[512]{0}', space=vmem, size = 0x400, scoped, tag = 'input window, operand 19, single buffered']
    #allocation32 [shape = 'u8[512]{0}', space=vmem, size = 0x400, scoped, tag = 'input window, operand 20, single buffered']
    #allocation33 [shape = 's32[1]{0}', space=sflag, size = 0x4, scoped, tag = 'scoped memory for encoder_v2_forward.1']
    #allocation34 [shape = 'u8[32768]{0}', space=vmem, size = 0x8000, scoped, tag = 'input window, operand 21, single buffered']
    #allocation35 [shape = 'u8[512]{0}', space=vmem, size = 0x400, scoped, tag = 'input window, operand 22, single buffered']
    #allocation36 [shape = 's32[1]{0}', space=sflag, size = 0x4, scoped, tag = 'scoped memory for encoder_v2_forward.1']
    #allocation37 [shape = 'u8[512]{0}', space=vmem, size = 0x400, scoped, tag = 'input window, operand 23, single buffered']
    #allocation38 [shape = 'u8[512]{0}', space=vmem, size = 0x400, scoped, tag = 'input window, operand 24, single buffered']
    #allocation39 [shape = 's32[1]{0}', space=sflag, size = 0x4, scoped, tag = 'scoped memory for encoder_v2_forward.1']
    #allocation40 [shape = 'u8[32768]{0}', space=vmem, size = 0x8000, scoped, tag = 'input window, operand 25, single buffered']
    #allocation41 [shape = 'u8[512]{0}', space=vmem, size = 0x400, scoped, tag = 'input window, operand 26, single buffered']
    #allocation42 [shape = 's32[1]{0}', space=sflag, size = 0x4, scoped, tag = 'scoped memory for encoder_v2_forward.1']
    #allocation43 [shape = 'u8[512]{0}', space=vmem, size = 0x400, scoped, tag = 'input window, operand 27, single buffered']
    #allocation44 [shape = 'u8[512]{0}', space=vmem, size = 0x400, scoped, tag = 'input window, operand 28, single buffered']
    #allocation45 [shape = 's32[1]{0}', space=sflag, size = 0x4, scoped, tag = 'scoped memory for encoder_v2_forward.1']
    #allocation46 [shape = 'u8[32768]{0}', space=vmem, size = 0x8000, scoped, tag = 'input window, operand 29, single buffered']
    #allocation47 [shape = 'u8[512]{0}', space=vmem, size = 0x400, scoped, tag = 'input window, operand 30, single buffered']
    #allocation48 [shape = 's32[1]{0}', space=sflag, size = 0x4, scoped, tag = 'scoped memory for encoder_v2_forward.1']
    #allocation49 [shape = 'u8[512]{0}', space=vmem, size = 0x400, scoped, tag = 'input window, operand 31, single buffered']
    #allocation50 [shape = 'u8[512]{0}', space=vmem, size = 0x400, scoped, tag = 'input window, operand 32, single buffered']
    #allocation51 [shape = 's32[1]{0}', space=sflag, size = 0x4, scoped, tag = 'scoped memory for encoder_v2_forward.1']
    #allocation52 [shape = 'u8[4096]{0}', space=vmem, size = 0x1000, scoped, tag = 'output window, operand 0, single buffered']
    %72 = vsyncpa [#allocation3], 0
    %73 = vsyncpa [#allocation6], 0
    %74 = vsyncpa [#allocation9], 0
    %75 = vsyncpa [#allocation12], 0
    %76 = vsyncpa [#allocation15], 0
    %77 = vsyncpa [#allocation18], 0
    %78 = vsyncpa [#allocation21], 0
    %79 = vsyncpa [#allocation24], 0
    %80 = vsyncpa [#allocation27], 0
    %81 = vsyncpa [#allocation30], 0
    %82 = vsyncpa [#allocation33], 0
    %83 = vsyncpa [#allocation36], 0
    %84 = vsyncpa [#allocation39], 0
    %85 = vsyncpa [#allocation42], 0
    %86 = vsyncpa [#allocation45], 0
    %87 = vsyncpa [#allocation48], 0
    %88 = vsyncpa [#allocation51], 0
    %89 = vsyncpa [#allocation4], 0
    // Predicated region
    $region2: #{encoder_v2_forward.1} parent=1 // pred_check
      _
    $region3: #{encoder_v2_forward.1} parent=1 // pred_check_branch
      %91 = sbr.rel (0) target = $region5
    $region4: #{encoder_v2_forward.1} parent=1 // pred_region
      _
    $region5: #{encoder_v2_forward.1} parent=1 // pred_fallthru
      _
    // Predicated region
    $region6: #{encoder_v2_forward.1} parent=1 // pred_check
      _
    $region7: #{encoder_v2_forward.1} parent=1 // pred_check_branch
      %93 = sbr.rel (0) target = $region9
    $region8: #{encoder_v2_forward.1} parent=1 // pred_region
      %s95 = ssub.s32 76800, 76800
      %96 = vsyncadd [#allocation3], %s95
      %s97 = sshll.u32 [#allocation2], 4
      %s98 = int_to_ptr.vmem [resolvable:$true] %s97
      %103 = dma.hbm_to_vmem [thread:$0]  %s3, 76800, %s98, [#allocation3], 256, 256, 16
    $region9: #{encoder_v2_forward.1} parent=1 // pred_fallthru
      _
    // Predicated region
    $region10: #{encoder_v2_forward.1} parent=1 // pred_check
      _
    $region11: #{encoder_v2_forward.1} parent=1 // pred_check_branch
      %105 = sbr.rel (0) target = $region13
    $region12: #{encoder_v2_forward.1} parent=1 // pred_region
      %s107 = ssub.s32 64, 64
      %108 = vsyncadd [#allocation6], %s107
      %s110 = sshll.u32 [#allocation5], 4
      %s111 = int_to_ptr.vmem [resolvable:$true] %s110
      %113 = dma.hbm_to_vmem [thread:$0]  %s5, 64, %s111, [#allocation6]
    $region13: #{encoder_v2_forward.1} parent=1 // pred_fallthru
      _
    // Predicated region
    $region14: #{encoder_v2_forward.1} parent=1 // pred_check
      _
    $region15: #{encoder_v2_forward.1} parent=1 // pred_check_branch
      %115 = sbr.rel (0) target = $region17
    $region16: #{encoder_v2_forward.1} parent=1 // pred_region
      %s117 = ssub.s32 64, 64
      %118 = vsyncadd [#allocation6], %s117
      %s120 = sshll.u32 [#allocation7], 4
      %s121 = int_to_ptr.vmem [resolvable:$true] %s120
      %123 = dma.hbm_to_vmem [thread:$0]  %s7, 64, %s121, [#allocation6]
    $region17: #{encoder_v2_forward.1} parent=1 // pred_fallthru
      _
    // Predicated region
    $region18: #{encoder_v2_forward.1} parent=1 // pred_check
      _
    $region19: #{encoder_v2_forward.1} parent=1 // pred_check_branch
      %125 = sbr.rel (0) target = $region21
    $region20: #{encoder_v2_forward.1} parent=1 // pred_region
      %s127 = ssub.s32 64, 64
      %128 = vsyncadd [#allocation9], %s127
      %s130 = sshll.u32 [#allocation8], 4
      %s131 = int_to_ptr.vmem [resolvable:$true] %s130
      %133 = dma.hbm_to_vmem [thread:$0]  %s9, 64, %s131, [#allocation9]
    $region21: #{encoder_v2_forward.1} parent=1 // pred_fallthru
      _
    // Predicated region
    $region22: #{encoder_v2_forward.1} parent=1 // pred_check
      _
    $region23: #{encoder_v2_forward.1} parent=1 // pred_check_branch
      %135 = sbr.rel (0) target = $region25
    $region24: #{encoder_v2_forward.1} parent=1 // pred_region
      %s137 = ssub.s32 16384, 16384
      %138 = vsyncadd [#allocation9], %s137
      %s139 = sshll.u32 [#allocation10], 4
      %s140 = int_to_ptr.vmem [resolvable:$true] %s139
      %145 = dma.hbm_to_vmem [thread:$0]  %s11, 16384, %s140, [#allocation9], 256, 256, 16
    $region25: #{encoder_v2_forward.1} parent=1 // pred_fallthru
      _
    // Predicated region
    $region26: #{encoder_v2_forward.1} parent=1 // pred_check
      _
    $region27: #{encoder_v2_forward.1} parent=1 // pred_check_branch
      %147 = sbr.rel (0) target = $region29
    $region28: #{encoder_v2_forward.1} parent=1 // pred_region
      %s149 = ssub.s32 64, 64
      %150 = vsyncadd [#allocation12], %s149
      %s152 = sshll.u32 [#allocation11], 4
      %s153 = int_to_ptr.vmem [resolvable:$true] %s152
      %155 = dma.hbm_to_vmem [thread:$0]  %s13, 64, %s153, [#allocation12]
    $region29: #{encoder_v2_forward.1} parent=1 // pred_fallthru
      _
    // Predicated region
    $region30: #{encoder_v2_forward.1} parent=1 // pred_check
      _
    $region31: #{encoder_v2_forward.1} parent=1 // pred_check_branch
      %157 = sbr.rel (0) target = $region33
    $region32: #{encoder_v2_forward.1} parent=1 // pred_region
      %s159 = ssub.s32 64, 64
      %160 = vsyncadd [#allocation12], %s159
      %s162 = sshll.u32 [#allocation13], 4
      %s163 = int_to_ptr.vmem [resolvable:$true] %s162
      %165 = dma.hbm_to_vmem [thread:$0]  %s15, 64, %s163, [#allocation12]
    $region33: #{encoder_v2_forward.1} parent=1 // pred_fallthru
      _
    // Predicated region
    $region34: #{encoder_v2_forward.1} parent=1 // pred_check
      _
    $region35: #{encoder_v2_forward.1} parent=1 // pred_check_branch
      %167 = sbr.rel (0) target = $region37
    $region36: #{encoder_v2_forward.1} parent=1 // pred_region
      %s169 = ssub.s32 64, 64
      %170 = vsyncadd [#allocation15], %s169
      %s172 = sshll.u32 [#allocation14], 4
      %s173 = int_to_ptr.vmem [resolvable:$true] %s172
      %175 = dma.hbm_to_vmem [thread:$0]  %s17, 64, %s173, [#allocation15]
    $region37: #{encoder_v2_forward.1} parent=1 // pred_fallthru
      _
    // Predicated region
    $region38: #{encoder_v2_forward.1} parent=1 // pred_check
      _
    $region39: #{encoder_v2_forward.1} parent=1 // pred_check_branch
      %177 = sbr.rel (0) target = $region41
    $region40: #{encoder_v2_forward.1} parent=1 // pred_region
      %s179 = ssub.s32 8192, 8192
      %180 = vsyncadd [#allocation15], %s179
      %s181 = sshll.u32 [#allocation16], 4
      %s182 = int_to_ptr.vmem [resolvable:$true] %s181
      %187 = dma.hbm_to_vmem [thread:$0]  %s19, 8192, %s182, [#allocation15], 128, 128, 8
    $region41: #{encoder_v2_forward.1} parent=1 // pred_fallthru
      _
    // Predicated region
    $region42: #{encoder_v2_forward.1} parent=1 // pred_check
      _
    $region43: #{encoder_v2_forward.1} parent=1 // pred_check_branch
      %189 = sbr.rel (0) target = $region45
    $region44: #{encoder_v2_forward.1} parent=1 // pred_region
      %s191 = ssub.s32 32, 32
      %192 = vsyncadd [#allocation18], %s191
      %s194 = sshll.u32 [#allocation17], 4
      %s195 = int_to_ptr.vmem [resolvable:$true] %s194
      %197 = dma.hbm_to_vmem [thread:$0]  %s21, 32, %s195, [#allocation18]
    $region45: #{encoder_v2_forward.1} parent=1 // pred_fallthru
      _
    // Predicated region
    $region46: #{encoder_v2_forward.1} parent=1 // pred_check
      _
    $region47: #{encoder_v2_forward.1} parent=1 // pred_check_branch
      %199 = sbr.rel (0) target = $region49
    $region48: #{encoder_v2_forward.1} parent=1 // pred_region
      %s201 = ssub.s32 32, 32
      %202 = vsyncadd [#allocation18], %s201
      %s204 = sshll.u32 [#allocation19], 4
      %s205 = int_to_ptr.vmem [resolvable:$true] %s204
      %207 = dma.hbm_to_vmem [thread:$0]  %s23, 32, %s205, [#allocation18]
    $region49: #{encoder_v2_forward.1} parent=1 // pred_fallthru
      _
    // Predicated region
    $region50: #{encoder_v2_forward.1} parent=1 // pred_check
      _
    $region51: #{encoder_v2_forward.1} parent=1 // pred_check_branch
      %209 = sbr.rel (0) target = $region53
    $region52: #{encoder_v2_forward.1} parent=1 // pred_region
      %s211 = ssub.s32 32, 32
      %212 = vsyncadd [#allocation21], %s211
      %s214 = sshll.u32 [#allocation20], 4
      %s215 = int_to_ptr.vmem [resolvable:$true] %s214
      %217 = dma.hbm_to_vmem [thread:$0]  %s25, 32, %s215, [#allocation21]
    $region53: #{encoder_v2_forward.1} parent=1 // pred_fallthru
      _
    // Predicated region
    $region54: #{encoder_v2_forward.1} parent=1 // pred_check
      _
    $region55: #{encoder_v2_forward.1} parent=1 // pred_check_branch
      %219 = sbr.rel (0) target = $region57
    $region56: #{encoder_v2_forward.1} parent=1 // pred_region
      %s221 = ssub.s32 4096, 4096
      %222 = vsyncadd [#allocation21], %s221
      %s223 = sshll.u32 [#allocation22], 4
      %s224 = int_to_ptr.vmem [resolvable:$true] %s223
      %229 = dma.hbm_to_vmem [thread:$0]  %s27, 4096, %s224, [#allocation21], 128, 128, 8
    $region57: #{encoder_v2_forward.1} parent=1 // pred_fallthru
      _
    // Predicated region
    $region58: #{encoder_v2_forward.1} parent=1 // pred_check
      _
    $region59: #{encoder_v2_forward.1} parent=1 // pred_check_branch
      %231 = sbr.rel (0) target = $region61
    $region60: #{encoder_v2_forward.1} parent=1 // pred_region
      %s233 = ssub.s32 32, 32
      %234 = vsyncadd [#allocation24], %s233
      %s236 = sshll.u32 [#allocation23], 4
      %s237 = int_to_ptr.vmem [resolvable:$true] %s236
      %239 = dma.hbm_to_vmem [thread:$0]  %s29, 32, %s237, [#allocation24]
    $region61: #{encoder_v2_forward.1} parent=1 // pred_fallthru
      _
    // Predicated region
    $region62: #{encoder_v2_forward.1} parent=1 // pred_check
      _
    $region63: #{encoder_v2_forward.1} parent=1 // pred_check_branch
      %241 = sbr.rel (0) target = $region65
    $region64: #{encoder_v2_forward.1} parent=1 // pred_region
      %s243 = ssub.s32 32, 32
      %244 = vsyncadd [#allocation24], %s243
      %s246 = sshll.u32 [#allocation25], 4
      %s247 = int_to_ptr.vmem [resolvable:$true] %s246
      %249 = dma.hbm_to_vmem [thread:$0]  %s31, 32, %s247, [#allocation24]
    $region65: #{encoder_v2_forward.1} parent=1 // pred_fallthru
      _
    // Predicated region
    $region66: #{encoder_v2_forward.1} parent=1 // pred_check
      _
    $region67: #{encoder_v2_forward.1} parent=1 // pred_check_branch
      %251 = sbr.rel (0) target = $region69
    $region68: #{encoder_v2_forward.1} parent=1 // pred_region
      %s253 = ssub.s32 32, 32
      %254 = vsyncadd [#allocation27], %s253
      %s256 = sshll.u32 [#allocation26], 4
      %s257 = int_to_ptr.vmem [resolvable:$true] %s256
      %259 = dma.hbm_to_vmem [thread:$0]  %s33, 32, %s257, [#allocation27]
    $region69: #{encoder_v2_forward.1} parent=1 // pred_fallthru
      _
    // Predicated region
    $region70: #{encoder_v2_forward.1} parent=1 // pred_check
      _
    $region71: #{encoder_v2_forward.1} parent=1 // pred_check_branch
      %261 = sbr.rel (0) target = $region73
    $region72: #{encoder_v2_forward.1} parent=1 // pred_region
      %s263 = ssub.s32 2048, 2048
      %264 = vsyncadd [#allocation27], %s263
      %s265 = sshll.u32 [#allocation28], 4
      %s266 = int_to_ptr.vmem [resolvable:$true] %s265
      %271 = dma.hbm_to_vmem [thread:$0]  %s35, 2048, %s266, [#allocation27], 64, 64, 4
    $region73: #{encoder_v2_forward.1} parent=1 // pred_fallthru
      _
    // Predicated region
    $region74: #{encoder_v2_forward.1} parent=1 // pred_check
      _
    $region75: #{encoder_v2_forward.1} parent=1 // pred_check_branch
      %273 = sbr.rel (0) target = $region77
    $region76: #{encoder_v2_forward.1} parent=1 // pred_region
      %s275 = ssub.s32 16, 16
      %276 = vsyncadd [#allocation30], %s275
      %s278 = sshll.u32 [#allocation29], 4
      %s279 = int_to_ptr.vmem [resolvable:$true] %s278
      %281 = dma.hbm_to_vmem [thread:$0]  %s37, 16, %s279, [#allocation30]
    $region77: #{encoder_v2_forward.1} parent=1 // pred_fallthru
      _
    // Predicated region
    $region78: #{encoder_v2_forward.1} parent=1 // pred_check
      _
    $region79: #{encoder_v2_forward.1} parent=1 // pred_check_branch
      %283 = sbr.rel (0) target = $region81
    $region80: #{encoder_v2_forward.1} parent=1 // pred_region
      %s285 = ssub.s32 16, 16
      %286 = vsyncadd [#allocation30], %s285
      %s288 = sshll.u32 [#allocation31], 4
      %s289 = int_to_ptr.vmem [resolvable:$true] %s288
      %291 = dma.hbm_to_vmem [thread:$0]  %s39, 16, %s289, [#allocation30]
    $region81: #{encoder_v2_forward.1} parent=1 // pred_fallthru
      _
    // Predicated region
    $region82: #{encoder_v2_forward.1} parent=1 // pred_check
      _
    $region83: #{encoder_v2_forward.1} parent=1 // pred_check_branch
      %293 = sbr.rel (0) target = $region85
    $region84: #{encoder_v2_forward.1} parent=1 // pred_region
      %s295 = ssub.s32 16, 16
      %296 = vsyncadd [#allocation33], %s295
      %s298 = sshll.u32 [#allocation32], 4
      %s299 = int_to_ptr.vmem [resolvable:$true] %s298
      %301 = dma.hbm_to_vmem [thread:$0]  %s41, 16, %s299, [#allocation33]
    $region85: #{encoder_v2_forward.1} parent=1 // pred_fallthru
      _
    // Predicated region
    $region86: #{encoder_v2_forward.1} parent=1 // pred_check
      _
    $region87: #{encoder_v2_forward.1} parent=1 // pred_check_branch
      %303 = sbr.rel (0) target = $region89
    $region88: #{encoder_v2_forward.1} parent=1 // pred_region
      %s305 = ssub.s32 1024, 1024
      %306 = vsyncadd [#allocation33], %s305
      %s307 = sshll.u32 [#allocation34], 4
      %s308 = int_to_ptr.vmem [resolvable:$true] %s307
      %313 = dma.hbm_to_vmem [thread:$0]  %s43, 1024, %s308, [#allocation33], 64, 64, 4
    $region89: #{encoder_v2_forward.1} parent=1 // pred_fallthru
      _
    // Predicated region
    $region90: #{encoder_v2_forward.1} parent=1 // pred_check
      _
    $region91: #{encoder_v2_forward.1} parent=1 // pred_check_branch
      %315 = sbr.rel (0) target = $region93
    $region92: #{encoder_v2_forward.1} parent=1 // pred_region
      %s317 = ssub.s32 16, 16
      %318 = vsyncadd [#allocation36], %s317
      %s320 = sshll.u32 [#allocation35], 4
      %s321 = int_to_ptr.vmem [resolvable:$true] %s320
      %323 = dma.hbm_to_vmem [thread:$0]  %s45, 16, %s321, [#allocation36]
    $region93: #{encoder_v2_forward.1} parent=1 // pred_fallthru
      _
    // Predicated region
    $region94: #{encoder_v2_forward.1} parent=1 // pred_check
      _
    $region95: #{encoder_v2_forward.1} parent=1 // pred_check_branch
      %325 = sbr.rel (0) target = $region97
    $region96: #{encoder_v2_forward.1} parent=1 // pred_region
      %s327 = ssub.s32 16, 16
      %328 = vsyncadd [#allocation36], %s327
      %s330 = sshll.u32 [#allocation37], 4
      %s331 = int_to_ptr.vmem [resolvable:$true] %s330
      %333 = dma.hbm_to_vmem [thread:$0]  %s47, 16, %s331, [#allocation36]
    $region97: #{encoder_v2_forward.1} parent=1 // pred_fallthru
      _
    // Predicated region
    $region98: #{encoder_v2_forward.1} parent=1 // pred_check
      _
    $region99: #{encoder_v2_forward.1} parent=1 // pred_check_branch
      %335 = sbr.rel (0) target = $region101
    $region100: #{encoder_v2_forward.1} parent=1 // pred_region
      %s337 = ssub.s32 16, 16
      %338 = vsyncadd [#allocation39], %s337
      %s340 = sshll.u32 [#allocation38], 4
      %s341 = int_to_ptr.vmem [resolvable:$true] %s340
      %343 = dma.hbm_to_vmem [thread:$0]  %s49, 16, %s341, [#allocation39]
    $region101: #{encoder_v2_forward.1} parent=1 // pred_fallthru
      _
    // Predicated region
    $region102: #{encoder_v2_forward.1} parent=1 // pred_check
      _
    $region103: #{encoder_v2_forward.1} parent=1 // pred_check_branch
      %345 = sbr.rel (0) target = $region105
    $region104: #{encoder_v2_forward.1} parent=1 // pred_region
      %s347 = ssub.s32 1024, 1024
      %348 = vsyncadd [#allocation39], %s347
      %s349 = sshll.u32 [#allocation40], 4
      %s350 = int_to_ptr.vmem [resolvable:$true] %s349
      %355 = dma.hbm_to_vmem [thread:$0]  %s51, 1024, %s350, [#allocation39], 64, 64, 4
    $region105: #{encoder_v2_forward.1} parent=1 // pred_fallthru
      _
    // Predicated region
    $region106: #{encoder_v2_forward.1} parent=1 // pred_check
      _
    $region107: #{encoder_v2_forward.1} parent=1 // pred_check_branch
      %357 = sbr.rel (0) target = $region109
    $region108: #{encoder_v2_forward.1} parent=1 // pred_region
      %s359 = ssub.s32 16, 16
      %360 = vsyncadd [#allocation42], %s359
      %s362 = sshll.u32 [#allocation41], 4
      %s363 = int_to_ptr.vmem [resolvable:$true] %s362
      %365 = dma.hbm_to_vmem [thread:$0]  %s53, 16, %s363, [#allocation42]
    $region109: #{encoder_v2_forward.1} parent=1 // pred_fallthru
      _
    // Predicated region
    $region110: #{encoder_v2_forward.1} parent=1 // pred_check
      _
    $region111: #{encoder_v2_forward.1} parent=1 // pred_check_branch
      %367 = sbr.rel (0) target = $region113
    $region112: #{encoder_v2_forward.1} parent=1 // pred_region
      %s369 = ssub.s32 16, 16
      %370 = vsyncadd [#allocation42], %s369
      %s372 = sshll.u32 [#allocation43], 4
      %s373 = int_to_ptr.vmem [resolvable:$true] %s372
      %375 = dma.hbm_to_vmem [thread:$0]  %s55, 16, %s373, [#allocation42]
    $region113: #{encoder_v2_forward.1} parent=1 // pred_fallthru
      _
    // Predicated region
    $region114: #{encoder_v2_forward.1} parent=1 // pred_check
      _
    $region115: #{encoder_v2_forward.1} parent=1 // pred_check_branch
      %377 = sbr.rel (0) target = $region117
    $region116: #{encoder_v2_forward.1} parent=1 // pred_region
      %s379 = ssub.s32 16, 16
      %380 = vsyncadd [#allocation45], %s379
      %s382 = sshll.u32 [#allocation44], 4
      %s383 = int_to_ptr.vmem [resolvable:$true] %s382
      %385 = dma.hbm_to_vmem [thread:$0]  %s57, 16, %s383, [#allocation45]
    $region117: #{encoder_v2_forward.1} parent=1 // pred_fallthru
      _
    // Predicated region
    $region118: #{encoder_v2_forward.1} parent=1 // pred_check
      _
    $region119: #{encoder_v2_forward.1} parent=1 // pred_check_branch
      %387 = sbr.rel (0) target = $region121
    $region120: #{encoder_v2_forward.1} parent=1 // pred_region
      %s389 = ssub.s32 1024, 1024
      %390 = vsyncadd [#allocation45], %s389
      %s391 = sshll.u32 [#allocation46], 4
      %s392 = int_to_ptr.vmem [resolvable:$true] %s391
      %397 = dma.hbm_to_vmem [thread:$0]  %s59, 1024, %s392, [#allocation45], 64, 64, 4
    $region121: #{encoder_v2_forward.1} parent=1 // pred_fallthru
      _
    // Predicated region
    $region122: #{encoder_v2_forward.1} parent=1 // pred_check
      _
    $region123: #{encoder_v2_forward.1} parent=1 // pred_check_branch
      %399 = sbr.rel (0) target = $region125
    $region124: #{encoder_v2_forward.1} parent=1 // pred_region
      %s401 = ssub.s32 16, 16
      %402 = vsyncadd [#allocation48], %s401
      %s404 = sshll.u32 [#allocation47], 4
      %s405 = int_to_ptr.vmem [resolvable:$true] %s404
      %407 = dma.hbm_to_vmem [thread:$0]  %s61, 16, %s405, [#allocation48]
    $region125: #{encoder_v2_forward.1} parent=1 // pred_fallthru
      _
    // Predicated region
    $region126: #{encoder_v2_forward.1} parent=1 // pred_check
      _
    $region127: #{encoder_v2_forward.1} parent=1 // pred_check_branch
      %409 = sbr.rel (0) target = $region129
    $region128: #{encoder_v2_forward.1} parent=1 // pred_region
      %s411 = ssub.s32 16, 16
      %412 = vsyncadd [#allocation48], %s411
      %s414 = sshll.u32 [#allocation49], 4
      %s415 = int_to_ptr.vmem [resolvable:$true] %s414
      %417 = dma.hbm_to_vmem [thread:$0]  %s63, 16, %s415, [#allocation48]
    $region129: #{encoder_v2_forward.1} parent=1 // pred_fallthru
      _
    // Predicated region
    $region130: #{encoder_v2_forward.1} parent=1 // pred_check
      _
    $region131: #{encoder_v2_forward.1} parent=1 // pred_check_branch
      %419 = sbr.rel (0) target = $region133
    $region132: #{encoder_v2_forward.1} parent=1 // pred_region
      %s421 = ssub.s32 16, 16
      %422 = vsyncadd [#allocation51], %s421
      %s424 = sshll.u32 [#allocation50], 4
      %s425 = int_to_ptr.vmem [resolvable:$true] %s424
      %427 = dma.hbm_to_vmem [thread:$0]  %s65, 16, %s425, [#allocation51]
    $region133: #{encoder_v2_forward.1} parent=1 // pred_fallthru
      _
    // Predicated region
    $region134: #{encoder_v2_forward.1} parent=1 // pred_check
      _
    $region135: #{encoder_v2_forward.1} parent=1 // pred_check_branch
      %429 = sbr.rel (0) target = $region137
    $region136: #{encoder_v2_forward.1} parent=1 // pred_region
      %430 = dma.done [#allocation3], 76800
    $region137: #{encoder_v2_forward.1} parent=1 // pred_fallthru
      _
    // Predicated region
    $region138: #{encoder_v2_forward.1} parent=1 // pred_check
      _
    $region139: #{encoder_v2_forward.1} parent=1 // pred_check_branch
      %432 = sbr.rel (0) target = $region141
    $region140: #{encoder_v2_forward.1} parent=1 // pred_region
      %433 = dma.done [#allocation6], 64
    $region141: #{encoder_v2_forward.1} parent=1 // pred_fallthru
      _
    // Predicated region
    $region142: #{encoder_v2_forward.1} parent=1 // pred_check
      _
    $region143: #{encoder_v2_forward.1} parent=1 // pred_check_branch
      %435 = sbr.rel (0) target = $region145
    $region144: #{encoder_v2_forward.1} parent=1 // pred_region
      %436 = dma.done [#allocation6], 64
    $region145: #{encoder_v2_forward.1} parent=1 // pred_fallthru
      _
    // Predicated region
    $region146: #{encoder_v2_forward.1} parent=1 // pred_check
      _
    $region147: #{encoder_v2_forward.1} parent=1 // pred_check_branch
      %438 = sbr.rel (0) target = $region149
    $region148: #{encoder_v2_forward.1} parent=1 // pred_region
      %439 = dma.done [#allocation9], 64
    $region149: #{encoder_v2_forward.1} parent=1 // pred_fallthru
      _
    // Predicated region
    $region150: #{encoder_v2_forward.1} parent=1 // pred_check
      _
    $region151: #{encoder_v2_forward.1} parent=1 // pred_check_branch
      %441 = sbr.rel (0) target = $region153
    $region152: #{encoder_v2_forward.1} parent=1 // pred_region
      %442 = dma.done [#allocation9], 16384
    $region153: #{encoder_v2_forward.1} parent=1 // pred_fallthru
      _
    // Predicated region
    $region154: #{encoder_v2_forward.1} parent=1 // pred_check
      _
    $region155: #{encoder_v2_forward.1} parent=1 // pred_check_branch
      %444 = sbr.rel (0) target = $region157
    $region156: #{encoder_v2_forward.1} parent=1 // pred_region
      %445 = dma.done [#allocation12], 64
    $region157: #{encoder_v2_forward.1} parent=1 // pred_fallthru
      _
    // Predicated region
    $region158: #{encoder_v2_forward.1} parent=1 // pred_check
      _
    $region159: #{encoder_v2_forward.1} parent=1 // pred_check_branch
      %447 = sbr.rel (0) target = $region161
    $region160: #{encoder_v2_forward.1} parent=1 // pred_region
      %448 = dma.done [#allocation12], 64
    $region161: #{encoder_v2_forward.1} parent=1 // pred_fallthru
      _
    // Predicated region
    $region162: #{encoder_v2_forward.1} parent=1 // pred_check
      _
    $region163: #{encoder_v2_forward.1} parent=1 // pred_check_branch
      %450 = sbr.rel (0) target = $region165
    $region164: #{encoder_v2_forward.1} parent=1 // pred_region
      %451 = dma.done [#allocation15], 64
    $region165: #{encoder_v2_forward.1} parent=1 // pred_fallthru
      _
    // Predicated region
    $region166: #{encoder_v2_forward.1} parent=1 // pred_check
      _
    $region167: #{encoder_v2_forward.1} parent=1 // pred_check_branch
      %453 = sbr.rel (0) target = $region169
    $region168: #{encoder_v2_forward.1} parent=1 // pred_region
      %454 = dma.done [#allocation15], 8192
    $region169: #{encoder_v2_forward.1} parent=1 // pred_fallthru
      _
    // Predicated region
    $region170: #{encoder_v2_forward.1} parent=1 // pred_check
      _
    $region171: #{encoder_v2_forward.1} parent=1 // pred_check_branch
      %456 = sbr.rel (0) target = $region173
    $region172: #{encoder_v2_forward.1} parent=1 // pred_region
      %457 = dma.done [#allocation18], 32
    $region173: #{encoder_v2_forward.1} parent=1 // pred_fallthru
      _
    // Predicated region
    $region174: #{encoder_v2_forward.1} parent=1 // pred_check
      _
    $region175: #{encoder_v2_forward.1} parent=1 // pred_check_branch
      %459 = sbr.rel (0) target = $region177
    $region176: #{encoder_v2_forward.1} parent=1 // pred_region
      %460 = dma.done [#allocation18], 32
    $region177: #{encoder_v2_forward.1} parent=1 // pred_fallthru
      _
    // Predicated region
    $region178: #{encoder_v2_forward.1} parent=1 // pred_check
      _
    $region179: #{encoder_v2_forward.1} parent=1 // pred_check_branch
      %462 = sbr.rel (0) target = $region181
    $region180: #{encoder_v2_forward.1} parent=1 // pred_region
      %463 = dma.done [#allocation21], 32
    $region181: #{encoder_v2_forward.1} parent=1 // pred_fallthru
      _
    // Predicated region
    $region182: #{encoder_v2_forward.1} parent=1 // pred_check
      _
    $region183: #{encoder_v2_forward.1} parent=1 // pred_check_branch
      %465 = sbr.rel (0) target = $region185
    $region184: #{encoder_v2_forward.1} parent=1 // pred_region
      %466 = dma.done [#allocation21], 4096
    $region185: #{encoder_v2_forward.1} parent=1 // pred_fallthru
      _
    // Predicated region
    $region186: #{encoder_v2_forward.1} parent=1 // pred_check
      _
    $region187: #{encoder_v2_forward.1} parent=1 // pred_check_branch
      %468 = sbr.rel (0) target = $region189
    $region188: #{encoder_v2_forward.1} parent=1 // pred_region
      %469 = dma.done [#allocation24], 32
    $region189: #{encoder_v2_forward.1} parent=1 // pred_fallthru
      _
    // Predicated region
    $region190: #{encoder_v2_forward.1} parent=1 // pred_check
      _
    $region191: #{encoder_v2_forward.1} parent=1 // pred_check_branch
      %471 = sbr.rel (0) target = $region193
    $region192: #{encoder_v2_forward.1} parent=1 // pred_region
      %472 = dma.done [#allocation24], 32
    $region193: #{encoder_v2_forward.1} parent=1 // pred_fallthru
      _
    // Predicated region
    $region194: #{encoder_v2_forward.1} parent=1 // pred_check
      _
    $region195: #{encoder_v2_forward.1} parent=1 // pred_check_branch
      %474 = sbr.rel (0) target = $region197
    $region196: #{encoder_v2_forward.1} parent=1 // pred_region
      %475 = dma.done [#allocation27], 32
    $region197: #{encoder_v2_forward.1} parent=1 // pred_fallthru
      _
    // Predicated region
    $region198: #{encoder_v2_forward.1} parent=1 // pred_check
      _
    $region199: #{encoder_v2_forward.1} parent=1 // pred_check_branch
      %477 = sbr.rel (0) target = $region201
    $region200: #{encoder_v2_forward.1} parent=1 // pred_region
      %478 = dma.done [#allocation27], 2048
    $region201: #{encoder_v2_forward.1} parent=1 // pred_fallthru
      _
    // Predicated region
    $region202: #{encoder_v2_forward.1} parent=1 // pred_check
      _
    $region203: #{encoder_v2_forward.1} parent=1 // pred_check_branch
      %480 = sbr.rel (0) target = $region205
    $region204: #{encoder_v2_forward.1} parent=1 // pred_region
      %481 = dma.done [#allocation30], 16
    $region205: #{encoder_v2_forward.1} parent=1 // pred_fallthru
      _
    // Predicated region
    $region206: #{encoder_v2_forward.1} parent=1 // pred_check
      _
    $region207: #{encoder_v2_forward.1} parent=1 // pred_check_branch
      %483 = sbr.rel (0) target = $region209
    $region208: #{encoder_v2_forward.1} parent=1 // pred_region
      %484 = dma.done [#allocation30], 16
    $region209: #{encoder_v2_forward.1} parent=1 // pred_fallthru
      _
    // Predicated region
    $region210: #{encoder_v2_forward.1} parent=1 // pred_check
      _
    $region211: #{encoder_v2_forward.1} parent=1 // pred_check_branch
      %486 = sbr.rel (0) target = $region213
    $region212: #{encoder_v2_forward.1} parent=1 // pred_region
      %487 = dma.done [#allocation33], 16
    $region213: #{encoder_v2_forward.1} parent=1 // pred_fallthru
      _
    // Predicated region
    $region214: #{encoder_v2_forward.1} parent=1 // pred_check
      _
    $region215: #{encoder_v2_forward.1} parent=1 // pred_check_branch
      %489 = sbr.rel (0) target = $region217
    $region216: #{encoder_v2_forward.1} parent=1 // pred_region
      %490 = dma.done [#allocation33], 1024
    $region217: #{encoder_v2_forward.1} parent=1 // pred_fallthru
      _
    // Predicated region
    $region218: #{encoder_v2_forward.1} parent=1 // pred_check
      _
    $region219: #{encoder_v2_forward.1} parent=1 // pred_check_branch
      %492 = sbr.rel (0) target = $region221
    $region220: #{encoder_v2_forward.1} parent=1 // pred_region
      %493 = dma.done [#allocation36], 16
    $region221: #{encoder_v2_forward.1} parent=1 // pred_fallthru
      _
    // Predicated region
    $region222: #{encoder_v2_forward.1} parent=1 // pred_check
      _
    $region223: #{encoder_v2_forward.1} parent=1 // pred_check_branch
      %495 = sbr.rel (0) target = $region225
    $region224: #{encoder_v2_forward.1} parent=1 // pred_region
      %496 = dma.done [#allocation36], 16
    $region225: #{encoder_v2_forward.1} parent=1 // pred_fallthru
      _
    // Predicated region
    $region226: #{encoder_v2_forward.1} parent=1 // pred_check
      _
    $region227: #{encoder_v2_forward.1} parent=1 // pred_check_branch
      %498 = sbr.rel (0) target = $region229
    $region228: #{encoder_v2_forward.1} parent=1 // pred_region
      %499 = dma.done [#allocation39], 16
    $region229: #{encoder_v2_forward.1} parent=1 // pred_fallthru
      _
    // Predicated region
    $region230: #{encoder_v2_forward.1} parent=1 // pred_check
      _
    $region231: #{encoder_v2_forward.1} parent=1 // pred_check_branch
      %501 = sbr.rel (0) target = $region233
    $region232: #{encoder_v2_forward.1} parent=1 // pred_region
      %502 = dma.done [#allocation39], 1024
    $region233: #{encoder_v2_forward.1} parent=1 // pred_fallthru
      _
    // Predicated region
    $region234: #{encoder_v2_forward.1} parent=1 // pred_check
      _
    $region235: #{encoder_v2_forward.1} parent=1 // pred_check_branch
      %504 = sbr.rel (0) target = $region237
    $region236: #{encoder_v2_forward.1} parent=1 // pred_region
      %505 = dma.done [#allocation42], 16
    $region237: #{encoder_v2_forward.1} parent=1 // pred_fallthru
      _
    // Predicated region
    $region238: #{encoder_v2_forward.1} parent=1 // pred_check
      _
    $region239: #{encoder_v2_forward.1} parent=1 // pred_check_branch
      %507 = sbr.rel (0) target = $region241
    $region240: #{encoder_v2_forward.1} parent=1 // pred_region
      %508 = dma.done [#allocation42], 16
    $region241: #{encoder_v2_forward.1} parent=1 // pred_fallthru
      _
    // Predicated region
    $region242: #{encoder_v2_forward.1} parent=1 // pred_check
      _
    $region243: #{encoder_v2_forward.1} parent=1 // pred_check_branch
      %510 = sbr.rel (0) target = $region245
    $region244: #{encoder_v2_forward.1} parent=1 // pred_region
      %511 = dma.done [#allocation45], 16
    $region245: #{encoder_v2_forward.1} parent=1 // pred_fallthru
      _
    // Predicated region
    $region246: #{encoder_v2_forward.1} parent=1 // pred_check
      _
    $region247: #{encoder_v2_forward.1} parent=1 // pred_check_branch
      %513 = sbr.rel (0) target = $region249
    $region248: #{encoder_v2_forward.1} parent=1 // pred_region
      %514 = dma.done [#allocation45], 1024
    $region249: #{encoder_v2_forward.1} parent=1 // pred_fallthru
      _
    // Predicated region
    $region250: #{encoder_v2_forward.1} parent=1 // pred_check
      _
    $region251: #{encoder_v2_forward.1} parent=1 // pred_check_branch
      %516 = sbr.rel (0) target = $region253
    $region252: #{encoder_v2_forward.1} parent=1 // pred_region
      %517 = dma.done [#allocation48], 16
    $region253: #{encoder_v2_forward.1} parent=1 // pred_fallthru
      _
    // Predicated region
    $region254: #{encoder_v2_forward.1} parent=1 // pred_check
      _
    $region255: #{encoder_v2_forward.1} parent=1 // pred_check_branch
      %519 = sbr.rel (0) target = $region257
    $region256: #{encoder_v2_forward.1} parent=1 // pred_region
      %520 = dma.done [#allocation48], 16
    $region257: #{encoder_v2_forward.1} parent=1 // pred_fallthru
      _
    // Predicated region
    $region258: #{encoder_v2_forward.1} parent=1 // pred_check
      _
    $region259: #{encoder_v2_forward.1} parent=1 // pred_check_branch
      %522 = sbr.rel (0) target = $region261
    $region260: #{encoder_v2_forward.1} parent=1 // pred_region
      %523 = dma.done [#allocation51], 16
    $region261: #{encoder_v2_forward.1} parent=1 // pred_fallthru
      _
    %v525 = vld [vmem:[%s1] sm:$0xff]
    %v526 = vld [vmem:[%s1 + $0x8] sm:$0xff]
    %v527 = vld [vmem:[%s1 + $0x10] sm:$0xff]
    %v528 = vld [vmem:[%s1 + $0x18] sm:$0xff]
    %v529 = vld [vmem:[%s1 + $0x20] sm:$0xff]
    %v530 = vld [vmem:[%s1 + $0x28] sm:$0xff]
    %v531 = vld [vmem:[%s1 + $0x30] sm:$0xff]
    %v532 = vld [vmem:[%s1 + $0x38] sm:$0xff]
    %v533 = vld [vmem:[%s1 + $0x40] sm:$0xff]
    %v534 = vld [vmem:[%s1 + $0x48] sm:$0xff]
    %v535 = vld [vmem:[%s1 + $0x50] sm:$0xff]
    %v536 = vld [vmem:[%s1 + $0x58] sm:$0xff]
    %v537 = vld [vmem:[%s1 + $0x60] sm:$0xff]
    %v538 = vld [vmem:[%s1 + $0x68] sm:$0xff]
    %v539 = vld [vmem:[%s1 + $0x70] sm:$0xff]
    %v540 = vld [vmem:[%s1 + $0x78] sm:$0xff]
    %v541 = vld [vmem:[%s1 + $0x80] sm:$0xff]
    %v542 = vld [vmem:[%s1 + $0x88] sm:$0xff]
    %v543 = vld [vmem:[%s1 + $0x90] sm:$0xff]
    %v544 = vpack.c.bf16 %v525, %v525
    %v545 = vpack.c.bf16 %v526, %v526
    %v546 = vpack.c.bf16 %v527, %v527
    %v547 = vpack.c.bf16 %v528, %v528
    %v548 = vpack.c.bf16 %v529, %v529
    %v549 = vpack.c.bf16 %v530, %v530
    %v550 = vpack.c.bf16 %v531, %v531
    %v551 = vpack.c.bf16 %v532, %v532
    %v552 = vpack.c.bf16 %v533, %v533
    %v553 = vpack.c.bf16 %v534, %v534
    %v554 = vpack.c.bf16 %v535, %v535
    %v555 = vpack.c.bf16 %v536, %v536
    %v556 = vpack.c.bf16 %v537, %v537
    %v557 = vpack.c.bf16 %v538, %v538
    %v558 = vpack.c.bf16 %v539, %v539
    %v559 = vpack.c.bf16 %v540, %v540
    %v560 = vpack.c.bf16 %v541, %v541
    %v561 = vpack.c.bf16 %v542, %v542
    %v562 = vpack.c.bf16 %v543, %v543
    %v563 = vld [vmem:[#allocation2] sm:$0xff]
    %v564 = vld [vmem:[#allocation2 + $0x8] sm:$0xff]
    %v565 = vld [vmem:[#allocation2 + $0x10] sm:$0xff]
    %v566 = vld [vmem:[#allocation2 + $0x18] sm:$0xff]
    %v567 = vld [vmem:[#allocation2 + $0x20] sm:$0xff]
    %v568 = vld [vmem:[#allocation2 + $0x28] sm:$0xff]
    %v569 = vld [vmem:[#allocation2 + $0x30] sm:$0xff]
    %v570 = vld [vmem:[#allocation2 + $0x38] sm:$0xff]
    %v571 = vld [vmem:[#allocation2 + $0x40] sm:$0xff]
    %v572 = vld [vmem:[#allocation2 + $0x48] sm:$0xff]
    %v573 = vld [vmem:[#allocation2 + $0x50] sm:$0xff]
    %v574 = vld [vmem:[#allocation2 + $0x58] sm:$0xff]
    %v575 = vld [vmem:[#allocation2 + $0x60] sm:$0xff]
    %v576 = vld [vmem:[#allocation2 + $0x68] sm:$0xff]
    %v577 = vld [vmem:[#allocation2 + $0x70] sm:$0xff]
    %v578 = vld [vmem:[#allocation2 + $0x78] sm:$0xff]
    %v579 = vld [vmem:[#allocation2 + $0x80] sm:$0xff]
    %v580 = vld [vmem:[#allocation2 + $0x88] sm:$0xff]
    %v581 = vld [vmem:[#allocation2 + $0x90] sm:$0xff]
    %v582 = vld [vmem:[#allocation2 + $0x98] sm:$0xff]
    %v583 = vld [vmem:[#allocation2 + $0xa0] sm:$0xff]
    %v584 = vld [vmem:[#allocation2 + $0xa8] sm:$0xff]
    %v585 = vld [vmem:[#allocation2 + $0xb0] sm:$0xff]
    %v586 = vld [vmem:[#allocation2 + $0xb8] sm:$0xff]
    %v587 = vld [vmem:[#allocation2 + $0xc0] sm:$0xff]
    %v588 = vld [vmem:[#allocation2 + $0xc8] sm:$0xff]
    %v589 = vld [vmem:[#allocation2 + $0xd0] sm:$0xff]
    %v590 = vld [vmem:[#allocation2 + $0xd8] sm:$0xff]
    %v591 = vld [vmem:[#allocation2 + $0xe0] sm:$0xff]
    %v592 = vld [vmem:[#allocation2 + $0xe8] sm:$0xff]
    %v593 = vld [vmem:[#allocation2 + $0xf0] sm:$0xff]
    %v594 = vld [vmem:[#allocation2 + $0xf8] sm:$0xff]
    %v595 = vld [vmem:[#allocation2 + $0x100] sm:$0xff]
    %v596 = vld [vmem:[#allocation2 + $0x108] sm:$0xff]
    %v597 = vld [vmem:[#allocation2 + $0x110] sm:$0xff]
    %v598 = vld [vmem:[#allocation2 + $0x118] sm:$0xff]
    %v599 = vld [vmem:[#allocation2 + $0x120] sm:$0xff]
    %v600 = vld [vmem:[#allocation2 + $0x128] sm:$0xff]
    %v601 = vld [vmem:[#allocation2 + $0x130] sm:$0xff]
    %v602 = vld [vmem:[#allocation2 + $0x138] sm:$0xff]
    %v603 = vld [vmem:[#allocation2 + $0x140] sm:$0xff]
    %v604 = vld [vmem:[#allocation2 + $0x148] sm:$0xff]
    %v605 = vld [vmem:[#allocation2 + $0x150] sm:$0xff]
    %v606 = vld [vmem:[#allocation2 + $0x158] sm:$0xff]
    %v607 = vld [vmem:[#allocation2 + $0x160] sm:$0xff]
    %v608 = vld [vmem:[#allocation2 + $0x168] sm:$0xff]
    %v609 = vld [vmem:[#allocation2 + $0x170] sm:$0xff]
    %v610 = vld [vmem:[#allocation2 + $0x178] sm:$0xff]
    %v611 = vld [vmem:[#allocation2 + $0x180] sm:$0xff]
    %v612 = vld [vmem:[#allocation2 + $0x188] sm:$0xff]
    %v613 = vld [vmem:[#allocation2 + $0x190] sm:$0xff]
    %v614 = vld [vmem:[#allocation2 + $0x198] sm:$0xff]
    %v615 = vld [vmem:[#allocation2 + $0x1a0] sm:$0xff]
    %v616 = vld [vmem:[#allocation2 + $0x1a8] sm:$0xff]
    %v617 = vld [vmem:[#allocation2 + $0x1b0] sm:$0xff]
    %v618 = vld [vmem:[#allocation2 + $0x1b8] sm:$0xff]
    %v619 = vld [vmem:[#allocation2 + $0x1c0] sm:$0xff]
    %v620 = vld [vmem:[#allocation2 + $0x1c8] sm:$0xff]
    %v621 = vld [vmem:[#allocation2 + $0x1d0] sm:$0xff]
    %v622 = vld [vmem:[#allocation2 + $0x1d8] sm:$0xff]
    %v623 = vld [vmem:[#allocation2 + $0x1e0] sm:$0xff]
    %v624 = vld [vmem:[#allocation2 + $0x1e8] sm:$0xff]
    %v625 = vld [vmem:[#allocation2 + $0x1f0] sm:$0xff]
    %v626 = vld [vmem:[#allocation2 + $0x1f8] sm:$0xff]
    %v627 = vld [vmem:[#allocation2 + $0x200] sm:$0xff]
    %v628 = vld [vmem:[#allocation2 + $0x208] sm:$0xff]
    %v629 = vld [vmem:[#allocation2 + $0x210] sm:$0xff]
    %v630 = vld [vmem:[#allocation2 + $0x218] sm:$0xff]
    %v631 = vld [vmem:[#allocation2 + $0x220] sm:$0xff]
    %v632 = vld [vmem:[#allocation2 + $0x228] sm:$0xff]
    %v633 = vld [vmem:[#allocation2 + $0x230] sm:$0xff]
    %v634 = vld [vmem:[#allocation2 + $0x238] sm:$0xff]
    %v635 = vld [vmem:[#allocation2 + $0x240] sm:$0xff]
    %v636 = vld [vmem:[#allocation2 + $0x248] sm:$0xff]
    %v637 = vld [vmem:[#allocation2 + $0x250] sm:$0xff]
    %v638 = vld [vmem:[#allocation2 + $0x258] sm:$0xff]
    %v639 = vld [vmem:[#allocation2 + $0x260] sm:$0xff]
    %v640 = vld [vmem:[#allocation2 + $0x268] sm:$0xff]
    %v641 = vld [vmem:[#allocation2 + $0x270] sm:$0xff]
    %v642 = vld [vmem:[#allocation2 + $0x278] sm:$0xff]
    %v643 = vld [vmem:[#allocation2 + $0x280] sm:$0xff]
    %v644 = vld [vmem:[#allocation2 + $0x288] sm:$0xff]
    %v645 = vld [vmem:[#allocation2 + $0x290] sm:$0xff]
    %v646 = vld [vmem:[#allocation2 + $0x298] sm:$0xff]
    %v647 = vld [vmem:[#allocation2 + $0x2a0] sm:$0xff]
    %v648 = vld [vmem:[#allocation2 + $0x2a8] sm:$0xff]
    %v649 = vld [vmem:[#allocation2 + $0x2b0] sm:$0xff]
    %v650 = vld [vmem:[#allocation2 + $0x2b8] sm:$0xff]
    %v651 = vld [vmem:[#allocation2 + $0x2c0] sm:$0xff]
    %v652 = vld [vmem:[#allocation2 + $0x2c8] sm:$0xff]
    %v653 = vld [vmem:[#allocation2 + $0x2d0] sm:$0xff]
    %v654 = vld [vmem:[#allocation2 + $0x2d8] sm:$0xff]
    %v655 = vld [vmem:[#allocation2 + $0x2e0] sm:$0xff]
    %v656 = vld [vmem:[#allocation2 + $0x2e8] sm:$0xff]
    %v657 = vld [vmem:[#allocation2 + $0x2f0] sm:$0xff]
    %v658 = vld [vmem:[#allocation2 + $0x2f8] sm:$0xff]
    %v659 = vld [vmem:[#allocation2 + $0x300] sm:$0xff]
    %v660 = vld [vmem:[#allocation2 + $0x308] sm:$0xff]
    %v661 = vld [vmem:[#allocation2 + $0x310] sm:$0xff]
    %v662 = vld [vmem:[#allocation2 + $0x318] sm:$0xff]
    %v663 = vld [vmem:[#allocation2 + $0x320] sm:$0xff]
    %v664 = vld [vmem:[#allocation2 + $0x328] sm:$0xff]
    %v665 = vld [vmem:[#allocation2 + $0x330] sm:$0xff]
    %v666 = vld [vmem:[#allocation2 + $0x338] sm:$0xff]
    %v667 = vld [vmem:[#allocation2 + $0x340] sm:$0xff]
    %v668 = vld [vmem:[#allocation2 + $0x348] sm:$0xff]
    %v669 = vld [vmem:[#allocation2 + $0x350] sm:$0xff]
    %v670 = vld [vmem:[#allocation2 + $0x358] sm:$0xff]
    %v671 = vld [vmem:[#allocation2 + $0x360] sm:$0xff]
    %v672 = vld [vmem:[#allocation2 + $0x368] sm:$0xff]
    %v673 = vld [vmem:[#allocation2 + $0x370] sm:$0xff]
    %v674 = vld [vmem:[#allocation2 + $0x378] sm:$0xff]
    %v675 = vld [vmem:[#allocation2 + $0x380] sm:$0xff]
    %v676 = vld [vmem:[#allocation2 + $0x388] sm:$0xff]
    %v677 = vld [vmem:[#allocation2 + $0x390] sm:$0xff]
    %v678 = vld [vmem:[#allocation2 + $0x398] sm:$0xff]
    %v679 = vld [vmem:[#allocation2 + $0x3a0] sm:$0xff]
    %v680 = vld [vmem:[#allocation2 + $0x3a8] sm:$0xff]
    %v681 = vld [vmem:[#allocation2 + $0x3b0] sm:$0xff]
    %v682 = vld [vmem:[#allocation2 + $0x3b8] sm:$0xff]
    %v683 = vld [vmem:[#allocation2 + $0x3c0] sm:$0xff]
    %v684 = vld [vmem:[#allocation2 + $0x3c8] sm:$0xff]
    %v685 = vld [vmem:[#allocation2 + $0x3d0] sm:$0xff]
    %v686 = vld [vmem:[#allocation2 + $0x3d8] sm:$0xff]
    %v687 = vld [vmem:[#allocation2 + $0x3e0] sm:$0xff]
    %v688 = vld [vmem:[#allocation2 + $0x3e8] sm:$0xff]
    %v689 = vld [vmem:[#allocation2 + $0x3f0] sm:$0xff]
    %v690 = vld [vmem:[#allocation2 + $0x3f8] sm:$0xff]
    %v691 = vld [vmem:[#allocation2 + $0x400] sm:$0xff]
    %v692 = vld [vmem:[#allocation2 + $0x408] sm:$0xff]
    %v693 = vld [vmem:[#allocation2 + $0x410] sm:$0xff]
    %v694 = vld [vmem:[#allocation2 + $0x418] sm:$0xff]
    %v695 = vld [vmem:[#allocation2 + $0x420] sm:$0xff]
    %v696 = vld [vmem:[#allocation2 + $0x428] sm:$0xff]
    %v697 = vld [vmem:[#allocation2 + $0x430] sm:$0xff]
    %v698 = vld [vmem:[#allocation2 + $0x438] sm:$0xff]
    %v699 = vld [vmem:[#allocation2 + $0x440] sm:$0xff]
    %v700 = vld [vmem:[#allocation2 + $0x448] sm:$0xff]
    %v701 = vld [vmem:[#allocation2 + $0x450] sm:$0xff]
    %v702 = vld [vmem:[#allocation2 + $0x458] sm:$0xff]
    %v703 = vld [vmem:[#allocation2 + $0x460] sm:$0xff]
    %v704 = vld [vmem:[#allocation2 + $0x468] sm:$0xff]
    %v705 = vld [vmem:[#allocation2 + $0x470] sm:$0xff]
    %v706 = vld [vmem:[#allocation2 + $0x478] sm:$0xff]
    %v707 = vld [vmem:[#allocation2 + $0x480] sm:$0xff]
    %v708 = vld [vmem:[#allocation2 + $0x488] sm:$0xff]
    %v709 = vld [vmem:[#allocation2 + $0x490] sm:$0xff]
    %v710 = vld [vmem:[#allocation2 + $0x498] sm:$0xff]
    %v711 = vld [vmem:[#allocation2 + $0x4a0] sm:$0xff]
    %v712 = vld [vmem:[#allocation2 + $0x4a8] sm:$0xff]
    %v713 = vld [vmem:[#allocation2 + $0x4b0] sm:$0xff]
    %v714 = vld [vmem:[#allocation2 + $0x4b8] sm:$0xff]
    %v715 = vld [vmem:[#allocation2 + $0x4c0] sm:$0xff]
    %v716 = vld [vmem:[#allocation2 + $0x4c8] sm:$0xff]
    %v717 = vld [vmem:[#allocation2 + $0x4d0] sm:$0xff]
    %v718 = vld [vmem:[#allocation2 + $0x4d8] sm:$0xff]
    %v719 = vld [vmem:[#allocation2 + $0x4e0] sm:$0xff]
    %v720 = vld [vmem:[#allocation2 + $0x4e8] sm:$0xff]
    %v721 = vld [vmem:[#allocation2 + $0x4f0] sm:$0xff]
    %v722 = vld [vmem:[#allocation2 + $0x4f8] sm:$0xff]
    %v723 = vld [vmem:[#allocation2 + $0x500] sm:$0xff]
    %v724 = vld [vmem:[#allocation2 + $0x508] sm:$0xff]
    %v725 = vld [vmem:[#allocation2 + $0x510] sm:$0xff]
    %v726 = vld [vmem:[#allocation2 + $0x518] sm:$0xff]
    %v727 = vld [vmem:[#allocation2 + $0x520] sm:$0xff]
    %v728 = vld [vmem:[#allocation2 + $0x528] sm:$0xff]
    %v729 = vld [vmem:[#allocation2 + $0x530] sm:$0xff]
    %v730 = vld [vmem:[#allocation2 + $0x538] sm:$0xff]
    %v731 = vld [vmem:[#allocation2 + $0x540] sm:$0xff]
    %v732 = vld [vmem:[#allocation2 + $0x548] sm:$0xff]
    %v733 = vld [vmem:[#allocation2 + $0x550] sm:$0xff]
    %v734 = vld [vmem:[#allocation2 + $0x558] sm:$0xff]
    %v735 = vld [vmem:[#allocation2 + $0x560] sm:$0xff]
    %v736 = vld [vmem:[#allocation2 + $0x568] sm:$0xff]
    %v737 = vld [vmem:[#allocation2 + $0x570] sm:$0xff]
    %v738 = vld [vmem:[#allocation2 + $0x578] sm:$0xff]
    %v739 = vld [vmem:[#allocation2 + $0x580] sm:$0xff]
    %v740 = vld [vmem:[#allocation2 + $0x588] sm:$0xff]
    %v741 = vld [vmem:[#allocation2 + $0x590] sm:$0xff]
    %v742 = vld [vmem:[#allocation2 + $0x598] sm:$0xff]
    %v743 = vld [vmem:[#allocation2 + $0x5a0] sm:$0xff]
    %v744 = vld [vmem:[#allocation2 + $0x5a8] sm:$0xff]
    %v745 = vld [vmem:[#allocation2 + $0x5b0] sm:$0xff]
    %v746 = vld [vmem:[#allocation2 + $0x5b8] sm:$0xff]
    %v747 = vld [vmem:[#allocation2 + $0x5c0] sm:$0xff]
    %v748 = vld [vmem:[#allocation2 + $0x5c8] sm:$0xff]
    %v749 = vld [vmem:[#allocation2 + $0x5d0] sm:$0xff]
    %v750 = vld [vmem:[#allocation2 + $0x5d8] sm:$0xff]
    %v751 = vld [vmem:[#allocation2 + $0x5e0] sm:$0xff]
    %v752 = vld [vmem:[#allocation2 + $0x5e8] sm:$0xff]
    %v753 = vld [vmem:[#allocation2 + $0x5f0] sm:$0xff]
    %v754 = vld [vmem:[#allocation2 + $0x5f8] sm:$0xff]
    %v755 = vld [vmem:[#allocation2 + $0x600] sm:$0xff]
    %v756 = vld [vmem:[#allocation2 + $0x608] sm:$0xff]
    %v757 = vld [vmem:[#allocation2 + $0x610] sm:$0xff]
    %v758 = vld [vmem:[#allocation2 + $0x618] sm:$0xff]
    %v759 = vld [vmem:[#allocation2 + $0x620] sm:$0xff]
    %v760 = vld [vmem:[#allocation2 + $0x628] sm:$0xff]
    %v761 = vld [vmem:[#allocation2 + $0x630] sm:$0xff]
    %v762 = vld [vmem:[#allocation2 + $0x638] sm:$0xff]
    %v763 = vld [vmem:[#allocation2 + $0x640] sm:$0xff]
    %v764 = vld [vmem:[#allocation2 + $0x648] sm:$0xff]
    %v765 = vld [vmem:[#allocation2 + $0x650] sm:$0xff]
    %v766 = vld [vmem:[#allocation2 + $0x658] sm:$0xff]
    %v767 = vld [vmem:[#allocation2 + $0x660] sm:$0xff]
    %v768 = vld [vmem:[#allocation2 + $0x668] sm:$0xff]
    %v769 = vld [vmem:[#allocation2 + $0x670] sm:$0xff]
    %v770 = vld [vmem:[#allocation2 + $0x678] sm:$0xff]
    %v771 = vld [vmem:[#allocation2 + $0x680] sm:$0xff]
    %v772 = vld [vmem:[#allocation2 + $0x688] sm:$0xff]
    %v773 = vld [vmem:[#allocation2 + $0x690] sm:$0xff]
    %v774 = vld [vmem:[#allocation2 + $0x698] sm:$0xff]
    %v775 = vld [vmem:[#allocation2 + $0x6a0] sm:$0xff]
    %v776 = vld [vmem:[#allocation2 + $0x6a8] sm:$0xff]
    %v777 = vld [vmem:[#allocation2 + $0x6b0] sm:$0xff]
    %v778 = vld [vmem:[#allocation2 + $0x6b8] sm:$0xff]
    %v779 = vld [vmem:[#allocation2 + $0x6c0] sm:$0xff]
    %v780 = vld [vmem:[#allocation2 + $0x6c8] sm:$0xff]
    %v781 = vld [vmem:[#allocation2 + $0x6d0] sm:$0xff]
    %v782 = vld [vmem:[#allocation2 + $0x6d8] sm:$0xff]
    %v783 = vld [vmem:[#allocation2 + $0x6e0] sm:$0xff]
    %v784 = vld [vmem:[#allocation2 + $0x6e8] sm:$0xff]
    %v785 = vld [vmem:[#allocation2 + $0x6f0] sm:$0xff]
    %v786 = vld [vmem:[#allocation2 + $0x6f8] sm:$0xff]
    %v787 = vld [vmem:[#allocation2 + $0x700] sm:$0xff]
    %v788 = vld [vmem:[#allocation2 + $0x708] sm:$0xff]
    %v789 = vld [vmem:[#allocation2 + $0x710] sm:$0xff]
    %v790 = vld [vmem:[#allocation2 + $0x718] sm:$0xff]
    %v791 = vld [vmem:[#allocation2 + $0x720] sm:$0xff]
    %v792 = vld [vmem:[#allocation2 + $0x728] sm:$0xff]
    %v793 = vld [vmem:[#allocation2 + $0x730] sm:$0xff]
    %v794 = vld [vmem:[#allocation2 + $0x738] sm:$0xff]
    %v795 = vld [vmem:[#allocation2 + $0x740] sm:$0xff]
    %v796 = vld [vmem:[#allocation2 + $0x748] sm:$0xff]
    %v797 = vld [vmem:[#allocation2 + $0x750] sm:$0xff]
    %v798 = vld [vmem:[#allocation2 + $0x758] sm:$0xff]
    %v799 = vld [vmem:[#allocation2 + $0x760] sm:$0xff]
    %v800 = vld [vmem:[#allocation2 + $0x768] sm:$0xff]
    %v801 = vld [vmem:[#allocation2 + $0x770] sm:$0xff]
    %v802 = vld [vmem:[#allocation2 + $0x778] sm:$0xff]
    %v803 = vld [vmem:[#allocation2 + $0x780] sm:$0xff]
    %v804 = vld [vmem:[#allocation2 + $0x788] sm:$0xff]
    %v805 = vld [vmem:[#allocation2 + $0x790] sm:$0xff]
    %v806 = vld [vmem:[#allocation2 + $0x798] sm:$0xff]
    %v807 = vld [vmem:[#allocation2 + $0x7a0] sm:$0xff]
    %v808 = vld [vmem:[#allocation2 + $0x7a8] sm:$0xff]
    %v809 = vld [vmem:[#allocation2 + $0x7b0] sm:$0xff]
    %v810 = vld [vmem:[#allocation2 + $0x7b8] sm:$0xff]
    %v811 = vld [vmem:[#allocation2 + $0x7c0] sm:$0xff]
    %v812 = vld [vmem:[#allocation2 + $0x7c8] sm:$0xff]
    %v813 = vld [vmem:[#allocation2 + $0x7d0] sm:$0xff]
    %v814 = vld [vmem:[#allocation2 + $0x7d8] sm:$0xff]
    %v815 = vld [vmem:[#allocation2 + $0x7e0] sm:$0xff]
    %v816 = vld [vmem:[#allocation2 + $0x7e8] sm:$0xff]
    %v817 = vld [vmem:[#allocation2 + $0x7f0] sm:$0xff]
    %v818 = vld [vmem:[#allocation2 + $0x7f8] sm:$0xff]
    %v819 = vld [vmem:[#allocation2 + $0x800] sm:$0xff]
    %v820 = vld [vmem:[#allocation2 + $0x808] sm:$0xff]
    %v821 = vld [vmem:[#allocation2 + $0x810] sm:$0xff]
    %v822 = vld [vmem:[#allocation2 + $0x818] sm:$0xff]
    %v823 = vld [vmem:[#allocation2 + $0x820] sm:$0xff]
    %v824 = vld [vmem:[#allocation2 + $0x828] sm:$0xff]
    %v825 = vld [vmem:[#allocation2 + $0x830] sm:$0xff]
    %v826 = vld [vmem:[#allocation2 + $0x838] sm:$0xff]
    %v827 = vld [vmem:[#allocation2 + $0x840] sm:$0xff]
    %v828 = vld [vmem:[#allocation2 + $0x848] sm:$0xff]
    %v829 = vld [vmem:[#allocation2 + $0x850] sm:$0xff]
    %v830 = vld [vmem:[#allocation2 + $0x858] sm:$0xff]
    %v831 = vld [vmem:[#allocation2 + $0x860] sm:$0xff]
    %v832 = vld [vmem:[#allocation2 + $0x868] sm:$0xff]
    %v833 = vld [vmem:[#allocation2 + $0x870] sm:$0xff]
    %v834 = vld [vmem:[#allocation2 + $0x878] sm:$0xff]
    %v835 = vld [vmem:[#allocation2 + $0x880] sm:$0xff]
    %v836 = vld [vmem:[#allocation2 + $0x888] sm:$0xff]
    %v837 = vld [vmem:[#allocation2 + $0x890] sm:$0xff]
    %v838 = vld [vmem:[#allocation2 + $0x898] sm:$0xff]
    %v839 = vld [vmem:[#allocation2 + $0x8a0] sm:$0xff]
    %v840 = vld [vmem:[#allocation2 + $0x8a8] sm:$0xff]
    %v841 = vld [vmem:[#allocation2 + $0x8b0] sm:$0xff]
    %v842 = vld [vmem:[#allocation2 + $0x8b8] sm:$0xff]
    %v843 = vld [vmem:[#allocation2 + $0x8c0] sm:$0xff]
    %v844 = vld [vmem:[#allocation2 + $0x8c8] sm:$0xff]
    %v845 = vld [vmem:[#allocation2 + $0x8d0] sm:$0xff]
    %v846 = vld [vmem:[#allocation2 + $0x8d8] sm:$0xff]
    %v847 = vld [vmem:[#allocation2 + $0x8e0] sm:$0xff]
    %v848 = vld [vmem:[#allocation2 + $0x8e8] sm:$0xff]
    %v849 = vld [vmem:[#allocation2 + $0x8f0] sm:$0xff]
    %v850 = vld [vmem:[#allocation2 + $0x8f8] sm:$0xff]
    %v851 = vld [vmem:[#allocation2 + $0x900] sm:$0xff]
    %v852 = vld [vmem:[#allocation2 + $0x908] sm:$0xff]
    %v853 = vld [vmem:[#allocation2 + $0x910] sm:$0xff]
    %v854 = vld [vmem:[#allocation2 + $0x918] sm:$0xff]
    %v855 = vld [vmem:[#allocation2 + $0x920] sm:$0xff]
    %v856 = vld [vmem:[#allocation2 + $0x928] sm:$0xff]
    %v857 = vld [vmem:[#allocation2 + $0x930] sm:$0xff]
    %v858 = vld [vmem:[#allocation2 + $0x938] sm:$0xff]
    %v859 = vld [vmem:[#allocation2 + $0x940] sm:$0xff]
    %v860 = vld [vmem:[#allocation2 + $0x948] sm:$0xff]
    %v861 = vld [vmem:[#allocation2 + $0x950] sm:$0xff]
    %v862 = vld [vmem:[#allocation2 + $0x958] sm:$0xff]
    %v863 = vld [vmem:[#allocation2 + $0x960] sm:$0xff]
    %v864 = vld [vmem:[#allocation2 + $0x968] sm:$0xff]
    %v865 = vld [vmem:[#allocation2 + $0x970] sm:$0xff]
    %v866 = vld [vmem:[#allocation2 + $0x978] sm:$0xff]
    %v867 = vld [vmem:[#allocation2 + $0x980] sm:$0xff]
    %v868 = vld [vmem:[#allocation2 + $0x988] sm:$0xff]
    %v869 = vld [vmem:[#allocation2 + $0x990] sm:$0xff]
    %v870 = vld [vmem:[#allocation2 + $0x998] sm:$0xff]
    %v871 = vld [vmem:[#allocation2 + $0x9a0] sm:$0xff]
    %v872 = vld [vmem:[#allocation2 + $0x9a8] sm:$0xff]
    %v873 = vld [vmem:[#allocation2 + $0x9b0] sm:$0xff]
    %v874 = vld [vmem:[#allocation2 + $0x9b8] sm:$0xff]
    %v875 = vld [vmem:[#allocation2 + $0x9c0] sm:$0xff]
    %v876 = vld [vmem:[#allocation2 + $0x9c8] sm:$0xff]
    %v877 = vld [vmem:[#allocation2 + $0x9d0] sm:$0xff]
    %v878 = vld [vmem:[#allocation2 + $0x9d8] sm:$0xff]
    %v879 = vld [vmem:[#allocation2 + $0x9e0] sm:$0xff]
    %v880 = vld [vmem:[#allocation2 + $0x9e8] sm:$0xff]
    %v881 = vld [vmem:[#allocation2 + $0x9f0] sm:$0xff]
    %v882 = vld [vmem:[#allocation2 + $0x9f8] sm:$0xff]
    %v883 = vld [vmem:[#allocation2 + $0xa00] sm:$0xff]
    %v884 = vld [vmem:[#allocation2 + $0xa08] sm:$0xff]
    %v885 = vld [vmem:[#allocation2 + $0xa10] sm:$0xff]
    %v886 = vld [vmem:[#allocation2 + $0xa18] sm:$0xff]
    %v887 = vld [vmem:[#allocation2 + $0xa20] sm:$0xff]
    %v888 = vld [vmem:[#allocation2 + $0xa28] sm:$0xff]
    %v889 = vld [vmem:[#allocation2 + $0xa30] sm:$0xff]
    %v890 = vld [vmem:[#allocation2 + $0xa38] sm:$0xff]
    %v891 = vld [vmem:[#allocation2 + $0xa40] sm:$0xff]
    %v892 = vld [vmem:[#allocation2 + $0xa48] sm:$0xff]
    %v893 = vld [vmem:[#allocation2 + $0xa50] sm:$0xff]
    %v894 = vld [vmem:[#allocation2 + $0xa58] sm:$0xff]
    %v895 = vld [vmem:[#allocation2 + $0xa60] sm:$0xff]
    %v896 = vld [vmem:[#allocation2 + $0xa68] sm:$0xff]
    %v897 = vld [vmem:[#allocation2 + $0xa70] sm:$0xff]
    %v898 = vld [vmem:[#allocation2 + $0xa78] sm:$0xff]
    %v899 = vld [vmem:[#allocation2 + $0xa80] sm:$0xff]
    %v900 = vld [vmem:[#allocation2 + $0xa88] sm:$0xff]
    %v901 = vld [vmem:[#allocation2 + $0xa90] sm:$0xff]
    %v902 = vld [vmem:[#allocation2 + $0xa98] sm:$0xff]
    %v903 = vld [vmem:[#allocation2 + $0xaa0] sm:$0xff]
    %v904 = vld [vmem:[#allocation2 + $0xaa8] sm:$0xff]
    %v905 = vld [vmem:[#allocation2 + $0xab0] sm:$0xff]
    %v906 = vld [vmem:[#allocation2 + $0xab8] sm:$0xff]
    %v907 = vld [vmem:[#allocation2 + $0xac0] sm:$0xff]
    %v908 = vld [vmem:[#allocation2 + $0xac8] sm:$0xff]
    %v909 = vld [vmem:[#allocation2 + $0xad0] sm:$0xff]
    %v910 = vld [vmem:[#allocation2 + $0xad8] sm:$0xff]
    %v911 = vld [vmem:[#allocation2 + $0xae0] sm:$0xff]
    %v912 = vld [vmem:[#allocation2 + $0xae8] sm:$0xff]
    %v913 = vld [vmem:[#allocation2 + $0xaf0] sm:$0xff]
    %v914 = vld [vmem:[#allocation2 + $0xaf8] sm:$0xff]
    %v915 = vld [vmem:[#allocation2 + $0xb00] sm:$0xff]
    %v916 = vld [vmem:[#allocation2 + $0xb08] sm:$0xff]
    %v917 = vld [vmem:[#allocation2 + $0xb10] sm:$0xff]
    %v918 = vld [vmem:[#allocation2 + $0xb18] sm:$0xff]
    %v919 = vld [vmem:[#allocation2 + $0xb20] sm:$0xff]
    %v920 = vld [vmem:[#allocation2 + $0xb28] sm:$0xff]
    %v921 = vld [vmem:[#allocation2 + $0xb30] sm:$0xff]
    %v922 = vld [vmem:[#allocation2 + $0xb38] sm:$0xff]
    %v923 = vld [vmem:[#allocation2 + $0xb40] sm:$0xff]
    %v924 = vld [vmem:[#allocation2 + $0xb48] sm:$0xff]
    %v925 = vld [vmem:[#allocation2 + $0xb50] sm:$0xff]
    %v926 = vld [vmem:[#allocation2 + $0xb58] sm:$0xff]
    %v927 = vld [vmem:[#allocation2 + $0xb60] sm:$0xff]
    %v928 = vld [vmem:[#allocation2 + $0xb68] sm:$0xff]
    %v929 = vld [vmem:[#allocation2 + $0xb70] sm:$0xff]
    %v930 = vld [vmem:[#allocation2 + $0xb78] sm:$0xff]
    %v931 = vld [vmem:[#allocation2 + $0xb80] sm:$0xff]
    %v932 = vld [vmem:[#allocation2 + $0xb88] sm:$0xff]
    %v933 = vld [vmem:[#allocation2 + $0xb90] sm:$0xff]
    %v934 = vld [vmem:[#allocation2 + $0xb98] sm:$0xff]
    %v935 = vld [vmem:[#allocation2 + $0xba0] sm:$0xff]
    %v936 = vld [vmem:[#allocation2 + $0xba8] sm:$0xff]
    %v937 = vld [vmem:[#allocation2 + $0xbb0] sm:$0xff]
    %v938 = vld [vmem:[#allocation2 + $0xbb8] sm:$0xff]
    %v939 = vld [vmem:[#allocation2 + $0xbc0] sm:$0xff]
    %v940 = vld [vmem:[#allocation2 + $0xbc8] sm:$0xff]
    %v941 = vld [vmem:[#allocation2 + $0xbd0] sm:$0xff]
    %v942 = vld [vmem:[#allocation2 + $0xbd8] sm:$0xff]
    %v943 = vld [vmem:[#allocation2 + $0xbe0] sm:$0xff]
    %v944 = vld [vmem:[#allocation2 + $0xbe8] sm:$0xff]
    %v945 = vld [vmem:[#allocation2 + $0xbf0] sm:$0xff]
    %v946 = vld [vmem:[#allocation2 + $0xbf8] sm:$0xff]
    %v947 = vld [vmem:[#allocation2 + $0xc00] sm:$0xff]
    %v948 = vld [vmem:[#allocation2 + $0xc08] sm:$0xff]
    %v949 = vld [vmem:[#allocation2 + $0xc10] sm:$0xff]
    %v950 = vld [vmem:[#allocation2 + $0xc18] sm:$0xff]
    %v951 = vld [vmem:[#allocation2 + $0xc20] sm:$0xff]
    %v952 = vld [vmem:[#allocation2 + $0xc28] sm:$0xff]
    %v953 = vld [vmem:[#allocation2 + $0xc30] sm:$0xff]
    %v954 = vld [vmem:[#allocation2 + $0xc38] sm:$0xff]
    %v955 = vld [vmem:[#allocation2 + $0xc40] sm:$0xff]
    %v956 = vld [vmem:[#allocation2 + $0xc48] sm:$0xff]
    %v957 = vld [vmem:[#allocation2 + $0xc50] sm:$0xff]
    %v958 = vld [vmem:[#allocation2 + $0xc58] sm:$0xff]
    %v959 = vld [vmem:[#allocation2 + $0xc60] sm:$0xff]
    %v960 = vld [vmem:[#allocation2 + $0xc68] sm:$0xff]
    %v961 = vld [vmem:[#allocation2 + $0xc70] sm:$0xff]
    %v962 = vld [vmem:[#allocation2 + $0xc78] sm:$0xff]
    %v963 = vld [vmem:[#allocation2 + $0xc80] sm:$0xff]
    %v964 = vld [vmem:[#allocation2 + $0xc88] sm:$0xff]
    %v965 = vld [vmem:[#allocation2 + $0xc90] sm:$0xff]
    %v966 = vld [vmem:[#allocation2 + $0xc98] sm:$0xff]
    %v967 = vld [vmem:[#allocation2 + $0xca0] sm:$0xff]
    %v968 = vld [vmem:[#allocation2 + $0xca8] sm:$0xff]
    %v969 = vld [vmem:[#allocation2 + $0xcb0] sm:$0xff]
    %v970 = vld [vmem:[#allocation2 + $0xcb8] sm:$0xff]
    %v971 = vld [vmem:[#allocation2 + $0xcc0] sm:$0xff]
    %v972 = vld [vmem:[#allocation2 + $0xcc8] sm:$0xff]
    %v973 = vld [vmem:[#allocation2 + $0xcd0] sm:$0xff]
    %v974 = vld [vmem:[#allocation2 + $0xcd8] sm:$0xff]
    %v975 = vld [vmem:[#allocation2 + $0xce0] sm:$0xff]
    %v976 = vld [vmem:[#allocation2 + $0xce8] sm:$0xff]
    %v977 = vld [vmem:[#allocation2 + $0xcf0] sm:$0xff]
    %v978 = vld [vmem:[#allocation2 + $0xcf8] sm:$0xff]
    %v979 = vld [vmem:[#allocation2 + $0xd00] sm:$0xff]
    %v980 = vld [vmem:[#allocation2 + $0xd08] sm:$0xff]
    %v981 = vld [vmem:[#allocation2 + $0xd10] sm:$0xff]
    %v982 = vld [vmem:[#allocation2 + $0xd18] sm:$0xff]
    %v983 = vld [vmem:[#allocation2 + $0xd20] sm:$0xff]
    %v984 = vld [vmem:[#allocation2 + $0xd28] sm:$0xff]
    %v985 = vld [vmem:[#allocation2 + $0xd30] sm:$0xff]
    %v986 = vld [vmem:[#allocation2 + $0xd38] sm:$0xff]
    %v987 = vld [vmem:[#allocation2 + $0xd40] sm:$0xff]
    %v988 = vld [vmem:[#allocation2 + $0xd48] sm:$0xff]
    %v989 = vld [vmem:[#allocation2 + $0xd50] sm:$0xff]
    %v990 = vld [vmem:[#allocation2 + $0xd58] sm:$0xff]
    %v991 = vld [vmem:[#allocation2 + $0xd60] sm:$0xff]
    %v992 = vld [vmem:[#allocation2 + $0xd68] sm:$0xff]
    %v993 = vld [vmem:[#allocation2 + $0xd70] sm:$0xff]
    %v994 = vld [vmem:[#allocation2 + $0xd78] sm:$0xff]
    %v995 = vld [vmem:[#allocation2 + $0xd80] sm:$0xff]
    %v996 = vld [vmem:[#allocation2 + $0xd88] sm:$0xff]
    %v997 = vld [vmem:[#allocation2 + $0xd90] sm:$0xff]
    %v998 = vld [vmem:[#allocation2 + $0xd98] sm:$0xff]
    %v999 = vld [vmem:[#allocation2 + $0xda0] sm:$0xff]
    %v1000 = vld [vmem:[#allocation2 + $0xda8] sm:$0xff]
    %v1001 = vld [vmem:[#allocation2 + $0xdb0] sm:$0xff]
    %v1002 = vld [vmem:[#allocation2 + $0xdb8] sm:$0xff]
    %v1003 = vld [vmem:[#allocation2 + $0xdc0] sm:$0xff]
    %v1004 = vld [vmem:[#allocation2 + $0xdc8] sm:$0xff]
    %v1005 = vld [vmem:[#allocation2 + $0xdd0] sm:$0xff]
    %v1006 = vld [vmem:[#allocation2 + $0xdd8] sm:$0xff]
    %v1007 = vld [vmem:[#allocation2 + $0xde0] sm:$0xff]
    %v1008 = vld [vmem:[#allocation2 + $0xde8] sm:$0xff]
    %v1009 = vld [vmem:[#allocation2 + $0xdf0] sm:$0xff]
    %v1010 = vld [vmem:[#allocation2 + $0xdf8] sm:$0xff]
    %v1011 = vld [vmem:[#allocation2 + $0xe00] sm:$0xff]
    %v1012 = vld [vmem:[#allocation2 + $0xe08] sm:$0xff]
    %v1013 = vld [vmem:[#allocation2 + $0xe10] sm:$0xff]
    %v1014 = vld [vmem:[#allocation2 + $0xe18] sm:$0xff]
    %v1015 = vld [vmem:[#allocation2 + $0xe20] sm:$0xff]
    %v1016 = vld [vmem:[#allocation2 + $0xe28] sm:$0xff]
    %v1017 = vld [vmem:[#allocation2 + $0xe30] sm:$0xff]
    %v1018 = vld [vmem:[#allocation2 + $0xe38] sm:$0xff]
    %v1019 = vld [vmem:[#allocation2 + $0xe40] sm:$0xff]
    %v1020 = vld [vmem:[#allocation2 + $0xe48] sm:$0xff]
    %v1021 = vld [vmem:[#allocation2 + $0xe50] sm:$0xff]
    %v1022 = vld [vmem:[#allocation2 + $0xe58] sm:$0xff]
    %v1023 = vld [vmem:[#allocation2 + $0xe60] sm:$0xff]
    %v1024 = vld [vmem:[#allocation2 + $0xe68] sm:$0xff]
    %v1025 = vld [vmem:[#allocation2 + $0xe70] sm:$0xff]
    %v1026 = vld [vmem:[#allocation2 + $0xe78] sm:$0xff]
    %v1027 = vld [vmem:[#allocation2 + $0xe80] sm:$0xff]
    %v1028 = vld [vmem:[#allocation2 + $0xe88] sm:$0xff]
    %v1029 = vld [vmem:[#allocation2 + $0xe90] sm:$0xff]
    %v1030 = vld [vmem:[#allocation2 + $0xe98] sm:$0xff]
    %v1031 = vld [vmem:[#allocation2 + $0xea0] sm:$0xff]
    %v1032 = vld [vmem:[#allocation2 + $0xea8] sm:$0xff]
    %v1033 = vld [vmem:[#allocation2 + $0xeb0] sm:$0xff]
    %v1034 = vld [vmem:[#allocation2 + $0xeb8] sm:$0xff]
    %v1035 = vld [vmem:[#allocation2 + $0xec0] sm:$0xff]
    %v1036 = vld [vmem:[#allocation2 + $0xec8] sm:$0xff]
    %v1037 = vld [vmem:[#allocation2 + $0xed0] sm:$0xff]
    %v1038 = vld [vmem:[#allocation2 + $0xed8] sm:$0xff]
    %v1039 = vld [vmem:[#allocation2 + $0xee0] sm:$0xff]
    %v1040 = vld [vmem:[#allocation2 + $0xee8] sm:$0xff]
    %v1041 = vld [vmem:[#allocation2 + $0xef0] sm:$0xff]
    %v1042 = vld [vmem:[#allocation2 + $0xef8] sm:$0xff]
    %v1043 = vld [vmem:[#allocation2 + $0xf00] sm:$0xff]
    %v1044 = vld [vmem:[#allocation2 + $0xf08] sm:$0xff]
    %v1045 = vld [vmem:[#allocation2 + $0xf10] sm:$0xff]
    %v1046 = vld [vmem:[#allocation2 + $0xf18] sm:$0xff]
    %v1047 = vld [vmem:[#allocation2 + $0xf20] sm:$0xff]
    %v1048 = vld [vmem:[#allocation2 + $0xf28] sm:$0xff]
    %v1049 = vld [vmem:[#allocation2 + $0xf30] sm:$0xff]
    %v1050 = vld [vmem:[#allocation2 + $0xf38] sm:$0xff]
    %v1051 = vld [vmem:[#allocation2 + $0xf40] sm:$0xff]
    %v1052 = vld [vmem:[#allocation2 + $0xf48] sm:$0xff]
    %v1053 = vld [vmem:[#allocation2 + $0xf50] sm:$0xff]
    %v1054 = vld [vmem:[#allocation2 + $0xf58] sm:$0xff]
    %v1055 = vld [vmem:[#allocation2 + $0xf60] sm:$0xff]
    %v1056 = vld [vmem:[#allocation2 + $0xf68] sm:$0xff]
    %v1057 = vld [vmem:[#allocation2 + $0xf70] sm:$0xff]
    %v1058 = vld [vmem:[#allocation2 + $0xf78] sm:$0xff]
    %v1059 = vld [vmem:[#allocation2 + $0xf80] sm:$0xff]
    %v1060 = vld [vmem:[#allocation2 + $0xf88] sm:$0xff]
    %v1061 = vld [vmem:[#allocation2 + $0xf90] sm:$0xff]
    %v1062 = vld [vmem:[#allocation2 + $0xf98] sm:$0xff]
    %v1063 = vld [vmem:[#allocation2 + $0xfa0] sm:$0xff]
    %v1064 = vld [vmem:[#allocation2 + $0xfa8] sm:$0xff]
    %v1065 = vld [vmem:[#allocation2 + $0xfb0] sm:$0xff]
    %v1066 = vld [vmem:[#allocation2 + $0xfb8] sm:$0xff]
    %v1067 = vld [vmem:[#allocation2 + $0xfc0] sm:$0xff]
    %v1068 = vld [vmem:[#allocation2 + $0xfc8] sm:$0xff]
    %v1069 = vld [vmem:[#allocation2 + $0xfd0] sm:$0xff]
    %v1070 = vld [vmem:[#allocation2 + $0xfd8] sm:$0xff]
    %v1071 = vld [vmem:[#allocation2 + $0xfe0] sm:$0xff]
    %v1072 = vld [vmem:[#allocation2 + $0xfe8] sm:$0xff]
    %v1073 = vld [vmem:[#allocation2 + $0xff0] sm:$0xff]
    %v1074 = vld [vmem:[#allocation2 + $0xff8] sm:$0xff]
    %v1075 = vld [vmem:[#allocation2 + $0x1000] sm:$0xff]
    %v1076 = vld [vmem:[#allocation2 + $0x1008] sm:$0xff]
    %v1077 = vld [vmem:[#allocation2 + $0x1010] sm:$0xff]
    %v1078 = vld [vmem:[#allocation2 + $0x1018] sm:$0xff]
    %v1079 = vld [vmem:[#allocation2 + $0x1020] sm:$0xff]
    %v1080 = vld [vmem:[#allocation2 + $0x1028] sm:$0xff]
    %v1081 = vld [vmem:[#allocation2 + $0x1030] sm:$0xff]
    %v1082 = vld [vmem:[#allocation2 + $0x1038] sm:$0xff]
    %v1083 = vld [vmem:[#allocation2 + $0x1040] sm:$0xff]
    %v1084 = vld [vmem:[#allocation2 + $0x1048] sm:$0xff]
    %v1085 = vld [vmem:[#allocation2 + $0x1050] sm:$0xff]
    %v1086 = vld [vmem:[#allocation2 + $0x1058] sm:$0xff]
    %v1087 = vld [vmem:[#allocation2 + $0x1060] sm:$0xff]
    %v1088 = vld [vmem:[#allocation2 + $0x1068] sm:$0xff]
    %v1089 = vld [vmem:[#allocation2 + $0x1070] sm:$0xff]
    %v1090 = vld [vmem:[#allocation2 + $0x1078] sm:$0xff]
    %v1091 = vld [vmem:[#allocation2 + $0x1080] sm:$0xff]
    %v1092 = vld [vmem:[#allocation2 + $0x1088] sm:$0xff]
    %v1093 = vld [vmem:[#allocation2 + $0x1090] sm:$0xff]
    %v1094 = vld [vmem:[#allocation2 + $0x1098] sm:$0xff]
    %v1095 = vld [vmem:[#allocation2 + $0x10a0] sm:$0xff]
    %v1096 = vld [vmem:[#allocation2 + $0x10a8] sm:$0xff]
    %v1097 = vld [vmem:[#allocation2 + $0x10b0] sm:$0xff]
    %v1098 = vld [vmem:[#allocation2 + $0x10b8] sm:$0xff]
    %v1099 = vld [vmem:[#allocation2 + $0x10c0] sm:$0xff]
    %v1100 = vld [vmem:[#allocation2 + $0x10c8] sm:$0xff]
    %v1101 = vld [vmem:[#allocation2 + $0x10d0] sm:$0xff]
    %v1102 = vld [vmem:[#allocation2 + $0x10d8] sm:$0xff]
    %v1103 = vld [vmem:[#allocation2 + $0x10e0] sm:$0xff]
    %v1104 = vld [vmem:[#allocation2 + $0x10e8] sm:$0xff]
    %v1105 = vld [vmem:[#allocation2 + $0x10f0] sm:$0xff]
    %v1106 = vld [vmem:[#allocation2 + $0x10f8] sm:$0xff]
    %v1107 = vld [vmem:[#allocation2 + $0x1100] sm:$0xff]
    %v1108 = vld [vmem:[#allocation2 + $0x1108] sm:$0xff]
    %v1109 = vld [vmem:[#allocation2 + $0x1110] sm:$0xff]
    %v1110 = vld [vmem:[#allocation2 + $0x1118] sm:$0xff]
    %v1111 = vld [vmem:[#allocation2 + $0x1120] sm:$0xff]
    %v1112 = vld [vmem:[#allocation2 + $0x1128] sm:$0xff]
    %v1113 = vld [vmem:[#allocation2 + $0x1130] sm:$0xff]
    %v1114 = vld [vmem:[#allocation2 + $0x1138] sm:$0xff]
    %v1115 = vld [vmem:[#allocation2 + $0x1140] sm:$0xff]
    %v1116 = vld [vmem:[#allocation2 + $0x1148] sm:$0xff]
    %v1117 = vld [vmem:[#allocation2 + $0x1150] sm:$0xff]
    %v1118 = vld [vmem:[#allocation2 + $0x1158] sm:$0xff]
    %v1119 = vld [vmem:[#allocation2 + $0x1160] sm:$0xff]
    %v1120 = vld [vmem:[#allocation2 + $0x1168] sm:$0xff]
    %v1121 = vld [vmem:[#allocation2 + $0x1170] sm:$0xff]
    %v1122 = vld [vmem:[#allocation2 + $0x1178] sm:$0xff]
    %v1123 = vld [vmem:[#allocation2 + $0x1180] sm:$0xff]
    %v1124 = vld [vmem:[#allocation2 + $0x1188] sm:$0xff]
    %v1125 = vld [vmem:[#allocation2 + $0x1190] sm:$0xff]
    %v1126 = vld [vmem:[#allocation2 + $0x1198] sm:$0xff]
    %v1127 = vld [vmem:[#allocation2 + $0x11a0] sm:$0xff]
    %v1128 = vld [vmem:[#allocation2 + $0x11a8] sm:$0xff]
    %v1129 = vld [vmem:[#allocation2 + $0x11b0] sm:$0xff]
    %v1130 = vld [vmem:[#allocation2 + $0x11b8] sm:$0xff]
    %v1131 = vld [vmem:[#allocation2 + $0x11c0] sm:$0xff]
    %v1132 = vld [vmem:[#allocation2 + $0x11c8] sm:$0xff]
    %v1133 = vld [vmem:[#allocation2 + $0x11d0] sm:$0xff]
    %v1134 = vld [vmem:[#allocation2 + $0x11d8] sm:$0xff]
    %v1135 = vld [vmem:[#allocation2 + $0x11e0] sm:$0xff]
    %v1136 = vld [vmem:[#allocation2 + $0x11e8] sm:$0xff]
    %v1137 = vld [vmem:[#allocation2 + $0x11f0] sm:$0xff]
    %v1138 = vld [vmem:[#allocation2 + $0x11f8] sm:$0xff]
    %v1139 = vld [vmem:[#allocation2 + $0x1200] sm:$0xff]
    %v1140 = vld [vmem:[#allocation2 + $0x1208] sm:$0xff]
    %v1141 = vld [vmem:[#allocation2 + $0x1210] sm:$0xff]
    %v1142 = vld [vmem:[#allocation2 + $0x1218] sm:$0xff]
    %v1143 = vld [vmem:[#allocation2 + $0x1220] sm:$0xff]
    %v1144 = vld [vmem:[#allocation2 + $0x1228] sm:$0xff]
    %v1145 = vld [vmem:[#allocation2 + $0x1230] sm:$0xff]
    %v1146 = vld [vmem:[#allocation2 + $0x1238] sm:$0xff]
    %v1147 = vld [vmem:[#allocation2 + $0x1240] sm:$0xff]
    %v1148 = vld [vmem:[#allocation2 + $0x1248] sm:$0xff]
    %v1149 = vld [vmem:[#allocation2 + $0x1250] sm:$0xff]
    %v1150 = vld [vmem:[#allocation2 + $0x1258] sm:$0xff]
    %v1151 = vld [vmem:[#allocation2 + $0x1260] sm:$0xff]
    %v1152 = vld [vmem:[#allocation2 + $0x1268] sm:$0xff]
    %v1153 = vld [vmem:[#allocation2 + $0x1270] sm:$0xff]
    %v1154 = vld [vmem:[#allocation2 + $0x1278] sm:$0xff]
    %v1155 = vld [vmem:[#allocation2 + $0x1280] sm:$0xff]
    %v1156 = vld [vmem:[#allocation2 + $0x1288] sm:$0xff]
    %v1157 = vld [vmem:[#allocation2 + $0x1290] sm:$0xff]
    %v1158 = vld [vmem:[#allocation2 + $0x1298] sm:$0xff]
    %v1159 = vld [vmem:[#allocation2 + $0x12a0] sm:$0xff]
    %v1160 = vld [vmem:[#allocation2 + $0x12a8] sm:$0xff]
    %v1161 = vld [vmem:[#allocation2 + $0x12b0] sm:$0xff]
    %v1162 = vld [vmem:[#allocation2 + $0x12b8] sm:$0xff]
    %v1163 = vld [vmem:[#allocation5] sm:$0xf]
    %v1165 = vlaneseq
    %v1166 = vshrl.u32 %v1165, 7
    %v1167 = vsub.s32 0, %v1166
    %v1168 = vrot.slane %v1163, %v1167
    %v1169 = vlaneseq
    %v1170 = vshrl.u32 %v1169, 7
    %v1171 = vsub.s32 1, %v1170
    %v1172 = vrot.slane %v1163, %v1171
    %v1173 = vlaneseq
    %v1174 = vshrl.u32 %v1173, 7
    %v1175 = vsub.s32 2, %v1174
    %v1176 = vrot.slane %v1163, %v1175
    %v1177 = vlaneseq
    %v1178 = vshrl.u32 %v1177, 7
    %v1179 = vsub.s32 3, %v1178
    %v1180 = vrot.slane %v1163, %v1179
    %v1785 = vunpack.c.l.b16 %v563
    %v1786 = vunpack.c.h.b16 %v563
    %v1787 = vunpack.c.l.b16 %v564
    %v1788 = vunpack.c.h.b16 %v564
    %v1789 = vunpack.c.l.b16 %v565
    %v1790 = vunpack.c.h.b16 %v565
    %v1791 = vunpack.c.l.b16 %v566
    %v1792 = vunpack.c.h.b16 %v566
    %v1793 = vunpack.c.l.b16 %v567
    %v1794 = vunpack.c.h.b16 %v567
    %v1795 = vunpack.c.l.b16 %v568
    %v1796 = vunpack.c.h.b16 %v568
    %v1797 = vunpack.c.l.b16 %v569
    %v1798 = vunpack.c.h.b16 %v569
    %v1799 = vunpack.c.l.b16 %v570
    %v1800 = vunpack.c.h.b16 %v570
    %v1801 = vunpack.c.l.b16 %v571
    %v1802 = vunpack.c.h.b16 %v571
    %v1803 = vunpack.c.l.b16 %v572
    %v1804 = vunpack.c.h.b16 %v572
    %v1805 = vunpack.c.l.b16 %v573
    %v1806 = vunpack.c.h.b16 %v573
    %v1807 = vunpack.c.l.b16 %v574
    %v1808 = vunpack.c.h.b16 %v574
    %v1809 = vunpack.c.l.b16 %v575
    %v1810 = vunpack.c.h.b16 %v575
    %v1811 = vunpack.c.l.b16 %v576
    %v1812 = vunpack.c.h.b16 %v576
    %v1813 = vunpack.c.l.b16 %v577
    %v1814 = vunpack.c.h.b16 %v577
    %v1815 = vunpack.c.l.b16 %v578
    %v1816 = vunpack.c.h.b16 %v578
    %v1817 = vunpack.c.l.b16 %v579
    %v1818 = vunpack.c.h.b16 %v579
    %v1819 = vunpack.c.l.b16 %v580
    %v1820 = vunpack.c.h.b16 %v580
    %v1821 = vunpack.c.l.b16 %v581
    %v1822 = vunpack.c.h.b16 %v581
    %v1823 = vunpack.c.l.b16 %v582
    %v1824 = vunpack.c.h.b16 %v582
    %v1825 = vunpack.c.l.b16 %v583
    %v1826 = vunpack.c.h.b16 %v583
    %v1827 = vunpack.c.l.b16 %v584
    %v1828 = vunpack.c.h.b16 %v584
    %v1829 = vunpack.c.l.b16 %v585
    %v1830 = vunpack.c.h.b16 %v585
    %v1831 = vunpack.c.l.b16 %v586
    %v1832 = vunpack.c.h.b16 %v586
    %v1833 = vunpack.c.l.b16 %v587
    %v1834 = vunpack.c.h.b16 %v587
    %v1835 = vunpack.c.l.b16 %v588
    %v1836 = vunpack.c.h.b16 %v588
    %v1837 = vunpack.c.l.b16 %v589
    %v1838 = vunpack.c.h.b16 %v589
    %v1839 = vunpack.c.l.b16 %v590
    %v1840 = vunpack.c.h.b16 %v590
    %v1841 = vunpack.c.l.b16 %v591
    %v1842 = vunpack.c.h.b16 %v591
    %v1843 = vunpack.c.l.b16 %v592
    %v1844 = vunpack.c.h.b16 %v592
    %v1845 = vunpack.c.l.b16 %v593
    %v1846 = vunpack.c.h.b16 %v593
    %v1847 = vunpack.c.l.b16 %v594
    %v1848 = vunpack.c.h.b16 %v594
    %v1849 = vunpack.c.l.b16 %v595
    %v1850 = vunpack.c.h.b16 %v595
    %v1851 = vunpack.c.l.b16 %v596
    %v1852 = vunpack.c.h.b16 %v596
    %v1853 = vunpack.c.l.b16 %v597
    %v1854 = vunpack.c.h.b16 %v597
    %v1855 = vunpack.c.l.b16 %v598
    %v1856 = vunpack.c.h.b16 %v598
    %v1857 = vunpack.c.l.b16 %v599
    %v1858 = vunpack.c.h.b16 %v599
    %v1859 = vunpack.c.l.b16 %v600
    %v1860 = vunpack.c.h.b16 %v600
    %v1861 = vunpack.c.l.b16 %v601
    %v1862 = vunpack.c.h.b16 %v601
    %v1863 = vunpack.c.l.b16 %v602
    %v1864 = vunpack.c.h.b16 %v602
    %v1865 = vunpack.c.l.b16 %v603
    %v1866 = vunpack.c.h.b16 %v603
    %v1867 = vunpack.c.l.b16 %v604
    %v1868 = vunpack.c.h.b16 %v604
    %v1869 = vunpack.c.l.b16 %v605
    %v1870 = vunpack.c.h.b16 %v605
    %v1871 = vunpack.c.l.b16 %v606
    %v1872 = vunpack.c.h.b16 %v606
    %v1873 = vunpack.c.l.b16 %v607
    %v1874 = vunpack.c.h.b16 %v607
    %v1875 = vunpack.c.l.b16 %v608
    %v1876 = vunpack.c.h.b16 %v608
    %v1877 = vunpack.c.l.b16 %v609
    %v1878 = vunpack.c.h.b16 %v609
    %v1879 = vunpack.c.l.b16 %v610
    %v1880 = vunpack.c.h.b16 %v610
    %v1881 = vunpack.c.l.b16 %v611
    %v1882 = vunpack.c.h.b16 %v611
    %v1883 = vunpack.c.l.b16 %v612
    %v1884 = vunpack.c.h.b16 %v612
    %v1885 = vunpack.c.l.b16 %v613
    %v1886 = vunpack.c.h.b16 %v613
    %v1887 = vunpack.c.l.b16 %v614
    %v1888 = vunpack.c.h.b16 %v614
    %v1889 = vunpack.c.l.b16 %v615
    %v1890 = vunpack.c.h.b16 %v615
    %v1891 = vunpack.c.l.b16 %v616
    %v1892 = vunpack.c.h.b16 %v616
    %v1893 = vunpack.c.l.b16 %v617
    %v1894 = vunpack.c.h.b16 %v617
    %v1895 = vunpack.c.l.b16 %v618
    %v1896 = vunpack.c.h.b16 %v618
    %v1897 = vunpack.c.l.b16 %v619
    %v1898 = vunpack.c.h.b16 %v619
    %v1899 = vunpack.c.l.b16 %v620
    %v1900 = vunpack.c.h.b16 %v620
    %v1901 = vunpack.c.l.b16 %v621
    %v1902 = vunpack.c.h.b16 %v621
    %v1903 = vunpack.c.l.b16 %v622
    %v1904 = vunpack.c.h.b16 %v622
    %v1905 = vunpack.c.l.b16 %v623
    %v1906 = vunpack.c.h.b16 %v623
    %v1907 = vunpack.c.l.b16 %v624
    %v1908 = vunpack.c.h.b16 %v624
    %v1909 = vunpack.c.l.b16 %v625
    %v1910 = vunpack.c.h.b16 %v625
    %v1911 = vunpack.c.l.b16 %v626
    %v1912 = vunpack.c.h.b16 %v626
    %v1913 = vunpack.c.l.b16 %v627
    %v1914 = vunpack.c.h.b16 %v627
    %v1915 = vunpack.c.l.b16 %v628
    %v1916 = vunpack.c.h.b16 %v628
    %v1917 = vunpack.c.l.b16 %v629
    %v1918 = vunpack.c.h.b16 %v629
    %v1919 = vunpack.c.l.b16 %v630
    %v1920 = vunpack.c.h.b16 %v630
    %v1921 = vunpack.c.l.b16 %v631
    %v1922 = vunpack.c.h.b16 %v631
    %v1923 = vunpack.c.l.b16 %v632
    %v1924 = vunpack.c.h.b16 %v632
    %v1925 = vunpack.c.l.b16 %v633
    %v1926 = vunpack.c.h.b16 %v633
    %v1927 = vunpack.c.l.b16 %v634
    %v1928 = vunpack.c.h.b16 %v634
    %v1929 = vunpack.c.l.b16 %v635
    %v1930 = vunpack.c.h.b16 %v635
    %v1931 = vunpack.c.l.b16 %v636
    %v1932 = vunpack.c.h.b16 %v636
    %v1933 = vunpack.c.l.b16 %v637
    %v1934 = vunpack.c.h.b16 %v637
    %v1935 = vunpack.c.l.b16 %v638
    %v1936 = vunpack.c.h.b16 %v638
    %v1937 = vunpack.c.l.b16 %v639
    %v1938 = vunpack.c.h.b16 %v639
    %v1939 = vunpack.c.l.b16 %v640
    %v1940 = vunpack.c.h.b16 %v640
    %v1941 = vunpack.c.l.b16 %v641
    %v1942 = vunpack.c.h.b16 %v641
    %v1943 = vunpack.c.l.b16 %v642
    %v1944 = vunpack.c.h.b16 %v642
    %v1945 = vunpack.c.l.b16 %v643
    %v1946 = vunpack.c.h.b16 %v643
    %v1947 = vunpack.c.l.b16 %v644
    %v1948 = vunpack.c.h.b16 %v644
    %v1949 = vunpack.c.l.b16 %v645
    %v1950 = vunpack.c.h.b16 %v645
    %v1951 = vunpack.c.l.b16 %v646
    %v1952 = vunpack.c.h.b16 %v646
    %v1953 = vunpack.c.l.b16 %v647
    %v1954 = vunpack.c.h.b16 %v647
    %v1955 = vunpack.c.l.b16 %v648
    %v1956 = vunpack.c.h.b16 %v648
    %v1957 = vunpack.c.l.b16 %v649
    %v1958 = vunpack.c.h.b16 %v649
    %v1959 = vunpack.c.l.b16 %v650
    %v1960 = vunpack.c.h.b16 %v650
    %v1961 = vunpack.c.l.b16 %v651
    %v1962 = vunpack.c.h.b16 %v651
    %v1963 = vunpack.c.l.b16 %v652
    %v1964 = vunpack.c.h.b16 %v652
    %v1965 = vunpack.c.l.b16 %v653
    %v1966 = vunpack.c.h.b16 %v653
    %v1967 = vunpack.c.l.b16 %v654
    %v1968 = vunpack.c.h.b16 %v654
    %v1969 = vunpack.c.l.b16 %v655
    %v1970 = vunpack.c.h.b16 %v655
    %v1971 = vunpack.c.l.b16 %v656
    %v1972 = vunpack.c.h.b16 %v656
    %v1973 = vunpack.c.l.b16 %v657
    %v1974 = vunpack.c.h.b16 %v657
    %v1975 = vunpack.c.l.b16 %v658
    %v1976 = vunpack.c.h.b16 %v658
    %v1977 = vunpack.c.l.b16 %v659
    %v1978 = vunpack.c.h.b16 %v659
    %v1979 = vunpack.c.l.b16 %v660
    %v1980 = vunpack.c.h.b16 %v660
    %v1981 = vunpack.c.l.b16 %v661
    %v1982 = vunpack.c.h.b16 %v661
    %v1983 = vunpack.c.l.b16 %v662
    %v1984 = vunpack.c.h.b16 %v662
    %v1985 = vunpack.c.l.b16 %v663
    %v1986 = vunpack.c.h.b16 %v663
    %v1987 = vunpack.c.l.b16 %v664
    %v1988 = vunpack.c.h.b16 %v664
    %v1989 = vunpack.c.l.b16 %v665
    %v1990 = vunpack.c.h.b16 %v665
    %v1991 = vunpack.c.l.b16 %v666
    %v1992 = vunpack.c.h.b16 %v666
    %v1993 = vunpack.c.l.b16 %v667
    %v1994 = vunpack.c.h.b16 %v667
    %v1995 = vunpack.c.l.b16 %v668
    %v1996 = vunpack.c.h.b16 %v668
    %v1997 = vunpack.c.l.b16 %v669
    %v1998 = vunpack.c.h.b16 %v669
    %v1999 = vunpack.c.l.b16 %v670
    %v2000 = vunpack.c.h.b16 %v670
    %v2001 = vunpack.c.l.b16 %v671
    %v2002 = vunpack.c.h.b16 %v671
    %v2003 = vunpack.c.l.b16 %v672
    %v2004 = vunpack.c.h.b16 %v672
    %v2005 = vunpack.c.l.b16 %v673
    %v2006 = vunpack.c.h.b16 %v673
    %v2007 = vunpack.c.l.b16 %v674
    %v2008 = vunpack.c.h.b16 %v674
    %v2009 = vunpack.c.l.b16 %v675
    %v2010 = vunpack.c.h.b16 %v675
    %v2011 = vunpack.c.l.b16 %v676
    %v2012 = vunpack.c.h.b16 %v676
    %v2013 = vunpack.c.l.b16 %v677
    %v2014 = vunpack.c.h.b16 %v677
    %v2015 = vunpack.c.l.b16 %v678
    %v2016 = vunpack.c.h.b16 %v678
    %v2017 = vunpack.c.l.b16 %v679
    %v2018 = vunpack.c.h.b16 %v679
    %v2019 = vunpack.c.l.b16 %v680
    %v2020 = vunpack.c.h.b16 %v680
    %v2021 = vunpack.c.l.b16 %v681
    %v2022 = vunpack.c.h.b16 %v681
    %v2023 = vunpack.c.l.b16 %v682
    %v2024 = vunpack.c.h.b16 %v682
    %v2025 = vunpack.c.l.b16 %v683
    %v2026 = vunpack.c.h.b16 %v683
    %v2027 = vunpack.c.l.b16 %v684
    %v2028 = vunpack.c.h.b16 %v684
    %v2029 = vunpack.c.l.b16 %v685
    %v2030 = vunpack.c.h.b16 %v685
    %v2031 = vunpack.c.l.b16 %v686
    %v2032 = vunpack.c.h.b16 %v686
    %v2033 = vunpack.c.l.b16 %v687
    %v2034 = vunpack.c.h.b16 %v687
    %v2035 = vunpack.c.l.b16 %v688
    %v2036 = vunpack.c.h.b16 %v688
    %v2037 = vunpack.c.l.b16 %v689
    %v2038 = vunpack.c.h.b16 %v689
    %v2039 = vunpack.c.l.b16 %v690
    %v2040 = vunpack.c.h.b16 %v690
    %v2041 = vunpack.c.l.b16 %v691
    %v2042 = vunpack.c.h.b16 %v691
    %v2043 = vunpack.c.l.b16 %v692
    %v2044 = vunpack.c.h.b16 %v692
    %v2045 = vunpack.c.l.b16 %v693
    %v2046 = vunpack.c.h.b16 %v693
    %v2047 = vunpack.c.l.b16 %v694
    %v2048 = vunpack.c.h.b16 %v694
    %v2049 = vunpack.c.l.b16 %v695
    %v2050 = vunpack.c.h.b16 %v695
    %v2051 = vunpack.c.l.b16 %v696
    %v2052 = vunpack.c.h.b16 %v696
    %v2053 = vunpack.c.l.b16 %v697
    %v2054 = vunpack.c.h.b16 %v697
    %v2055 = vunpack.c.l.b16 %v698
    %v2056 = vunpack.c.h.b16 %v698
    %v2057 = vunpack.c.l.b16 %v699
    %v2058 = vunpack.c.h.b16 %v699
    %v2059 = vunpack.c.l.b16 %v700
    %v2060 = vunpack.c.h.b16 %v700
    %v2061 = vunpack.c.l.b16 %v701
    %v2062 = vunpack.c.h.b16 %v701
    %v2063 = vunpack.c.l.b16 %v702
    %v2064 = vunpack.c.h.b16 %v702
    %v2065 = vunpack.c.l.b16 %v703
    %v2066 = vunpack.c.h.b16 %v703
    %v2067 = vunpack.c.l.b16 %v704
    %v2068 = vunpack.c.h.b16 %v704
    %v2069 = vunpack.c.l.b16 %v705
    %v2070 = vunpack.c.h.b16 %v705
    %v2071 = vunpack.c.l.b16 %v706
    %v2072 = vunpack.c.h.b16 %v706
    %v2073 = vunpack.c.l.b16 %v707
    %v2074 = vunpack.c.h.b16 %v707
    %v2075 = vunpack.c.l.b16 %v708
    %v2076 = vunpack.c.h.b16 %v708
    %v2077 = vunpack.c.l.b16 %v709
    %v2078 = vunpack.c.h.b16 %v709
    %v2079 = vunpack.c.l.b16 %v710
    %v2080 = vunpack.c.h.b16 %v710
    %v2081 = vunpack.c.l.b16 %v711
    %v2082 = vunpack.c.h.b16 %v711
    %v2083 = vunpack.c.l.b16 %v712
    %v2084 = vunpack.c.h.b16 %v712
    %v2085 = vunpack.c.l.b16 %v713
    %v2086 = vunpack.c.h.b16 %v713
    %v2087 = vunpack.c.l.b16 %v714
    %v2088 = vunpack.c.h.b16 %v714
    %v2089 = vunpack.c.l.b16 %v715
    %v2090 = vunpack.c.h.b16 %v715
    %v2091 = vunpack.c.l.b16 %v716
    %v2092 = vunpack.c.h.b16 %v716
    %v2093 = vunpack.c.l.b16 %v717
    %v2094 = vunpack.c.h.b16 %v717
    %v2095 = vunpack.c.l.b16 %v718
    %v2096 = vunpack.c.h.b16 %v718
    %v2097 = vunpack.c.l.b16 %v719
    %v2098 = vunpack.c.h.b16 %v719
    %v2099 = vunpack.c.l.b16 %v720
    %v2100 = vunpack.c.h.b16 %v720
    %v2101 = vunpack.c.l.b16 %v721
    %v2102 = vunpack.c.h.b16 %v721
    %v2103 = vunpack.c.l.b16 %v722
    %v2104 = vunpack.c.h.b16 %v722
    %v2105 = vunpack.c.l.b16 %v723
    %v2106 = vunpack.c.h.b16 %v723
    %v2107 = vunpack.c.l.b16 %v724
    %v2108 = vunpack.c.h.b16 %v724
    %v2109 = vunpack.c.l.b16 %v725
    %v2110 = vunpack.c.h.b16 %v725
    %v2111 = vunpack.c.l.b16 %v726
    %v2112 = vunpack.c.h.b16 %v726
    %v2113 = vunpack.c.l.b16 %v727
    %v2114 = vunpack.c.h.b16 %v727
    %v2115 = vunpack.c.l.b16 %v728
    %v2116 = vunpack.c.h.b16 %v728
    %v2117 = vunpack.c.l.b16 %v729
    %v2118 = vunpack.c.h.b16 %v729
    %v2119 = vunpack.c.l.b16 %v730
    %v2120 = vunpack.c.h.b16 %v730
    %v2121 = vunpack.c.l.b16 %v731
    %v2122 = vunpack.c.h.b16 %v731
    %v2123 = vunpack.c.l.b16 %v732
    %v2124 = vunpack.c.h.b16 %v732
    %v2125 = vunpack.c.l.b16 %v733
    %v2126 = vunpack.c.h.b16 %v733
    %v2127 = vunpack.c.l.b16 %v734
    %v2128 = vunpack.c.h.b16 %v734
    %v2129 = vunpack.c.l.b16 %v735
    %v2130 = vunpack.c.h.b16 %v735
    %v2131 = vunpack.c.l.b16 %v736
    %v2132 = vunpack.c.h.b16 %v736
    %v2133 = vunpack.c.l.b16 %v737
    %v2134 = vunpack.c.h.b16 %v737
    %v2135 = vunpack.c.l.b16 %v738
    %v2136 = vunpack.c.h.b16 %v738
    %v2137 = vunpack.c.l.b16 %v739
    %v2138 = vunpack.c.h.b16 %v739
    %v2139 = vunpack.c.l.b16 %v740
    %v2140 = vunpack.c.h.b16 %v740
    %v2141 = vunpack.c.l.b16 %v741
    %v2142 = vunpack.c.h.b16 %v741
    %v2143 = vunpack.c.l.b16 %v742
    %v2144 = vunpack.c.h.b16 %v742
    %v2145 = vunpack.c.l.b16 %v743
    %v2146 = vunpack.c.h.b16 %v743
    %v2147 = vunpack.c.l.b16 %v744
    %v2148 = vunpack.c.h.b16 %v744
    %v2149 = vunpack.c.l.b16 %v745
    %v2150 = vunpack.c.h.b16 %v745
    %v2151 = vunpack.c.l.b16 %v746
    %v2152 = vunpack.c.h.b16 %v746
    %v2153 = vunpack.c.l.b16 %v747
    %v2154 = vunpack.c.h.b16 %v747
    %v2155 = vunpack.c.l.b16 %v748
    %v2156 = vunpack.c.h.b16 %v748
    %v2157 = vunpack.c.l.b16 %v749
    %v2158 = vunpack.c.h.b16 %v749
    %v2159 = vunpack.c.l.b16 %v750
    %v2160 = vunpack.c.h.b16 %v750
    %v2161 = vunpack.c.l.b16 %v751
    %v2162 = vunpack.c.h.b16 %v751
    %v2163 = vunpack.c.l.b16 %v752
    %v2164 = vunpack.c.h.b16 %v752
    %v2165 = vunpack.c.l.b16 %v753
    %v2166 = vunpack.c.h.b16 %v753
    %v2167 = vunpack.c.l.b16 %v754
    %v2168 = vunpack.c.h.b16 %v754
    %v2169 = vunpack.c.l.b16 %v755
    %v2170 = vunpack.c.h.b16 %v755
    %v2171 = vunpack.c.l.b16 %v756
    %v2172 = vunpack.c.h.b16 %v756
    %v2173 = vunpack.c.l.b16 %v757
    %v2174 = vunpack.c.h.b16 %v757
    %v2175 = vunpack.c.l.b16 %v758
    %v2176 = vunpack.c.h.b16 %v758
    %v2177 = vunpack.c.l.b16 %v759
    %v2178 = vunpack.c.h.b16 %v759
    %v2179 = vunpack.c.l.b16 %v760
    %v2180 = vunpack.c.h.b16 %v760
    %v2181 = vunpack.c.l.b16 %v761
    %v2182 = vunpack.c.h.b16 %v761
    %v2183 = vunpack.c.l.b16 %v762
    %v2184 = vunpack.c.h.b16 %v762
    %v2185 = vunpack.c.l.b16 %v763
    %v2186 = vunpack.c.h.b16 %v763
    %v2187 = vunpack.c.l.b16 %v764
    %v2188 = vunpack.c.h.b16 %v764
    %v2189 = vunpack.c.l.b16 %v765
    %v2190 = vunpack.c.h.b16 %v765
    %v2191 = vunpack.c.l.b16 %v766
    %v2192 = vunpack.c.h.b16 %v766
    %v2193 = vunpack.c.l.b16 %v767
    %v2194 = vunpack.c.h.b16 %v767
    %v2195 = vunpack.c.l.b16 %v768
    %v2196 = vunpack.c.h.b16 %v768
    %v2197 = vunpack.c.l.b16 %v769
    %v2198 = vunpack.c.h.b16 %v769
    %v2199 = vunpack.c.l.b16 %v770
    %v2200 = vunpack.c.h.b16 %v770
    %v2201 = vunpack.c.l.b16 %v771
    %v2202 = vunpack.c.h.b16 %v771
    %v2203 = vunpack.c.l.b16 %v772
    %v2204 = vunpack.c.h.b16 %v772
    %v2205 = vunpack.c.l.b16 %v773
    %v2206 = vunpack.c.h.b16 %v773
    %v2207 = vunpack.c.l.b16 %v774
    %v2208 = vunpack.c.h.b16 %v774
    %v2209 = vunpack.c.l.b16 %v775
    %v2210 = vunpack.c.h.b16 %v775
    %v2211 = vunpack.c.l.b16 %v776
    %v2212 = vunpack.c.h.b16 %v776
    %v2213 = vunpack.c.l.b16 %v777
    %v2214 = vunpack.c.h.b16 %v777
    %v2215 = vunpack.c.l.b16 %v778
    %v2216 = vunpack.c.h.b16 %v778
    %v2217 = vunpack.c.l.b16 %v779
    %v2218 = vunpack.c.h.b16 %v779
    %v2219 = vunpack.c.l.b16 %v780
    %v2220 = vunpack.c.h.b16 %v780
    %v2221 = vunpack.c.l.b16 %v781
    %v2222 = vunpack.c.h.b16 %v781
    %v2223 = vunpack.c.l.b16 %v782
    %v2224 = vunpack.c.h.b16 %v782
    %v2225 = vunpack.c.l.b16 %v783
    %v2226 = vunpack.c.h.b16 %v783
    %v2227 = vunpack.c.l.b16 %v784
    %v2228 = vunpack.c.h.b16 %v784
    %v2229 = vunpack.c.l.b16 %v785
    %v2230 = vunpack.c.h.b16 %v785
    %v2231 = vunpack.c.l.b16 %v786
    %v2232 = vunpack.c.h.b16 %v786
    %v2233 = vunpack.c.l.b16 %v787
    %v2234 = vunpack.c.h.b16 %v787
    %v2235 = vunpack.c.l.b16 %v788
    %v2236 = vunpack.c.h.b16 %v788
    %v2237 = vunpack.c.l.b16 %v789
    %v2238 = vunpack.c.h.b16 %v789
    %v2239 = vunpack.c.l.b16 %v790
    %v2240 = vunpack.c.h.b16 %v790
    %v2241 = vunpack.c.l.b16 %v791
    %v2242 = vunpack.c.h.b16 %v791
    %v2243 = vunpack.c.l.b16 %v792
    %v2244 = vunpack.c.h.b16 %v792
    %v2245 = vunpack.c.l.b16 %v793
    %v2246 = vunpack.c.h.b16 %v793
    %v2247 = vunpack.c.l.b16 %v794
    %v2248 = vunpack.c.h.b16 %v794
    %v2249 = vunpack.c.l.b16 %v795
    %v2250 = vunpack.c.h.b16 %v795
    %v2251 = vunpack.c.l.b16 %v796
    %v2252 = vunpack.c.h.b16 %v796
    %v2253 = vunpack.c.l.b16 %v797
    %v2254 = vunpack.c.h.b16 %v797
    %v2255 = vunpack.c.l.b16 %v798
    %v2256 = vunpack.c.h.b16 %v798
    %v2257 = vunpack.c.l.b16 %v799
    %v2258 = vunpack.c.h.b16 %v799
    %v2259 = vunpack.c.l.b16 %v800
    %v2260 = vunpack.c.h.b16 %v800
    %v2261 = vunpack.c.l.b16 %v801
    %v2262 = vunpack.c.h.b16 %v801
    %v2263 = vunpack.c.l.b16 %v802
    %v2264 = vunpack.c.h.b16 %v802
    %v2265 = vunpack.c.l.b16 %v803
    %v2266 = vunpack.c.h.b16 %v803
    %v2267 = vunpack.c.l.b16 %v804
    %v2268 = vunpack.c.h.b16 %v804
    %v2269 = vunpack.c.l.b16 %v805
    %v2270 = vunpack.c.h.b16 %v805
    %v2271 = vunpack.c.l.b16 %v806
    %v2272 = vunpack.c.h.b16 %v806
    %v2273 = vunpack.c.l.b16 %v807
    %v2274 = vunpack.c.h.b16 %v807
    %v2275 = vunpack.c.l.b16 %v808
    %v2276 = vunpack.c.h.b16 %v808
    %v2277 = vunpack.c.l.b16 %v809
    %v2278 = vunpack.c.h.b16 %v809
    %v2279 = vunpack.c.l.b16 %v810
    %v2280 = vunpack.c.h.b16 %v810
    %v2281 = vunpack.c.l.b16 %v811
    %v2282 = vunpack.c.h.b16 %v811
    %v2283 = vunpack.c.l.b16 %v812
    %v2284 = vunpack.c.h.b16 %v812
    %v2285 = vunpack.c.l.b16 %v813
    %v2286 = vunpack.c.h.b16 %v813
    %v2287 = vunpack.c.l.b16 %v814
    %v2288 = vunpack.c.h.b16 %v814
    %v2289 = vunpack.c.l.b16 %v815
    %v2290 = vunpack.c.h.b16 %v815
    %v2291 = vunpack.c.l.b16 %v816
    %v2292 = vunpack.c.h.b16 %v816
    %v2293 = vunpack.c.l.b16 %v817
    %v2294 = vunpack.c.h.b16 %v817
    %v2295 = vunpack.c.l.b16 %v818
    %v2296 = vunpack.c.h.b16 %v818
    %v2297 = vunpack.c.l.b16 %v819
    %v2298 = vunpack.c.h.b16 %v819
    %v2299 = vunpack.c.l.b16 %v820
    %v2300 = vunpack.c.h.b16 %v820
    %v2301 = vunpack.c.l.b16 %v821
    %v2302 = vunpack.c.h.b16 %v821
    %v2303 = vunpack.c.l.b16 %v822
    %v2304 = vunpack.c.h.b16 %v822
    %v2305 = vunpack.c.l.b16 %v823
    %v2306 = vunpack.c.h.b16 %v823
    %v2307 = vunpack.c.l.b16 %v824
    %v2308 = vunpack.c.h.b16 %v824
    %v2309 = vunpack.c.l.b16 %v825
    %v2310 = vunpack.c.h.b16 %v825
    %v2311 = vunpack.c.l.b16 %v826
    %v2312 = vunpack.c.h.b16 %v826
    %v2313 = vunpack.c.l.b16 %v827
    %v2314 = vunpack.c.h.b16 %v827
    %v2315 = vunpack.c.l.b16 %v828
    %v2316 = vunpack.c.h.b16 %v828
    %v2317 = vunpack.c.l.b16 %v829
    %v2318 = vunpack.c.h.b16 %v829
    %v2319 = vunpack.c.l.b16 %v830
    %v2320 = vunpack.c.h.b16 %v830
    %v2321 = vunpack.c.l.b16 %v831
    %v2322 = vunpack.c.h.b16 %v831
    %v2323 = vunpack.c.l.b16 %v832
    %v2324 = vunpack.c.h.b16 %v832
    %v2325 = vunpack.c.l.b16 %v833
    %v2326 = vunpack.c.h.b16 %v833
    %v2327 = vunpack.c.l.b16 %v834
    %v2328 = vunpack.c.h.b16 %v834
    %v2329 = vunpack.c.l.b16 %v835
    %v2330 = vunpack.c.h.b16 %v835
    %v2331 = vunpack.c.l.b16 %v836
    %v2332 = vunpack.c.h.b16 %v836
    %v2333 = vunpack.c.l.b16 %v837
    %v2334 = vunpack.c.h.b16 %v837
    %v2335 = vunpack.c.l.b16 %v838
    %v2336 = vunpack.c.h.b16 %v838
    %v2337 = vunpack.c.l.b16 %v839
    %v2338 = vunpack.c.h.b16 %v839
    %v2339 = vunpack.c.l.b16 %v840
    %v2340 = vunpack.c.h.b16 %v840
    %v2341 = vunpack.c.l.b16 %v841
    %v2342 = vunpack.c.h.b16 %v841
    %v2343 = vunpack.c.l.b16 %v842
    %v2344 = vunpack.c.h.b16 %v842
    %v2345 = vunpack.c.l.b16 %v843
    %v2346 = vunpack.c.h.b16 %v843
    %v2347 = vunpack.c.l.b16 %v844
    %v2348 = vunpack.c.h.b16 %v844
    %v2349 = vunpack.c.l.b16 %v845
    %v2350 = vunpack.c.h.b16 %v845
    %v2351 = vunpack.c.l.b16 %v846
    %v2352 = vunpack.c.h.b16 %v846
    %v2353 = vunpack.c.l.b16 %v847
    %v2354 = vunpack.c.h.b16 %v847
    %v2355 = vunpack.c.l.b16 %v848
    %v2356 = vunpack.c.h.b16 %v848
    %v2357 = vunpack.c.l.b16 %v849
    %v2358 = vunpack.c.h.b16 %v849
    %v2359 = vunpack.c.l.b16 %v850
    %v2360 = vunpack.c.h.b16 %v850
    %v2361 = vunpack.c.l.b16 %v851
    %v2362 = vunpack.c.h.b16 %v851
    %v2363 = vunpack.c.l.b16 %v852
    %v2364 = vunpack.c.h.b16 %v852
    %v2365 = vunpack.c.l.b16 %v853
    %v2366 = vunpack.c.h.b16 %v853
    %v2367 = vunpack.c.l.b16 %v854
    %v2368 = vunpack.c.h.b16 %v854
    %v2369 = vunpack.c.l.b16 %v855
    %v2370 = vunpack.c.h.b16 %v855
    %v2371 = vunpack.c.l.b16 %v856
    %v2372 = vunpack.c.h.b16 %v856
    %v2373 = vunpack.c.l.b16 %v857
    %v2374 = vunpack.c.h.b16 %v857
    %v2375 = vunpack.c.l.b16 %v858
    %v2376 = vunpack.c.h.b16 %v858
    %v2377 = vunpack.c.l.b16 %v859
    %v2378 = vunpack.c.h.b16 %v859
    %v2379 = vunpack.c.l.b16 %v860
    %v2380 = vunpack.c.h.b16 %v860
    %v2381 = vunpack.c.l.b16 %v861
    %v2382 = vunpack.c.h.b16 %v861
    %v2383 = vunpack.c.l.b16 %v862
    %v2384 = vunpack.c.h.b16 %v862
    %v2385 = vunpack.c.l.b16 %v863
    %v2386 = vunpack.c.h.b16 %v863
    %v2387 = vunpack.c.l.b16 %v864
    %v2388 = vunpack.c.h.b16 %v864
    %v2389 = vunpack.c.l.b16 %v865
    %v2390 = vunpack.c.h.b16 %v865
    %v2391 = vunpack.c.l.b16 %v866
    %v2392 = vunpack.c.h.b16 %v866
    %v2393 = vunpack.c.l.b16 %v867
    %v2394 = vunpack.c.h.b16 %v867
    %v2395 = vunpack.c.l.b16 %v868
    %v2396 = vunpack.c.h.b16 %v868
    %v2397 = vunpack.c.l.b16 %v869
    %v2398 = vunpack.c.h.b16 %v869
    %v2399 = vunpack.c.l.b16 %v870
    %v2400 = vunpack.c.h.b16 %v870
    %v2401 = vunpack.c.l.b16 %v871
    %v2402 = vunpack.c.h.b16 %v871
    %v2403 = vunpack.c.l.b16 %v872
    %v2404 = vunpack.c.h.b16 %v872
    %v2405 = vunpack.c.l.b16 %v873
    %v2406 = vunpack.c.h.b16 %v873
    %v2407 = vunpack.c.l.b16 %v874
    %v2408 = vunpack.c.h.b16 %v874
    %v2409 = vunpack.c.l.b16 %v875
    %v2410 = vunpack.c.h.b16 %v875
    %v2411 = vunpack.c.l.b16 %v876
    %v2412 = vunpack.c.h.b16 %v876
    %v2413 = vunpack.c.l.b16 %v877
    %v2414 = vunpack.c.h.b16 %v877
    %v2415 = vunpack.c.l.b16 %v878
    %v2416 = vunpack.c.h.b16 %v878
    %v2417 = vunpack.c.l.b16 %v879
    %v2418 = vunpack.c.h.b16 %v879
    %v2419 = vunpack.c.l.b16 %v880
    %v2420 = vunpack.c.h.b16 %v880
    %v2421 = vunpack.c.l.b16 %v881
    %v2422 = vunpack.c.h.b16 %v881
    %v2423 = vunpack.c.l.b16 %v882
    %v2424 = vunpack.c.h.b16 %v882
    %v2425 = vunpack.c.l.b16 %v883
    %v2426 = vunpack.c.h.b16 %v883
    %v2427 = vunpack.c.l.b16 %v884
    %v2428 = vunpack.c.h.b16 %v884
    %v2429 = vunpack.c.l.b16 %v885
    %v2430 = vunpack.c.h.b16 %v885
    %v2431 = vunpack.c.l.b16 %v886
    %v2432 = vunpack.c.h.b16 %v886
    %v2433 = vunpack.c.l.b16 %v887
    %v2434 = vunpack.c.h.b16 %v887
    %v2435 = vunpack.c.l.b16 %v888
    %v2436 = vunpack.c.h.b16 %v888
    %v2437 = vunpack.c.l.b16 %v889
    %v2438 = vunpack.c.h.b16 %v889
    %v2439 = vunpack.c.l.b16 %v890
    %v2440 = vunpack.c.h.b16 %v890
    %v2441 = vunpack.c.l.b16 %v891
    %v2442 = vunpack.c.h.b16 %v891
    %v2443 = vunpack.c.l.b16 %v892
    %v2444 = vunpack.c.h.b16 %v892
    %v2445 = vunpack.c.l.b16 %v893
    %v2446 = vunpack.c.h.b16 %v893
    %v2447 = vunpack.c.l.b16 %v894
    %v2448 = vunpack.c.h.b16 %v894
    %v2449 = vunpack.c.l.b16 %v895
    %v2450 = vunpack.c.h.b16 %v895
    %v2451 = vunpack.c.l.b16 %v896
    %v2452 = vunpack.c.h.b16 %v896
    %v2453 = vunpack.c.l.b16 %v897
    %v2454 = vunpack.c.h.b16 %v897
    %v2455 = vunpack.c.l.b16 %v898
    %v2456 = vunpack.c.h.b16 %v898
    %v2457 = vunpack.c.l.b16 %v899
    %v2458 = vunpack.c.h.b16 %v899
    %v2459 = vunpack.c.l.b16 %v900
    %v2460 = vunpack.c.h.b16 %v900
    %v2461 = vunpack.c.l.b16 %v901
    %v2462 = vunpack.c.h.b16 %v901
    %v2463 = vunpack.c.l.b16 %v902
    %v2464 = vunpack.c.h.b16 %v902
    %v2465 = vunpack.c.l.b16 %v903
    %v2466 = vunpack.c.h.b16 %v903
    %v2467 = vunpack.c.l.b16 %v904
    %v2468 = vunpack.c.h.b16 %v904
    %v2469 = vunpack.c.l.b16 %v905
    %v2470 = vunpack.c.h.b16 %v905
    %v2471 = vunpack.c.l.b16 %v906
    %v2472 = vunpack.c.h.b16 %v906
    %v2473 = vunpack.c.l.b16 %v907
    %v2474 = vunpack.c.h.b16 %v907
    %v2475 = vunpack.c.l.b16 %v908
    %v2476 = vunpack.c.h.b16 %v908
    %v2477 = vunpack.c.l.b16 %v909
    %v2478 = vunpack.c.h.b16 %v909
    %v2479 = vunpack.c.l.b16 %v910
    %v2480 = vunpack.c.h.b16 %v910
    %v2481 = vunpack.c.l.b16 %v911
    %v2482 = vunpack.c.h.b16 %v911
    %v2483 = vunpack.c.l.b16 %v912
    %v2484 = vunpack.c.h.b16 %v912
    %v2485 = vunpack.c.l.b16 %v913
    %v2486 = vunpack.c.h.b16 %v913
    %v2487 = vunpack.c.l.b16 %v914
    %v2488 = vunpack.c.h.b16 %v914
    %v2489 = vunpack.c.l.b16 %v915
    %v2490 = vunpack.c.h.b16 %v915
    %v2491 = vunpack.c.l.b16 %v916
    %v2492 = vunpack.c.h.b16 %v916
    %v2493 = vunpack.c.l.b16 %v917
    %v2494 = vunpack.c.h.b16 %v917
    %v2495 = vunpack.c.l.b16 %v918
    %v2496 = vunpack.c.h.b16 %v918
    %v2497 = vunpack.c.l.b16 %v919
    %v2498 = vunpack.c.h.b16 %v919
    %v2499 = vunpack.c.l.b16 %v920
    %v2500 = vunpack.c.h.b16 %v920
    %v2501 = vunpack.c.l.b16 %v921
    %v2502 = vunpack.c.h.b16 %v921
    %v2503 = vunpack.c.l.b16 %v922
    %v2504 = vunpack.c.h.b16 %v922
    %v2505 = vunpack.c.l.b16 %v923
    %v2506 = vunpack.c.h.b16 %v923
    %v2507 = vunpack.c.l.b16 %v924
    %v2508 = vunpack.c.h.b16 %v924
    %v2509 = vunpack.c.l.b16 %v925
    %v2510 = vunpack.c.h.b16 %v925
    %v2511 = vunpack.c.l.b16 %v926
    %v2512 = vunpack.c.h.b16 %v926
    %v2513 = vunpack.c.l.b16 %v927
    %v2514 = vunpack.c.h.b16 %v927
    %v2515 = vunpack.c.l.b16 %v928
    %v2516 = vunpack.c.h.b16 %v928
    %v2517 = vunpack.c.l.b16 %v929
    %v2518 = vunpack.c.h.b16 %v929
    %v2519 = vunpack.c.l.b16 %v930
    %v2520 = vunpack.c.h.b16 %v930
    %v2521 = vunpack.c.l.b16 %v931
    %v2522 = vunpack.c.h.b16 %v931
    %v2523 = vunpack.c.l.b16 %v932
    %v2524 = vunpack.c.h.b16 %v932
    %v2525 = vunpack.c.l.b16 %v933
    %v2526 = vunpack.c.h.b16 %v933
    %v2527 = vunpack.c.l.b16 %v934
    %v2528 = vunpack.c.h.b16 %v934
    %v2529 = vunpack.c.l.b16 %v935
    %v2530 = vunpack.c.h.b16 %v935
    %v2531 = vunpack.c.l.b16 %v936
    %v2532 = vunpack.c.h.b16 %v936
    %v2533 = vunpack.c.l.b16 %v937
    %v2534 = vunpack.c.h.b16 %v937
    %v2535 = vunpack.c.l.b16 %v938
    %v2536 = vunpack.c.h.b16 %v938
    %v2537 = vunpack.c.l.b16 %v939
    %v2538 = vunpack.c.h.b16 %v939
    %v2539 = vunpack.c.l.b16 %v940
    %v2540 = vunpack.c.h.b16 %v940
    %v2541 = vunpack.c.l.b16 %v941
    %v2542 = vunpack.c.h.b16 %v941
    %v2543 = vunpack.c.l.b16 %v942
    %v2544 = vunpack.c.h.b16 %v942
    %v2545 = vunpack.c.l.b16 %v943
    %v2546 = vunpack.c.h.b16 %v943
    %v2547 = vunpack.c.l.b16 %v944
    %v2548 = vunpack.c.h.b16 %v944
    %v2549 = vunpack.c.l.b16 %v945
    %v2550 = vunpack.c.h.b16 %v945
    %v2551 = vunpack.c.l.b16 %v946
    %v2552 = vunpack.c.h.b16 %v946
    %v2553 = vunpack.c.l.b16 %v947
    %v2554 = vunpack.c.h.b16 %v947
    %v2555 = vunpack.c.l.b16 %v948
    %v2556 = vunpack.c.h.b16 %v948
    %v2557 = vunpack.c.l.b16 %v949
    %v2558 = vunpack.c.h.b16 %v949
    %v2559 = vunpack.c.l.b16 %v950
    %v2560 = vunpack.c.h.b16 %v950
    %v2561 = vunpack.c.l.b16 %v951
    %v2562 = vunpack.c.h.b16 %v951
    %v2563 = vunpack.c.l.b16 %v952
    %v2564 = vunpack.c.h.b16 %v952
    %v2565 = vunpack.c.l.b16 %v953
    %v2566 = vunpack.c.h.b16 %v953
    %v2567 = vunpack.c.l.b16 %v954
    %v2568 = vunpack.c.h.b16 %v954
    %v2569 = vunpack.c.l.b16 %v955
    %v2570 = vunpack.c.h.b16 %v955
    %v2571 = vunpack.c.l.b16 %v956
    %v2572 = vunpack.c.h.b16 %v956
    %v2573 = vunpack.c.l.b16 %v957
    %v2574 = vunpack.c.h.b16 %v957
    %v2575 = vunpack.c.l.b16 %v958
    %v2576 = vunpack.c.h.b16 %v958
    %v2577 = vunpack.c.l.b16 %v959
    %v2578 = vunpack.c.h.b16 %v959
    %v2579 = vunpack.c.l.b16 %v960
    %v2580 = vunpack.c.h.b16 %v960
    %v2581 = vunpack.c.l.b16 %v961
    %v2582 = vunpack.c.h.b16 %v961
    %v2583 = vunpack.c.l.b16 %v962
    %v2584 = vunpack.c.h.b16 %v962
    %v2585 = vunpack.c.l.b16 %v963
    %v2586 = vunpack.c.h.b16 %v963
    %v2587 = vunpack.c.l.b16 %v964
    %v2588 = vunpack.c.h.b16 %v964
    %v2589 = vunpack.c.l.b16 %v965
    %v2590 = vunpack.c.h.b16 %v965
    %v2591 = vunpack.c.l.b16 %v966
    %v2592 = vunpack.c.h.b16 %v966
    %v2593 = vunpack.c.l.b16 %v967
    %v2594 = vunpack.c.h.b16 %v967
    %v2595 = vunpack.c.l.b16 %v968
    %v2596 = vunpack.c.h.b16 %v968
    %v2597 = vunpack.c.l.b16 %v969
    %v2598 = vunpack.c.h.b16 %v969
    %v2599 = vunpack.c.l.b16 %v970
    %v2600 = vunpack.c.h.b16 %v970
    %v2601 = vunpack.c.l.b16 %v971
    %v2602 = vunpack.c.h.b16 %v971
    %v2603 = vunpack.c.l.b16 %v972
    %v2604 = vunpack.c.h.b16 %v972
    %v2605 = vunpack.c.l.b16 %v973
    %v2606 = vunpack.c.h.b16 %v973
    %v2607 = vunpack.c.l.b16 %v974
    %v2608 = vunpack.c.h.b16 %v974
    %v2609 = vunpack.c.l.b16 %v975
    %v2610 = vunpack.c.h.b16 %v975
    %v2611 = vunpack.c.l.b16 %v976
    %v2612 = vunpack.c.h.b16 %v976
    %v2613 = vunpack.c.l.b16 %v977
    %v2614 = vunpack.c.h.b16 %v977
    %v2615 = vunpack.c.l.b16 %v978
    %v2616 = vunpack.c.h.b16 %v978
    %v2617 = vunpack.c.l.b16 %v979
    %v2618 = vunpack.c.h.b16 %v979
    %v2619 = vunpack.c.l.b16 %v980
    %v2620 = vunpack.c.h.b16 %v980
    %v2621 = vunpack.c.l.b16 %v981
    %v2622 = vunpack.c.h.b16 %v981
    %v2623 = vunpack.c.l.b16 %v982
    %v2624 = vunpack.c.h.b16 %v982
    %v2625 = vunpack.c.l.b16 %v983
    %v2626 = vunpack.c.h.b16 %v983
    %v2627 = vunpack.c.l.b16 %v984
    %v2628 = vunpack.c.h.b16 %v984
    %v2629 = vunpack.c.l.b16 %v985
    %v2630 = vunpack.c.h.b16 %v985
    %v2631 = vunpack.c.l.b16 %v986
    %v2632 = vunpack.c.h.b16 %v986
    %v2633 = vunpack.c.l.b16 %v987
    %v2634 = vunpack.c.h.b16 %v987
    %v2635 = vunpack.c.l.b16 %v988
    %v2636 = vunpack.c.h.b16 %v988
    %v2637 = vunpack.c.l.b16 %v989
    %v2638 = vunpack.c.h.b16 %v989
    %v2639 = vunpack.c.l.b16 %v990
    %v2640 = vunpack.c.h.b16 %v990
    %v2641 = vunpack.c.l.b16 %v991
    %v2642 = vunpack.c.h.b16 %v991
    %v2643 = vunpack.c.l.b16 %v992
    %v2644 = vunpack.c.h.b16 %v992
    %v2645 = vunpack.c.l.b16 %v993
    %v2646 = vunpack.c.h.b16 %v993
    %v2647 = vunpack.c.l.b16 %v994
    %v2648 = vunpack.c.h.b16 %v994
    %v2649 = vunpack.c.l.b16 %v995
    %v2650 = vunpack.c.h.b16 %v995
    %v2651 = vunpack.c.l.b16 %v996
    %v2652 = vunpack.c.h.b16 %v996
    %v2653 = vunpack.c.l.b16 %v997
    %v2654 = vunpack.c.h.b16 %v997
    %v2655 = vunpack.c.l.b16 %v998
    %v2656 = vunpack.c.h.b16 %v998
    %v2657 = vunpack.c.l.b16 %v999
    %v2658 = vunpack.c.h.b16 %v999
    %v2659 = vunpack.c.l.b16 %v1000
    %v2660 = vunpack.c.h.b16 %v1000
    %v2661 = vunpack.c.l.b16 %v1001
    %v2662 = vunpack.c.h.b16 %v1001
    %v2663 = vunpack.c.l.b16 %v1002
    %v2664 = vunpack.c.h.b16 %v1002
    %v2665 = vunpack.c.l.b16 %v1003
    %v2666 = vunpack.c.h.b16 %v1003
    %v2667 = vunpack.c.l.b16 %v1004
    %v2668 = vunpack.c.h.b16 %v1004
    %v2669 = vunpack.c.l.b16 %v1005
    %v2670 = vunpack.c.h.b16 %v1005
    %v2671 = vunpack.c.l.b16 %v1006
    %v2672 = vunpack.c.h.b16 %v1006
    %v2673 = vunpack.c.l.b16 %v1007
    %v2674 = vunpack.c.h.b16 %v1007
    %v2675 = vunpack.c.l.b16 %v1008
    %v2676 = vunpack.c.h.b16 %v1008
    %v2677 = vunpack.c.l.b16 %v1009
    %v2678 = vunpack.c.h.b16 %v1009
    %v2679 = vunpack.c.l.b16 %v1010
    %v2680 = vunpack.c.h.b16 %v1010
    %v2681 = vunpack.c.l.b16 %v1011
    %v2682 = vunpack.c.h.b16 %v1011
    %v2683 = vunpack.c.l.b16 %v1012
    %v2684 = vunpack.c.h.b16 %v1012
    %v2685 = vunpack.c.l.b16 %v1013
    %v2686 = vunpack.c.h.b16 %v1013
    %v2687 = vunpack.c.l.b16 %v1014
    %v2688 = vunpack.c.h.b16 %v1014
    %v2689 = vunpack.c.l.b16 %v1015
    %v2690 = vunpack.c.h.b16 %v1015
    %v2691 = vunpack.c.l.b16 %v1016
    %v2692 = vunpack.c.h.b16 %v1016
    %v2693 = vunpack.c.l.b16 %v1017
    %v2694 = vunpack.c.h.b16 %v1017
    %v2695 = vunpack.c.l.b16 %v1018
    %v2696 = vunpack.c.h.b16 %v1018
    %v2697 = vunpack.c.l.b16 %v1019
    %v2698 = vunpack.c.h.b16 %v1019
    %v2699 = vunpack.c.l.b16 %v1020
    %v2700 = vunpack.c.h.b16 %v1020
    %v2701 = vunpack.c.l.b16 %v1021
    %v2702 = vunpack.c.h.b16 %v1021
    %v2703 = vunpack.c.l.b16 %v1022
    %v2704 = vunpack.c.h.b16 %v1022
    %v2705 = vunpack.c.l.b16 %v1023
    %v2706 = vunpack.c.h.b16 %v1023
    %v2707 = vunpack.c.l.b16 %v1024
    %v2708 = vunpack.c.h.b16 %v1024
    %v2709 = vunpack.c.l.b16 %v1025
    %v2710 = vunpack.c.h.b16 %v1025
    %v2711 = vunpack.c.l.b16 %v1026
    %v2712 = vunpack.c.h.b16 %v1026
    %v2713 = vunpack.c.l.b16 %v1027
    %v2714 = vunpack.c.h.b16 %v1027
    %v2715 = vunpack.c.l.b16 %v1028
    %v2716 = vunpack.c.h.b16 %v1028
    %v2717 = vunpack.c.l.b16 %v1029
    %v2718 = vunpack.c.h.b16 %v1029
    %v2719 = vunpack.c.l.b16 %v1030
    %v2720 = vunpack.c.h.b16 %v1030
    %v2721 = vunpack.c.l.b16 %v1031
    %v2722 = vunpack.c.h.b16 %v1031
    %v2723 = vunpack.c.l.b16 %v1032
    %v2724 = vunpack.c.h.b16 %v1032
    %v2725 = vunpack.c.l.b16 %v1033
    %v2726 = vunpack.c.h.b16 %v1033
    %v2727 = vunpack.c.l.b16 %v1034
    %v2728 = vunpack.c.h.b16 %v1034
    %v2729 = vunpack.c.l.b16 %v1035
    %v2730 = vunpack.c.h.b16 %v1035
    %v2731 = vunpack.c.l.b16 %v1036
    %v2732 = vunpack.c.h.b16 %v1036
    %v2733 = vunpack.c.l.b16 %v1037
    %v2734 = vunpack.c.h.b16 %v1037
    %v2735 = vunpack.c.l.b16 %v1038
    %v2736 = vunpack.c.h.b16 %v1038
    %v2737 = vunpack.c.l.b16 %v1039
    %v2738 = vunpack.c.h.b16 %v1039
    %v2739 = vunpack.c.l.b16 %v1040
    %v2740 = vunpack.c.h.b16 %v1040
    %v2741 = vunpack.c.l.b16 %v1041
    %v2742 = vunpack.c.h.b16 %v1041
    %v2743 = vunpack.c.l.b16 %v1042
    %v2744 = vunpack.c.h.b16 %v1042
    %v2745 = vunpack.c.l.b16 %v1043
    %v2746 = vunpack.c.h.b16 %v1043
    %v2747 = vunpack.c.l.b16 %v1044
    %v2748 = vunpack.c.h.b16 %v1044
    %v2749 = vunpack.c.l.b16 %v1045
    %v2750 = vunpack.c.h.b16 %v1045
    %v2751 = vunpack.c.l.b16 %v1046
    %v2752 = vunpack.c.h.b16 %v1046
    %v2753 = vunpack.c.l.b16 %v1047
    %v2754 = vunpack.c.h.b16 %v1047
    %v2755 = vunpack.c.l.b16 %v1048
    %v2756 = vunpack.c.h.b16 %v1048
    %v2757 = vunpack.c.l.b16 %v1049
    %v2758 = vunpack.c.h.b16 %v1049
    %v2759 = vunpack.c.l.b16 %v1050
    %v2760 = vunpack.c.h.b16 %v1050
    %v2761 = vunpack.c.l.b16 %v1051
    %v2762 = vunpack.c.h.b16 %v1051
    %v2763 = vunpack.c.l.b16 %v1052
    %v2764 = vunpack.c.h.b16 %v1052
    %v2765 = vunpack.c.l.b16 %v1053
    %v2766 = vunpack.c.h.b16 %v1053
    %v2767 = vunpack.c.l.b16 %v1054
    %v2768 = vunpack.c.h.b16 %v1054
    %v2769 = vunpack.c.l.b16 %v1055
    %v2770 = vunpack.c.h.b16 %v1055
    %v2771 = vunpack.c.l.b16 %v1056
    %v2772 = vunpack.c.h.b16 %v1056
    %v2773 = vunpack.c.l.b16 %v1057
    %v2774 = vunpack.c.h.b16 %v1057
    %v2775 = vunpack.c.l.b16 %v1058
    %v2776 = vunpack.c.h.b16 %v1058
    %v2777 = vunpack.c.l.b16 %v1059
    %v2778 = vunpack.c.h.b16 %v1059
    %v2779 = vunpack.c.l.b16 %v1060
    %v2780 = vunpack.c.h.b16 %v1060
    %v2781 = vunpack.c.l.b16 %v1061
    %v2782 = vunpack.c.h.b16 %v1061
    %v2783 = vunpack.c.l.b16 %v1062
    %v2784 = vunpack.c.h.b16 %v1062
    %v2785 = vunpack.c.l.b16 %v1063
    %v2786 = vunpack.c.h.b16 %v1063
    %v2787 = vunpack.c.l.b16 %v1064
    %v2788 = vunpack.c.h.b16 %v1064
    %v2789 = vunpack.c.l.b16 %v1065
    %v2790 = vunpack.c.h.b16 %v1065
    %v2791 = vunpack.c.l.b16 %v1066
    %v2792 = vunpack.c.h.b16 %v1066
    %v2793 = vunpack.c.l.b16 %v1067
    %v2794 = vunpack.c.h.b16 %v1067
    %v2795 = vunpack.c.l.b16 %v1068
    %v2796 = vunpack.c.h.b16 %v1068
    %v2797 = vunpack.c.l.b16 %v1069
    %v2798 = vunpack.c.h.b16 %v1069
    %v2799 = vunpack.c.l.b16 %v1070
    %v2800 = vunpack.c.h.b16 %v1070
    %v2801 = vunpack.c.l.b16 %v1071
    %v2802 = vunpack.c.h.b16 %v1071
    %v2803 = vunpack.c.l.b16 %v1072
    %v2804 = vunpack.c.h.b16 %v1072
    %v2805 = vunpack.c.l.b16 %v1073
    %v2806 = vunpack.c.h.b16 %v1073
    %v2807 = vunpack.c.l.b16 %v1074
    %v2808 = vunpack.c.h.b16 %v1074
    %v2809 = vunpack.c.l.b16 %v1075
    %v2810 = vunpack.c.h.b16 %v1075
    %v2811 = vunpack.c.l.b16 %v1076
    %v2812 = vunpack.c.h.b16 %v1076
    %v2813 = vunpack.c.l.b16 %v1077
    %v2814 = vunpack.c.h.b16 %v1077
    %v2815 = vunpack.c.l.b16 %v1078
    %v2816 = vunpack.c.h.b16 %v1078
    %v2817 = vunpack.c.l.b16 %v1079
    %v2818 = vunpack.c.h.b16 %v1079
    %v2819 = vunpack.c.l.b16 %v1080
    %v2820 = vunpack.c.h.b16 %v1080
    %v2821 = vunpack.c.l.b16 %v1081
    %v2822 = vunpack.c.h.b16 %v1081
    %v2823 = vunpack.c.l.b16 %v1082
    %v2824 = vunpack.c.h.b16 %v1082
    %v2825 = vunpack.c.l.b16 %v1083
    %v2826 = vunpack.c.h.b16 %v1083
    %v2827 = vunpack.c.l.b16 %v1084
    %v2828 = vunpack.c.h.b16 %v1084
    %v2829 = vunpack.c.l.b16 %v1085
    %v2830 = vunpack.c.h.b16 %v1085
    %v2831 = vunpack.c.l.b16 %v1086
    %v2832 = vunpack.c.h.b16 %v1086
    %v2833 = vunpack.c.l.b16 %v1087
    %v2834 = vunpack.c.h.b16 %v1087
    %v2835 = vunpack.c.l.b16 %v1088
    %v2836 = vunpack.c.h.b16 %v1088
    %v2837 = vunpack.c.l.b16 %v1089
    %v2838 = vunpack.c.h.b16 %v1089
    %v2839 = vunpack.c.l.b16 %v1090
    %v2840 = vunpack.c.h.b16 %v1090
    %v2841 = vunpack.c.l.b16 %v1091
    %v2842 = vunpack.c.h.b16 %v1091
    %v2843 = vunpack.c.l.b16 %v1092
    %v2844 = vunpack.c.h.b16 %v1092
    %v2845 = vunpack.c.l.b16 %v1093
    %v2846 = vunpack.c.h.b16 %v1093
    %v2847 = vunpack.c.l.b16 %v1094
    %v2848 = vunpack.c.h.b16 %v1094
    %v2849 = vunpack.c.l.b16 %v1095
    %v2850 = vunpack.c.h.b16 %v1095
    %v2851 = vunpack.c.l.b16 %v1096
    %v2852 = vunpack.c.h.b16 %v1096
    %v2853 = vunpack.c.l.b16 %v1097
    %v2854 = vunpack.c.h.b16 %v1097
    %v2855 = vunpack.c.l.b16 %v1098
    %v2856 = vunpack.c.h.b16 %v1098
    %v2857 = vunpack.c.l.b16 %v1099
    %v2858 = vunpack.c.h.b16 %v1099
    %v2859 = vunpack.c.l.b16 %v1100
    %v2860 = vunpack.c.h.b16 %v1100
    %v2861 = vunpack.c.l.b16 %v1101
    %v2862 = vunpack.c.h.b16 %v1101
    %v2863 = vunpack.c.l.b16 %v1102
    %v2864 = vunpack.c.h.b16 %v1102
    %v2865 = vunpack.c.l.b16 %v1103
    %v2866 = vunpack.c.h.b16 %v1103
    %v2867 = vunpack.c.l.b16 %v1104
    %v2868 = vunpack.c.h.b16 %v1104
    %v2869 = vunpack.c.l.b16 %v1105
    %v2870 = vunpack.c.h.b16 %v1105
    %v2871 = vunpack.c.l.b16 %v1106
    %v2872 = vunpack.c.h.b16 %v1106
    %v2873 = vunpack.c.l.b16 %v1107
    %v2874 = vunpack.c.h.b16 %v1107
    %v2875 = vunpack.c.l.b16 %v1108
    %v2876 = vunpack.c.h.b16 %v1108
    %v2877 = vunpack.c.l.b16 %v1109
    %v2878 = vunpack.c.h.b16 %v1109
    %v2879 = vunpack.c.l.b16 %v1110
    %v2880 = vunpack.c.h.b16 %v1110
    %v2881 = vunpack.c.l.b16 %v1111
    %v2882 = vunpack.c.h.b16 %v1111
    %v2883 = vunpack.c.l.b16 %v1112
    %v2884 = vunpack.c.h.b16 %v1112
    %v2885 = vunpack.c.l.b16 %v1113
    %v2886 = vunpack.c.h.b16 %v1113
    %v2887 = vunpack.c.l.b16 %v1114
    %v2888 = vunpack.c.h.b16 %v1114
    %v2889 = vunpack.c.l.b16 %v1115
    %v2890 = vunpack.c.h.b16 %v1115
    %v2891 = vunpack.c.l.b16 %v1116
    %v2892 = vunpack.c.h.b16 %v1116
    %v2893 = vunpack.c.l.b16 %v1117
    %v2894 = vunpack.c.h.b16 %v1117
    %v2895 = vunpack.c.l.b16 %v1118
    %v2896 = vunpack.c.h.b16 %v1118
    %v2897 = vunpack.c.l.b16 %v1119
    %v2898 = vunpack.c.h.b16 %v1119
    %v2899 = vunpack.c.l.b16 %v1120
    %v2900 = vunpack.c.h.b16 %v1120
    %v2901 = vunpack.c.l.b16 %v1121
    %v2902 = vunpack.c.h.b16 %v1121
    %v2903 = vunpack.c.l.b16 %v1122
    %v2904 = vunpack.c.h.b16 %v1122
    %v2905 = vunpack.c.l.b16 %v1123
    %v2906 = vunpack.c.h.b16 %v1123
    %v2907 = vunpack.c.l.b16 %v1124
    %v2908 = vunpack.c.h.b16 %v1124
    %v2909 = vunpack.c.l.b16 %v1125
    %v2910 = vunpack.c.h.b16 %v1125
    %v2911 = vunpack.c.l.b16 %v1126
    %v2912 = vunpack.c.h.b16 %v1126
    %v2913 = vunpack.c.l.b16 %v1127
    %v2914 = vunpack.c.h.b16 %v1127
    %v2915 = vunpack.c.l.b16 %v1128
    %v2916 = vunpack.c.h.b16 %v1128
    %v2917 = vunpack.c.l.b16 %v1129
    %v2918 = vunpack.c.h.b16 %v1129
    %v2919 = vunpack.c.l.b16 %v1130
    %v2920 = vunpack.c.h.b16 %v1130
    %v2921 = vunpack.c.l.b16 %v1131
    %v2922 = vunpack.c.h.b16 %v1131
    %v2923 = vunpack.c.l.b16 %v1132
    %v2924 = vunpack.c.h.b16 %v1132
    %v2925 = vunpack.c.l.b16 %v1133
    %v2926 = vunpack.c.h.b16 %v1133
    %v2927 = vunpack.c.l.b16 %v1134
    %v2928 = vunpack.c.h.b16 %v1134
    %v2929 = vunpack.c.l.b16 %v1135
    %v2930 = vunpack.c.h.b16 %v1135
    %v2931 = vunpack.c.l.b16 %v1136
    %v2932 = vunpack.c.h.b16 %v1136
    %v2933 = vunpack.c.l.b16 %v1137
    %v2934 = vunpack.c.h.b16 %v1137
    %v2935 = vunpack.c.l.b16 %v1138
    %v2936 = vunpack.c.h.b16 %v1138
    %v2937 = vunpack.c.l.b16 %v1139
    %v2938 = vunpack.c.h.b16 %v1139
    %v2939 = vunpack.c.l.b16 %v1140
    %v2940 = vunpack.c.h.b16 %v1140
    %v2941 = vunpack.c.l.b16 %v1141
    %v2942 = vunpack.c.h.b16 %v1141
    %v2943 = vunpack.c.l.b16 %v1142
    %v2944 = vunpack.c.h.b16 %v1142
    %v2945 = vunpack.c.l.b16 %v1143
    %v2946 = vunpack.c.h.b16 %v1143
    %v2947 = vunpack.c.l.b16 %v1144
    %v2948 = vunpack.c.h.b16 %v1144
    %v2949 = vunpack.c.l.b16 %v1145
    %v2950 = vunpack.c.h.b16 %v1145
    %v2951 = vunpack.c.l.b16 %v1146
    %v2952 = vunpack.c.h.b16 %v1146
    %v2953 = vunpack.c.l.b16 %v1147
    %v2954 = vunpack.c.h.b16 %v1147
    %v2955 = vunpack.c.l.b16 %v1148
    %v2956 = vunpack.c.h.b16 %v1148
    %v2957 = vunpack.c.l.b16 %v1149
    %v2958 = vunpack.c.h.b16 %v1149
    %v2959 = vunpack.c.l.b16 %v1150
    %v2960 = vunpack.c.h.b16 %v1150
    %v2961 = vunpack.c.l.b16 %v1151
    %v2962 = vunpack.c.h.b16 %v1151
    %v2963 = vunpack.c.l.b16 %v1152
    %v2964 = vunpack.c.h.b16 %v1152
    %v2965 = vunpack.c.l.b16 %v1153
    %v2966 = vunpack.c.h.b16 %v1153
    %v2967 = vunpack.c.l.b16 %v1154
    %v2968 = vunpack.c.h.b16 %v1154
    %v2969 = vunpack.c.l.b16 %v1155
    %v2970 = vunpack.c.h.b16 %v1155
    %v2971 = vunpack.c.l.b16 %v1156
    %v2972 = vunpack.c.h.b16 %v1156
    %v2973 = vunpack.c.l.b16 %v1157
    %v2974 = vunpack.c.h.b16 %v1157
    %v2975 = vunpack.c.l.b16 %v1158
    %v2976 = vunpack.c.h.b16 %v1158
    %v2977 = vunpack.c.l.b16 %v1159
    %v2978 = vunpack.c.h.b16 %v1159
    %v2979 = vunpack.c.l.b16 %v1160
    %v2980 = vunpack.c.h.b16 %v1160
    %v2981 = vunpack.c.l.b16 %v1161
    %v2982 = vunpack.c.h.b16 %v1161
    %v2983 = vunpack.c.l.b16 %v1162
    %v2984 = vunpack.c.h.b16 %v1162
    %v2985 = vpack.c.b16 %v1789, %v1785
    %v2986 = vpack.c.b16 %v1790, %v1786
    %v2987 = vpack.c.b16 %v1791, %v1787
    %v2988 = vpack.c.b16 %v1792, %v1788
    %v2989 = vpack.c.b16 %v1797, %v1793
    %v2990 = vpack.c.b16 %v1798, %v1794
    %v2991 = vpack.c.b16 %v1799, %v1795
    %v2992 = vpack.c.b16 %v1800, %v1796
    %v2993 = vpack.c.b16 %v1805, %v1801
    %v2994 = vpack.c.b16 %v1806, %v1802
    %v2995 = vpack.c.b16 %v1807, %v1803
    %v2996 = vpack.c.b16 %v1808, %v1804
    %v2997 = vpack.c.b16 %v1813, %v1809
    %v2998 = vpack.c.b16 %v1814, %v1810
    %v2999 = vpack.c.b16 %v1815, %v1811
    %v3000 = vpack.c.b16 %v1816, %v1812
    %v3001 = vpack.c.b16 %v1821, %v1817
    %v3002 = vpack.c.b16 %v1822, %v1818
    %v3003 = vpack.c.b16 %v1823, %v1819
    %v3004 = vpack.c.b16 %v1824, %v1820
    %v3005 = vpack.c.b16 %v1829, %v1825
    %v3006 = vpack.c.b16 %v1830, %v1826
    %v3007 = vpack.c.b16 %v1831, %v1827
    %v3008 = vpack.c.b16 %v1832, %v1828
    %v3009 = vpack.c.b16 %v1837, %v1833
    %v3010 = vpack.c.b16 %v1838, %v1834
    %v3011 = vpack.c.b16 %v1839, %v1835
    %v3012 = vpack.c.b16 %v1840, %v1836
    %v3013 = vpack.c.b16 %v1845, %v1841
    %v3014 = vpack.c.b16 %v1846, %v1842
    %v3015 = vpack.c.b16 %v1847, %v1843
    %v3016 = vpack.c.b16 %v1848, %v1844
    %v3017 = vpack.c.b16 %v1853, %v1849
    %v3018 = vpack.c.b16 %v1854, %v1850
    %v3019 = vpack.c.b16 %v1855, %v1851
    %v3020 = vpack.c.b16 %v1856, %v1852
    %v3021 = vpack.c.b16 %v1861, %v1857
    %v3022 = vpack.c.b16 %v1862, %v1858
    %v3023 = vpack.c.b16 %v1863, %v1859
    %v3024 = vpack.c.b16 %v1864, %v1860
    %v3025 = vpack.c.b16 %v1869, %v1865
    %v3026 = vpack.c.b16 %v1870, %v1866
    %v3027 = vpack.c.b16 %v1871, %v1867
    %v3028 = vpack.c.b16 %v1872, %v1868
    %v3029 = vpack.c.b16 %v1877, %v1873
    %v3030 = vpack.c.b16 %v1878, %v1874
    %v3031 = vpack.c.b16 %v1879, %v1875
    %v3032 = vpack.c.b16 %v1880, %v1876
    %v3033 = vpack.c.b16 %v1885, %v1881
    %v3034 = vpack.c.b16 %v1886, %v1882
    %v3035 = vpack.c.b16 %v1887, %v1883
    %v3036 = vpack.c.b16 %v1888, %v1884
    %v3037 = vpack.c.b16 %v1893, %v1889
    %v3038 = vpack.c.b16 %v1894, %v1890
    %v3039 = vpack.c.b16 %v1895, %v1891
    %v3040 = vpack.c.b16 %v1896, %v1892
    %v3041 = vpack.c.b16 %v1901, %v1897
    %v3042 = vpack.c.b16 %v1902, %v1898
    %v3043 = vpack.c.b16 %v1903, %v1899
    %v3044 = vpack.c.b16 %v1904, %v1900
    %v3045 = vpack.c.b16 %v1909, %v1905
    %v3046 = vpack.c.b16 %v1910, %v1906
    %v3047 = vpack.c.b16 %v1911, %v1907
    %v3048 = vpack.c.b16 %v1912, %v1908
    %v3049 = vpack.c.b16 %v1917, %v1913
    %v3050 = vpack.c.b16 %v1918, %v1914
    %v3051 = vpack.c.b16 %v1919, %v1915
    %v3052 = vpack.c.b16 %v1920, %v1916
    %v3053 = vpack.c.b16 %v1925, %v1921
    %v3054 = vpack.c.b16 %v1926, %v1922
    %v3055 = vpack.c.b16 %v1927, %v1923
    %v3056 = vpack.c.b16 %v1928, %v1924
    %v3057 = vpack.c.b16 %v1933, %v1929
    %v3058 = vpack.c.b16 %v1934, %v1930
    %v3059 = vpack.c.b16 %v1935, %v1931
    %v3060 = vpack.c.b16 %v1936, %v1932
    %v3061 = vpack.c.b16 %v1941, %v1937
    %v3062 = vpack.c.b16 %v1942, %v1938
    %v3063 = vpack.c.b16 %v1943, %v1939
    %v3064 = vpack.c.b16 %v1944, %v1940
    %v3065 = vpack.c.b16 %v1949, %v1945
    %v3066 = vpack.c.b16 %v1950, %v1946
    %v3067 = vpack.c.b16 %v1951, %v1947
    %v3068 = vpack.c.b16 %v1952, %v1948
    %v3069 = vpack.c.b16 %v1957, %v1953
    %v3070 = vpack.c.b16 %v1958, %v1954
    %v3071 = vpack.c.b16 %v1959, %v1955
    %v3072 = vpack.c.b16 %v1960, %v1956
    %v3073 = vpack.c.b16 %v1965, %v1961
    %v3074 = vpack.c.b16 %v1966, %v1962
    %v3075 = vpack.c.b16 %v1967, %v1963
    %v3076 = vpack.c.b16 %v1968, %v1964
    %v3077 = vpack.c.b16 %v1973, %v1969
    %v3078 = vpack.c.b16 %v1974, %v1970
    %v3079 = vpack.c.b16 %v1975, %v1971
    %v3080 = vpack.c.b16 %v1976, %v1972
    %v3081 = vpack.c.b16 %v1981, %v1977
    %v3082 = vpack.c.b16 %v1982, %v1978
    %v3083 = vpack.c.b16 %v1983, %v1979
    %v3084 = vpack.c.b16 %v1984, %v1980
    %v3085 = vpack.c.b16 %v1989, %v1985
    %v3086 = vpack.c.b16 %v1990, %v1986
    %v3087 = vpack.c.b16 %v1991, %v1987
    %v3088 = vpack.c.b16 %v1992, %v1988
    %v3089 = vpack.c.b16 %v1997, %v1993
    %v3090 = vpack.c.b16 %v1998, %v1994
    %v3091 = vpack.c.b16 %v1999, %v1995
    %v3092 = vpack.c.b16 %v2000, %v1996
    %v3093 = vpack.c.b16 %v2005, %v2001
    %v3094 = vpack.c.b16 %v2006, %v2002
    %v3095 = vpack.c.b16 %v2007, %v2003
    %v3096 = vpack.c.b16 %v2008, %v2004
    %v3097 = vpack.c.b16 %v2013, %v2009
    %v3098 = vpack.c.b16 %v2014, %v2010
    %v3099 = vpack.c.b16 %v2015, %v2011
    %v3100 = vpack.c.b16 %v2016, %v2012
    %v3101 = vpack.c.b16 %v2021, %v2017
    %v3102 = vpack.c.b16 %v2022, %v2018
    %v3103 = vpack.c.b16 %v2023, %v2019
    %v3104 = vpack.c.b16 %v2024, %v2020
    %v3105 = vpack.c.b16 %v2029, %v2025
    %v3106 = vpack.c.b16 %v2030, %v2026
    %v3107 = vpack.c.b16 %v2031, %v2027
    %v3108 = vpack.c.b16 %v2032, %v2028
    %v3109 = vpack.c.b16 %v2037, %v2033
    %v3110 = vpack.c.b16 %v2038, %v2034
    %v3111 = vpack.c.b16 %v2039, %v2035
    %v3112 = vpack.c.b16 %v2040, %v2036
    %v3113 = vpack.c.b16 %v2045, %v2041
    %v3114 = vpack.c.b16 %v2046, %v2042
    %v3115 = vpack.c.b16 %v2047, %v2043
    %v3116 = vpack.c.b16 %v2048, %v2044
    %v3117 = vpack.c.b16 %v2053, %v2049
    %v3118 = vpack.c.b16 %v2054, %v2050
    %v3119 = vpack.c.b16 %v2055, %v2051
    %v3120 = vpack.c.b16 %v2056, %v2052
    %v3121 = vpack.c.b16 %v2061, %v2057
    %v3122 = vpack.c.b16 %v2062, %v2058
    %v3123 = vpack.c.b16 %v2063, %v2059
    %v3124 = vpack.c.b16 %v2064, %v2060
    %v3125 = vpack.c.b16 %v2069, %v2065
    %v3126 = vpack.c.b16 %v2070, %v2066
    %v3127 = vpack.c.b16 %v2071, %v2067
    %v3128 = vpack.c.b16 %v2072, %v2068
    %v3129 = vpack.c.b16 %v2077, %v2073
    %v3130 = vpack.c.b16 %v2078, %v2074
    %v3131 = vpack.c.b16 %v2079, %v2075
    %v3132 = vpack.c.b16 %v2080, %v2076
    %v3133 = vpack.c.b16 %v2085, %v2081
    %v3134 = vpack.c.b16 %v2086, %v2082
    %v3135 = vpack.c.b16 %v2087, %v2083
    %v3136 = vpack.c.b16 %v2088, %v2084
    %v3137 = vpack.c.b16 %v2093, %v2089
    %v3138 = vpack.c.b16 %v2094, %v2090
    %v3139 = vpack.c.b16 %v2095, %v2091
    %v3140 = vpack.c.b16 %v2096, %v2092
    %v3141 = vpack.c.b16 %v2101, %v2097
    %v3142 = vpack.c.b16 %v2102, %v2098
    %v3143 = vpack.c.b16 %v2103, %v2099
    %v3144 = vpack.c.b16 %v2104, %v2100
    %v3145 = vpack.c.b16 %v2109, %v2105
    %v3146 = vpack.c.b16 %v2110, %v2106
    %v3147 = vpack.c.b16 %v2111, %v2107
    %v3148 = vpack.c.b16 %v2112, %v2108
    %v3149 = vpack.c.b16 %v2117, %v2113
    %v3150 = vpack.c.b16 %v2118, %v2114
    %v3151 = vpack.c.b16 %v2119, %v2115
    %v3152 = vpack.c.b16 %v2120, %v2116
    %v3153 = vpack.c.b16 %v2125, %v2121
    %v3154 = vpack.c.b16 %v2126, %v2122
    %v3155 = vpack.c.b16 %v2127, %v2123
    %v3156 = vpack.c.b16 %v2128, %v2124
    %v3157 = vpack.c.b16 %v2133, %v2129
    %v3158 = vpack.c.b16 %v2134, %v2130
    %v3159 = vpack.c.b16 %v2135, %v2131
    %v3160 = vpack.c.b16 %v2136, %v2132
    %v3161 = vpack.c.b16 %v2141, %v2137
    %v3162 = vpack.c.b16 %v2142, %v2138
    %v3163 = vpack.c.b16 %v2143, %v2139
    %v3164 = vpack.c.b16 %v2144, %v2140
    %v3165 = vpack.c.b16 %v2149, %v2145
    %v3166 = vpack.c.b16 %v2150, %v2146
    %v3167 = vpack.c.b16 %v2151, %v2147
    %v3168 = vpack.c.b16 %v2152, %v2148
    %v3169 = vpack.c.b16 %v2157, %v2153
    %v3170 = vpack.c.b16 %v2158, %v2154
    %v3171 = vpack.c.b16 %v2159, %v2155
    %v3172 = vpack.c.b16 %v2160, %v2156
    %v3173 = vpack.c.b16 %v2165, %v2161
    %v3174 = vpack.c.b16 %v2166, %v2162
    %v3175 = vpack.c.b16 %v2167, %v2163
    %v3176 = vpack.c.b16 %v2168, %v2164
    %v3177 = vpack.c.b16 %v2173, %v2169
    %v3178 = vpack.c.b16 %v2174, %v2170
    %v3179 = vpack.c.b16 %v2175, %v2171
    %v3180 = vpack.c.b16 %v2176, %v2172
    %v3181 = vpack.c.b16 %v2181, %v2177
    %v3182 = vpack.c.b16 %v2182, %v2178
    %v3183 = vpack.c.b16 %v2183, %v2179
    %v3184 = vpack.c.b16 %v2184, %v2180
    %v3185 = vpack.c.b16 %v2189, %v2185
    %v3186 = vpack.c.b16 %v2190, %v2186
    %v3187 = vpack.c.b16 %v2191, %v2187
    %v3188 = vpack.c.b16 %v2192, %v2188
    %v3189 = vpack.c.b16 %v2197, %v2193
    %v3190 = vpack.c.b16 %v2198, %v2194
    %v3191 = vpack.c.b16 %v2199, %v2195
    %v3192 = vpack.c.b16 %v2200, %v2196
    %v3193 = vpack.c.b16 %v2205, %v2201
    %v3194 = vpack.c.b16 %v2206, %v2202
    %v3195 = vpack.c.b16 %v2207, %v2203
    %v3196 = vpack.c.b16 %v2208, %v2204
    %v3197 = vpack.c.b16 %v2213, %v2209
    %v3198 = vpack.c.b16 %v2214, %v2210
    %v3199 = vpack.c.b16 %v2215, %v2211
    %v3200 = vpack.c.b16 %v2216, %v2212
    %v3201 = vpack.c.b16 %v2221, %v2217
    %v3202 = vpack.c.b16 %v2222, %v2218
    %v3203 = vpack.c.b16 %v2223, %v2219
    %v3204 = vpack.c.b16 %v2224, %v2220
    %v3205 = vpack.c.b16 %v2229, %v2225
    %v3206 = vpack.c.b16 %v2230, %v2226
    %v3207 = vpack.c.b16 %v2231, %v2227
    %v3208 = vpack.c.b16 %v2232, %v2228
    %v3209 = vpack.c.b16 %v2237, %v2233
    %v3210 = vpack.c.b16 %v2238, %v2234
    %v3211 = vpack.c.b16 %v2239, %v2235
    %v3212 = vpack.c.b16 %v2240, %v2236
    %v3213 = vpack.c.b16 %v2245, %v2241
    %v3214 = vpack.c.b16 %v2246, %v2242
    %v3215 = vpack.c.b16 %v2247, %v2243
    %v3216 = vpack.c.b16 %v2248, %v2244
    %v3217 = vpack.c.b16 %v2253, %v2249
    %v3218 = vpack.c.b16 %v2254, %v2250
    %v3219 = vpack.c.b16 %v2255, %v2251
    %v3220 = vpack.c.b16 %v2256, %v2252
    %v3221 = vpack.c.b16 %v2261, %v2257
    %v3222 = vpack.c.b16 %v2262, %v2258
    %v3223 = vpack.c.b16 %v2263, %v2259
    %v3224 = vpack.c.b16 %v2264, %v2260
    %v3225 = vpack.c.b16 %v2269, %v2265
    %v3226 = vpack.c.b16 %v2270, %v2266
    %v3227 = vpack.c.b16 %v2271, %v2267
    %v3228 = vpack.c.b16 %v2272, %v2268
    %v3229 = vpack.c.b16 %v2277, %v2273
    %v3230 = vpack.c.b16 %v2278, %v2274
    %v3231 = vpack.c.b16 %v2279, %v2275
    %v3232 = vpack.c.b16 %v2280, %v2276
    %v3233 = vpack.c.b16 %v2285, %v2281
    %v3234 = vpack.c.b16 %v2286, %v2282
    %v3235 = vpack.c.b16 %v2287, %v2283
    %v3236 = vpack.c.b16 %v2288, %v2284
    %v3237 = vpack.c.b16 %v2293, %v2289
    %v3238 = vpack.c.b16 %v2294, %v2290
    %v3239 = vpack.c.b16 %v2295, %v2291
    %v3240 = vpack.c.b16 %v2296, %v2292
    %v3241 = vpack.c.b16 %v2301, %v2297
    %v3242 = vpack.c.b16 %v2302, %v2298
    %v3243 = vpack.c.b16 %v2303, %v2299
    %v3244 = vpack.c.b16 %v2304, %v2300
    %v3245 = vpack.c.b16 %v2309, %v2305
    %v3246 = vpack.c.b16 %v2310, %v2306
    %v3247 = vpack.c.b16 %v2311, %v2307
    %v3248 = vpack.c.b16 %v2312, %v2308
    %v3249 = vpack.c.b16 %v2317, %v2313
    %v3250 = vpack.c.b16 %v2318, %v2314
    %v3251 = vpack.c.b16 %v2319, %v2315
    %v3252 = vpack.c.b16 %v2320, %v2316
    %v3253 = vpack.c.b16 %v2325, %v2321
    %v3254 = vpack.c.b16 %v2326, %v2322
    %v3255 = vpack.c.b16 %v2327, %v2323
    %v3256 = vpack.c.b16 %v2328, %v2324
    %v3257 = vpack.c.b16 %v2333, %v2329
    %v3258 = vpack.c.b16 %v2334, %v2330
    %v3259 = vpack.c.b16 %v2335, %v2331
    %v3260 = vpack.c.b16 %v2336, %v2332
    %v3261 = vpack.c.b16 %v2341, %v2337
    %v3262 = vpack.c.b16 %v2342, %v2338
    %v3263 = vpack.c.b16 %v2343, %v2339
    %v3264 = vpack.c.b16 %v2344, %v2340
    %v3265 = vpack.c.b16 %v2349, %v2345
    %v3266 = vpack.c.b16 %v2350, %v2346
    %v3267 = vpack.c.b16 %v2351, %v2347
    %v3268 = vpack.c.b16 %v2352, %v2348
    %v3269 = vpack.c.b16 %v2357, %v2353
    %v3270 = vpack.c.b16 %v2358, %v2354
    %v3271 = vpack.c.b16 %v2359, %v2355
    %v3272 = vpack.c.b16 %v2360, %v2356
    %v3273 = vpack.c.b16 %v2365, %v2361
    %v3274 = vpack.c.b16 %v2366, %v2362
    %v3275 = vpack.c.b16 %v2367, %v2363
    %v3276 = vpack.c.b16 %v2368, %v2364
    %v3277 = vpack.c.b16 %v2373, %v2369
    %v3278 = vpack.c.b16 %v2374, %v2370
    %v3279 = vpack.c.b16 %v2375, %v2371
    %v3280 = vpack.c.b16 %v2376, %v2372
    %v3281 = vpack.c.b16 %v2381, %v2377
    %v3282 = vpack.c.b16 %v2382, %v2378
    %v3283 = vpack.c.b16 %v2383, %v2379
    %v3284 = vpack.c.b16 %v2384, %v2380
    %v3285 = vpack.c.b16 %v2389, %v2385
    %v3286 = vpack.c.b16 %v2390, %v2386
    %v3287 = vpack.c.b16 %v2391, %v2387
    %v3288 = vpack.c.b16 %v2392, %v2388
    %v3289 = vpack.c.b16 %v2397, %v2393
    %v3290 = vpack.c.b16 %v2398, %v2394
    %v3291 = vpack.c.b16 %v2399, %v2395
    %v3292 = vpack.c.b16 %v2400, %v2396
    %v3293 = vpack.c.b16 %v2405, %v2401
    %v3294 = vpack.c.b16 %v2406, %v2402
    %v3295 = vpack.c.b16 %v2407, %v2403
    %v3296 = vpack.c.b16 %v2408, %v2404
    %v3297 = vpack.c.b16 %v2413, %v2409
    %v3298 = vpack.c.b16 %v2414, %v2410
    %v3299 = vpack.c.b16 %v2415, %v2411
    %v3300 = vpack.c.b16 %v2416, %v2412
    %v3301 = vpack.c.b16 %v2421, %v2417
    %v3302 = vpack.c.b16 %v2422, %v2418
    %v3303 = vpack.c.b16 %v2423, %v2419
    %v3304 = vpack.c.b16 %v2424, %v2420
    %v3305 = vpack.c.b16 %v2429, %v2425
    %v3306 = vpack.c.b16 %v2430, %v2426
    %v3307 = vpack.c.b16 %v2431, %v2427
    %v3308 = vpack.c.b16 %v2432, %v2428
    %v3309 = vpack.c.b16 %v2437, %v2433
    %v3310 = vpack.c.b16 %v2438, %v2434
    %v3311 = vpack.c.b16 %v2439, %v2435
    %v3312 = vpack.c.b16 %v2440, %v2436
    %v3313 = vpack.c.b16 %v2445, %v2441
    %v3314 = vpack.c.b16 %v2446, %v2442
    %v3315 = vpack.c.b16 %v2447, %v2443
    %v3316 = vpack.c.b16 %v2448, %v2444
    %v3317 = vpack.c.b16 %v2453, %v2449
    %v3318 = vpack.c.b16 %v2454, %v2450
    %v3319 = vpack.c.b16 %v2455, %v2451
    %v3320 = vpack.c.b16 %v2456, %v2452
    %v3321 = vpack.c.b16 %v2461, %v2457
    %v3322 = vpack.c.b16 %v2462, %v2458
    %v3323 = vpack.c.b16 %v2463, %v2459
    %v3324 = vpack.c.b16 %v2464, %v2460
    %v3325 = vpack.c.b16 %v2469, %v2465
    %v3326 = vpack.c.b16 %v2470, %v2466
    %v3327 = vpack.c.b16 %v2471, %v2467
    %v3328 = vpack.c.b16 %v2472, %v2468
    %v3329 = vpack.c.b16 %v2477, %v2473
    %v3330 = vpack.c.b16 %v2478, %v2474
    %v3331 = vpack.c.b16 %v2479, %v2475
    %v3332 = vpack.c.b16 %v2480, %v2476
    %v3333 = vpack.c.b16 %v2485, %v2481
    %v3334 = vpack.c.b16 %v2486, %v2482
    %v3335 = vpack.c.b16 %v2487, %v2483
    %v3336 = vpack.c.b16 %v2488, %v2484
    %v3337 = vpack.c.b16 %v2493, %v2489
    %v3338 = vpack.c.b16 %v2494, %v2490
    %v3339 = vpack.c.b16 %v2495, %v2491
    %v3340 = vpack.c.b16 %v2496, %v2492
    %v3341 = vpack.c.b16 %v2501, %v2497
    %v3342 = vpack.c.b16 %v2502, %v2498
    %v3343 = vpack.c.b16 %v2503, %v2499
    %v3344 = vpack.c.b16 %v2504, %v2500
    %v3345 = vpack.c.b16 %v2509, %v2505
    %v3346 = vpack.c.b16 %v2510, %v2506
    %v3347 = vpack.c.b16 %v2511, %v2507
    %v3348 = vpack.c.b16 %v2512, %v2508
    %v3349 = vpack.c.b16 %v2517, %v2513
    %v3350 = vpack.c.b16 %v2518, %v2514
    %v3351 = vpack.c.b16 %v2519, %v2515
    %v3352 = vpack.c.b16 %v2520, %v2516
    %v3353 = vpack.c.b16 %v2525, %v2521
    %v3354 = vpack.c.b16 %v2526, %v2522
    %v3355 = vpack.c.b16 %v2527, %v2523
    %v3356 = vpack.c.b16 %v2528, %v2524
    %v3357 = vpack.c.b16 %v2533, %v2529
    %v3358 = vpack.c.b16 %v2534, %v2530
    %v3359 = vpack.c.b16 %v2535, %v2531
    %v3360 = vpack.c.b16 %v2536, %v2532
    %v3361 = vpack.c.b16 %v2541, %v2537
    %v3362 = vpack.c.b16 %v2542, %v2538
    %v3363 = vpack.c.b16 %v2543, %v2539
    %v3364 = vpack.c.b16 %v2544, %v2540
    %v3365 = vpack.c.b16 %v2549, %v2545
    %v3366 = vpack.c.b16 %v2550, %v2546
    %v3367 = vpack.c.b16 %v2551, %v2547
    %v3368 = vpack.c.b16 %v2552, %v2548
    %v3369 = vpack.c.b16 %v2557, %v2553
    %v3370 = vpack.c.b16 %v2558, %v2554
    %v3371 = vpack.c.b16 %v2559, %v2555
    %v3372 = vpack.c.b16 %v2560, %v2556
    %v3373 = vpack.c.b16 %v2565, %v2561
    %v3374 = vpack.c.b16 %v2566, %v2562
    %v3375 = vpack.c.b16 %v2567, %v2563
    %v3376 = vpack.c.b16 %v2568, %v2564
    %v3377 = vpack.c.b16 %v2573, %v2569
    %v3378 = vpack.c.b16 %v2574, %v2570
    %v3379 = vpack.c.b16 %v2575, %v2571
    %v3380 = vpack.c.b16 %v2576, %v2572
    %v3381 = vpack.c.b16 %v2581, %v2577
    %v3382 = vpack.c.b16 %v2582, %v2578
    %v3383 = vpack.c.b16 %v2583, %v2579
    %v3384 = vpack.c.b16 %v2584, %v2580
    %v3385 = vpack.c.b16 %v2589, %v2585
    %v3386 = vpack.c.b16 %v2590, %v2586
    %v3387 = vpack.c.b16 %v2591, %v2587
    %v3388 = vpack.c.b16 %v2592, %v2588
    %v3389 = vpack.c.b16 %v2597, %v2593
    %v3390 = vpack.c.b16 %v2598, %v2594
    %v3391 = vpack.c.b16 %v2599, %v2595
    %v3392 = vpack.c.b16 %v2600, %v2596
    %v3393 = vpack.c.b16 %v2605, %v2601
    %v3394 = vpack.c.b16 %v2606, %v2602
    %v3395 = vpack.c.b16 %v2607, %v2603
    %v3396 = vpack.c.b16 %v2608, %v2604
    %v3397 = vpack.c.b16 %v2613, %v2609
    %v3398 = vpack.c.b16 %v2614, %v2610
    %v3399 = vpack.c.b16 %v2615, %v2611
    %v3400 = vpack.c.b16 %v2616, %v2612
    %v3401 = vpack.c.b16 %v2621, %v2617
    %v3402 = vpack.c.b16 %v2622, %v2618
    %v3403 = vpack.c.b16 %v2623, %v2619
    %v3404 = vpack.c.b16 %v2624, %v2620
    %v3405 = vpack.c.b16 %v2629, %v2625
    %v3406 = vpack.c.b16 %v2630, %v2626
    %v3407 = vpack.c.b16 %v2631, %v2627
    %v3408 = vpack.c.b16 %v2632, %v2628
    %v3409 = vpack.c.b16 %v2637, %v2633
    %v3410 = vpack.c.b16 %v2638, %v2634
    %v3411 = vpack.c.b16 %v2639, %v2635
    %v3412 = vpack.c.b16 %v2640, %v2636
    %v3413 = vpack.c.b16 %v2645, %v2641
    %v3414 = vpack.c.b16 %v2646, %v2642
    %v3415 = vpack.c.b16 %v2647, %v2643
    %v3416 = vpack.c.b16 %v2648, %v2644
    %v3417 = vpack.c.b16 %v2653, %v2649
    %v3418 = vpack.c.b16 %v2654, %v2650
    %v3419 = vpack.c.b16 %v2655, %v2651
    %v3420 = vpack.c.b16 %v2656, %v2652
    %v3421 = vpack.c.b16 %v2661, %v2657
    %v3422 = vpack.c.b16 %v2662, %v2658
    %v3423 = vpack.c.b16 %v2663, %v2659
    %v3424 = vpack.c.b16 %v2664, %v2660
    %v3425 = vpack.c.b16 %v2669, %v2665
    %v3426 = vpack.c.b16 %v2670, %v2666
    %v3427 = vpack.c.b16 %v2671, %v2667
    %v3428 = vpack.c.b16 %v2672, %v2668
    %v3429 = vpack.c.b16 %v2677, %v2673
    %v3430 = vpack.c.b16 %v2678, %v2674
    %v3431 = vpack.c.b16 %v2679, %v2675
    %v3432 = vpack.c.b16 %v2680, %v2676
    %v3433 = vpack.c.b16 %v2685, %v2681
    %v3434 = vpack.c.b16 %v2686, %v2682
    %v3435 = vpack.c.b16 %v2687, %v2683
    %v3436 = vpack.c.b16 %v2688, %v2684
    %v3437 = vpack.c.b16 %v2693, %v2689
    %v3438 = vpack.c.b16 %v2694, %v2690
    %v3439 = vpack.c.b16 %v2695, %v2691
    %v3440 = vpack.c.b16 %v2696, %v2692
    %v3441 = vpack.c.b16 %v2701, %v2697
    %v3442 = vpack.c.b16 %v2702, %v2698
    %v3443 = vpack.c.b16 %v2703, %v2699
    %v3444 = vpack.c.b16 %v2704, %v2700
    %v3445 = vpack.c.b16 %v2709, %v2705
    %v3446 = vpack.c.b16 %v2710, %v2706
    %v3447 = vpack.c.b16 %v2711, %v2707
    %v3448 = vpack.c.b16 %v2712, %v2708
    %v3449 = vpack.c.b16 %v2717, %v2713
    %v3450 = vpack.c.b16 %v2718, %v2714
    %v3451 = vpack.c.b16 %v2719, %v2715
    %v3452 = vpack.c.b16 %v2720, %v2716
    %v3453 = vpack.c.b16 %v2725, %v2721
    %v3454 = vpack.c.b16 %v2726, %v2722
    %v3455 = vpack.c.b16 %v2727, %v2723
    %v3456 = vpack.c.b16 %v2728, %v2724
    %v3457 = vpack.c.b16 %v2733, %v2729
    %v3458 = vpack.c.b16 %v2734, %v2730
    %v3459 = vpack.c.b16 %v2735, %v2731
    %v3460 = vpack.c.b16 %v2736, %v2732
    %v3461 = vpack.c.b16 %v2741, %v2737
    %v3462 = vpack.c.b16 %v2742, %v2738
    %v3463 = vpack.c.b16 %v2743, %v2739
    %v3464 = vpack.c.b16 %v2744, %v2740
    %v3465 = vpack.c.b16 %v2749, %v2745
    %v3466 = vpack.c.b16 %v2750, %v2746
    %v3467 = vpack.c.b16 %v2751, %v2747
    %v3468 = vpack.c.b16 %v2752, %v2748
    %v3469 = vpack.c.b16 %v2757, %v2753
    %v3470 = vpack.c.b16 %v2758, %v2754
    %v3471 = vpack.c.b16 %v2759, %v2755
    %v3472 = vpack.c.b16 %v2760, %v2756
    %v3473 = vpack.c.b16 %v2765, %v2761
    %v3474 = vpack.c.b16 %v2766, %v2762
    %v3475 = vpack.c.b16 %v2767, %v2763
    %v3476 = vpack.c.b16 %v2768, %v2764
    %v3477 = vpack.c.b16 %v2773, %v2769
    %v3478 = vpack.c.b16 %v2774, %v2770
    %v3479 = vpack.c.b16 %v2775, %v2771
    %v3480 = vpack.c.b16 %v2776, %v2772
    %v3481 = vpack.c.b16 %v2781, %v2777
    %v3482 = vpack.c.b16 %v2782, %v2778
    %v3483 = vpack.c.b16 %v2783, %v2779
    %v3484 = vpack.c.b16 %v2784, %v2780
    %v3485 = vpack.c.b16 %v2789, %v2785
    %v3486 = vpack.c.b16 %v2790, %v2786
    %v3487 = vpack.c.b16 %v2791, %v2787
    %v3488 = vpack.c.b16 %v2792, %v2788
    %v3489 = vpack.c.b16 %v2797, %v2793
    %v3490 = vpack.c.b16 %v2798, %v2794
    %v3491 = vpack.c.b16 %v2799, %v2795
    %v3492 = vpack.c.b16 %v2800, %v2796
    %v3493 = vpack.c.b16 %v2805, %v2801
    %v3494 = vpack.c.b16 %v2806, %v2802
    %v3495 = vpack.c.b16 %v2807, %v2803
    %v3496 = vpack.c.b16 %v2808, %v2804
    %v3497 = vpack.c.b16 %v2813, %v2809
    %v3498 = vpack.c.b16 %v2814, %v2810
    %v3499 = vpack.c.b16 %v2815, %v2811
    %v3500 = vpack.c.b16 %v2816, %v2812
    %v3501 = vpack.c.b16 %v2821, %v2817
    %v3502 = vpack.c.b16 %v2822, %v2818
    %v3503 = vpack.c.b16 %v2823, %v2819
    %v3504 = vpack.c.b16 %v2824, %v2820
    %v3505 = vpack.c.b16 %v2829, %v2825
    %v3506 = vpack.c.b16 %v2830, %v2826
    %v3507 = vpack.c.b16 %v2831, %v2827
    %v3508 = vpack.c.b16 %v2832, %v2828
    %v3509 = vpack.c.b16 %v2837, %v2833
    %v3510 = vpack.c.b16 %v2838, %v2834
    %v3511 = vpack.c.b16 %v2839, %v2835
    %v3512 = vpack.c.b16 %v2840, %v2836
    %v3513 = vpack.c.b16 %v2845, %v2841
    %v3514 = vpack.c.b16 %v2846, %v2842
    %v3515 = vpack.c.b16 %v2847, %v2843
    %v3516 = vpack.c.b16 %v2848, %v2844
    %v3517 = vpack.c.b16 %v2853, %v2849
    %v3518 = vpack.c.b16 %v2854, %v2850
    %v3519 = vpack.c.b16 %v2855, %v2851
    %v3520 = vpack.c.b16 %v2856, %v2852
    %v3521 = vpack.c.b16 %v2861, %v2857
    %v3522 = vpack.c.b16 %v2862, %v2858
    %v3523 = vpack.c.b16 %v2863, %v2859
    %v3524 = vpack.c.b16 %v2864, %v2860
    %v3525 = vpack.c.b16 %v2869, %v2865
    %v3526 = vpack.c.b16 %v2870, %v2866
    %v3527 = vpack.c.b16 %v2871, %v2867
    %v3528 = vpack.c.b16 %v2872, %v2868
    %v3529 = vpack.c.b16 %v2877, %v2873
    %v3530 = vpack.c.b16 %v2878, %v2874
    %v3531 = vpack.c.b16 %v2879, %v2875
    %v3532 = vpack.c.b16 %v2880, %v2876
    %v3533 = vpack.c.b16 %v2885, %v2881
    %v3534 = vpack.c.b16 %v2886, %v2882
    %v3535 = vpack.c.b16 %v2887, %v2883
    %v3536 = vpack.c.b16 %v2888, %v2884
    %v3537 = vpack.c.b16 %v2893, %v2889
    %v3538 = vpack.c.b16 %v2894, %v2890
    %v3539 = vpack.c.b16 %v2895, %v2891
    %v3540 = vpack.c.b16 %v2896, %v2892
    %v3541 = vpack.c.b16 %v2901, %v2897
    %v3542 = vpack.c.b16 %v2902, %v2898
    %v3543 = vpack.c.b16 %v2903, %v2899
    %v3544 = vpack.c.b16 %v2904, %v2900
    %v3545 = vpack.c.b16 %v2909, %v2905
    %v3546 = vpack.c.b16 %v2910, %v2906
    %v3547 = vpack.c.b16 %v2911, %v2907
    %v3548 = vpack.c.b16 %v2912, %v2908
    %v3549 = vpack.c.b16 %v2917, %v2913
    %v3550 = vpack.c.b16 %v2918, %v2914
    %v3551 = vpack.c.b16 %v2919, %v2915
    %v3552 = vpack.c.b16 %v2920, %v2916
    %v3553 = vpack.c.b16 %v2925, %v2921
    %v3554 = vpack.c.b16 %v2926, %v2922
    %v3555 = vpack.c.b16 %v2927, %v2923
    %v3556 = vpack.c.b16 %v2928, %v2924
    %v3557 = vpack.c.b16 %v2933, %v2929
    %v3558 = vpack.c.b16 %v2934, %v2930
    %v3559 = vpack.c.b16 %v2935, %v2931
    %v3560 = vpack.c.b16 %v2936, %v2932
    %v3561 = vpack.c.b16 %v2941, %v2937
    %v3562 = vpack.c.b16 %v2942, %v2938
    %v3563 = vpack.c.b16 %v2943, %v2939
    %v3564 = vpack.c.b16 %v2944, %v2940
    %v3565 = vpack.c.b16 %v2949, %v2945
    %v3566 = vpack.c.b16 %v2950, %v2946
    %v3567 = vpack.c.b16 %v2951, %v2947
    %v3568 = vpack.c.b16 %v2952, %v2948
    %v3569 = vpack.c.b16 %v2957, %v2953
    %v3570 = vpack.c.b16 %v2958, %v2954
    %v3571 = vpack.c.b16 %v2959, %v2955
    %v3572 = vpack.c.b16 %v2960, %v2956
    %v3573 = vpack.c.b16 %v2965, %v2961
    %v3574 = vpack.c.b16 %v2966, %v2962
    %v3575 = vpack.c.b16 %v2967, %v2963
    %v3576 = vpack.c.b16 %v2968, %v2964
    %v3577 = vpack.c.b16 %v2973, %v2969
    %v3578 = vpack.c.b16 %v2974, %v2970
    %v3579 = vpack.c.b16 %v2975, %v2971
    %v3580 = vpack.c.b16 %v2976, %v2972
    %v3581 = vpack.c.b16 %v2981, %v2977
    %v3582 = vpack.c.b16 %v2982, %v2978
    %v3583 = vpack.c.b16 %v2983, %v2979
    %v3584 = vpack.c.b16 %v2984, %v2980
    %vm4185 = vcmask 785408
    %v4187 = vsel %vm4185, %v562, 0
    %4189 = vmatprep.subr.bf16.mxu0 %v2986
    %4190 = vmatpush1.bf16.msra.mxu0 %v2985
    %4191 = vmatprep.subr.bf16.mxu0 %v2990
    %4192 = vmatpush1.bf16.msra.mxu0 %v2989
    %4193 = vmatprep.subr.bf16.mxu0 %v2994
    %4194 = vmatpush1.bf16.msra.mxu0 %v2993
    %4195 = vmatprep.subr.bf16.mxu0 %v2998
    %4196 = vmatpush1.bf16.msra.mxu0 %v2997
    %4197 = vmatprep.subr.bf16.mxu0 %v3002
    %4198 = vmatpush1.bf16.msra.mxu0 %v3001
    %4199 = vmatprep.subr.bf16.mxu0 %v3006
    %4200 = vmatpush1.bf16.msra.mxu0 %v3005
    %4201 = vmatprep.subr.bf16.mxu0 %v3010
    %4202 = vmatpush1.bf16.msra.mxu0 %v3009
    %4203 = vmatprep.subr.bf16.mxu0 %v3014
    %4204 = vmatpush1.bf16.msra.mxu0 %v3013
    %4205 = vmatprep.subr.bf16.mxu0 %v3018
    %4206 = vmatpush1.bf16.msra.mxu0 %v3017
    %4207 = vmatprep.subr.bf16.mxu0 %v3022
    %4208 = vmatpush1.bf16.msra.mxu0 %v3021
    %4209 = vmatprep.subr.bf16.mxu0 %v3026
    %4210 = vmatpush1.bf16.msra.mxu0 %v3025
    %4211 = vmatprep.subr.bf16.mxu0 %v3030
    %4212 = vmatpush1.bf16.msra.mxu0 %v3029
    %4213 = vmatprep.subr.bf16.mxu0 %v3034
    %4214 = vmatpush1.bf16.msra.mxu0 %v3033
    %4215 = vmatprep.subr.bf16.mxu0 %v3038
    %4216 = vmatpush1.bf16.msra.mxu0 %v3037
    %4217 = vmatprep.subr.bf16.mxu0 %v3042
    %4218 = vmatpush1.bf16.msra.mxu0 %v3041
    %4219 = vmatprep.subr.bf16.mxu0 %v3046
    %4220 = vmatpush1.bf16.msra.mxu0 %v3045
    %4221 = vmatprep.mubr.bf16.mxu0 %v545
    %4222 = vmatmul.mubr.bf16.gmra.mrb[0].mxu0 %v544
    %v4223 = vpop.f32.mrb[0].mxu0
    %v4224 = vadd.f32 %v1168, %v4223
    %v4225 = vpop.f32.mrb[0].mxu0
    %v4226 = vadd.f32 %v1172, %v4225
    %v4227 = vpop.f32.mrb[0].mxu0
    %v4228 = vpop.f32.mrb[0].mxu0
    %4229 = vdwg.mxu0
    %4230 = vmatprep.subr.bf16.mxu0 %v3050
    %4231 = vmatpush1.bf16.msra.mxu0 %v3049
    %4232 = vmatprep.subr.bf16.mxu0 %v3054
    %4233 = vmatpush1.bf16.msra.mxu0 %v3053
    %4234 = vmatprep.subr.bf16.mxu0 %v3058
    %4235 = vmatpush1.bf16.msra.mxu0 %v3057
    %4236 = vmatprep.subr.bf16.mxu0 %v3062
    %4237 = vmatpush1.bf16.msra.mxu0 %v3061
    %4238 = vmatprep.subr.bf16.mxu0 %v3066
    %4239 = vmatpush1.bf16.msra.mxu0 %v3065
    %4240 = vmatprep.subr.bf16.mxu0 %v3070
    %4241 = vmatpush1.bf16.msra.mxu0 %v3069
    %4242 = vmatprep.subr.bf16.mxu0 %v3074
    %4243 = vmatpush1.bf16.msra.mxu0 %v3073
    %4244 = vmatprep.subr.bf16.mxu0 %v3078
    %4245 = vmatpush1.bf16.msra.mxu0 %v3077
    %4246 = vmatprep.subr.bf16.mxu0 %v3082
    %4247 = vmatpush1.bf16.msra.mxu0 %v3081
    %4248 = vmatprep.subr.bf16.mxu0 %v3086
    %4249 = vmatpush1.bf16.msra.mxu0 %v3085
    %4250 = vmatprep.subr.bf16.mxu0 %v3090
    %4251 = vmatpush1.bf16.msra.mxu0 %v3089
    %4252 = vmatprep.subr.bf16.mxu0 %v3094
    %4253 = vmatpush1.bf16.msra.mxu0 %v3093
    %4254 = vmatprep.subr.bf16.mxu0 %v3098
    %4255 = vmatpush1.bf16.msra.mxu0 %v3097
    %4256 = vmatprep.subr.bf16.mxu0 %v3102
    %4257 = vmatpush1.bf16.msra.mxu0 %v3101
    %4258 = vmatprep.subr.bf16.mxu0 %v3106
    %4259 = vmatpush1.bf16.msra.mxu0 %v3105
    %4260 = vmatprep.subr.bf16.mxu0 %v3110
    %4261 = vmatpush1.bf16.msra.mxu0 %v3109
    %4262 = vmatprep.mubr.bf16.mxu0 %v547
    %4263 = vmatmul.mubr.bf16.gmra.mrb[0].mxu0 %v546
    %v4264 = vpop.f32.mrb[0].mxu0
    %v4265 = vadd.f32 %v4224, %v4264
    %v4266 = vpop.f32.mrb[0].mxu0
    %v4267 = vadd.f32 %v4226, %v4266
    %v4268 = vpop.f32.mrb[0].mxu0
    %v4269 = vpop.f32.mrb[0].mxu0
    %4270 = vdwg.mxu0
    %4271 = vmatprep.subr.bf16.mxu0 %v3114
    %4272 = vmatpush1.bf16.msra.mxu0 %v3113
    %4273 = vmatprep.subr.bf16.mxu0 %v3118
    %4274 = vmatpush1.bf16.msra.mxu0 %v3117
    %4275 = vmatprep.subr.bf16.mxu0 %v3122
    %4276 = vmatpush1.bf16.msra.mxu0 %v3121
    %4277 = vmatprep.subr.bf16.mxu0 %v3126
    %4278 = vmatpush1.bf16.msra.mxu0 %v3125
    %4279 = vmatprep.subr.bf16.mxu0 %v3130
    %4280 = vmatpush1.bf16.msra.mxu0 %v3129
    %4281 = vmatprep.subr.bf16.mxu0 %v3134
    %4282 = vmatpush1.bf16.msra.mxu0 %v3133
    %4283 = vmatprep.subr.bf16.mxu0 %v3138
    %4284 = vmatpush1.bf16.msra.mxu0 %v3137
    %4285 = vmatprep.subr.bf16.mxu0 %v3142
    %4286 = vmatpush1.bf16.msra.mxu0 %v3141
    %4287 = vmatprep.subr.bf16.mxu0 %v3146
    %4288 = vmatpush1.bf16.msra.mxu0 %v3145
    %4289 = vmatprep.subr.bf16.mxu0 %v3150
    %4290 = vmatpush1.bf16.msra.mxu0 %v3149
    %4291 = vmatprep.subr.bf16.mxu0 %v3154
    %4292 = vmatpush1.bf16.msra.mxu0 %v3153
    %4293 = vmatprep.subr.bf16.mxu0 %v3158
    %4294 = vmatpush1.bf16.msra.mxu0 %v3157
    %4295 = vmatprep.subr.bf16.mxu0 %v3162
    %4296 = vmatpush1.bf16.msra.mxu0 %v3161
    %4297 = vmatprep.subr.bf16.mxu0 %v3166
    %4298 = vmatpush1.bf16.msra.mxu0 %v3165
    %4299 = vmatprep.subr.bf16.mxu0 %v3170
    %4300 = vmatpush1.bf16.msra.mxu0 %v3169
    %4301 = vmatprep.subr.bf16.mxu0 %v3174
    %4302 = vmatpush1.bf16.msra.mxu0 %v3173
    %4303 = vmatprep.mubr.bf16.mxu0 %v549
    %4304 = vmatmul.mubr.bf16.gmra.mrb[0].mxu0 %v548
    %v4305 = vpop.f32.mrb[0].mxu0
    %v4306 = vadd.f32 %v4265, %v4305
    %v4307 = vpop.f32.mrb[0].mxu0
    %v4308 = vadd.f32 %v4267, %v4307
    %v4309 = vpop.f32.mrb[0].mxu0
    %v4310 = vpop.f32.mrb[0].mxu0
    %4311 = vdwg.mxu0
    %4312 = vmatprep.subr.bf16.mxu0 %v3178
    %4313 = vmatpush1.bf16.msra.mxu0 %v3177
    %4314 = vmatprep.subr.bf16.mxu0 %v3182
    %4315 = vmatpush1.bf16.msra.mxu0 %v3181
    %4316 = vmatprep.subr.bf16.mxu0 %v3186
    %4317 = vmatpush1.bf16.msra.mxu0 %v3185
    %4318 = vmatprep.subr.bf16.mxu0 %v3190
    %4319 = vmatpush1.bf16.msra.mxu0 %v3189
    %4320 = vmatprep.subr.bf16.mxu0 %v3194
    %4321 = vmatpush1.bf16.msra.mxu0 %v3193
    %4322 = vmatprep.subr.bf16.mxu0 %v3198
    %4323 = vmatpush1.bf16.msra.mxu0 %v3197
    %4324 = vmatprep.subr.bf16.mxu0 %v3202
    %4325 = vmatpush1.bf16.msra.mxu0 %v3201
    %4326 = vmatprep.subr.bf16.mxu0 %v3206
    %4327 = vmatpush1.bf16.msra.mxu0 %v3205
    %4328 = vmatprep.subr.bf16.mxu0 %v3210
    %4329 = vmatpush1.bf16.msra.mxu0 %v3209
    %4330 = vmatprep.subr.bf16.mxu0 %v3214
    %4331 = vmatpush1.bf16.msra.mxu0 %v3213
    %4332 = vmatprep.subr.bf16.mxu0 %v3218
    %4333 = vmatpush1.bf16.msra.mxu0 %v3217
    %4334 = vmatprep.subr.bf16.mxu0 %v3222
    %4335 = vmatpush1.bf16.msra.mxu0 %v3221
    %4336 = vmatprep.subr.bf16.mxu0 %v3226
    %4337 = vmatpush1.bf16.msra.mxu0 %v3225
    %4338 = vmatprep.subr.bf16.mxu0 %v3230
    %4339 = vmatpush1.bf16.msra.mxu0 %v3229
    %4340 = vmatprep.subr.bf16.mxu0 %v3234
    %4341 = vmatpush1.bf16.msra.mxu0 %v3233
    %4342 = vmatprep.subr.bf16.mxu0 %v3238
    %4343 = vmatpush1.bf16.msra.mxu0 %v3237
    %4344 = vmatprep.mubr.bf16.mxu0 %v551
    %4345 = vmatmul.mubr.bf16.gmra.mrb[0].mxu0 %v550
    %v4346 = vpop.f32.mrb[0].mxu0
    %v4347 = vadd.f32 %v4306, %v4346
    %v4348 = vpop.f32.mrb[0].mxu0
    %v4349 = vadd.f32 %v4308, %v4348
    %v4350 = vpop.f32.mrb[0].mxu0
    %v4351 = vpop.f32.mrb[0].mxu0
    %4352 = vdwg.mxu0
    %4353 = vmatprep.subr.bf16.mxu0 %v3242
    %4354 = vmatpush1.bf16.msra.mxu0 %v3241
    %4355 = vmatprep.subr.bf16.mxu0 %v3246
    %4356 = vmatpush1.bf16.msra.mxu0 %v3245
    %4357 = vmatprep.subr.bf16.mxu0 %v3250
    %4358 = vmatpush1.bf16.msra.mxu0 %v3249
    %4359 = vmatprep.subr.bf16.mxu0 %v3254
    %4360 = vmatpush1.bf16.msra.mxu0 %v3253
    %4361 = vmatprep.subr.bf16.mxu0 %v3258
    %4362 = vmatpush1.bf16.msra.mxu0 %v3257
    %4363 = vmatprep.subr.bf16.mxu0 %v3262
    %4364 = vmatpush1.bf16.msra.mxu0 %v3261
    %4365 = vmatprep.subr.bf16.mxu0 %v3266
    %4366 = vmatpush1.bf16.msra.mxu0 %v3265
    %4367 = vmatprep.subr.bf16.mxu0 %v3270
    %4368 = vmatpush1.bf16.msra.mxu0 %v3269
    %4369 = vmatprep.subr.bf16.mxu0 %v3274
    %4370 = vmatpush1.bf16.msra.mxu0 %v3273
    %4371 = vmatprep.subr.bf16.mxu0 %v3278
    %4372 = vmatpush1.bf16.msra.mxu0 %v3277
    %4373 = vmatprep.subr.bf16.mxu0 %v3282
    %4374 = vmatpush1.bf16.msra.mxu0 %v3281
    %4375 = vmatprep.subr.bf16.mxu0 %v3286
    %4376 = vmatpush1.bf16.msra.mxu0 %v3285
    %4377 = vmatprep.subr.bf16.mxu0 %v3290
    %4378 = vmatpush1.bf16.msra.mxu0 %v3289
    %4379 = vmatprep.subr.bf16.mxu0 %v3294
    %4380 = vmatpush1.bf16.msra.mxu0 %v3293
    %4381 = vmatprep.subr.bf16.mxu0 %v3298
    %4382 = vmatpush1.bf16.msra.mxu0 %v3297
    %4383 = vmatprep.subr.bf16.mxu0 %v3302
    %4384 = vmatpush1.bf16.msra.mxu0 %v3301
    %4385 = vmatprep.mubr.bf16.mxu0 %v553
    %4386 = vmatmul.mubr.bf16.gmra.mrb[0].mxu0 %v552
    %v4387 = vpop.f32.mrb[0].mxu0
    %v4388 = vadd.f32 %v4347, %v4387
    %v4389 = vpop.f32.mrb[0].mxu0
    %v4390 = vadd.f32 %v4349, %v4389
    %v4391 = vpop.f32.mrb[0].mxu0
    %v4392 = vpop.f32.mrb[0].mxu0
    %4393 = vdwg.mxu0
    %4394 = vmatprep.subr.bf16.mxu0 %v3306
    %4395 = vmatpush1.bf16.msra.mxu0 %v3305
    %4396 = vmatprep.subr.bf16.mxu0 %v3310
    %4397 = vmatpush1.bf16.msra.mxu0 %v3309
    %4398 = vmatprep.subr.bf16.mxu0 %v3314
    %4399 = vmatpush1.bf16.msra.mxu0 %v3313
    %4400 = vmatprep.subr.bf16.mxu0 %v3318
    %4401 = vmatpush1.bf16.msra.mxu0 %v3317
    %4402 = vmatprep.subr.bf16.mxu0 %v3322
    %4403 = vmatpush1.bf16.msra.mxu0 %v3321
    %4404 = vmatprep.subr.bf16.mxu0 %v3326
    %4405 = vmatpush1.bf16.msra.mxu0 %v3325
    %4406 = vmatprep.subr.bf16.mxu0 %v3330
    %4407 = vmatpush1.bf16.msra.mxu0 %v3329
    %4408 = vmatprep.subr.bf16.mxu0 %v3334
    %4409 = vmatpush1.bf16.msra.mxu0 %v3333
    %4410 = vmatprep.subr.bf16.mxu0 %v3338
    %4411 = vmatpush1.bf16.msra.mxu0 %v3337
    %4412 = vmatprep.subr.bf16.mxu0 %v3342
    %4413 = vmatpush1.bf16.msra.mxu0 %v3341
    %4414 = vmatprep.subr.bf16.mxu0 %v3346
    %4415 = vmatpush1.bf16.msra.mxu0 %v3345
    %4416 = vmatprep.subr.bf16.mxu0 %v3350
    %4417 = vmatpush1.bf16.msra.mxu0 %v3349
    %4418 = vmatprep.subr.bf16.mxu0 %v3354
    %4419 = vmatpush1.bf16.msra.mxu0 %v3353
    %4420 = vmatprep.subr.bf16.mxu0 %v3358
    %4421 = vmatpush1.bf16.msra.mxu0 %v3357
    %4422 = vmatprep.subr.bf16.mxu0 %v3362
    %4423 = vmatpush1.bf16.msra.mxu0 %v3361
    %4424 = vmatprep.subr.bf16.mxu0 %v3366
    %4425 = vmatpush1.bf16.msra.mxu0 %v3365
    %4426 = vmatprep.mubr.bf16.mxu0 %v555
    %4427 = vmatmul.mubr.bf16.gmra.mrb[0].mxu0 %v554
    %v4428 = vpop.f32.mrb[0].mxu0
    %v4429 = vadd.f32 %v4388, %v4428
    %v4430 = vpop.f32.mrb[0].mxu0
    %v4431 = vadd.f32 %v4390, %v4430
    %v4432 = vpop.f32.mrb[0].mxu0
    %v4433 = vpop.f32.mrb[0].mxu0
    %4434 = vdwg.mxu0
    %4435 = vmatprep.subr.bf16.mxu0 %v3370
    %4436 = vmatpush1.bf16.msra.mxu0 %v3369
    %4437 = vmatprep.subr.bf16.mxu0 %v3374
    %4438 = vmatpush1.bf16.msra.mxu0 %v3373
    %4439 = vmatprep.subr.bf16.mxu0 %v3378
    %4440 = vmatpush1.bf16.msra.mxu0 %v3377
    %4441 = vmatprep.subr.bf16.mxu0 %v3382
    %4442 = vmatpush1.bf16.msra.mxu0 %v3381
    %4443 = vmatprep.subr.bf16.mxu0 %v3386
    %4444 = vmatpush1.bf16.msra.mxu0 %v3385
    %4445 = vmatprep.subr.bf16.mxu0 %v3390
    %4446 = vmatpush1.bf16.msra.mxu0 %v3389
    %4447 = vmatprep.subr.bf16.mxu0 %v3394
    %4448 = vmatpush1.bf16.msra.mxu0 %v3393
    %4449 = vmatprep.subr.bf16.mxu0 %v3398
    %4450 = vmatpush1.bf16.msra.mxu0 %v3397
    %4451 = vmatprep.subr.bf16.mxu0 %v3402
    %4452 = vmatpush1.bf16.msra.mxu0 %v3401
    %4453 = vmatprep.subr.bf16.mxu0 %v3406
    %4454 = vmatpush1.bf16.msra.mxu0 %v3405
    %4455 = vmatprep.subr.bf16.mxu0 %v3410
    %4456 = vmatpush1.bf16.msra.mxu0 %v3409
    %4457 = vmatprep.subr.bf16.mxu0 %v3414
    %4458 = vmatpush1.bf16.msra.mxu0 %v3413
    %4459 = vmatprep.subr.bf16.mxu0 %v3418
    %4460 = vmatpush1.bf16.msra.mxu0 %v3417
    %4461 = vmatprep.subr.bf16.mxu0 %v3422
    %4462 = vmatpush1.bf16.msra.mxu0 %v3421
    %4463 = vmatprep.subr.bf16.mxu0 %v3426
    %4464 = vmatpush1.bf16.msra.mxu0 %v3425
    %4465 = vmatprep.subr.bf16.mxu0 %v3430
    %4466 = vmatpush1.bf16.msra.mxu0 %v3429
    %4467 = vmatprep.mubr.bf16.mxu0 %v557
    %4468 = vmatmul.mubr.bf16.gmra.mrb[0].mxu0 %v556
    %v4469 = vpop.f32.mrb[0].mxu0
    %v4470 = vadd.f32 %v4429, %v4469
    %v4471 = vpop.f32.mrb[0].mxu0
    %v4472 = vadd.f32 %v4431, %v4471
    %v4473 = vpop.f32.mrb[0].mxu0
    %v4474 = vpop.f32.mrb[0].mxu0
    %4475 = vdwg.mxu0
    %4476 = vmatprep.subr.bf16.mxu0 %v3434
    %4477 = vmatpush1.bf16.msra.mxu0 %v3433
    %4478 = vmatprep.subr.bf16.mxu0 %v3438
    %4479 = vmatpush1.bf16.msra.mxu0 %v3437
    %4480 = vmatprep.subr.bf16.mxu0 %v3442
    %4481 = vmatpush1.bf16.msra.mxu0 %v3441
    %4482 = vmatprep.subr.bf16.mxu0 %v3446
    %4483 = vmatpush1.bf16.msra.mxu0 %v3445
    %4484 = vmatprep.subr.bf16.mxu0 %v3450
    %4485 = vmatpush1.bf16.msra.mxu0 %v3449
    %4486 = vmatprep.subr.bf16.mxu0 %v3454
    %4487 = vmatpush1.bf16.msra.mxu0 %v3453
    %4488 = vmatprep.subr.bf16.mxu0 %v3458
    %4489 = vmatpush1.bf16.msra.mxu0 %v3457
    %4490 = vmatprep.subr.bf16.mxu0 %v3462
    %4491 = vmatpush1.bf16.msra.mxu0 %v3461
    %4492 = vmatprep.subr.bf16.mxu0 %v3466
    %4493 = vmatpush1.bf16.msra.mxu0 %v3465
    %4494 = vmatprep.subr.bf16.mxu0 %v3470
    %4495 = vmatpush1.bf16.msra.mxu0 %v3469
    %4496 = vmatprep.subr.bf16.mxu0 %v3474
    %4497 = vmatpush1.bf16.msra.mxu0 %v3473
    %4498 = vmatprep.subr.bf16.mxu0 %v3478
    %4499 = vmatpush1.bf16.msra.mxu0 %v3477
    %4500 = vmatprep.subr.bf16.mxu0 %v3482
    %4501 = vmatpush1.bf16.msra.mxu0 %v3481
    %4502 = vmatprep.subr.bf16.mxu0 %v3486
    %4503 = vmatpush1.bf16.msra.mxu0 %v3485
    %4504 = vmatprep.subr.bf16.mxu0 %v3490
    %4505 = vmatpush1.bf16.msra.mxu0 %v3489
    %4506 = vmatprep.subr.bf16.mxu0 %v3494
    %4507 = vmatpush1.bf16.msra.mxu0 %v3493
    %4508 = vmatprep.mubr.bf16.mxu0 %v559
    %4509 = vmatmul.mubr.bf16.gmra.mrb[0].mxu0 %v558
    %v4510 = vpop.f32.mrb[0].mxu0
    %v4511 = vadd.f32 %v4470, %v4510
    %v4512 = vpop.f32.mrb[0].mxu0
    %v4513 = vadd.f32 %v4472, %v4512
    %v4514 = vpop.f32.mrb[0].mxu0
    %v4515 = vpop.f32.mrb[0].mxu0
    %4516 = vdwg.mxu0
    %4517 = vmatprep.subr.bf16.mxu0 %v3498
    %4518 = vmatpush1.bf16.msra.mxu0 %v3497
    %4519 = vmatprep.subr.bf16.mxu0 %v3502
    %4520 = vmatpush1.bf16.msra.mxu0 %v3501
    %4521 = vmatprep.subr.bf16.mxu0 %v3506
    %4522 = vmatpush1.bf16.msra.mxu0 %v3505
    %4523 = vmatprep.subr.bf16.mxu0 %v3510
    %4524 = vmatpush1.bf16.msra.mxu0 %v3509
    %4525 = vmatprep.subr.bf16.mxu0 %v3514
    %4526 = vmatpush1.bf16.msra.mxu0 %v3513
    %4527 = vmatprep.subr.bf16.mxu0 %v3518
    %4528 = vmatpush1.bf16.msra.mxu0 %v3517
    %4529 = vmatprep.subr.bf16.mxu0 %v3522
    %4530 = vmatpush1.bf16.msra.mxu0 %v3521
    %4531 = vmatprep.subr.bf16.mxu0 %v3526
    %4532 = vmatpush1.bf16.msra.mxu0 %v3525
    %4533 = vmatprep.subr.bf16.mxu0 %v3530
    %4534 = vmatpush1.bf16.msra.mxu0 %v3529
    %4535 = vmatprep.subr.bf16.mxu0 %v3534
    %4536 = vmatpush1.bf16.msra.mxu0 %v3533
    %4537 = vmatprep.subr.bf16.mxu0 %v3538
    %4538 = vmatpush1.bf16.msra.mxu0 %v3537
    %4539 = vmatprep.subr.bf16.mxu0 %v3542
    %4540 = vmatpush1.bf16.msra.mxu0 %v3541
    %4541 = vmatprep.subr.bf16.mxu0 %v3546
    %4542 = vmatpush1.bf16.msra.mxu0 %v3545
    %4543 = vmatprep.subr.bf16.mxu0 %v3550
    %4544 = vmatpush1.bf16.msra.mxu0 %v3549
    %4545 = vmatprep.subr.bf16.mxu0 %v3554
    %4546 = vmatpush1.bf16.msra.mxu0 %v3553
    %4547 = vmatprep.subr.bf16.mxu0 %v3558
    %4548 = vmatpush1.bf16.msra.mxu0 %v3557
    %4549 = vmatprep.mubr.bf16.mxu0 %v561
    %4550 = vmatmul.mubr.bf16.gmra.mrb[0].mxu0 %v560
    %v4551 = vpop.f32.mrb[0].mxu0
    %v4552 = vadd.f32 %v4511, %v4551
    %v4553 = vpop.f32.mrb[0].mxu0
    %v4554 = vadd.f32 %v4513, %v4553
    %v4555 = vpop.f32.mrb[0].mxu0
    %v4556 = vpop.f32.mrb[0].mxu0
    %4557 = vdwg.mxu0
    %4558 = vmatprep.subr.bf16.mxu0 %v3562
    %4559 = vmatpush1.bf16.msra.mxu0 %v3561
    %4560 = vmatprep.subr.bf16.mxu0 %v3566
    %4561 = vmatpush1.bf16.msra.mxu0 %v3565
    %4562 = vmatprep.subr.bf16.mxu0 %v3570
    %4563 = vmatpush1.bf16.msra.mxu0 %v3569
    %4564 = vmatprep.subr.bf16.mxu0 %v3574
    %4565 = vmatpush1.bf16.msra.mxu0 %v3573
    %4566 = vmatprep.subr.bf16.mxu0 %v3578
    %4567 = vmatpush1.bf16.msra.mxu0 %v3577
    %4568 = vmatprep.subr.bf16.mxu0 %v3582
    %4569 = vmatpush1.bf16.msra.mxu0 %v3581
    %4570 = vmatprep.subr.bf16.mxu0 0
    %4571 = vmatpush1.bf16.msra.mxu0 0
    %4572 = vmatprep.subr.bf16.mxu0 0
    %4573 = vmatpush1.bf16.msra.mxu0 0
    %4574 = vmatprep.subr.bf16.mxu0 0
    %4575 = vmatpush1.bf16.msra.mxu0 0
    %4576 = vmatprep.subr.bf16.mxu0 0
    %4577 = vmatpush1.bf16.msra.mxu0 0
    %4578 = vmatprep.subr.bf16.mxu0 0
    %4579 = vmatpush1.bf16.msra.mxu0 0
    %4580 = vmatprep.subr.bf16.mxu0 0
    %4581 = vmatpush1.bf16.msra.mxu0 0
    %4582 = vmatprep.subr.bf16.mxu0 0
    %4583 = vmatpush1.bf16.msra.mxu0 0
    %4584 = vmatprep.subr.bf16.mxu0 0
    %4585 = vmatpush1.bf16.msra.mxu0 0
    %4586 = vmatprep.subr.bf16.mxu0 0
    %4587 = vmatpush1.bf16.msra.mxu0 0
    %4588 = vmatprep.subr.bf16.mxu0 0
    %4589 = vmatpush1.bf16.msra.mxu0 0
    %4590 = vmatprep.mubr.bf16.mxu0 0
    %4591 = vmatmul.mubr.bf16.gmra.mrb[0].mxu0 %v4187
    %v4592 = vpop.f32.mrb[0].mxu0
    %v4593 = vadd.f32 %v4552, %v4592
    %v4594 = vpop.f32.mrb[0].mxu0
    %v4595 = vadd.f32 %v4554, %v4594
    %v4596 = vpop.f32.mrb[0].mxu0
    %v4597 = vpop.f32.mrb[0].mxu0
    %4598 = vdwg.mxu0
    %4599 = vmatprep.subr.bf16.mxu0 %v2988
    %4600 = vmatpush1.bf16.msra.mxu0 %v2987
    %4601 = vmatprep.subr.bf16.mxu0 %v2992
    %4602 = vmatpush1.bf16.msra.mxu0 %v2991
    %4603 = vmatprep.subr.bf16.mxu0 %v2996
    %4604 = vmatpush1.bf16.msra.mxu0 %v2995
    %4605 = vmatprep.subr.bf16.mxu0 %v3000
    %4606 = vmatpush1.bf16.msra.mxu0 %v2999
    %4607 = vmatprep.subr.bf16.mxu0 %v3004
    %4608 = vmatpush1.bf16.msra.mxu0 %v3003
    %4609 = vmatprep.subr.bf16.mxu0 %v3008
    %4610 = vmatpush1.bf16.msra.mxu0 %v3007
    %4611 = vmatprep.subr.bf16.mxu0 %v3012
    %4612 = vmatpush1.bf16.msra.mxu0 %v3011
    %4613 = vmatprep.subr.bf16.mxu0 %v3016
    %4614 = vmatpush1.bf16.msra.mxu0 %v3015
    %4615 = vmatprep.subr.bf16.mxu0 %v3020
    %4616 = vmatpush1.bf16.msra.mxu0 %v3019
    %4617 = vmatprep.subr.bf16.mxu0 %v3024
    %4618 = vmatpush1.bf16.msra.mxu0 %v3023
    %4619 = vmatprep.subr.bf16.mxu0 %v3028
    %4620 = vmatpush1.bf16.msra.mxu0 %v3027
    %4621 = vmatprep.subr.bf16.mxu0 %v3032
    %4622 = vmatpush1.bf16.msra.mxu0 %v3031
    %4623 = vmatprep.subr.bf16.mxu0 %v3036
    %4624 = vmatpush1.bf16.msra.mxu0 %v3035
    %4625 = vmatprep.subr.bf16.mxu0 %v3040
    %4626 = vmatpush1.bf16.msra.mxu0 %v3039
    %4627 = vmatprep.subr.bf16.mxu0 %v3044
    %4628 = vmatpush1.bf16.msra.mxu0 %v3043
    %4629 = vmatprep.subr.bf16.mxu0 %v3048
    %4630 = vmatpush1.bf16.msra.mxu0 %v3047
    %4631 = vmatprep.mubr.bf16.mxu0 %v545
    %4632 = vmatmul.mubr.bf16.gmra.mrb[0].mxu0 %v544
    %v4633 = vpop.f32.mrb[0].mxu0
    %v4634 = vadd.f32 %v1176, %v4633
    %v4635 = vpop.f32.mrb[0].mxu0
    %v4636 = vadd.f32 %v1180, %v4635
    %v4637 = vpop.f32.mrb[0].mxu0
    %v4638 = vpop.f32.mrb[0].mxu0
    %4639 = vdwg.mxu0
    %4640 = vmatprep.subr.bf16.mxu0 %v3052
    %4641 = vmatpush1.bf16.msra.mxu0 %v3051
    %4642 = vmatprep.subr.bf16.mxu0 %v3056
    %4643 = vmatpush1.bf16.msra.mxu0 %v3055
    %4644 = vmatprep.subr.bf16.mxu0 %v3060
    %4645 = vmatpush1.bf16.msra.mxu0 %v3059
    %4646 = vmatprep.subr.bf16.mxu0 %v3064
    %4647 = vmatpush1.bf16.msra.mxu0 %v3063
    %4648 = vmatprep.subr.bf16.mxu0 %v3068
    %4649 = vmatpush1.bf16.msra.mxu0 %v3067
    %4650 = vmatprep.subr.bf16.mxu0 %v3072
    %4651 = vmatpush1.bf16.msra.mxu0 %v3071
    %4652 = vmatprep.subr.bf16.mxu0 %v3076
    %4653 = vmatpush1.bf16.msra.mxu0 %v3075
    %4654 = vmatprep.subr.bf16.mxu0 %v3080
    %4655 = vmatpush1.bf16.msra.mxu0 %v3079
    %4656 = vmatprep.subr.bf16.mxu0 %v3084
    %4657 = vmatpush1.bf16.msra.mxu0 %v3083
    %4658 = vmatprep.subr.bf16.mxu0 %v3088
    %4659 = vmatpush1.bf16.msra.mxu0 %v3087
    %4660 = vmatprep.subr.bf16.mxu0 %v3092
    %4661 = vmatpush1.bf16.msra.mxu0 %v3091
    %4662 = vmatprep.subr.bf16.mxu0 %v3096
    %4663 = vmatpush1.bf16.msra.mxu0 %v3095
    %4664 = vmatprep.subr.bf16.mxu0 %v3100
    %4665 = vmatpush1.bf16.msra.mxu0 %v3099
    %4666 = vmatprep.subr.bf16.mxu0 %v3104
    %4667 = vmatpush1.bf16.msra.mxu0 %v3103
    %4668 = vmatprep.subr.bf16.mxu0 %v3108
    %4669 = vmatpush1.bf16.msra.mxu0 %v3107
    %4670 = vmatprep.subr.bf16.mxu0 %v3112
    %4671 = vmatpush1.bf16.msra.mxu0 %v3111
    %4672 = vmatprep.mubr.bf16.mxu0 %v547
    %4673 = vmatmul.mubr.bf16.gmra.mrb[0].mxu0 %v546
    %v4674 = vpop.f32.mrb[0].mxu0
    %v4675 = vadd.f32 %v4634, %v4674
    %v4676 = vpop.f32.mrb[0].mxu0
    %v4677 = vadd.f32 %v4636, %v4676
    %v4678 = vpop.f32.mrb[0].mxu0
    %v4679 = vpop.f32.mrb[0].mxu0
    %4680 = vdwg.mxu0
    %4681 = vmatprep.subr.bf16.mxu0 %v3116
    %4682 = vmatpush1.bf16.msra.mxu0 %v3115
    %4683 = vmatprep.subr.bf16.mxu0 %v3120
    %4684 = vmatpush1.bf16.msra.mxu0 %v3119
    %4685 = vmatprep.subr.bf16.mxu0 %v3124
    %4686 = vmatpush1.bf16.msra.mxu0 %v3123
    %4687 = vmatprep.subr.bf16.mxu0 %v3128
    %4688 = vmatpush1.bf16.msra.mxu0 %v3127
    %4689 = vmatprep.subr.bf16.mxu0 %v3132
    %4690 = vmatpush1.bf16.msra.mxu0 %v3131
    %4691 = vmatprep.subr.bf16.mxu0 %v3136
    %4692 = vmatpush1.bf16.msra.mxu0 %v3135
    %4693 = vmatprep.subr.bf16.mxu0 %v3140
    %4694 = vmatpush1.bf16.msra.mxu0 %v3139
    %4695 = vmatprep.subr.bf16.mxu0 %v3144
    %4696 = vmatpush1.bf16.msra.mxu0 %v3143
    %4697 = vmatprep.subr.bf16.mxu0 %v3148
    %4698 = vmatpush1.bf16.msra.mxu0 %v3147
    %4699 = vmatprep.subr.bf16.mxu0 %v3152
    %4700 = vmatpush1.bf16.msra.mxu0 %v3151
    %4701 = vmatprep.subr.bf16.mxu0 %v3156
    %4702 = vmatpush1.bf16.msra.mxu0 %v3155
    %4703 = vmatprep.subr.bf16.mxu0 %v3160
    %4704 = vmatpush1.bf16.msra.mxu0 %v3159
    %4705 = vmatprep.subr.bf16.mxu0 %v3164
    %4706 = vmatpush1.bf16.msra.mxu0 %v3163
    %4707 = vmatprep.subr.bf16.mxu0 %v3168
    %4708 = vmatpush1.bf16.msra.mxu0 %v3167
    %4709 = vmatprep.subr.bf16.mxu0 %v3172
    %4710 = vmatpush1.bf16.msra.mxu0 %v3171
    %4711 = vmatprep.subr.bf16.mxu0 %v3176
    %4712 = vmatpush1.bf16.msra.mxu0 %v3175
    %4713 = vmatprep.mubr.bf16.mxu0 %v549
    %4714 = vmatmul.mubr.bf16.gmra.mrb[0].mxu0 %v548
    %v4715 = vpop.f32.mrb[0].mxu0
    %v4716 = vadd.f32 %v4675, %v4715
    %v4717 = vpop.f32.mrb[0].mxu0
    %v4718 = vadd.f32 %v4677, %v4717
    %v4719 = vpop.f32.mrb[0].mxu0
    %v4720 = vpop.f32.mrb[0].mxu0
    %4721 = vdwg.mxu0
    %4722 = vmatprep.subr.bf16.mxu0 %v3180
    %4723 = vmatpush1.bf16.msra.mxu0 %v3179
    %4724 = vmatprep.subr.bf16.mxu0 %v3184
    %4725 = vmatpush1.bf16.msra.mxu0 %v3183
    %4726 = vmatprep.subr.bf16.mxu0 %v3188
    %4727 = vmatpush1.bf16.msra.mxu0 %v3187
    %4728 = vmatprep.subr.bf16.mxu0 %v3192
    %4729 = vmatpush1.bf16.msra.mxu0 %v3191
    %4730 = vmatprep.subr.bf16.mxu0 %v3196
    %4731 = vmatpush1.bf16.msra.mxu0 %v3195
    %4732 = vmatprep.subr.bf16.mxu0 %v3200
    %4733 = vmatpush1.bf16.msra.mxu0 %v3199
    %4734 = vmatprep.subr.bf16.mxu0 %v3204
    %4735 = vmatpush1.bf16.msra.mxu0 %v3203
    %4736 = vmatprep.subr.bf16.mxu0 %v3208
    %4737 = vmatpush1.bf16.msra.mxu0 %v3207
    %4738 = vmatprep.subr.bf16.mxu0 %v3212
    %4739 = vmatpush1.bf16.msra.mxu0 %v3211
    %4740 = vmatprep.subr.bf16.mxu0 %v3216
    %4741 = vmatpush1.bf16.msra.mxu0 %v3215
    %4742 = vmatprep.subr.bf16.mxu0 %v3220
    %4743 = vmatpush1.bf16.msra.mxu0 %v3219
    %4744 = vmatprep.subr.bf16.mxu0 %v3224
    %4745 = vmatpush1.bf16.msra.mxu0 %v3223
    %4746 = vmatprep.subr.bf16.mxu0 %v3228
    %4747 = vmatpush1.bf16.msra.mxu0 %v3227
    %4748 = vmatprep.subr.bf16.mxu0 %v3232
    %4749 = vmatpush1.bf16.msra.mxu0 %v3231
    %4750 = vmatprep.subr.bf16.mxu0 %v3236
    %4751 = vmatpush1.bf16.msra.mxu0 %v3235
    %4752 = vmatprep.subr.bf16.mxu0 %v3240
    %4753 = vmatpush1.bf16.msra.mxu0 %v3239
    %4754 = vmatprep.mubr.bf16.mxu0 %v551
    %4755 = vmatmul.mubr.bf16.gmra.mrb[0].mxu0 %v550
    %v4756 = vpop.f32.mrb[0].mxu0
    %v4757 = vadd.f32 %v4716, %v4756
    %v4758 = vpop.f32.mrb[0].mxu0
    %v4759 = vadd.f32 %v4718, %v4758
    %v4760 = vpop.f32.mrb[0].mxu0
    %v4761 = vpop.f32.mrb[0].mxu0
    %4762 = vdwg.mxu0
    %4763 = vmatprep.subr.bf16.mxu0 %v3244
    %4764 = vmatpush1.bf16.msra.mxu0 %v3243
    %4765 = vmatprep.subr.bf16.mxu0 %v3248
    %4766 = vmatpush1.bf16.msra.mxu0 %v3247
    %4767 = vmatprep.subr.bf16.mxu0 %v3252
    %4768 = vmatpush1.bf16.msra.mxu0 %v3251
    %4769 = vmatprep.subr.bf16.mxu0 %v3256
    %4770 = vmatpush1.bf16.msra.mxu0 %v3255
    %4771 = vmatprep.subr.bf16.mxu0 %v3260
    %4772 = vmatpush1.bf16.msra.mxu0 %v3259
    %4773 = vmatprep.subr.bf16.mxu0 %v3264
    %4774 = vmatpush1.bf16.msra.mxu0 %v3263
    %4775 = vmatprep.subr.bf16.mxu0 %v3268
    %4776 = vmatpush1.bf16.msra.mxu0 %v3267
    %4777 = vmatprep.subr.bf16.mxu0 %v3272
    %4778 = vmatpush1.bf16.msra.mxu0 %v3271
    %4779 = vmatprep.subr.bf16.mxu0 %v3276
    %4780 = vmatpush1.bf16.msra.mxu0 %v3275
    %4781 = vmatprep.subr.bf16.mxu0 %v3280
    %4782 = vmatpush1.bf16.msra.mxu0 %v3279
    %4783 = vmatprep.subr.bf16.mxu0 %v3284
    %4784 = vmatpush1.bf16.msra.mxu0 %v3283
    %4785 = vmatprep.subr.bf16.mxu0 %v3288
    %4786 = vmatpush1.bf16.msra.mxu0 %v3287
    %4787 = vmatprep.subr.bf16.mxu0 %v3292
    %4788 = vmatpush1.bf16.msra.mxu0 %v3291
    %4789 = vmatprep.subr.bf16.mxu0 %v3296
    %4790 = vmatpush1.bf16.msra.mxu0 %v3295
    %4791 = vmatprep.subr.bf16.mxu0 %v3300
    %4792 = vmatpush1.bf16.msra.mxu0 %v3299
    %4793 = vmatprep.subr.bf16.mxu0 %v3304
    %4794 = vmatpush1.bf16.msra.mxu0 %v3303
    %4795 = vmatprep.mubr.bf16.mxu0 %v553
    %4796 = vmatmul.mubr.bf16.gmra.mrb[0].mxu0 %v552
    %v4797 = vpop.f32.mrb[0].mxu0
    %v4798 = vadd.f32 %v4757, %v4797
    %v4799 = vpop.f32.mrb[0].mxu0
    %v4800 = vadd.f32 %v4759, %v4799
    %v4801 = vpop.f32.mrb[0].mxu0
    %v4802 = vpop.f32.mrb[0].mxu0
    %4803 = vdwg.mxu0
    %4804 = vmatprep.subr.bf16.mxu0 %v3308
    %4805 = vmatpush1.bf16.msra.mxu0 %v3307
    %4806 = vmatprep.subr.bf16.mxu0 %v3312
    %4807 = vmatpush1.bf16.msra.mxu0 %v3311
    %4808 = vmatprep.subr.bf16.mxu0 %v3316
    %4809 = vmatpush1.bf16.msra.mxu0 %v3315
    %4810 = vmatprep.subr.bf16.mxu0 %v3320
    %4811 = vmatpush1.bf16.msra.mxu0 %v3319
    %4812 = vmatprep.subr.bf16.mxu0 %v3324
    %4813 = vmatpush1.bf16.msra.mxu0 %v3323
    %4814 = vmatprep.subr.bf16.mxu0 %v3328
    %4815 = vmatpush1.bf16.msra.mxu0 %v3327
    %4816 = vmatprep.subr.bf16.mxu0 %v3332
    %4817 = vmatpush1.bf16.msra.mxu0 %v3331
    %4818 = vmatprep.subr.bf16.mxu0 %v3336
    %4819 = vmatpush1.bf16.msra.mxu0 %v3335
    %4820 = vmatprep.subr.bf16.mxu0 %v3340
    %4821 = vmatpush1.bf16.msra.mxu0 %v3339
    %4822 = vmatprep.subr.bf16.mxu0 %v3344
    %4823 = vmatpush1.bf16.msra.mxu0 %v3343
    %4824 = vmatprep.subr.bf16.mxu0 %v3348
    %4825 = vmatpush1.bf16.msra.mxu0 %v3347
    %4826 = vmatprep.subr.bf16.mxu0 %v3352
    %4827 = vmatpush1.bf16.msra.mxu0 %v3351
    %4828 = vmatprep.subr.bf16.mxu0 %v3356
    %4829 = vmatpush1.bf16.msra.mxu0 %v3355
    %4830 = vmatprep.subr.bf16.mxu0 %v3360
    %4831 = vmatpush1.bf16.msra.mxu0 %v3359
    %4832 = vmatprep.subr.bf16.mxu0 %v3364
    %4833 = vmatpush1.bf16.msra.mxu0 %v3363
    %4834 = vmatprep.subr.bf16.mxu0 %v3368
    %4835 = vmatpush1.bf16.msra.mxu0 %v3367
    %4836 = vmatprep.mubr.bf16.mxu0 %v555
    %4837 = vmatmul.mubr.bf16.gmra.mrb[0].mxu0 %v554
    %v4838 = vpop.f32.mrb[0].mxu0
    %v4839 = vadd.f32 %v4798, %v4838
    %v4840 = vpop.f32.mrb[0].mxu0
    %v4841 = vadd.f32 %v4800, %v4840
    %v4842 = vpop.f32.mrb[0].mxu0
    %v4843 = vpop.f32.mrb[0].mxu0
    %4844 = vdwg.mxu0
    %4845 = vmatprep.subr.bf16.mxu0 %v3372
    %4846 = vmatpush1.bf16.msra.mxu0 %v3371
    %4847 = vmatprep.subr.bf16.mxu0 %v3376
    %4848 = vmatpush1.bf16.msra.mxu0 %v3375
    %4849 = vmatprep.subr.bf16.mxu0 %v3380
    %4850 = vmatpush1.bf16.msra.mxu0 %v3379
    %4851 = vmatprep.subr.bf16.mxu0 %v3384
    %4852 = vmatpush1.bf16.msra.mxu0 %v3383
    %4853 = vmatprep.subr.bf16.mxu0 %v3388
    %4854 = vmatpush1.bf16.msra.mxu0 %v3387
    %4855 = vmatprep.subr.bf16.mxu0 %v3392
    %4856 = vmatpush1.bf16.msra.mxu0 %v3391
    %4857 = vmatprep.subr.bf16.mxu0 %v3396
    %4858 = vmatpush1.bf16.msra.mxu0 %v3395
    %4859 = vmatprep.subr.bf16.mxu0 %v3400
    %4860 = vmatpush1.bf16.msra.mxu0 %v3399
    %4861 = vmatprep.subr.bf16.mxu0 %v3404
    %4862 = vmatpush1.bf16.msra.mxu0 %v3403
    %4863 = vmatprep.subr.bf16.mxu0 %v3408
    %4864 = vmatpush1.bf16.msra.mxu0 %v3407
    %4865 = vmatprep.subr.bf16.mxu0 %v3412
    %4866 = vmatpush1.bf16.msra.mxu0 %v3411
    %4867 = vmatprep.subr.bf16.mxu0 %v3416
    %4868 = vmatpush1.bf16.msra.mxu0 %v3415
    %4869 = vmatprep.subr.bf16.mxu0 %v3420
    %4870 = vmatpush1.bf16.msra.mxu0 %v3419
    %4871 = vmatprep.subr.bf16.mxu0 %v3424
    %4872 = vmatpush1.bf16.msra.mxu0 %v3423
    %4873 = vmatprep.subr.bf16.mxu0 %v3428
    %4874 = vmatpush1.bf16.msra.mxu0 %v3427
    %4875 = vmatprep.subr.bf16.mxu0 %v3432
    %4876 = vmatpush1.bf16.msra.mxu0 %v3431
    %4877 = vmatprep.mubr.bf16.mxu0 %v557
    %4878 = vmatmul.mubr.bf16.gmra.mrb[0].mxu0 %v556
    %v4879 = vpop.f32.mrb[0].mxu0
    %v4880 = vadd.f32 %v4839, %v4879
    %v4881 = vpop.f32.mrb[0].mxu0
    %v4882 = vadd.f32 %v4841, %v4881
    %v4883 = vpop.f32.mrb[0].mxu0
    %v4884 = vpop.f32.mrb[0].mxu0
    %4885 = vdwg.mxu0
    %4886 = vmatprep.subr.bf16.mxu0 %v3436
    %4887 = vmatpush1.bf16.msra.mxu0 %v3435
    %4888 = vmatprep.subr.bf16.mxu0 %v3440
    %4889 = vmatpush1.bf16.msra.mxu0 %v3439
    %4890 = vmatprep.subr.bf16.mxu0 %v3444
    %4891 = vmatpush1.bf16.msra.mxu0 %v3443
    %4892 = vmatprep.subr.bf16.mxu0 %v3448
    %4893 = vmatpush1.bf16.msra.mxu0 %v3447
    %4894 = vmatprep.subr.bf16.mxu0 %v3452
    %4895 = vmatpush1.bf16.msra.mxu0 %v3451
    %4896 = vmatprep.subr.bf16.mxu0 %v3456
    %4897 = vmatpush1.bf16.msra.mxu0 %v3455
    %4898 = vmatprep.subr.bf16.mxu0 %v3460
    %4899 = vmatpush1.bf16.msra.mxu0 %v3459
    %4900 = vmatprep.subr.bf16.mxu0 %v3464
    %4901 = vmatpush1.bf16.msra.mxu0 %v3463
    %4902 = vmatprep.subr.bf16.mxu0 %v3468
    %4903 = vmatpush1.bf16.msra.mxu0 %v3467
    %4904 = vmatprep.subr.bf16.mxu0 %v3472
    %4905 = vmatpush1.bf16.msra.mxu0 %v3471
    %4906 = vmatprep.subr.bf16.mxu0 %v3476
    %4907 = vmatpush1.bf16.msra.mxu0 %v3475
    %4908 = vmatprep.subr.bf16.mxu0 %v3480
    %4909 = vmatpush1.bf16.msra.mxu0 %v3479
    %4910 = vmatprep.subr.bf16.mxu0 %v3484
    %4911 = vmatpush1.bf16.msra.mxu0 %v3483
    %4912 = vmatprep.subr.bf16.mxu0 %v3488
    %4913 = vmatpush1.bf16.msra.mxu0 %v3487
    %4914 = vmatprep.subr.bf16.mxu0 %v3492
    %4915 = vmatpush1.bf16.msra.mxu0 %v3491
    %4916 = vmatprep.subr.bf16.mxu0 %v3496
    %4917 = vmatpush1.bf16.msra.mxu0 %v3495
    %4918 = vmatprep.mubr.bf16.mxu0 %v559
    %4919 = vmatmul.mubr.bf16.gmra.mrb[0].mxu0 %v558
    %v4920 = vpop.f32.mrb[0].mxu0
    %v4921 = vadd.f32 %v4880, %v4920
    %v4922 = vpop.f32.mrb[0].mxu0
    %v4923 = vadd.f32 %v4882, %v4922
    %v4924 = vpop.f32.mrb[0].mxu0
    %v4925 = vpop.f32.mrb[0].mxu0
    %4926 = vdwg.mxu0
    %4927 = vmatprep.subr.bf16.mxu0 %v3500
    %4928 = vmatpush1.bf16.msra.mxu0 %v3499
    %4929 = vmatprep.subr.bf16.mxu0 %v3504
    %4930 = vmatpush1.bf16.msra.mxu0 %v3503
    %4931 = vmatprep.subr.bf16.mxu0 %v3508
    %4932 = vmatpush1.bf16.msra.mxu0 %v3507
    %4933 = vmatprep.subr.bf16.mxu0 %v3512
    %4934 = vmatpush1.bf16.msra.mxu0 %v3511
    %4935 = vmatprep.subr.bf16.mxu0 %v3516
    %4936 = vmatpush1.bf16.msra.mxu0 %v3515
    %4937 = vmatprep.subr.bf16.mxu0 %v3520
    %4938 = vmatpush1.bf16.msra.mxu0 %v3519
    %4939 = vmatprep.subr.bf16.mxu0 %v3524
    %4940 = vmatpush1.bf16.msra.mxu0 %v3523
    %4941 = vmatprep.subr.bf16.mxu0 %v3528
    %4942 = vmatpush1.bf16.msra.mxu0 %v3527
    %4943 = vmatprep.subr.bf16.mxu0 %v3532
    %4944 = vmatpush1.bf16.msra.mxu0 %v3531
    %4945 = vmatprep.subr.bf16.mxu0 %v3536
    %4946 = vmatpush1.bf16.msra.mxu0 %v3535
    %4947 = vmatprep.subr.bf16.mxu0 %v3540
    %4948 = vmatpush1.bf16.msra.mxu0 %v3539
    %4949 = vmatprep.subr.bf16.mxu0 %v3544
    %4950 = vmatpush1.bf16.msra.mxu0 %v3543
    %4951 = vmatprep.subr.bf16.mxu0 %v3548
    %4952 = vmatpush1.bf16.msra.mxu0 %v3547
    %4953 = vmatprep.subr.bf16.mxu0 %v3552
    %4954 = vmatpush1.bf16.msra.mxu0 %v3551
    %4955 = vmatprep.subr.bf16.mxu0 %v3556
    %4956 = vmatpush1.bf16.msra.mxu0 %v3555
    %4957 = vmatprep.subr.bf16.mxu0 %v3560
    %4958 = vmatpush1.bf16.msra.mxu0 %v3559
    %4959 = vmatprep.mubr.bf16.mxu0 %v561
    %4960 = vmatmul.mubr.bf16.gmra.mrb[0].mxu0 %v560
    %v4961 = vpop.f32.mrb[0].mxu0
    %v4962 = vadd.f32 %v4921, %v4961
    %v4963 = vpop.f32.mrb[0].mxu0
    %v4964 = vadd.f32 %v4923, %v4963
    %v4965 = vpop.f32.mrb[0].mxu0
    %v4966 = vpop.f32.mrb[0].mxu0
    %4967 = vdwg.mxu0
    %4968 = vmatprep.subr.bf16.mxu0 %v3564
    %4969 = vmatpush1.bf16.msra.mxu0 %v3563
    %4970 = vmatprep.subr.bf16.mxu0 %v3568
    %4971 = vmatpush1.bf16.msra.mxu0 %v3567
    %4972 = vmatprep.subr.bf16.mxu0 %v3572
    %4973 = vmatpush1.bf16.msra.mxu0 %v3571
    %4974 = vmatprep.subr.bf16.mxu0 %v3576
    %4975 = vmatpush1.bf16.msra.mxu0 %v3575
    %4976 = vmatprep.subr.bf16.mxu0 %v3580
    %4977 = vmatpush1.bf16.msra.mxu0 %v3579
    %4978 = vmatprep.subr.bf16.mxu0 %v3584
    %4979 = vmatpush1.bf16.msra.mxu0 %v3583
    %4980 = vmatprep.subr.bf16.mxu0 0
    %4981 = vmatpush1.bf16.msra.mxu0 0
    %4982 = vmatprep.subr.bf16.mxu0 0
    %4983 = vmatpush1.bf16.msra.mxu0 0
    %4984 = vmatprep.subr.bf16.mxu0 0
    %4985 = vmatpush1.bf16.msra.mxu0 0
    %4986 = vmatprep.subr.bf16.mxu0 0
    %4987 = vmatpush1.bf16.msra.mxu0 0
    %4988 = vmatprep.subr.bf16.mxu0 0
    %4989 = vmatpush1.bf16.msra.mxu0 0
    %4990 = vmatprep.subr.bf16.mxu0 0
    %4991 = vmatpush1.bf16.msra.mxu0 0
    %4992 = vmatprep.subr.bf16.mxu0 0
    %4993 = vmatpush1.bf16.msra.mxu0 0
    %4994 = vmatprep.subr.bf16.mxu0 0
    %4995 = vmatpush1.bf16.msra.mxu0 0
    %4996 = vmatprep.subr.bf16.mxu0 0
    %4997 = vmatpush1.bf16.msra.mxu0 0
    %4998 = vmatprep.subr.bf16.mxu0 0
    %4999 = vmatpush1.bf16.msra.mxu0 0
    %5000 = vmatprep.mubr.bf16.mxu0 0
    %5001 = vmatmul.mubr.bf16.gmra.mrb[0].mxu0 %v4187
    %v5002 = vpop.f32.mrb[0].mxu0
    %v5003 = vadd.f32 %v4962, %v5002
    %v5004 = vpop.f32.mrb[0].mxu0
    %v5005 = vadd.f32 %v4964, %v5004
    %v5006 = vpop.f32.mrb[0].mxu0
    %v5007 = vpop.f32.mrb[0].mxu0
    %5008 = vdwg.mxu0
    %v5009 = vrot.slane %v4593, 4
    %v5010 = vadd.f32 %v4593, %v5009
    %v5011 = vrot.slane %v5010, 2
    %v5012 = vadd.f32 %v5010, %v5011
    %v5013 = vrot.slane %v5012, 1
    %v5014 = vadd.f32 %v5012, %v5013
    %v5015 = vrot.slane %v4595, 4
    %v5016 = vadd.f32 %v4595, %v5015
    %v5017 = vrot.slane %v5016, 2
    %v5018 = vadd.f32 %v5016, %v5017
    %v5019 = vrot.slane %v5018, 1
    %v5020 = vadd.f32 %v5018, %v5019
    %v5021 = vrot.slane %v5003, 4
    %v5022 = vadd.f32 %v5003, %v5021
    %v5023 = vrot.slane %v5022, 2
    %v5024 = vadd.f32 %v5022, %v5023
    %v5025 = vrot.slane %v5024, 1
    %v5026 = vadd.f32 %v5024, %v5025
    %v5027 = vrot.slane %v5005, 4
    %v5028 = vadd.f32 %v5005, %v5027
    %v5029 = vrot.slane %v5028, 2
    %v5030 = vadd.f32 %v5028, %v5029
    %v5031 = vrot.slane %v5030, 1
    %v5032 = vadd.f32 %v5030, %v5031
    %v5033 = vrcp.pop 8.0
    %v5034 = vmul.f32 %v5014, %v5033
    %v5035 = vmul.f32 %v5020, %v5033
    %v5036 = vmul.f32 %v5026, %v5033
    %v5037 = vmul.f32 %v5032, %v5033
    %v5038 = vmul.f32 %v4593, %v4593
    %v5039 = vmul.f32 %v4595, %v4595
    %v5040 = vmul.f32 %v5003, %v5003
    %v5041 = vmul.f32 %v5005, %v5005
    %v5042 = vrot.slane %v5038, 4
    %v5043 = vadd.f32 %v5038, %v5042
    %v5044 = vrot.slane %v5043, 2
    %v5045 = vadd.f32 %v5043, %v5044
    %v5046 = vrot.slane %v5045, 1
    %v5047 = vadd.f32 %v5045, %v5046
    %v5048 = vrot.slane %v5039, 4
    %v5049 = vadd.f32 %v5039, %v5048
    %v5050 = vrot.slane %v5049, 2
    %v5051 = vadd.f32 %v5049, %v5050
    %v5052 = vrot.slane %v5051, 1
    %v5053 = vadd.f32 %v5051, %v5052
    %v5054 = vrot.slane %v5040, 4
    %v5055 = vadd.f32 %v5040, %v5054
    %v5056 = vrot.slane %v5055, 2
    %v5057 = vadd.f32 %v5055, %v5056
    %v5058 = vrot.slane %v5057, 1
    %v5059 = vadd.f32 %v5057, %v5058
    %v5060 = vrot.slane %v5041, 4
    %v5061 = vadd.f32 %v5041, %v5060
    %v5062 = vrot.slane %v5061, 2
    %v5063 = vadd.f32 %v5061, %v5062
    %v5064 = vrot.slane %v5063, 1
    %v5065 = vadd.f32 %v5063, %v5064
    %v5066 = vmul.f32 %v5047, %v5033
    %v5067 = vmul.f32 %v5053, %v5033
    %v5068 = vmul.f32 %v5059, %v5033
    %v5069 = vmul.f32 %v5065, %v5033
    %v5070 = vmul.f32 %v5034, %v5034
    %v5071 = vmul.f32 %v5035, %v5035
    %v5072 = vmul.f32 %v5036, %v5036
    %v5073 = vmul.f32 %v5037, %v5037
    %v5074 = vsub.f32 %v5066, %v5070
    %v5075 = vsub.f32 %v5067, %v5071
    %v5076 = vsub.f32 %v5068, %v5072
    %v5077 = vsub.f32 %v5069, %v5073
    %v5078 = vmax.f32 %v5074, 0.0
    %v5079 = vmax.f32 %v5075, 0.0
    %v5080 = vmax.f32 %v5076, 0.0
    %v5081 = vmax.f32 %v5077, 0.0
    %v5082 = vld [vmem:[#allocation7] sm:$0xf]
    %v5083 = vadd.f32 %v5078, 1e-05
    %v5084 = vadd.f32 %v5079, 1e-05
    %v5085 = vadd.f32 %v5080, 1e-05
    %v5086 = vadd.f32 %v5081, 1e-05
    %v5087 = vrsqrt.pop %v5083
    %v5088 = vrsqrt.pop %v5084
    %v5089 = vrsqrt.pop %v5085
    %v5090 = vrsqrt.pop %v5086
    %v5095 = vcombine.low %v5087, %v5088
    %v5096 = vcombine.low %v5089, %v5090
    %v5098 = vunpack.c.l.s4 1966171168
    %v5099 = vunpack.c.0.s8 %v5098
    %v5100 = vlaneseq
    %v5101 = vshrl.u32 %v5100, 7
    %v5102 = vsub.s32 %v5099, %v5101
    %v5103 = vrot.slane %v5095, %v5102
    %v5105 = vunpack.c.l.s4 1966171168
    %v5106 = vunpack.c.0.s8 %v5105
    %v5107 = vlaneseq
    %v5108 = vshrl.u32 %v5107, 7
    %v5109 = vsub.s32 %v5106, %v5108
    %v5110 = vrot.slane %v5096, %v5109
    %v5111 = vcombine.low %v5103, %v5110
    %v5113 = vunpack.c.l.s4 1966171168
    %v5114 = vunpack.c.0.s8 %v5113
    %v5115 = vlaneseq
    %v5116 = vshrl.u32 %v5115, 7
    %v5117 = vsub.s32 %v5114, %v5116
    %v5118 = vrot.slane %v5111, %v5117
    %v5120 = vmul.f32 %v5082, %v5118
    %v5121 = vld [vmem:[#allocation8] sm:$0xf]
    %v5123 = vlaneseq
    %v5124 = vshrl.u32 %v5123, 7
    %v5125 = vsub.s32 0, %v5124
    %v5126 = vrot.slane %v5120, %v5125
    %v5127 = vlaneseq
    %v5128 = vshrl.u32 %v5127, 7
    %v5129 = vsub.s32 1, %v5128
    %v5130 = vrot.slane %v5120, %v5129
    %v5131 = vlaneseq
    %v5132 = vshrl.u32 %v5131, 7
    %v5133 = vsub.s32 2, %v5132
    %v5134 = vrot.slane %v5120, %v5133
    %v5135 = vlaneseq
    %v5136 = vshrl.u32 %v5135, 7
    %v5137 = vsub.s32 3, %v5136
    %v5138 = vrot.slane %v5120, %v5137
    %v5143 = vmul.f32 %v5034, %v5126
    %v5144 = vmul.f32 %v5035, %v5130
    %v5145 = vmul.f32 %v5036, %v5134
    %v5146 = vmul.f32 %v5037, %v5138
    %v5151 = vcombine.low %v5143, %v5144
    %v5152 = vcombine.low %v5145, %v5146
    %v5154 = vunpack.c.l.s4 1966171168
    %v5155 = vunpack.c.0.s8 %v5154
    %v5156 = vlaneseq
    %v5157 = vshrl.u32 %v5156, 7
    %v5158 = vsub.s32 %v5155, %v5157
    %v5159 = vrot.slane %v5151, %v5158
    %v5161 = vunpack.c.l.s4 1966171168
    %v5162 = vunpack.c.0.s8 %v5161
    %v5163 = vlaneseq
    %v5164 = vshrl.u32 %v5163, 7
    %v5165 = vsub.s32 %v5162, %v5164
    %v5166 = vrot.slane %v5152, %v5165
    %v5167 = vcombine.low %v5159, %v5166
    %v5169 = vunpack.c.l.s4 1966171168
    %v5170 = vunpack.c.0.s8 %v5169
    %v5171 = vlaneseq
    %v5172 = vshrl.u32 %v5171, 7
    %v5173 = vsub.s32 %v5170, %v5172
    %v5174 = vrot.slane %v5167, %v5173
    %v5176 = vsub.f32 %v5121, %v5174
    %v5177 = vmul.f32 %v4593, %v5126
    %v5178 = vmul.f32 %v4595, %v5130
    %v5179 = vmul.f32 %v5003, %v5134
    %v5180 = vmul.f32 %v5005, %v5138
    %v5182 = vlaneseq
    %v5183 = vshrl.u32 %v5182, 7
    %v5184 = vsub.s32 0, %v5183
    %v5185 = vrot.slane %v5176, %v5184
    %v5186 = vlaneseq
    %v5187 = vshrl.u32 %v5186, 7
    %v5188 = vsub.s32 1, %v5187
    %v5189 = vrot.slane %v5176, %v5188
    %v5190 = vlaneseq
    %v5191 = vshrl.u32 %v5190, 7
    %v5192 = vsub.s32 2, %v5191
    %v5193 = vrot.slane %v5176, %v5192
    %v5194 = vlaneseq
    %v5195 = vshrl.u32 %v5194, 7
    %v5196 = vsub.s32 3, %v5195
    %v5197 = vrot.slane %v5176, %v5196
    %v5202 = vadd.f32 %v5177, %v5185
    %v5203 = vadd.f32 %v5178, %v5189
    %v5204 = vadd.f32 %v5179, %v5193
    %v5205 = vadd.f32 %v5180, %v5197
    %v5206 = vmax.f32 %v5202, 0.0
    %v5207 = vmax.f32 %v5203, 0.0
    %v5208 = vmax.f32 %v5204, 0.0
    %v5209 = vmax.f32 %v5205, 0.0
    %v5210 = vpack.c.bf16 %v5206, %v5206
    %v5211 = vpack.c.bf16 %v5207, %v5207
    %v5212 = vpack.c.bf16 %v5208, %v5208
    %v5213 = vpack.c.bf16 %v5209, %v5209
    %v5214 = vld [vmem:[#allocation10] sm:$0xff]
    %v5215 = vld [vmem:[#allocation10 + $0x8] sm:$0xff]
    %v5216 = vld [vmem:[#allocation10 + $0x10] sm:$0xff]
    %v5217 = vld [vmem:[#allocation10 + $0x18] sm:$0xff]
    %v5218 = vld [vmem:[#allocation10 + $0x20] sm:$0xff]
    %v5219 = vld [vmem:[#allocation10 + $0x28] sm:$0xff]
    %v5220 = vld [vmem:[#allocation10 + $0x30] sm:$0xff]
    %v5221 = vld [vmem:[#allocation10 + $0x38] sm:$0xff]
    %v5222 = vld [vmem:[#allocation10 + $0x40] sm:$0xff]
    %v5223 = vld [vmem:[#allocation10 + $0x48] sm:$0xff]
    %v5224 = vld [vmem:[#allocation10 + $0x50] sm:$0xff]
    %v5225 = vld [vmem:[#allocation10 + $0x58] sm:$0xff]
    %v5226 = vld [vmem:[#allocation10 + $0x60] sm:$0xff]
    %v5227 = vld [vmem:[#allocation10 + $0x68] sm:$0xff]
    %v5228 = vld [vmem:[#allocation10 + $0x70] sm:$0xff]
    %v5229 = vld [vmem:[#allocation10 + $0x78] sm:$0xff]
    %v5230 = vld [vmem:[#allocation10 + $0x80] sm:$0xff]
    %v5231 = vld [vmem:[#allocation10 + $0x88] sm:$0xff]
    %v5232 = vld [vmem:[#allocation10 + $0x90] sm:$0xff]
    %v5233 = vld [vmem:[#allocation10 + $0x98] sm:$0xff]
    %v5234 = vld [vmem:[#allocation10 + $0xa0] sm:$0xff]
    %v5235 = vld [vmem:[#allocation10 + $0xa8] sm:$0xff]
    %v5236 = vld [vmem:[#allocation10 + $0xb0] sm:$0xff]
    %v5237 = vld [vmem:[#allocation10 + $0xb8] sm:$0xff]
    %v5238 = vld [vmem:[#allocation10 + $0xc0] sm:$0xff]
    %v5239 = vld [vmem:[#allocation10 + $0xc8] sm:$0xff]
    %v5240 = vld [vmem:[#allocation10 + $0xd0] sm:$0xff]
    %v5241 = vld [vmem:[#allocation10 + $0xd8] sm:$0xff]
    %v5242 = vld [vmem:[#allocation10 + $0xe0] sm:$0xff]
    %v5243 = vld [vmem:[#allocation10 + $0xe8] sm:$0xff]
    %v5244 = vld [vmem:[#allocation10 + $0xf0] sm:$0xff]
    %v5245 = vld [vmem:[#allocation10 + $0xf8] sm:$0xff]
    %v5246 = vld [vmem:[#allocation10 + $0x100] sm:$0xff]
    %v5247 = vld [vmem:[#allocation10 + $0x108] sm:$0xff]
    %v5248 = vld [vmem:[#allocation10 + $0x110] sm:$0xff]
    %v5249 = vld [vmem:[#allocation10 + $0x118] sm:$0xff]
    %v5250 = vld [vmem:[#allocation10 + $0x120] sm:$0xff]
    %v5251 = vld [vmem:[#allocation10 + $0x128] sm:$0xff]
    %v5252 = vld [vmem:[#allocation10 + $0x130] sm:$0xff]
    %v5253 = vld [vmem:[#allocation10 + $0x138] sm:$0xff]
    %v5254 = vld [vmem:[#allocation10 + $0x140] sm:$0xff]
    %v5255 = vld [vmem:[#allocation10 + $0x148] sm:$0xff]
    %v5256 = vld [vmem:[#allocation10 + $0x150] sm:$0xff]
    %v5257 = vld [vmem:[#allocation10 + $0x158] sm:$0xff]
    %v5258 = vld [vmem:[#allocation10 + $0x160] sm:$0xff]
    %v5259 = vld [vmem:[#allocation10 + $0x168] sm:$0xff]
    %v5260 = vld [vmem:[#allocation10 + $0x170] sm:$0xff]
    %v5261 = vld [vmem:[#allocation10 + $0x178] sm:$0xff]
    %v5262 = vld [vmem:[#allocation10 + $0x180] sm:$0xff]
    %v5263 = vld [vmem:[#allocation10 + $0x188] sm:$0xff]
    %v5264 = vld [vmem:[#allocation10 + $0x190] sm:$0xff]
    %v5265 = vld [vmem:[#allocation10 + $0x198] sm:$0xff]
    %v5266 = vld [vmem:[#allocation10 + $0x1a0] sm:$0xff]
    %v5267 = vld [vmem:[#allocation10 + $0x1a8] sm:$0xff]
    %v5268 = vld [vmem:[#allocation10 + $0x1b0] sm:$0xff]
    %v5269 = vld [vmem:[#allocation10 + $0x1b8] sm:$0xff]
    %v5270 = vld [vmem:[#allocation10 + $0x1c0] sm:$0xff]
    %v5271 = vld [vmem:[#allocation10 + $0x1c8] sm:$0xff]
    %v5272 = vld [vmem:[#allocation10 + $0x1d0] sm:$0xff]
    %v5273 = vld [vmem:[#allocation10 + $0x1d8] sm:$0xff]
    %v5274 = vld [vmem:[#allocation10 + $0x1e0] sm:$0xff]
    %v5275 = vld [vmem:[#allocation10 + $0x1e8] sm:$0xff]
    %v5276 = vld [vmem:[#allocation10 + $0x1f0] sm:$0xff]
    %v5277 = vld [vmem:[#allocation10 + $0x1f8] sm:$0xff]
    %v5278 = vld [vmem:[#allocation10 + $0x200] sm:$0xff]
    %v5279 = vld [vmem:[#allocation10 + $0x208] sm:$0xff]
    %v5280 = vld [vmem:[#allocation10 + $0x210] sm:$0xff]
    %v5281 = vld [vmem:[#allocation10 + $0x218] sm:$0xff]
    %v5282 = vld [vmem:[#allocation10 + $0x220] sm:$0xff]
    %v5283 = vld [vmem:[#allocation10 + $0x228] sm:$0xff]
    %v5284 = vld [vmem:[#allocation10 + $0x230] sm:$0xff]
    %v5285 = vld [vmem:[#allocation10 + $0x238] sm:$0xff]
    %v5286 = vld [vmem:[#allocation10 + $0x240] sm:$0xff]
    %v5287 = vld [vmem:[#allocation10 + $0x248] sm:$0xff]
    %v5288 = vld [vmem:[#allocation10 + $0x250] sm:$0xff]
    %v5289 = vld [vmem:[#allocation10 + $0x258] sm:$0xff]
    %v5290 = vld [vmem:[#allocation10 + $0x260] sm:$0xff]
    %v5291 = vld [vmem:[#allocation10 + $0x268] sm:$0xff]
    %v5292 = vld [vmem:[#allocation10 + $0x270] sm:$0xff]
    %v5293 = vld [vmem:[#allocation10 + $0x278] sm:$0xff]
    %v5294 = vld [vmem:[#allocation10 + $0x280] sm:$0xff]
    %v5295 = vld [vmem:[#allocation10 + $0x288] sm:$0xff]
    %v5296 = vld [vmem:[#allocation10 + $0x290] sm:$0xff]
    %v5297 = vld [vmem:[#allocation10 + $0x298] sm:$0xff]
    %v5298 = vld [vmem:[#allocation10 + $0x2a0] sm:$0xff]
    %v5299 = vld [vmem:[#allocation10 + $0x2a8] sm:$0xff]
    %v5300 = vld [vmem:[#allocation10 + $0x2b0] sm:$0xff]
    %v5301 = vld [vmem:[#allocation10 + $0x2b8] sm:$0xff]
    %v5302 = vld [vmem:[#allocation10 + $0x2c0] sm:$0xff]
    %v5303 = vld [vmem:[#allocation10 + $0x2c8] sm:$0xff]
    %v5304 = vld [vmem:[#allocation10 + $0x2d0] sm:$0xff]
    %v5305 = vld [vmem:[#allocation10 + $0x2d8] sm:$0xff]
    %v5306 = vld [vmem:[#allocation10 + $0x2e0] sm:$0xff]
    %v5307 = vld [vmem:[#allocation10 + $0x2e8] sm:$0xff]
    %v5308 = vld [vmem:[#allocation10 + $0x2f0] sm:$0xff]
    %v5309 = vld [vmem:[#allocation10 + $0x2f8] sm:$0xff]
    %v5310 = vld [vmem:[#allocation10 + $0x300] sm:$0xff]
    %v5311 = vld [vmem:[#allocation10 + $0x308] sm:$0xff]
    %v5312 = vld [vmem:[#allocation10 + $0x310] sm:$0xff]
    %v5313 = vld [vmem:[#allocation10 + $0x318] sm:$0xff]
    %v5314 = vld [vmem:[#allocation10 + $0x320] sm:$0xff]
    %v5315 = vld [vmem:[#allocation10 + $0x328] sm:$0xff]
    %v5316 = vld [vmem:[#allocation10 + $0x330] sm:$0xff]
    %v5317 = vld [vmem:[#allocation10 + $0x338] sm:$0xff]
    %v5318 = vld [vmem:[#allocation10 + $0x340] sm:$0xff]
    %v5319 = vld [vmem:[#allocation10 + $0x348] sm:$0xff]
    %v5320 = vld [vmem:[#allocation10 + $0x350] sm:$0xff]
    %v5321 = vld [vmem:[#allocation10 + $0x358] sm:$0xff]
    %v5322 = vld [vmem:[#allocation10 + $0x360] sm:$0xff]
    %v5323 = vld [vmem:[#allocation10 + $0x368] sm:$0xff]
    %v5324 = vld [vmem:[#allocation10 + $0x370] sm:$0xff]
    %v5325 = vld [vmem:[#allocation10 + $0x378] sm:$0xff]
    %v5326 = vld [vmem:[#allocation10 + $0x380] sm:$0xff]
    %v5327 = vld [vmem:[#allocation10 + $0x388] sm:$0xff]
    %v5328 = vld [vmem:[#allocation10 + $0x390] sm:$0xff]
    %v5329 = vld [vmem:[#allocation10 + $0x398] sm:$0xff]
    %v5330 = vld [vmem:[#allocation10 + $0x3a0] sm:$0xff]
    %v5331 = vld [vmem:[#allocation10 + $0x3a8] sm:$0xff]
    %v5332 = vld [vmem:[#allocation10 + $0x3b0] sm:$0xff]
    %v5333 = vld [vmem:[#allocation10 + $0x3b8] sm:$0xff]
    %v5334 = vld [vmem:[#allocation10 + $0x3c0] sm:$0xff]
    %v5335 = vld [vmem:[#allocation10 + $0x3c8] sm:$0xff]
    %v5336 = vld [vmem:[#allocation10 + $0x3d0] sm:$0xff]
    %v5337 = vld [vmem:[#allocation10 + $0x3d8] sm:$0xff]
    %v5338 = vld [vmem:[#allocation10 + $0x3e0] sm:$0xff]
    %v5339 = vld [vmem:[#allocation10 + $0x3e8] sm:$0xff]
    %v5340 = vld [vmem:[#allocation10 + $0x3f0] sm:$0xff]
    %v5341 = vld [vmem:[#allocation10 + $0x3f8] sm:$0xff]
    %v5342 = vld [vmem:[#allocation11] sm:$0xf]
    %v5344 = vlaneseq
    %v5345 = vshrl.u32 %v5344, 7
    %v5346 = vsub.s32 0, %v5345
    %v5347 = vrot.slane %v5342, %v5346
    %v5348 = vlaneseq
    %v5349 = vshrl.u32 %v5348, 7
    %v5350 = vsub.s32 1, %v5349
    %v5351 = vrot.slane %v5342, %v5350
    %v5352 = vlaneseq
    %v5353 = vshrl.u32 %v5352, 7
    %v5354 = vsub.s32 2, %v5353
    %v5355 = vrot.slane %v5342, %v5354
    %v5356 = vlaneseq
    %v5357 = vshrl.u32 %v5356, 7
    %v5358 = vsub.s32 3, %v5357
    %v5359 = vrot.slane %v5342, %v5358
    %v5492 = vunpack.c.l.b16 %v5214
    %v5493 = vunpack.c.h.b16 %v5214
    %v5494 = vunpack.c.l.b16 %v5215
    %v5495 = vunpack.c.h.b16 %v5215
    %v5496 = vunpack.c.l.b16 %v5216
    %v5497 = vunpack.c.h.b16 %v5216
    %v5498 = vunpack.c.l.b16 %v5217
    %v5499 = vunpack.c.h.b16 %v5217
    %v5500 = vunpack.c.l.b16 %v5218
    %v5501 = vunpack.c.h.b16 %v5218
    %v5502 = vunpack.c.l.b16 %v5219
    %v5503 = vunpack.c.h.b16 %v5219
    %v5504 = vunpack.c.l.b16 %v5220
    %v5505 = vunpack.c.h.b16 %v5220
    %v5506 = vunpack.c.l.b16 %v5221
    %v5507 = vunpack.c.h.b16 %v5221
    %v5508 = vunpack.c.l.b16 %v5222
    %v5509 = vunpack.c.h.b16 %v5222
    %v5510 = vunpack.c.l.b16 %v5223
    %v5511 = vunpack.c.h.b16 %v5223
    %v5512 = vunpack.c.l.b16 %v5224
    %v5513 = vunpack.c.h.b16 %v5224
    %v5514 = vunpack.c.l.b16 %v5225
    %v5515 = vunpack.c.h.b16 %v5225
    %v5516 = vunpack.c.l.b16 %v5226
    %v5517 = vunpack.c.h.b16 %v5226
    %v5518 = vunpack.c.l.b16 %v5227
    %v5519 = vunpack.c.h.b16 %v5227
    %v5520 = vunpack.c.l.b16 %v5228
    %v5521 = vunpack.c.h.b16 %v5228
    %v5522 = vunpack.c.l.b16 %v5229
    %v5523 = vunpack.c.h.b16 %v5229
    %v5524 = vunpack.c.l.b16 %v5230
    %v5525 = vunpack.c.h.b16 %v5230
    %v5526 = vunpack.c.l.b16 %v5231
    %v5527 = vunpack.c.h.b16 %v5231
    %v5528 = vunpack.c.l.b16 %v5232
    %v5529 = vunpack.c.h.b16 %v5232
    %v5530 = vunpack.c.l.b16 %v5233
    %v5531 = vunpack.c.h.b16 %v5233
    %v5532 = vunpack.c.l.b16 %v5234
    %v5533 = vunpack.c.h.b16 %v5234
    %v5534 = vunpack.c.l.b16 %v5235
    %v5535 = vunpack.c.h.b16 %v5235
    %v5536 = vunpack.c.l.b16 %v5236
    %v5537 = vunpack.c.h.b16 %v5236
    %v5538 = vunpack.c.l.b16 %v5237
    %v5539 = vunpack.c.h.b16 %v5237
    %v5540 = vunpack.c.l.b16 %v5238
    %v5541 = vunpack.c.h.b16 %v5238
    %v5542 = vunpack.c.l.b16 %v5239
    %v5543 = vunpack.c.h.b16 %v5239
    %v5544 = vunpack.c.l.b16 %v5240
    %v5545 = vunpack.c.h.b16 %v5240
    %v5546 = vunpack.c.l.b16 %v5241
    %v5547 = vunpack.c.h.b16 %v5241
    %v5548 = vunpack.c.l.b16 %v5242
    %v5549 = vunpack.c.h.b16 %v5242
    %v5550 = vunpack.c.l.b16 %v5243
    %v5551 = vunpack.c.h.b16 %v5243
    %v5552 = vunpack.c.l.b16 %v5244
    %v5553 = vunpack.c.h.b16 %v5244
    %v5554 = vunpack.c.l.b16 %v5245
    %v5555 = vunpack.c.h.b16 %v5245
    %v5556 = vunpack.c.l.b16 %v5246
    %v5557 = vunpack.c.h.b16 %v5246
    %v5558 = vunpack.c.l.b16 %v5247
    %v5559 = vunpack.c.h.b16 %v5247
    %v5560 = vunpack.c.l.b16 %v5248
    %v5561 = vunpack.c.h.b16 %v5248
    %v5562 = vunpack.c.l.b16 %v5249
    %v5563 = vunpack.c.h.b16 %v5249
    %v5564 = vunpack.c.l.b16 %v5250
    %v5565 = vunpack.c.h.b16 %v5250
    %v5566 = vunpack.c.l.b16 %v5251
    %v5567 = vunpack.c.h.b16 %v5251
    %v5568 = vunpack.c.l.b16 %v5252
    %v5569 = vunpack.c.h.b16 %v5252
    %v5570 = vunpack.c.l.b16 %v5253
    %v5571 = vunpack.c.h.b16 %v5253
    %v5572 = vunpack.c.l.b16 %v5254
    %v5573 = vunpack.c.h.b16 %v5254
    %v5574 = vunpack.c.l.b16 %v5255
    %v5575 = vunpack.c.h.b16 %v5255
    %v5576 = vunpack.c.l.b16 %v5256
    %v5577 = vunpack.c.h.b16 %v5256
    %v5578 = vunpack.c.l.b16 %v5257
    %v5579 = vunpack.c.h.b16 %v5257
    %v5580 = vunpack.c.l.b16 %v5258
    %v5581 = vunpack.c.h.b16 %v5258
    %v5582 = vunpack.c.l.b16 %v5259
    %v5583 = vunpack.c.h.b16 %v5259
    %v5584 = vunpack.c.l.b16 %v5260
    %v5585 = vunpack.c.h.b16 %v5260
    %v5586 = vunpack.c.l.b16 %v5261
    %v5587 = vunpack.c.h.b16 %v5261
    %v5588 = vunpack.c.l.b16 %v5262
    %v5589 = vunpack.c.h.b16 %v5262
    %v5590 = vunpack.c.l.b16 %v5263
    %v5591 = vunpack.c.h.b16 %v5263
    %v5592 = vunpack.c.l.b16 %v5264
    %v5593 = vunpack.c.h.b16 %v5264
    %v5594 = vunpack.c.l.b16 %v5265
    %v5595 = vunpack.c.h.b16 %v5265
    %v5596 = vunpack.c.l.b16 %v5266
    %v5597 = vunpack.c.h.b16 %v5266
    %v5598 = vunpack.c.l.b16 %v5267
    %v5599 = vunpack.c.h.b16 %v5267
    %v5600 = vunpack.c.l.b16 %v5268
    %v5601 = vunpack.c.h.b16 %v5268
    %v5602 = vunpack.c.l.b16 %v5269
    %v5603 = vunpack.c.h.b16 %v5269
    %v5604 = vunpack.c.l.b16 %v5270
    %v5605 = vunpack.c.h.b16 %v5270
    %v5606 = vunpack.c.l.b16 %v5271
    %v5607 = vunpack.c.h.b16 %v5271
    %v5608 = vunpack.c.l.b16 %v5272
    %v5609 = vunpack.c.h.b16 %v5272
    %v5610 = vunpack.c.l.b16 %v5273
    %v5611 = vunpack.c.h.b16 %v5273
    %v5612 = vunpack.c.l.b16 %v5274
    %v5613 = vunpack.c.h.b16 %v5274
    %v5614 = vunpack.c.l.b16 %v5275
    %v5615 = vunpack.c.h.b16 %v5275
    %v5616 = vunpack.c.l.b16 %v5276
    %v5617 = vunpack.c.h.b16 %v5276
    %v5618 = vunpack.c.l.b16 %v5277
    %v5619 = vunpack.c.h.b16 %v5277
    %v5620 = vunpack.c.l.b16 %v5278
    %v5621 = vunpack.c.h.b16 %v5278
    %v5622 = vunpack.c.l.b16 %v5279
    %v5623 = vunpack.c.h.b16 %v5279
    %v5624 = vunpack.c.l.b16 %v5280
    %v5625 = vunpack.c.h.b16 %v5280
    %v5626 = vunpack.c.l.b16 %v5281
    %v5627 = vunpack.c.h.b16 %v5281
    %v5628 = vunpack.c.l.b16 %v5282
    %v5629 = vunpack.c.h.b16 %v5282
    %v5630 = vunpack.c.l.b16 %v5283
    %v5631 = vunpack.c.h.b16 %v5283
    %v5632 = vunpack.c.l.b16 %v5284
    %v5633 = vunpack.c.h.b16 %v5284
    %v5634 = vunpack.c.l.b16 %v5285
    %v5635 = vunpack.c.h.b16 %v5285
    %v5636 = vunpack.c.l.b16 %v5286
    %v5637 = vunpack.c.h.b16 %v5286
    %v5638 = vunpack.c.l.b16 %v5287
    %v5639 = vunpack.c.h.b16 %v5287
    %v5640 = vunpack.c.l.b16 %v5288
    %v5641 = vunpack.c.h.b16 %v5288
    %v5642 = vunpack.c.l.b16 %v5289
    %v5643 = vunpack.c.h.b16 %v5289
    %v5644 = vunpack.c.l.b16 %v5290
    %v5645 = vunpack.c.h.b16 %v5290
    %v5646 = vunpack.c.l.b16 %v5291
    %v5647 = vunpack.c.h.b16 %v5291
    %v5648 = vunpack.c.l.b16 %v5292
    %v5649 = vunpack.c.h.b16 %v5292
    %v5650 = vunpack.c.l.b16 %v5293
    %v5651 = vunpack.c.h.b16 %v5293
    %v5652 = vunpack.c.l.b16 %v5294
    %v5653 = vunpack.c.h.b16 %v5294
    %v5654 = vunpack.c.l.b16 %v5295
    %v5655 = vunpack.c.h.b16 %v5295
    %v5656 = vunpack.c.l.b16 %v5296
    %v5657 = vunpack.c.h.b16 %v5296
    %v5658 = vunpack.c.l.b16 %v5297
    %v5659 = vunpack.c.h.b16 %v5297
    %v5660 = vunpack.c.l.b16 %v5298
    %v5661 = vunpack.c.h.b16 %v5298
    %v5662 = vunpack.c.l.b16 %v5299
    %v5663 = vunpack.c.h.b16 %v5299
    %v5664 = vunpack.c.l.b16 %v5300
    %v5665 = vunpack.c.h.b16 %v5300
    %v5666 = vunpack.c.l.b16 %v5301
    %v5667 = vunpack.c.h.b16 %v5301
    %v5668 = vunpack.c.l.b16 %v5302
    %v5669 = vunpack.c.h.b16 %v5302
    %v5670 = vunpack.c.l.b16 %v5303
    %v5671 = vunpack.c.h.b16 %v5303
    %v5672 = vunpack.c.l.b16 %v5304
    %v5673 = vunpack.c.h.b16 %v5304
    %v5674 = vunpack.c.l.b16 %v5305
    %v5675 = vunpack.c.h.b16 %v5305
    %v5676 = vunpack.c.l.b16 %v5306
    %v5677 = vunpack.c.h.b16 %v5306
    %v5678 = vunpack.c.l.b16 %v5307
    %v5679 = vunpack.c.h.b16 %v5307
    %v5680 = vunpack.c.l.b16 %v5308
    %v5681 = vunpack.c.h.b16 %v5308
    %v5682 = vunpack.c.l.b16 %v5309
    %v5683 = vunpack.c.h.b16 %v5309
    %v5684 = vunpack.c.l.b16 %v5310
    %v5685 = vunpack.c.h.b16 %v5310
    %v5686 = vunpack.c.l.b16 %v5311
    %v5687 = vunpack.c.h.b16 %v5311
    %v5688 = vunpack.c.l.b16 %v5312
    %v5689 = vunpack.c.h.b16 %v5312
    %v5690 = vunpack.c.l.b16 %v5313
    %v5691 = vunpack.c.h.b16 %v5313
    %v5692 = vunpack.c.l.b16 %v5314
    %v5693 = vunpack.c.h.b16 %v5314
    %v5694 = vunpack.c.l.b16 %v5315
    %v5695 = vunpack.c.h.b16 %v5315
    %v5696 = vunpack.c.l.b16 %v5316
    %v5697 = vunpack.c.h.b16 %v5316
    %v5698 = vunpack.c.l.b16 %v5317
    %v5699 = vunpack.c.h.b16 %v5317
    %v5700 = vunpack.c.l.b16 %v5318
    %v5701 = vunpack.c.h.b16 %v5318
    %v5702 = vunpack.c.l.b16 %v5319
    %v5703 = vunpack.c.h.b16 %v5319
    %v5704 = vunpack.c.l.b16 %v5320
    %v5705 = vunpack.c.h.b16 %v5320
    %v5706 = vunpack.c.l.b16 %v5321
    %v5707 = vunpack.c.h.b16 %v5321
    %v5708 = vunpack.c.l.b16 %v5322
    %v5709 = vunpack.c.h.b16 %v5322
    %v5710 = vunpack.c.l.b16 %v5323
    %v5711 = vunpack.c.h.b16 %v5323
    %v5712 = vunpack.c.l.b16 %v5324
    %v5713 = vunpack.c.h.b16 %v5324
    %v5714 = vunpack.c.l.b16 %v5325
    %v5715 = vunpack.c.h.b16 %v5325
    %v5716 = vunpack.c.l.b16 %v5326
    %v5717 = vunpack.c.h.b16 %v5326
    %v5718 = vunpack.c.l.b16 %v5327
    %v5719 = vunpack.c.h.b16 %v5327
    %v5720 = vunpack.c.l.b16 %v5328
    %v5721 = vunpack.c.h.b16 %v5328
    %v5722 = vunpack.c.l.b16 %v5329
    %v5723 = vunpack.c.h.b16 %v5329
    %v5724 = vunpack.c.l.b16 %v5330
    %v5725 = vunpack.c.h.b16 %v5330
    %v5726 = vunpack.c.l.b16 %v5331
    %v5727 = vunpack.c.h.b16 %v5331
    %v5728 = vunpack.c.l.b16 %v5332
    %v5729 = vunpack.c.h.b16 %v5332
    %v5730 = vunpack.c.l.b16 %v5333
    %v5731 = vunpack.c.h.b16 %v5333
    %v5732 = vunpack.c.l.b16 %v5334
    %v5733 = vunpack.c.h.b16 %v5334
    %v5734 = vunpack.c.l.b16 %v5335
    %v5735 = vunpack.c.h.b16 %v5335
    %v5736 = vunpack.c.l.b16 %v5336
    %v5737 = vunpack.c.h.b16 %v5336
    %v5738 = vunpack.c.l.b16 %v5337
    %v5739 = vunpack.c.h.b16 %v5337
    %v5740 = vunpack.c.l.b16 %v5338
    %v5741 = vunpack.c.h.b16 %v5338
    %v5742 = vunpack.c.l.b16 %v5339
    %v5743 = vunpack.c.h.b16 %v5339
    %v5744 = vunpack.c.l.b16 %v5340
    %v5745 = vunpack.c.h.b16 %v5340
    %v5746 = vunpack.c.l.b16 %v5341
    %v5747 = vunpack.c.h.b16 %v5341
    %v5748 = vpack.c.b16 %v5496, %v5492
    %v5749 = vpack.c.b16 %v5497, %v5493
    %v5750 = vpack.c.b16 %v5498, %v5494
    %v5751 = vpack.c.b16 %v5499, %v5495
    %v5752 = vpack.c.b16 %v5504, %v5500
    %v5753 = vpack.c.b16 %v5505, %v5501
    %v5754 = vpack.c.b16 %v5506, %v5502
    %v5755 = vpack.c.b16 %v5507, %v5503
    %v5756 = vpack.c.b16 %v5512, %v5508
    %v5757 = vpack.c.b16 %v5513, %v5509
    %v5758 = vpack.c.b16 %v5514, %v5510
    %v5759 = vpack.c.b16 %v5515, %v5511
    %v5760 = vpack.c.b16 %v5520, %v5516
    %v5761 = vpack.c.b16 %v5521, %v5517
    %v5762 = vpack.c.b16 %v5522, %v5518
    %v5763 = vpack.c.b16 %v5523, %v5519
    %v5764 = vpack.c.b16 %v5528, %v5524
    %v5765 = vpack.c.b16 %v5529, %v5525
    %v5766 = vpack.c.b16 %v5530, %v5526
    %v5767 = vpack.c.b16 %v5531, %v5527
    %v5768 = vpack.c.b16 %v5536, %v5532
    %v5769 = vpack.c.b16 %v5537, %v5533
    %v5770 = vpack.c.b16 %v5538, %v5534
    %v5771 = vpack.c.b16 %v5539, %v5535
    %v5772 = vpack.c.b16 %v5544, %v5540
    %v5773 = vpack.c.b16 %v5545, %v5541
    %v5774 = vpack.c.b16 %v5546, %v5542
    %v5775 = vpack.c.b16 %v5547, %v5543
    %v5776 = vpack.c.b16 %v5552, %v5548
    %v5777 = vpack.c.b16 %v5553, %v5549
    %v5778 = vpack.c.b16 %v5554, %v5550
    %v5779 = vpack.c.b16 %v5555, %v5551
    %v5780 = vpack.c.b16 %v5560, %v5556
    %v5781 = vpack.c.b16 %v5561, %v5557
    %v5782 = vpack.c.b16 %v5562, %v5558
    %v5783 = vpack.c.b16 %v5563, %v5559
    %v5784 = vpack.c.b16 %v5568, %v5564
    %v5785 = vpack.c.b16 %v5569, %v5565
    %v5786 = vpack.c.b16 %v5570, %v5566
    %v5787 = vpack.c.b16 %v5571, %v5567
    %v5788 = vpack.c.b16 %v5576, %v5572
    %v5789 = vpack.c.b16 %v5577, %v5573
    %v5790 = vpack.c.b16 %v5578, %v5574
    %v5791 = vpack.c.b16 %v5579, %v5575
    %v5792 = vpack.c.b16 %v5584, %v5580
    %v5793 = vpack.c.b16 %v5585, %v5581
    %v5794 = vpack.c.b16 %v5586, %v5582
    %v5795 = vpack.c.b16 %v5587, %v5583
    %v5796 = vpack.c.b16 %v5592, %v5588
    %v5797 = vpack.c.b16 %v5593, %v5589
    %v5798 = vpack.c.b16 %v5594, %v5590
    %v5799 = vpack.c.b16 %v5595, %v5591
    %v5800 = vpack.c.b16 %v5600, %v5596
    %v5801 = vpack.c.b16 %v5601, %v5597
    %v5802 = vpack.c.b16 %v5602, %v5598
    %v5803 = vpack.c.b16 %v5603, %v5599
    %v5804 = vpack.c.b16 %v5608, %v5604
    %v5805 = vpack.c.b16 %v5609, %v5605
    %v5806 = vpack.c.b16 %v5610, %v5606
    %v5807 = vpack.c.b16 %v5611, %v5607
    %v5808 = vpack.c.b16 %v5616, %v5612
    %v5809 = vpack.c.b16 %v5617, %v5613
    %v5810 = vpack.c.b16 %v5618, %v5614
    %v5811 = vpack.c.b16 %v5619, %v5615
    %v5812 = vpack.c.b16 %v5624, %v5620
    %v5813 = vpack.c.b16 %v5625, %v5621
    %v5814 = vpack.c.b16 %v5626, %v5622
    %v5815 = vpack.c.b16 %v5627, %v5623
    %v5816 = vpack.c.b16 %v5632, %v5628
    %v5817 = vpack.c.b16 %v5633, %v5629
    %v5818 = vpack.c.b16 %v5634, %v5630
    %v5819 = vpack.c.b16 %v5635, %v5631
    %v5820 = vpack.c.b16 %v5640, %v5636
    %v5821 = vpack.c.b16 %v5641, %v5637
    %v5822 = vpack.c.b16 %v5642, %v5638
    %v5823 = vpack.c.b16 %v5643, %v5639
    %v5824 = vpack.c.b16 %v5648, %v5644
    %v5825 = vpack.c.b16 %v5649, %v5645
    %v5826 = vpack.c.b16 %v5650, %v5646
    %v5827 = vpack.c.b16 %v5651, %v5647
    %v5828 = vpack.c.b16 %v5656, %v5652
    %v5829 = vpack.c.b16 %v5657, %v5653
    %v5830 = vpack.c.b16 %v5658, %v5654
    %v5831 = vpack.c.b16 %v5659, %v5655
    %v5832 = vpack.c.b16 %v5664, %v5660
    %v5833 = vpack.c.b16 %v5665, %v5661
    %v5834 = vpack.c.b16 %v5666, %v5662
    %v5835 = vpack.c.b16 %v5667, %v5663
    %v5836 = vpack.c.b16 %v5672, %v5668
    %v5837 = vpack.c.b16 %v5673, %v5669
    %v5838 = vpack.c.b16 %v5674, %v5670
    %v5839 = vpack.c.b16 %v5675, %v5671
    %v5840 = vpack.c.b16 %v5680, %v5676
    %v5841 = vpack.c.b16 %v5681, %v5677
    %v5842 = vpack.c.b16 %v5682, %v5678
    %v5843 = vpack.c.b16 %v5683, %v5679
    %v5844 = vpack.c.b16 %v5688, %v5684
    %v5845 = vpack.c.b16 %v5689, %v5685
    %v5846 = vpack.c.b16 %v5690, %v5686
    %v5847 = vpack.c.b16 %v5691, %v5687
    %v5848 = vpack.c.b16 %v5696, %v5692
    %v5849 = vpack.c.b16 %v5697, %v5693
    %v5850 = vpack.c.b16 %v5698, %v5694
    %v5851 = vpack.c.b16 %v5699, %v5695
    %v5852 = vpack.c.b16 %v5704, %v5700
    %v5853 = vpack.c.b16 %v5705, %v5701
    %v5854 = vpack.c.b16 %v5706, %v5702
    %v5855 = vpack.c.b16 %v5707, %v5703
    %v5856 = vpack.c.b16 %v5712, %v5708
    %v5857 = vpack.c.b16 %v5713, %v5709
    %v5858 = vpack.c.b16 %v5714, %v5710
    %v5859 = vpack.c.b16 %v5715, %v5711
    %v5860 = vpack.c.b16 %v5720, %v5716
    %v5861 = vpack.c.b16 %v5721, %v5717
    %v5862 = vpack.c.b16 %v5722, %v5718
    %v5863 = vpack.c.b16 %v5723, %v5719
    %v5864 = vpack.c.b16 %v5728, %v5724
    %v5865 = vpack.c.b16 %v5729, %v5725
    %v5866 = vpack.c.b16 %v5730, %v5726
    %v5867 = vpack.c.b16 %v5731, %v5727
    %v5868 = vpack.c.b16 %v5736, %v5732
    %v5869 = vpack.c.b16 %v5737, %v5733
    %v5870 = vpack.c.b16 %v5738, %v5734
    %v5871 = vpack.c.b16 %v5739, %v5735
    %v5872 = vpack.c.b16 %v5744, %v5740
    %v5873 = vpack.c.b16 %v5745, %v5741
    %v5874 = vpack.c.b16 %v5746, %v5742
    %v5875 = vpack.c.b16 %v5747, %v5743
    %6004 = vmatprep.subr.bf16.mxu0 %v5749
    %6005 = vmatpush1.bf16.msra.mxu0 %v5748
    %6006 = vmatprep.subr.bf16.mxu0 %v5753
    %6007 = vmatpush1.bf16.msra.mxu0 %v5752
    %6008 = vmatprep.subr.bf16.mxu0 %v5757
    %6009 = vmatpush1.bf16.msra.mxu0 %v5756
    %6010 = vmatprep.subr.bf16.mxu0 %v5761
    %6011 = vmatpush1.bf16.msra.mxu0 %v5760
    %6012 = vmatprep.subr.bf16.mxu0 %v5765
    %6013 = vmatpush1.bf16.msra.mxu0 %v5764
    %6014 = vmatprep.subr.bf16.mxu0 %v5769
    %6015 = vmatpush1.bf16.msra.mxu0 %v5768
    %6016 = vmatprep.subr.bf16.mxu0 %v5773
    %6017 = vmatpush1.bf16.msra.mxu0 %v5772
    %6018 = vmatprep.subr.bf16.mxu0 %v5777
    %6019 = vmatpush1.bf16.msra.mxu0 %v5776
    %6020 = vmatprep.subr.bf16.mxu0 %v5781
    %6021 = vmatpush1.bf16.msra.mxu0 %v5780
    %6022 = vmatprep.subr.bf16.mxu0 %v5785
    %6023 = vmatpush1.bf16.msra.mxu0 %v5784
    %6024 = vmatprep.subr.bf16.mxu0 %v5789
    %6025 = vmatpush1.bf16.msra.mxu0 %v5788
    %6026 = vmatprep.subr.bf16.mxu0 %v5793
    %6027 = vmatpush1.bf16.msra.mxu0 %v5792
    %6028 = vmatprep.subr.bf16.mxu0 %v5797
    %6029 = vmatpush1.bf16.msra.mxu0 %v5796
    %6030 = vmatprep.subr.bf16.mxu0 %v5801
    %6031 = vmatpush1.bf16.msra.mxu0 %v5800
    %6032 = vmatprep.subr.bf16.mxu0 %v5805
    %6033 = vmatpush1.bf16.msra.mxu0 %v5804
    %6034 = vmatprep.subr.bf16.mxu0 %v5809
    %6035 = vmatpush1.bf16.msra.mxu0 %v5808
    %6036 = vmatprep.mubr.bf16.mxu0 %v5211
    %6037 = vmatmul.mubr.bf16.gmra.mrb[0].mxu0 %v5210
    %v6038 = vpop.f32.mrb[0].mxu0
    %v6039 = vadd.f32 %v5347, %v6038
    %v6040 = vpop.f32.mrb[0].mxu0
    %v6041 = vadd.f32 %v5351, %v6040
    %v6042 = vpop.f32.mrb[0].mxu0
    %v6043 = vpop.f32.mrb[0].mxu0
    %6044 = vdwg.mxu0
    %6045 = vmatprep.subr.bf16.mxu0 %v5813
    %6046 = vmatpush1.bf16.msra.mxu0 %v5812
    %6047 = vmatprep.subr.bf16.mxu0 %v5817
    %6048 = vmatpush1.bf16.msra.mxu0 %v5816
    %6049 = vmatprep.subr.bf16.mxu0 %v5821
    %6050 = vmatpush1.bf16.msra.mxu0 %v5820
    %6051 = vmatprep.subr.bf16.mxu0 %v5825
    %6052 = vmatpush1.bf16.msra.mxu0 %v5824
    %6053 = vmatprep.subr.bf16.mxu0 %v5829
    %6054 = vmatpush1.bf16.msra.mxu0 %v5828
    %6055 = vmatprep.subr.bf16.mxu0 %v5833
    %6056 = vmatpush1.bf16.msra.mxu0 %v5832
    %6057 = vmatprep.subr.bf16.mxu0 %v5837
    %6058 = vmatpush1.bf16.msra.mxu0 %v5836
    %6059 = vmatprep.subr.bf16.mxu0 %v5841
    %6060 = vmatpush1.bf16.msra.mxu0 %v5840
    %6061 = vmatprep.subr.bf16.mxu0 %v5845
    %6062 = vmatpush1.bf16.msra.mxu0 %v5844
    %6063 = vmatprep.subr.bf16.mxu0 %v5849
    %6064 = vmatpush1.bf16.msra.mxu0 %v5848
    %6065 = vmatprep.subr.bf16.mxu0 %v5853
    %6066 = vmatpush1.bf16.msra.mxu0 %v5852
    %6067 = vmatprep.subr.bf16.mxu0 %v5857
    %6068 = vmatpush1.bf16.msra.mxu0 %v5856
    %6069 = vmatprep.subr.bf16.mxu0 %v5861
    %6070 = vmatpush1.bf16.msra.mxu0 %v5860
    %6071 = vmatprep.subr.bf16.mxu0 %v5865
    %6072 = vmatpush1.bf16.msra.mxu0 %v5864
    %6073 = vmatprep.subr.bf16.mxu0 %v5869
    %6074 = vmatpush1.bf16.msra.mxu0 %v5868
    %6075 = vmatprep.subr.bf16.mxu0 %v5873
    %6076 = vmatpush1.bf16.msra.mxu0 %v5872
    %6077 = vmatprep.mubr.bf16.mxu0 %v5213
    %6078 = vmatmul.mubr.bf16.gmra.mrb[0].mxu0 %v5212
    %v6079 = vpop.f32.mrb[0].mxu0
    %v6080 = vadd.f32 %v6039, %v6079
    %v6081 = vpop.f32.mrb[0].mxu0
    %v6082 = vadd.f32 %v6041, %v6081
    %v6083 = vpop.f32.mrb[0].mxu0
    %v6084 = vpop.f32.mrb[0].mxu0
    %6085 = vdwg.mxu0
    %6086 = vmatprep.subr.bf16.mxu0 %v5751
    %6087 = vmatpush1.bf16.msra.mxu0 %v5750
    %6088 = vmatprep.subr.bf16.mxu0 %v5755
    %6089 = vmatpush1.bf16.msra.mxu0 %v5754
    %6090 = vmatprep.subr.bf16.mxu0 %v5759
    %6091 = vmatpush1.bf16.msra.mxu0 %v5758
    %6092 = vmatprep.subr.bf16.mxu0 %v5763
    %6093 = vmatpush1.bf16.msra.mxu0 %v5762
    %6094 = vmatprep.subr.bf16.mxu0 %v5767
    %6095 = vmatpush1.bf16.msra.mxu0 %v5766
    %6096 = vmatprep.subr.bf16.mxu0 %v5771
    %6097 = vmatpush1.bf16.msra.mxu0 %v5770
    %6098 = vmatprep.subr.bf16.mxu0 %v5775
    %6099 = vmatpush1.bf16.msra.mxu0 %v5774
    %6100 = vmatprep.subr.bf16.mxu0 %v5779
    %6101 = vmatpush1.bf16.msra.mxu0 %v5778
    %6102 = vmatprep.subr.bf16.mxu0 %v5783
    %6103 = vmatpush1.bf16.msra.mxu0 %v5782
    %6104 = vmatprep.subr.bf16.mxu0 %v5787
    %6105 = vmatpush1.bf16.msra.mxu0 %v5786
    %6106 = vmatprep.subr.bf16.mxu0 %v5791
    %6107 = vmatpush1.bf16.msra.mxu0 %v5790
    %6108 = vmatprep.subr.bf16.mxu0 %v5795
    %6109 = vmatpush1.bf16.msra.mxu0 %v5794
    %6110 = vmatprep.subr.bf16.mxu0 %v5799
    %6111 = vmatpush1.bf16.msra.mxu0 %v5798
    %6112 = vmatprep.subr.bf16.mxu0 %v5803
    %6113 = vmatpush1.bf16.msra.mxu0 %v5802
    %6114 = vmatprep.subr.bf16.mxu0 %v5807
    %6115 = vmatpush1.bf16.msra.mxu0 %v5806
    %6116 = vmatprep.subr.bf16.mxu0 %v5811
    %6117 = vmatpush1.bf16.msra.mxu0 %v5810
    %6118 = vmatprep.mubr.bf16.mxu0 %v5211
    %6119 = vmatmul.mubr.bf16.gmra.mrb[0].mxu0 %v5210
    %v6120 = vpop.f32.mrb[0].mxu0
    %v6121 = vadd.f32 %v5355, %v6120
    %v6122 = vpop.f32.mrb[0].mxu0
    %v6123 = vadd.f32 %v5359, %v6122
    %v6124 = vpop.f32.mrb[0].mxu0
    %v6125 = vpop.f32.mrb[0].mxu0
    %6126 = vdwg.mxu0
    %6127 = vmatprep.subr.bf16.mxu0 %v5815
    %6128 = vmatpush1.bf16.msra.mxu0 %v5814
    %6129 = vmatprep.subr.bf16.mxu0 %v5819
    %6130 = vmatpush1.bf16.msra.mxu0 %v5818
    %6131 = vmatprep.subr.bf16.mxu0 %v5823
    %6132 = vmatpush1.bf16.msra.mxu0 %v5822
    %6133 = vmatprep.subr.bf16.mxu0 %v5827
    %6134 = vmatpush1.bf16.msra.mxu0 %v5826
    %6135 = vmatprep.subr.bf16.mxu0 %v5831
    %6136 = vmatpush1.bf16.msra.mxu0 %v5830
    %6137 = vmatprep.subr.bf16.mxu0 %v5835
    %6138 = vmatpush1.bf16.msra.mxu0 %v5834
    %6139 = vmatprep.subr.bf16.mxu0 %v5839
    %6140 = vmatpush1.bf16.msra.mxu0 %v5838
    %6141 = vmatprep.subr.bf16.mxu0 %v5843
    %6142 = vmatpush1.bf16.msra.mxu0 %v5842
    %6143 = vmatprep.subr.bf16.mxu0 %v5847
    %6144 = vmatpush1.bf16.msra.mxu0 %v5846
    %6145 = vmatprep.subr.bf16.mxu0 %v5851
    %6146 = vmatpush1.bf16.msra.mxu0 %v5850
    %6147 = vmatprep.subr.bf16.mxu0 %v5855
    %6148 = vmatpush1.bf16.msra.mxu0 %v5854
    %6149 = vmatprep.subr.bf16.mxu0 %v5859
    %6150 = vmatpush1.bf16.msra.mxu0 %v5858
    %6151 = vmatprep.subr.bf16.mxu0 %v5863
    %6152 = vmatpush1.bf16.msra.mxu0 %v5862
    %6153 = vmatprep.subr.bf16.mxu0 %v5867
    %6154 = vmatpush1.bf16.msra.mxu0 %v5866
    %6155 = vmatprep.subr.bf16.mxu0 %v5871
    %6156 = vmatpush1.bf16.msra.mxu0 %v5870
    %6157 = vmatprep.subr.bf16.mxu0 %v5875
    %6158 = vmatpush1.bf16.msra.mxu0 %v5874
    %6159 = vmatprep.mubr.bf16.mxu0 %v5213
    %6160 = vmatmul.mubr.bf16.gmra.mrb[0].mxu0 %v5212
    %v6161 = vpop.f32.mrb[0].mxu0
    %v6162 = vadd.f32 %v6121, %v6161
    %v6163 = vpop.f32.mrb[0].mxu0
    %v6164 = vadd.f32 %v6123, %v6163
    %v6165 = vpop.f32.mrb[0].mxu0
    %v6166 = vpop.f32.mrb[0].mxu0
    %6167 = vdwg.mxu0
    %v6168 = vrot.slane %v6080, 4
    %v6169 = vadd.f32 %v6080, %v6168
    %v6170 = vrot.slane %v6169, 2
    %v6171 = vadd.f32 %v6169, %v6170
    %v6172 = vrot.slane %v6171, 1
    %v6173 = vadd.f32 %v6171, %v6172
    %v6174 = vrot.slane %v6082, 4
    %v6175 = vadd.f32 %v6082, %v6174
    %v6176 = vrot.slane %v6175, 2
    %v6177 = vadd.f32 %v6175, %v6176
    %v6178 = vrot.slane %v6177, 1
    %v6179 = vadd.f32 %v6177, %v6178
    %v6180 = vrot.slane %v6162, 4
    %v6181 = vadd.f32 %v6162, %v6180
    %v6182 = vrot.slane %v6181, 2
    %v6183 = vadd.f32 %v6181, %v6182
    %v6184 = vrot.slane %v6183, 1
    %v6185 = vadd.f32 %v6183, %v6184
    %v6186 = vrot.slane %v6164, 4
    %v6187 = vadd.f32 %v6164, %v6186
    %v6188 = vrot.slane %v6187, 2
    %v6189 = vadd.f32 %v6187, %v6188
    %v6190 = vrot.slane %v6189, 1
    %v6191 = vadd.f32 %v6189, %v6190
    %v6192 = vmul.f32 %v6173, %v5033
    %v6193 = vmul.f32 %v6179, %v5033
    %v6194 = vmul.f32 %v6185, %v5033
    %v6195 = vmul.f32 %v6191, %v5033
    %v6196 = vmul.f32 %v6080, %v6080
    %v6197 = vmul.f32 %v6082, %v6082
    %v6198 = vmul.f32 %v6162, %v6162
    %v6199 = vmul.f32 %v6164, %v6164
    %v6200 = vrot.slane %v6196, 4
    %v6201 = vadd.f32 %v6196, %v6200
    %v6202 = vrot.slane %v6201, 2
    %v6203 = vadd.f32 %v6201, %v6202
    %v6204 = vrot.slane %v6203, 1
    %v6205 = vadd.f32 %v6203, %v6204
    %v6206 = vrot.slane %v6197, 4
    %v6207 = vadd.f32 %v6197, %v6206
    %v6208 = vrot.slane %v6207, 2
    %v6209 = vadd.f32 %v6207, %v6208
    %v6210 = vrot.slane %v6209, 1
    %v6211 = vadd.f32 %v6209, %v6210
    %v6212 = vrot.slane %v6198, 4
    %v6213 = vadd.f32 %v6198, %v6212
    %v6214 = vrot.slane %v6213, 2
    %v6215 = vadd.f32 %v6213, %v6214
    %v6216 = vrot.slane %v6215, 1
    %v6217 = vadd.f32 %v6215, %v6216
    %v6218 = vrot.slane %v6199, 4
    %v6219 = vadd.f32 %v6199, %v6218
    %v6220 = vrot.slane %v6219, 2
    %v6221 = vadd.f32 %v6219, %v6220
    %v6222 = vrot.slane %v6221, 1
    %v6223 = vadd.f32 %v6221, %v6222
    %v6224 = vmul.f32 %v6205, %v5033
    %v6225 = vmul.f32 %v6211, %v5033
    %v6226 = vmul.f32 %v6217, %v5033
    %v6227 = vmul.f32 %v6223, %v5033
    %v6228 = vmul.f32 %v6192, %v6192
    %v6229 = vmul.f32 %v6193, %v6193
    %v6230 = vmul.f32 %v6194, %v6194
    %v6231 = vmul.f32 %v6195, %v6195
    %v6232 = vsub.f32 %v6224, %v6228
    %v6233 = vsub.f32 %v6225, %v6229
    %v6234 = vsub.f32 %v6226, %v6230
    %v6235 = vsub.f32 %v6227, %v6231
    %v6236 = vmax.f32 %v6232, 0.0
    %v6237 = vmax.f32 %v6233, 0.0
    %v6238 = vmax.f32 %v6234, 0.0
    %v6239 = vmax.f32 %v6235, 0.0
    %v6240 = vld [vmem:[#allocation13] sm:$0xf]
    %v6241 = vadd.f32 %v6236, 1e-05
    %v6242 = vadd.f32 %v6237, 1e-05
    %v6243 = vadd.f32 %v6238, 1e-05
    %v6244 = vadd.f32 %v6239, 1e-05
    %v6245 = vrsqrt.pop %v6241
    %v6246 = vrsqrt.pop %v6242
    %v6247 = vrsqrt.pop %v6243
    %v6248 = vrsqrt.pop %v6244
    %v6253 = vcombine.low %v6245, %v6246
    %v6254 = vcombine.low %v6247, %v6248
    %v6256 = vunpack.c.l.s4 1966171168
    %v6257 = vunpack.c.0.s8 %v6256
    %v6258 = vlaneseq
    %v6259 = vshrl.u32 %v6258, 7
    %v6260 = vsub.s32 %v6257, %v6259
    %v6261 = vrot.slane %v6253, %v6260
    %v6263 = vunpack.c.l.s4 1966171168
    %v6264 = vunpack.c.0.s8 %v6263
    %v6265 = vlaneseq
    %v6266 = vshrl.u32 %v6265, 7
    %v6267 = vsub.s32 %v6264, %v6266
    %v6268 = vrot.slane %v6254, %v6267
    %v6269 = vcombine.low %v6261, %v6268
    %v6271 = vunpack.c.l.s4 1966171168
    %v6272 = vunpack.c.0.s8 %v6271
    %v6273 = vlaneseq
    %v6274 = vshrl.u32 %v6273, 7
    %v6275 = vsub.s32 %v6272, %v6274
    %v6276 = vrot.slane %v6269, %v6275
    %v6278 = vmul.f32 %v6240, %v6276
    %v6279 = vld [vmem:[#allocation14] sm:$0xf]
    %v6281 = vlaneseq
    %v6282 = vshrl.u32 %v6281, 7
    %v6283 = vsub.s32 0, %v6282
    %v6284 = vrot.slane %v6278, %v6283
    %v6285 = vlaneseq
    %v6286 = vshrl.u32 %v6285, 7
    %v6287 = vsub.s32 1, %v6286
    %v6288 = vrot.slane %v6278, %v6287
    %v6289 = vlaneseq
    %v6290 = vshrl.u32 %v6289, 7
    %v6291 = vsub.s32 2, %v6290
    %v6292 = vrot.slane %v6278, %v6291
    %v6293 = vlaneseq
    %v6294 = vshrl.u32 %v6293, 7
    %v6295 = vsub.s32 3, %v6294
    %v6296 = vrot.slane %v6278, %v6295
    %v6301 = vmul.f32 %v6192, %v6284
    %v6302 = vmul.f32 %v6193, %v6288
    %v6303 = vmul.f32 %v6194, %v6292
    %v6304 = vmul.f32 %v6195, %v6296
    %v6309 = vcombine.low %v6301, %v6302
    %v6310 = vcombine.low %v6303, %v6304
    %v6312 = vunpack.c.l.s4 1966171168
    %v6313 = vunpack.c.0.s8 %v6312
    %v6314 = vlaneseq
    %v6315 = vshrl.u32 %v6314, 7
    %v6316 = vsub.s32 %v6313, %v6315
    %v6317 = vrot.slane %v6309, %v6316
    %v6319 = vunpack.c.l.s4 1966171168
    %v6320 = vunpack.c.0.s8 %v6319
    %v6321 = vlaneseq
    %v6322 = vshrl.u32 %v6321, 7
    %v6323 = vsub.s32 %v6320, %v6322
    %v6324 = vrot.slane %v6310, %v6323
    %v6325 = vcombine.low %v6317, %v6324
    %v6327 = vunpack.c.l.s4 1966171168
    %v6328 = vunpack.c.0.s8 %v6327
    %v6329 = vlaneseq
    %v6330 = vshrl.u32 %v6329, 7
    %v6331 = vsub.s32 %v6328, %v6330
    %v6332 = vrot.slane %v6325, %v6331
    %v6334 = vsub.f32 %v6279, %v6332
    %v6335 = vmul.f32 %v6080, %v6284
    %v6336 = vmul.f32 %v6082, %v6288
    %v6337 = vmul.f32 %v6162, %v6292
    %v6338 = vmul.f32 %v6164, %v6296
    %v6340 = vlaneseq
    %v6341 = vshrl.u32 %v6340, 7
    %v6342 = vsub.s32 0, %v6341
    %v6343 = vrot.slane %v6334, %v6342
    %v6344 = vlaneseq
    %v6345 = vshrl.u32 %v6344, 7
    %v6346 = vsub.s32 1, %v6345
    %v6347 = vrot.slane %v6334, %v6346
    %v6348 = vlaneseq
    %v6349 = vshrl.u32 %v6348, 7
    %v6350 = vsub.s32 2, %v6349
    %v6351 = vrot.slane %v6334, %v6350
    %v6352 = vlaneseq
    %v6353 = vshrl.u32 %v6352, 7
    %v6354 = vsub.s32 3, %v6353
    %v6355 = vrot.slane %v6334, %v6354
    %v6360 = vadd.f32 %v6335, %v6343
    %v6361 = vadd.f32 %v6336, %v6347
    %v6362 = vadd.f32 %v6337, %v6351
    %v6363 = vadd.f32 %v6338, %v6355
    %v6364 = vmax.f32 %v6360, 0.0
    %v6365 = vmax.f32 %v6361, 0.0
    %v6366 = vmax.f32 %v6362, 0.0
    %v6367 = vmax.f32 %v6363, 0.0
    %v6368 = vpack.c.bf16 %v6364, %v6364
    %v6369 = vpack.c.bf16 %v6365, %v6365
    %v6370 = vpack.c.bf16 %v6366, %v6366
    %v6371 = vpack.c.bf16 %v6367, %v6367
    %v6372 = vld [vmem:[#allocation16] sm:$0xff]
    %v6373 = vld [vmem:[#allocation16 + $0x8] sm:$0xff]
    %v6374 = vld [vmem:[#allocation16 + $0x10] sm:$0xff]
    %v6375 = vld [vmem:[#allocation16 + $0x18] sm:$0xff]
    %v6376 = vld [vmem:[#allocation16 + $0x20] sm:$0xff]
    %v6377 = vld [vmem:[#allocation16 + $0x28] sm:$0xff]
    %v6378 = vld [vmem:[#allocation16 + $0x30] sm:$0xff]
    %v6379 = vld [vmem:[#allocation16 + $0x38] sm:$0xff]
    %v6380 = vld [vmem:[#allocation16 + $0x40] sm:$0xff]
    %v6381 = vld [vmem:[#allocation16 + $0x48] sm:$0xff]
    %v6382 = vld [vmem:[#allocation16 + $0x50] sm:$0xff]
    %v6383 = vld [vmem:[#allocation16 + $0x58] sm:$0xff]
    %v6384 = vld [vmem:[#allocation16 + $0x60] sm:$0xff]
    %v6385 = vld [vmem:[#allocation16 + $0x68] sm:$0xff]
    %v6386 = vld [vmem:[#allocation16 + $0x70] sm:$0xff]
    %v6387 = vld [vmem:[#allocation16 + $0x78] sm:$0xff]
    %v6388 = vld [vmem:[#allocation16 + $0x80] sm:$0xff]
    %v6389 = vld [vmem:[#allocation16 + $0x88] sm:$0xff]
    %v6390 = vld [vmem:[#allocation16 + $0x90] sm:$0xff]
    %v6391 = vld [vmem:[#allocation16 + $0x98] sm:$0xff]
    %v6392 = vld [vmem:[#allocation16 + $0xa0] sm:$0xff]
    %v6393 = vld [vmem:[#allocation16 + $0xa8] sm:$0xff]
    %v6394 = vld [vmem:[#allocation16 + $0xb0] sm:$0xff]
    %v6395 = vld [vmem:[#allocation16 + $0xb8] sm:$0xff]
    %v6396 = vld [vmem:[#allocation16 + $0xc0] sm:$0xff]
    %v6397 = vld [vmem:[#allocation16 + $0xc8] sm:$0xff]
    %v6398 = vld [vmem:[#allocation16 + $0xd0] sm:$0xff]
    %v6399 = vld [vmem:[#allocation16 + $0xd8] sm:$0xff]
    %v6400 = vld [vmem:[#allocation16 + $0xe0] sm:$0xff]
    %v6401 = vld [vmem:[#allocation16 + $0xe8] sm:$0xff]
    %v6402 = vld [vmem:[#allocation16 + $0xf0] sm:$0xff]
    %v6403 = vld [vmem:[#allocation16 + $0xf8] sm:$0xff]
    %v6404 = vld [vmem:[#allocation16 + $0x100] sm:$0xff]
    %v6405 = vld [vmem:[#allocation16 + $0x108] sm:$0xff]
    %v6406 = vld [vmem:[#allocation16 + $0x110] sm:$0xff]
    %v6407 = vld [vmem:[#allocation16 + $0x118] sm:$0xff]
    %v6408 = vld [vmem:[#allocation16 + $0x120] sm:$0xff]
    %v6409 = vld [vmem:[#allocation16 + $0x128] sm:$0xff]
    %v6410 = vld [vmem:[#allocation16 + $0x130] sm:$0xff]
    %v6411 = vld [vmem:[#allocation16 + $0x138] sm:$0xff]
    %v6412 = vld [vmem:[#allocation16 + $0x140] sm:$0xff]
    %v6413 = vld [vmem:[#allocation16 + $0x148] sm:$0xff]
    %v6414 = vld [vmem:[#allocation16 + $0x150] sm:$0xff]
    %v6415 = vld [vmem:[#allocation16 + $0x158] sm:$0xff]
    %v6416 = vld [vmem:[#allocation16 + $0x160] sm:$0xff]
    %v6417 = vld [vmem:[#allocation16 + $0x168] sm:$0xff]
    %v6418 = vld [vmem:[#allocation16 + $0x170] sm:$0xff]
    %v6419 = vld [vmem:[#allocation16 + $0x178] sm:$0xff]
    %v6420 = vld [vmem:[#allocation16 + $0x180] sm:$0xff]
    %v6421 = vld [vmem:[#allocation16 + $0x188] sm:$0xff]
    %v6422 = vld [vmem:[#allocation16 + $0x190] sm:$0xff]
    %v6423 = vld [vmem:[#allocation16 + $0x198] sm:$0xff]
    %v6424 = vld [vmem:[#allocation16 + $0x1a0] sm:$0xff]
    %v6425 = vld [vmem:[#allocation16 + $0x1a8] sm:$0xff]
    %v6426 = vld [vmem:[#allocation16 + $0x1b0] sm:$0xff]
    %v6427 = vld [vmem:[#allocation16 + $0x1b8] sm:$0xff]
    %v6428 = vld [vmem:[#allocation16 + $0x1c0] sm:$0xff]
    %v6429 = vld [vmem:[#allocation16 + $0x1c8] sm:$0xff]
    %v6430 = vld [vmem:[#allocation16 + $0x1d0] sm:$0xff]
    %v6431 = vld [vmem:[#allocation16 + $0x1d8] sm:$0xff]
    %v6432 = vld [vmem:[#allocation16 + $0x1e0] sm:$0xff]
    %v6433 = vld [vmem:[#allocation16 + $0x1e8] sm:$0xff]
    %v6434 = vld [vmem:[#allocation16 + $0x1f0] sm:$0xff]
    %v6435 = vld [vmem:[#allocation16 + $0x1f8] sm:$0xff]
    %v6436 = vld [vmem:[#allocation17] sm:$0x3]
    %v6438 = vlaneseq
    %v6439 = vshrl.u32 %v6438, 7
    %v6440 = vsub.s32 0, %v6439
    %v6441 = vrot.slane %v6436, %v6440
    %v6442 = vlaneseq
    %v6443 = vshrl.u32 %v6442, 7
    %v6444 = vsub.s32 1, %v6443
    %v6445 = vrot.slane %v6436, %v6444
    %v6512 = vunpack.c.l.b16 %v6372
    %v6513 = vunpack.c.h.b16 %v6372
    %v6514 = vunpack.c.l.b16 %v6373
    %v6515 = vunpack.c.h.b16 %v6373
    %v6516 = vunpack.c.l.b16 %v6374
    %v6517 = vunpack.c.h.b16 %v6374
    %v6518 = vunpack.c.l.b16 %v6375
    %v6519 = vunpack.c.h.b16 %v6375
    %v6520 = vunpack.c.l.b16 %v6376
    %v6521 = vunpack.c.h.b16 %v6376
    %v6522 = vunpack.c.l.b16 %v6377
    %v6523 = vunpack.c.h.b16 %v6377
    %v6524 = vunpack.c.l.b16 %v6378
    %v6525 = vunpack.c.h.b16 %v6378
    %v6526 = vunpack.c.l.b16 %v6379
    %v6527 = vunpack.c.h.b16 %v6379
    %v6528 = vunpack.c.l.b16 %v6380
    %v6529 = vunpack.c.h.b16 %v6380
    %v6530 = vunpack.c.l.b16 %v6381
    %v6531 = vunpack.c.h.b16 %v6381
    %v6532 = vunpack.c.l.b16 %v6382
    %v6533 = vunpack.c.h.b16 %v6382
    %v6534 = vunpack.c.l.b16 %v6383
    %v6535 = vunpack.c.h.b16 %v6383
    %v6536 = vunpack.c.l.b16 %v6384
    %v6537 = vunpack.c.h.b16 %v6384
    %v6538 = vunpack.c.l.b16 %v6385
    %v6539 = vunpack.c.h.b16 %v6385
    %v6540 = vunpack.c.l.b16 %v6386
    %v6541 = vunpack.c.h.b16 %v6386
    %v6542 = vunpack.c.l.b16 %v6387
    %v6543 = vunpack.c.h.b16 %v6387
    %v6544 = vunpack.c.l.b16 %v6388
    %v6545 = vunpack.c.h.b16 %v6388
    %v6546 = vunpack.c.l.b16 %v6389
    %v6547 = vunpack.c.h.b16 %v6389
    %v6548 = vunpack.c.l.b16 %v6390
    %v6549 = vunpack.c.h.b16 %v6390
    %v6550 = vunpack.c.l.b16 %v6391
    %v6551 = vunpack.c.h.b16 %v6391
    %v6552 = vunpack.c.l.b16 %v6392
    %v6553 = vunpack.c.h.b16 %v6392
    %v6554 = vunpack.c.l.b16 %v6393
    %v6555 = vunpack.c.h.b16 %v6393
    %v6556 = vunpack.c.l.b16 %v6394
    %v6557 = vunpack.c.h.b16 %v6394
    %v6558 = vunpack.c.l.b16 %v6395
    %v6559 = vunpack.c.h.b16 %v6395
    %v6560 = vunpack.c.l.b16 %v6396
    %v6561 = vunpack.c.h.b16 %v6396
    %v6562 = vunpack.c.l.b16 %v6397
    %v6563 = vunpack.c.h.b16 %v6397
    %v6564 = vunpack.c.l.b16 %v6398
    %v6565 = vunpack.c.h.b16 %v6398
    %v6566 = vunpack.c.l.b16 %v6399
    %v6567 = vunpack.c.h.b16 %v6399
    %v6568 = vunpack.c.l.b16 %v6400
    %v6569 = vunpack.c.h.b16 %v6400
    %v6570 = vunpack.c.l.b16 %v6401
    %v6571 = vunpack.c.h.b16 %v6401
    %v6572 = vunpack.c.l.b16 %v6402
    %v6573 = vunpack.c.h.b16 %v6402
    %v6574 = vunpack.c.l.b16 %v6403
    %v6575 = vunpack.c.h.b16 %v6403
    %v6576 = vunpack.c.l.b16 %v6404
    %v6577 = vunpack.c.h.b16 %v6404
    %v6578 = vunpack.c.l.b16 %v6405
    %v6579 = vunpack.c.h.b16 %v6405
    %v6580 = vunpack.c.l.b16 %v6406
    %v6581 = vunpack.c.h.b16 %v6406
    %v6582 = vunpack.c.l.b16 %v6407
    %v6583 = vunpack.c.h.b16 %v6407
    %v6584 = vunpack.c.l.b16 %v6408
    %v6585 = vunpack.c.h.b16 %v6408
    %v6586 = vunpack.c.l.b16 %v6409
    %v6587 = vunpack.c.h.b16 %v6409
    %v6588 = vunpack.c.l.b16 %v6410
    %v6589 = vunpack.c.h.b16 %v6410
    %v6590 = vunpack.c.l.b16 %v6411
    %v6591 = vunpack.c.h.b16 %v6411
    %v6592 = vunpack.c.l.b16 %v6412
    %v6593 = vunpack.c.h.b16 %v6412
    %v6594 = vunpack.c.l.b16 %v6413
    %v6595 = vunpack.c.h.b16 %v6413
    %v6596 = vunpack.c.l.b16 %v6414
    %v6597 = vunpack.c.h.b16 %v6414
    %v6598 = vunpack.c.l.b16 %v6415
    %v6599 = vunpack.c.h.b16 %v6415
    %v6600 = vunpack.c.l.b16 %v6416
    %v6601 = vunpack.c.h.b16 %v6416
    %v6602 = vunpack.c.l.b16 %v6417
    %v6603 = vunpack.c.h.b16 %v6417
    %v6604 = vunpack.c.l.b16 %v6418
    %v6605 = vunpack.c.h.b16 %v6418
    %v6606 = vunpack.c.l.b16 %v6419
    %v6607 = vunpack.c.h.b16 %v6419
    %v6608 = vunpack.c.l.b16 %v6420
    %v6609 = vunpack.c.h.b16 %v6420
    %v6610 = vunpack.c.l.b16 %v6421
    %v6611 = vunpack.c.h.b16 %v6421
    %v6612 = vunpack.c.l.b16 %v6422
    %v6613 = vunpack.c.h.b16 %v6422
    %v6614 = vunpack.c.l.b16 %v6423
    %v6615 = vunpack.c.h.b16 %v6423
    %v6616 = vunpack.c.l.b16 %v6424
    %v6617 = vunpack.c.h.b16 %v6424
    %v6618 = vunpack.c.l.b16 %v6425
    %v6619 = vunpack.c.h.b16 %v6425
    %v6620 = vunpack.c.l.b16 %v6426
    %v6621 = vunpack.c.h.b16 %v6426
    %v6622 = vunpack.c.l.b16 %v6427
    %v6623 = vunpack.c.h.b16 %v6427
    %v6624 = vunpack.c.l.b16 %v6428
    %v6625 = vunpack.c.h.b16 %v6428
    %v6626 = vunpack.c.l.b16 %v6429
    %v6627 = vunpack.c.h.b16 %v6429
    %v6628 = vunpack.c.l.b16 %v6430
    %v6629 = vunpack.c.h.b16 %v6430
    %v6630 = vunpack.c.l.b16 %v6431
    %v6631 = vunpack.c.h.b16 %v6431
    %v6632 = vunpack.c.l.b16 %v6432
    %v6633 = vunpack.c.h.b16 %v6432
    %v6634 = vunpack.c.l.b16 %v6433
    %v6635 = vunpack.c.h.b16 %v6433
    %v6636 = vunpack.c.l.b16 %v6434
    %v6637 = vunpack.c.h.b16 %v6434
    %v6638 = vunpack.c.l.b16 %v6435
    %v6639 = vunpack.c.h.b16 %v6435
    %v6640 = vpack.c.b16 %v6514, %v6512
    %v6641 = vpack.c.b16 %v6515, %v6513
    %v6642 = vpack.c.b16 %v6518, %v6516
    %v6643 = vpack.c.b16 %v6519, %v6517
    %v6644 = vpack.c.b16 %v6522, %v6520
    %v6645 = vpack.c.b16 %v6523, %v6521
    %v6646 = vpack.c.b16 %v6526, %v6524
    %v6647 = vpack.c.b16 %v6527, %v6525
    %v6648 = vpack.c.b16 %v6530, %v6528
    %v6649 = vpack.c.b16 %v6531, %v6529
    %v6650 = vpack.c.b16 %v6534, %v6532
    %v6651 = vpack.c.b16 %v6535, %v6533
    %v6652 = vpack.c.b16 %v6538, %v6536
    %v6653 = vpack.c.b16 %v6539, %v6537
    %v6654 = vpack.c.b16 %v6542, %v6540
    %v6655 = vpack.c.b16 %v6543, %v6541
    %v6656 = vpack.c.b16 %v6546, %v6544
    %v6657 = vpack.c.b16 %v6547, %v6545
    %v6658 = vpack.c.b16 %v6550, %v6548
    %v6659 = vpack.c.b16 %v6551, %v6549
    %v6660 = vpack.c.b16 %v6554, %v6552
    %v6661 = vpack.c.b16 %v6555, %v6553
    %v6662 = vpack.c.b16 %v6558, %v6556
    %v6663 = vpack.c.b16 %v6559, %v6557
    %v6664 = vpack.c.b16 %v6562, %v6560
    %v6665 = vpack.c.b16 %v6563, %v6561
    %v6666 = vpack.c.b16 %v6566, %v6564
    %v6667 = vpack.c.b16 %v6567, %v6565
    %v6668 = vpack.c.b16 %v6570, %v6568
    %v6669 = vpack.c.b16 %v6571, %v6569
    %v6670 = vpack.c.b16 %v6574, %v6572
    %v6671 = vpack.c.b16 %v6575, %v6573
    %v6672 = vpack.c.b16 %v6578, %v6576
    %v6673 = vpack.c.b16 %v6579, %v6577
    %v6674 = vpack.c.b16 %v6582, %v6580
    %v6675 = vpack.c.b16 %v6583, %v6581
    %v6676 = vpack.c.b16 %v6586, %v6584
    %v6677 = vpack.c.b16 %v6587, %v6585
    %v6678 = vpack.c.b16 %v6590, %v6588
    %v6679 = vpack.c.b16 %v6591, %v6589
    %v6680 = vpack.c.b16 %v6594, %v6592
    %v6681 = vpack.c.b16 %v6595, %v6593
    %v6682 = vpack.c.b16 %v6598, %v6596
    %v6683 = vpack.c.b16 %v6599, %v6597
    %v6684 = vpack.c.b16 %v6602, %v6600
    %v6685 = vpack.c.b16 %v6603, %v6601
    %v6686 = vpack.c.b16 %v6606, %v6604
    %v6687 = vpack.c.b16 %v6607, %v6605
    %v6688 = vpack.c.b16 %v6610, %v6608
    %v6689 = vpack.c.b16 %v6611, %v6609
    %v6690 = vpack.c.b16 %v6614, %v6612
    %v6691 = vpack.c.b16 %v6615, %v6613
    %v6692 = vpack.c.b16 %v6618, %v6616
    %v6693 = vpack.c.b16 %v6619, %v6617
    %v6694 = vpack.c.b16 %v6622, %v6620
    %v6695 = vpack.c.b16 %v6623, %v6621
    %v6696 = vpack.c.b16 %v6626, %v6624
    %v6697 = vpack.c.b16 %v6627, %v6625
    %v6698 = vpack.c.b16 %v6630, %v6628
    %v6699 = vpack.c.b16 %v6631, %v6629
    %v6700 = vpack.c.b16 %v6634, %v6632
    %v6701 = vpack.c.b16 %v6635, %v6633
    %v6702 = vpack.c.b16 %v6638, %v6636
    %v6703 = vpack.c.b16 %v6639, %v6637
    %6768 = vmatprep.subr.bf16.mxu0 %v6641
    %6769 = vmatpush1.bf16.msra.mxu0 %v6640
    %6770 = vmatprep.subr.bf16.mxu0 %v6643
    %6771 = vmatpush1.bf16.msra.mxu0 %v6642
    %6772 = vmatprep.subr.bf16.mxu0 %v6645
    %6773 = vmatpush1.bf16.msra.mxu0 %v6644
    %6774 = vmatprep.subr.bf16.mxu0 %v6647
    %6775 = vmatpush1.bf16.msra.mxu0 %v6646
    %6776 = vmatprep.subr.bf16.mxu0 %v6649
    %6777 = vmatpush1.bf16.msra.mxu0 %v6648
    %6778 = vmatprep.subr.bf16.mxu0 %v6651
    %6779 = vmatpush1.bf16.msra.mxu0 %v6650
    %6780 = vmatprep.subr.bf16.mxu0 %v6653
    %6781 = vmatpush1.bf16.msra.mxu0 %v6652
    %6782 = vmatprep.subr.bf16.mxu0 %v6655
    %6783 = vmatpush1.bf16.msra.mxu0 %v6654
    %6784 = vmatprep.subr.bf16.mxu0 %v6657
    %6785 = vmatpush1.bf16.msra.mxu0 %v6656
    %6786 = vmatprep.subr.bf16.mxu0 %v6659
    %6787 = vmatpush1.bf16.msra.mxu0 %v6658
    %6788 = vmatprep.subr.bf16.mxu0 %v6661
    %6789 = vmatpush1.bf16.msra.mxu0 %v6660
    %6790 = vmatprep.subr.bf16.mxu0 %v6663
    %6791 = vmatpush1.bf16.msra.mxu0 %v6662
    %6792 = vmatprep.subr.bf16.mxu0 %v6665
    %6793 = vmatpush1.bf16.msra.mxu0 %v6664
    %6794 = vmatprep.subr.bf16.mxu0 %v6667
    %6795 = vmatpush1.bf16.msra.mxu0 %v6666
    %6796 = vmatprep.subr.bf16.mxu0 %v6669
    %6797 = vmatpush1.bf16.msra.mxu0 %v6668
    %6798 = vmatprep.subr.bf16.mxu0 %v6671
    %6799 = vmatpush1.bf16.msra.mxu0 %v6670
    %6800 = vmatprep.mubr.bf16.mxu0 %v6369
    %6801 = vmatmul.mubr.bf16.gmra.mrb[0].mxu0 %v6368
    %v6802 = vpop.f32.mrb[0].mxu0
    %v6803 = vadd.f32 %v6441, %v6802
    %v6804 = vpop.f32.mrb[0].mxu0
    %v6805 = vadd.f32 %v6445, %v6804
    %v6806 = vpop.f32.mrb[0].mxu0
    %v6807 = vpop.f32.mrb[0].mxu0
    %6808 = vdwg.mxu0
    %6809 = vmatprep.subr.bf16.mxu0 %v6673
    %6810 = vmatpush1.bf16.msra.mxu0 %v6672
    %6811 = vmatprep.subr.bf16.mxu0 %v6675
    %6812 = vmatpush1.bf16.msra.mxu0 %v6674
    %6813 = vmatprep.subr.bf16.mxu0 %v6677
    %6814 = vmatpush1.bf16.msra.mxu0 %v6676
    %6815 = vmatprep.subr.bf16.mxu0 %v6679
    %6816 = vmatpush1.bf16.msra.mxu0 %v6678
    %6817 = vmatprep.subr.bf16.mxu0 %v6681
    %6818 = vmatpush1.bf16.msra.mxu0 %v6680
    %6819 = vmatprep.subr.bf16.mxu0 %v6683
    %6820 = vmatpush1.bf16.msra.mxu0 %v6682
    %6821 = vmatprep.subr.bf16.mxu0 %v6685
    %6822 = vmatpush1.bf16.msra.mxu0 %v6684
    %6823 = vmatprep.subr.bf16.mxu0 %v6687
    %6824 = vmatpush1.bf16.msra.mxu0 %v6686
    %6825 = vmatprep.subr.bf16.mxu0 %v6689
    %6826 = vmatpush1.bf16.msra.mxu0 %v6688
    %6827 = vmatprep.subr.bf16.mxu0 %v6691
    %6828 = vmatpush1.bf16.msra.mxu0 %v6690
    %6829 = vmatprep.subr.bf16.mxu0 %v6693
    %6830 = vmatpush1.bf16.msra.mxu0 %v6692
    %6831 = vmatprep.subr.bf16.mxu0 %v6695
    %6832 = vmatpush1.bf16.msra.mxu0 %v6694
    %6833 = vmatprep.subr.bf16.mxu0 %v6697
    %6834 = vmatpush1.bf16.msra.mxu0 %v6696
    %6835 = vmatprep.subr.bf16.mxu0 %v6699
    %6836 = vmatpush1.bf16.msra.mxu0 %v6698
    %6837 = vmatprep.subr.bf16.mxu0 %v6701
    %6838 = vmatpush1.bf16.msra.mxu0 %v6700
    %6839 = vmatprep.subr.bf16.mxu0 %v6703
    %6840 = vmatpush1.bf16.msra.mxu0 %v6702
    %6841 = vmatprep.mubr.bf16.mxu0 %v6371
    %6842 = vmatmul.mubr.bf16.gmra.mrb[0].mxu0 %v6370
    %v6843 = vpop.f32.mrb[0].mxu0
    %v6844 = vadd.f32 %v6803, %v6843
    %v6845 = vpop.f32.mrb[0].mxu0
    %v6846 = vadd.f32 %v6805, %v6845
    %v6847 = vpop.f32.mrb[0].mxu0
    %v6848 = vpop.f32.mrb[0].mxu0
    %6849 = vdwg.mxu0
    %v6850 = vrot.slane %v6844, 4
    %v6851 = vadd.f32 %v6844, %v6850
    %v6852 = vrot.slane %v6851, 2
    %v6853 = vadd.f32 %v6851, %v6852
    %v6854 = vrot.slane %v6853, 1
    %v6855 = vadd.f32 %v6853, %v6854
    %v6856 = vrot.slane %v6846, 4
    %v6857 = vadd.f32 %v6846, %v6856
    %v6858 = vrot.slane %v6857, 2
    %v6859 = vadd.f32 %v6857, %v6858
    %v6860 = vrot.slane %v6859, 1
    %v6861 = vadd.f32 %v6859, %v6860
    %v6862 = vmul.f32 %v6855, %v5033
    %v6863 = vmul.f32 %v6861, %v5033
    %v6864 = vmul.f32 %v6844, %v6844
    %v6865 = vmul.f32 %v6846, %v6846
    %v6866 = vrot.slane %v6864, 4
    %v6867 = vadd.f32 %v6864, %v6866
    %v6868 = vrot.slane %v6867, 2
    %v6869 = vadd.f32 %v6867, %v6868
    %v6870 = vrot.slane %v6869, 1
    %v6871 = vadd.f32 %v6869, %v6870
    %v6872 = vrot.slane %v6865, 4
    %v6873 = vadd.f32 %v6865, %v6872
    %v6874 = vrot.slane %v6873, 2
    %v6875 = vadd.f32 %v6873, %v6874
    %v6876 = vrot.slane %v6875, 1
    %v6877 = vadd.f32 %v6875, %v6876
    %v6878 = vmul.f32 %v6871, %v5033
    %v6879 = vmul.f32 %v6877, %v5033
    %v6880 = vmul.f32 %v6862, %v6862
    %v6881 = vmul.f32 %v6863, %v6863
    %v6882 = vsub.f32 %v6878, %v6880
    %v6883 = vsub.f32 %v6879, %v6881
    %v6884 = vmax.f32 %v6882, 0.0
    %v6885 = vmax.f32 %v6883, 0.0
    %v6886 = vld [vmem:[#allocation19] sm:$0x3]
    %v6887 = vadd.f32 %v6884, 1e-05
    %v6888 = vadd.f32 %v6885, 1e-05
    %v6889 = vrsqrt.pop %v6887
    %v6890 = vrsqrt.pop %v6888
    %v6893 = vcombine.low %v6889, %v6890
    %v6895 = vunpack.c.l.s4 1966171168
    %v6896 = vunpack.c.0.s8 %v6895
    %v6897 = vlaneseq
    %v6898 = vshrl.u32 %v6897, 7
    %v6899 = vsub.s32 %v6896, %v6898
    %v6900 = vrot.slane %v6893, %v6899
    %v6902 = vunpack.c.l.s4 1966171168
    %v6903 = vunpack.c.0.s8 %v6902
    %v6904 = vlaneseq
    %v6905 = vshrl.u32 %v6904, 7
    %v6906 = vsub.s32 %v6903, %v6905
    %v6907 = vrot.slane %v6900, %v6906
    %v6909 = vmul.f32 %v6886, %v6907
    %v6910 = vld [vmem:[#allocation20] sm:$0x3]
    %v6912 = vlaneseq
    %v6913 = vshrl.u32 %v6912, 7
    %v6914 = vsub.s32 0, %v6913
    %v6915 = vrot.slane %v6909, %v6914
    %v6916 = vlaneseq
    %v6917 = vshrl.u32 %v6916, 7
    %v6918 = vsub.s32 1, %v6917
    %v6919 = vrot.slane %v6909, %v6918
    %v6922 = vmul.f32 %v6862, %v6915
    %v6923 = vmul.f32 %v6863, %v6919
    %v6926 = vcombine.low %v6922, %v6923
    %v6928 = vunpack.c.l.s4 1966171168
    %v6929 = vunpack.c.0.s8 %v6928
    %v6930 = vlaneseq
    %v6931 = vshrl.u32 %v6930, 7
    %v6932 = vsub.s32 %v6929, %v6931
    %v6933 = vrot.slane %v6926, %v6932
    %v6935 = vunpack.c.l.s4 1966171168
    %v6936 = vunpack.c.0.s8 %v6935
    %v6937 = vlaneseq
    %v6938 = vshrl.u32 %v6937, 7
    %v6939 = vsub.s32 %v6936, %v6938
    %v6940 = vrot.slane %v6933, %v6939
    %v6942 = vsub.f32 %v6910, %v6940
    %v6943 = vmul.f32 %v6844, %v6915
    %v6944 = vmul.f32 %v6846, %v6919
    %v6946 = vlaneseq
    %v6947 = vshrl.u32 %v6946, 7
    %v6948 = vsub.s32 0, %v6947
    %v6949 = vrot.slane %v6942, %v6948
    %v6950 = vlaneseq
    %v6951 = vshrl.u32 %v6950, 7
    %v6952 = vsub.s32 1, %v6951
    %v6953 = vrot.slane %v6942, %v6952
    %v6956 = vadd.f32 %v6943, %v6949
    %v6957 = vadd.f32 %v6944, %v6953
    %v6958 = vmax.f32 %v6956, 0.0
    %v6959 = vmax.f32 %v6957, 0.0
    %v6960 = vpack.c.bf16 %v6958, %v6958
    %v6961 = vpack.c.bf16 %v6959, %v6959
    %v6962 = vld [vmem:[#allocation22] sm:$0xff]
    %v6963 = vld [vmem:[#allocation22 + $0x8] sm:$0xff]
    %v6964 = vld [vmem:[#allocation22 + $0x10] sm:$0xff]
    %v6965 = vld [vmem:[#allocation22 + $0x18] sm:$0xff]
    %v6966 = vld [vmem:[#allocation22 + $0x20] sm:$0xff]
    %v6967 = vld [vmem:[#allocation22 + $0x28] sm:$0xff]
    %v6968 = vld [vmem:[#allocation22 + $0x30] sm:$0xff]
    %v6969 = vld [vmem:[#allocation22 + $0x38] sm:$0xff]
    %v6970 = vld [vmem:[#allocation22 + $0x40] sm:$0xff]
    %v6971 = vld [vmem:[#allocation22 + $0x48] sm:$0xff]
    %v6972 = vld [vmem:[#allocation22 + $0x50] sm:$0xff]
    %v6973 = vld [vmem:[#allocation22 + $0x58] sm:$0xff]
    %v6974 = vld [vmem:[#allocation22 + $0x60] sm:$0xff]
    %v6975 = vld [vmem:[#allocation22 + $0x68] sm:$0xff]
    %v6976 = vld [vmem:[#allocation22 + $0x70] sm:$0xff]
    %v6977 = vld [vmem:[#allocation22 + $0x78] sm:$0xff]
    %v6978 = vld [vmem:[#allocation22 + $0x80] sm:$0xff]
    %v6979 = vld [vmem:[#allocation22 + $0x88] sm:$0xff]
    %v6980 = vld [vmem:[#allocation22 + $0x90] sm:$0xff]
    %v6981 = vld [vmem:[#allocation22 + $0x98] sm:$0xff]
    %v6982 = vld [vmem:[#allocation22 + $0xa0] sm:$0xff]
    %v6983 = vld [vmem:[#allocation22 + $0xa8] sm:$0xff]
    %v6984 = vld [vmem:[#allocation22 + $0xb0] sm:$0xff]
    %v6985 = vld [vmem:[#allocation22 + $0xb8] sm:$0xff]
    %v6986 = vld [vmem:[#allocation22 + $0xc0] sm:$0xff]
    %v6987 = vld [vmem:[#allocation22 + $0xc8] sm:$0xff]
    %v6988 = vld [vmem:[#allocation22 + $0xd0] sm:$0xff]
    %v6989 = vld [vmem:[#allocation22 + $0xd8] sm:$0xff]
    %v6990 = vld [vmem:[#allocation22 + $0xe0] sm:$0xff]
    %v6991 = vld [vmem:[#allocation22 + $0xe8] sm:$0xff]
    %v6992 = vld [vmem:[#allocation22 + $0xf0] sm:$0xff]
    %v6993 = vld [vmem:[#allocation22 + $0xf8] sm:$0xff]
    %v6994 = vld [vmem:[#allocation23] sm:$0x3]
    %v6996 = vlaneseq
    %v6997 = vshrl.u32 %v6996, 7
    %v6998 = vsub.s32 0, %v6997
    %v6999 = vrot.slane %v6994, %v6998
    %v7000 = vlaneseq
    %v7001 = vshrl.u32 %v7000, 7
    %v7002 = vsub.s32 1, %v7001
    %v7003 = vrot.slane %v6994, %v7002
    %v7038 = vunpack.c.l.b16 %v6962
    %v7039 = vunpack.c.h.b16 %v6962
    %v7040 = vunpack.c.l.b16 %v6963
    %v7041 = vunpack.c.h.b16 %v6963
    %v7042 = vunpack.c.l.b16 %v6964
    %v7043 = vunpack.c.h.b16 %v6964
    %v7044 = vunpack.c.l.b16 %v6965
    %v7045 = vunpack.c.h.b16 %v6965
    %v7046 = vunpack.c.l.b16 %v6966
    %v7047 = vunpack.c.h.b16 %v6966
    %v7048 = vunpack.c.l.b16 %v6967
    %v7049 = vunpack.c.h.b16 %v6967
    %v7050 = vunpack.c.l.b16 %v6968
    %v7051 = vunpack.c.h.b16 %v6968
    %v7052 = vunpack.c.l.b16 %v6969
    %v7053 = vunpack.c.h.b16 %v6969
    %v7054 = vunpack.c.l.b16 %v6970
    %v7055 = vunpack.c.h.b16 %v6970
    %v7056 = vunpack.c.l.b16 %v6971
    %v7057 = vunpack.c.h.b16 %v6971
    %v7058 = vunpack.c.l.b16 %v6972
    %v7059 = vunpack.c.h.b16 %v6972
    %v7060 = vunpack.c.l.b16 %v6973
    %v7061 = vunpack.c.h.b16 %v6973
    %v7062 = vunpack.c.l.b16 %v6974
    %v7063 = vunpack.c.h.b16 %v6974
    %v7064 = vunpack.c.l.b16 %v6975
    %v7065 = vunpack.c.h.b16 %v6975
    %v7066 = vunpack.c.l.b16 %v6976
    %v7067 = vunpack.c.h.b16 %v6976
    %v7068 = vunpack.c.l.b16 %v6977
    %v7069 = vunpack.c.h.b16 %v6977
    %v7070 = vunpack.c.l.b16 %v6978
    %v7071 = vunpack.c.h.b16 %v6978
    %v7072 = vunpack.c.l.b16 %v6979
    %v7073 = vunpack.c.h.b16 %v6979
    %v7074 = vunpack.c.l.b16 %v6980
    %v7075 = vunpack.c.h.b16 %v6980
    %v7076 = vunpack.c.l.b16 %v6981
    %v7077 = vunpack.c.h.b16 %v6981
    %v7078 = vunpack.c.l.b16 %v6982
    %v7079 = vunpack.c.h.b16 %v6982
    %v7080 = vunpack.c.l.b16 %v6983
    %v7081 = vunpack.c.h.b16 %v6983
    %v7082 = vunpack.c.l.b16 %v6984
    %v7083 = vunpack.c.h.b16 %v6984
    %v7084 = vunpack.c.l.b16 %v6985
    %v7085 = vunpack.c.h.b16 %v6985
    %v7086 = vunpack.c.l.b16 %v6986
    %v7087 = vunpack.c.h.b16 %v6986
    %v7088 = vunpack.c.l.b16 %v6987
    %v7089 = vunpack.c.h.b16 %v6987
    %v7090 = vunpack.c.l.b16 %v6988
    %v7091 = vunpack.c.h.b16 %v6988
    %v7092 = vunpack.c.l.b16 %v6989
    %v7093 = vunpack.c.h.b16 %v6989
    %v7094 = vunpack.c.l.b16 %v6990
    %v7095 = vunpack.c.h.b16 %v6990
    %v7096 = vunpack.c.l.b16 %v6991
    %v7097 = vunpack.c.h.b16 %v6991
    %v7098 = vunpack.c.l.b16 %v6992
    %v7099 = vunpack.c.h.b16 %v6992
    %v7100 = vunpack.c.l.b16 %v6993
    %v7101 = vunpack.c.h.b16 %v6993
    %v7102 = vpack.c.b16 %v7040, %v7038
    %v7103 = vpack.c.b16 %v7041, %v7039
    %v7104 = vpack.c.b16 %v7044, %v7042
    %v7105 = vpack.c.b16 %v7045, %v7043
    %v7106 = vpack.c.b16 %v7048, %v7046
    %v7107 = vpack.c.b16 %v7049, %v7047
    %v7108 = vpack.c.b16 %v7052, %v7050
    %v7109 = vpack.c.b16 %v7053, %v7051
    %v7110 = vpack.c.b16 %v7056, %v7054
    %v7111 = vpack.c.b16 %v7057, %v7055
    %v7112 = vpack.c.b16 %v7060, %v7058
    %v7113 = vpack.c.b16 %v7061, %v7059
    %v7114 = vpack.c.b16 %v7064, %v7062
    %v7115 = vpack.c.b16 %v7065, %v7063
    %v7116 = vpack.c.b16 %v7068, %v7066
    %v7117 = vpack.c.b16 %v7069, %v7067
    %v7118 = vpack.c.b16 %v7072, %v7070
    %v7119 = vpack.c.b16 %v7073, %v7071
    %v7120 = vpack.c.b16 %v7076, %v7074
    %v7121 = vpack.c.b16 %v7077, %v7075
    %v7122 = vpack.c.b16 %v7080, %v7078
    %v7123 = vpack.c.b16 %v7081, %v7079
    %v7124 = vpack.c.b16 %v7084, %v7082
    %v7125 = vpack.c.b16 %v7085, %v7083
    %v7126 = vpack.c.b16 %v7088, %v7086
    %v7127 = vpack.c.b16 %v7089, %v7087
    %v7128 = vpack.c.b16 %v7092, %v7090
    %v7129 = vpack.c.b16 %v7093, %v7091
    %v7130 = vpack.c.b16 %v7096, %v7094
    %v7131 = vpack.c.b16 %v7097, %v7095
    %v7132 = vpack.c.b16 %v7100, %v7098
    %v7133 = vpack.c.b16 %v7101, %v7099
    %7166 = vmatprep.subr.bf16.mxu0 %v7103
    %7167 = vmatpush1.bf16.msra.mxu0 %v7102
    %7168 = vmatprep.subr.bf16.mxu0 %v7105
    %7169 = vmatpush1.bf16.msra.mxu0 %v7104
    %7170 = vmatprep.subr.bf16.mxu0 %v7107
    %7171 = vmatpush1.bf16.msra.mxu0 %v7106
    %7172 = vmatprep.subr.bf16.mxu0 %v7109
    %7173 = vmatpush1.bf16.msra.mxu0 %v7108
    %7174 = vmatprep.subr.bf16.mxu0 %v7111
    %7175 = vmatpush1.bf16.msra.mxu0 %v7110
    %7176 = vmatprep.subr.bf16.mxu0 %v7113
    %7177 = vmatpush1.bf16.msra.mxu0 %v7112
    %7178 = vmatprep.subr.bf16.mxu0 %v7115
    %7179 = vmatpush1.bf16.msra.mxu0 %v7114
    %7180 = vmatprep.subr.bf16.mxu0 %v7117
    %7181 = vmatpush1.bf16.msra.mxu0 %v7116
    %7182 = vmatprep.subr.bf16.mxu0 %v7119
    %7183 = vmatpush1.bf16.msra.mxu0 %v7118
    %7184 = vmatprep.subr.bf16.mxu0 %v7121
    %7185 = vmatpush1.bf16.msra.mxu0 %v7120
    %7186 = vmatprep.subr.bf16.mxu0 %v7123
    %7187 = vmatpush1.bf16.msra.mxu0 %v7122
    %7188 = vmatprep.subr.bf16.mxu0 %v7125
    %7189 = vmatpush1.bf16.msra.mxu0 %v7124
    %7190 = vmatprep.subr.bf16.mxu0 %v7127
    %7191 = vmatpush1.bf16.msra.mxu0 %v7126
    %7192 = vmatprep.subr.bf16.mxu0 %v7129
    %7193 = vmatpush1.bf16.msra.mxu0 %v7128
    %7194 = vmatprep.subr.bf16.mxu0 %v7131
    %7195 = vmatpush1.bf16.msra.mxu0 %v7130
    %7196 = vmatprep.subr.bf16.mxu0 %v7133
    %7197 = vmatpush1.bf16.msra.mxu0 %v7132
    %7198 = vmatprep.mubr.bf16.mxu0 %v6961
    %7199 = vmatmul.mubr.bf16.gmra.mrb[0].mxu0 %v6960
    %v7200 = vpop.f32.mrb[0].mxu0
    %v7201 = vadd.f32 %v6999, %v7200
    %v7202 = vpop.f32.mrb[0].mxu0
    %v7203 = vadd.f32 %v7003, %v7202
    %v7204 = vpop.f32.mrb[0].mxu0
    %v7205 = vpop.f32.mrb[0].mxu0
    %7206 = vdwg.mxu0
    %v7207 = vrot.slane %v7201, 4
    %v7208 = vadd.f32 %v7201, %v7207
    %v7209 = vrot.slane %v7208, 2
    %v7210 = vadd.f32 %v7208, %v7209
    %v7211 = vrot.slane %v7210, 1
    %v7212 = vadd.f32 %v7210, %v7211
    %v7213 = vrot.slane %v7203, 4
    %v7214 = vadd.f32 %v7203, %v7213
    %v7215 = vrot.slane %v7214, 2
    %v7216 = vadd.f32 %v7214, %v7215
    %v7217 = vrot.slane %v7216, 1
    %v7218 = vadd.f32 %v7216, %v7217
    %v7219 = vmul.f32 %v7212, %v5033
    %v7220 = vmul.f32 %v7218, %v5033
    %v7221 = vmul.f32 %v7201, %v7201
    %v7222 = vmul.f32 %v7203, %v7203
    %v7223 = vrot.slane %v7221, 4
    %v7224 = vadd.f32 %v7221, %v7223
    %v7225 = vrot.slane %v7224, 2
    %v7226 = vadd.f32 %v7224, %v7225
    %v7227 = vrot.slane %v7226, 1
    %v7228 = vadd.f32 %v7226, %v7227
    %v7229 = vrot.slane %v7222, 4
    %v7230 = vadd.f32 %v7222, %v7229
    %v7231 = vrot.slane %v7230, 2
    %v7232 = vadd.f32 %v7230, %v7231
    %v7233 = vrot.slane %v7232, 1
    %v7234 = vadd.f32 %v7232, %v7233
    %v7235 = vmul.f32 %v7228, %v5033
    %v7236 = vmul.f32 %v7234, %v5033
    %v7237 = vmul.f32 %v7219, %v7219
    %v7238 = vmul.f32 %v7220, %v7220
    %v7239 = vsub.f32 %v7235, %v7237
    %v7240 = vsub.f32 %v7236, %v7238
    %v7241 = vmax.f32 %v7239, 0.0
    %v7242 = vmax.f32 %v7240, 0.0
    %v7243 = vld [vmem:[#allocation25] sm:$0x3]
    %v7244 = vadd.f32 %v7241, 1e-05
    %v7245 = vadd.f32 %v7242, 1e-05
    %v7246 = vrsqrt.pop %v7244
    %v7247 = vrsqrt.pop %v7245
    %v7250 = vcombine.low %v7246, %v7247
    %v7252 = vunpack.c.l.s4 1966171168
    %v7253 = vunpack.c.0.s8 %v7252
    %v7254 = vlaneseq
    %v7255 = vshrl.u32 %v7254, 7
    %v7256 = vsub.s32 %v7253, %v7255
    %v7257 = vrot.slane %v7250, %v7256
    %v7259 = vunpack.c.l.s4 1966171168
    %v7260 = vunpack.c.0.s8 %v7259
    %v7261 = vlaneseq
    %v7262 = vshrl.u32 %v7261, 7
    %v7263 = vsub.s32 %v7260, %v7262
    %v7264 = vrot.slane %v7257, %v7263
    %v7266 = vmul.f32 %v7243, %v7264
    %v7267 = vld [vmem:[#allocation26] sm:$0x3]
    %v7269 = vlaneseq
    %v7270 = vshrl.u32 %v7269, 7
    %v7271 = vsub.s32 0, %v7270
    %v7272 = vrot.slane %v7266, %v7271
    %v7273 = vlaneseq
    %v7274 = vshrl.u32 %v7273, 7
    %v7275 = vsub.s32 1, %v7274
    %v7276 = vrot.slane %v7266, %v7275
    %v7279 = vmul.f32 %v7219, %v7272
    %v7280 = vmul.f32 %v7220, %v7276
    %v7283 = vcombine.low %v7279, %v7280
    %v7285 = vunpack.c.l.s4 1966171168
    %v7286 = vunpack.c.0.s8 %v7285
    %v7287 = vlaneseq
    %v7288 = vshrl.u32 %v7287, 7
    %v7289 = vsub.s32 %v7286, %v7288
    %v7290 = vrot.slane %v7283, %v7289
    %v7292 = vunpack.c.l.s4 1966171168
    %v7293 = vunpack.c.0.s8 %v7292
    %v7294 = vlaneseq
    %v7295 = vshrl.u32 %v7294, 7
    %v7296 = vsub.s32 %v7293, %v7295
    %v7297 = vrot.slane %v7290, %v7296
    %v7299 = vsub.f32 %v7267, %v7297
    %v7300 = vmul.f32 %v7201, %v7272
    %v7301 = vmul.f32 %v7203, %v7276
    %v7303 = vlaneseq
    %v7304 = vshrl.u32 %v7303, 7
    %v7305 = vsub.s32 0, %v7304
    %v7306 = vrot.slane %v7299, %v7305
    %v7307 = vlaneseq
    %v7308 = vshrl.u32 %v7307, 7
    %v7309 = vsub.s32 1, %v7308
    %v7310 = vrot.slane %v7299, %v7309
    %v7313 = vadd.f32 %v7300, %v7306
    %v7314 = vadd.f32 %v7301, %v7310
    %v7315 = vmax.f32 %v7313, 0.0
    %v7316 = vmax.f32 %v7314, 0.0
    %v7317 = vpack.c.bf16 %v7315, %v7315
    %v7318 = vpack.c.bf16 %v7316, %v7316
    %v7319 = vld [vmem:[#allocation28] sm:$0xf]
    %v7320 = vld [vmem:[#allocation28 + $0x4] sm:$0xf]
    %v7321 = vld [vmem:[#allocation28 + $0x8] sm:$0xf]
    %v7322 = vld [vmem:[#allocation28 + $0xc] sm:$0xf]
    %v7323 = vld [vmem:[#allocation28 + $0x10] sm:$0xf]
    %v7324 = vld [vmem:[#allocation28 + $0x14] sm:$0xf]
    %v7325 = vld [vmem:[#allocation28 + $0x18] sm:$0xf]
    %v7326 = vld [vmem:[#allocation28 + $0x1c] sm:$0xf]
    %v7327 = vld [vmem:[#allocation28 + $0x20] sm:$0xf]
    %v7328 = vld [vmem:[#allocation28 + $0x24] sm:$0xf]
    %v7329 = vld [vmem:[#allocation28 + $0x28] sm:$0xf]
    %v7330 = vld [vmem:[#allocation28 + $0x2c] sm:$0xf]
    %v7331 = vld [vmem:[#allocation28 + $0x30] sm:$0xf]
    %v7332 = vld [vmem:[#allocation28 + $0x34] sm:$0xf]
    %v7333 = vld [vmem:[#allocation28 + $0x38] sm:$0xf]
    %v7334 = vld [vmem:[#allocation28 + $0x3c] sm:$0xf]
    %v7335 = vld [vmem:[#allocation28 + $0x40] sm:$0xf]
    %v7336 = vld [vmem:[#allocation28 + $0x44] sm:$0xf]
    %v7337 = vld [vmem:[#allocation28 + $0x48] sm:$0xf]
    %v7338 = vld [vmem:[#allocation28 + $0x4c] sm:$0xf]
    %v7339 = vld [vmem:[#allocation28 + $0x50] sm:$0xf]
    %v7340 = vld [vmem:[#allocation28 + $0x54] sm:$0xf]
    %v7341 = vld [vmem:[#allocation28 + $0x58] sm:$0xf]
    %v7342 = vld [vmem:[#allocation28 + $0x5c] sm:$0xf]
    %v7343 = vld [vmem:[#allocation28 + $0x60] sm:$0xf]
    %v7344 = vld [vmem:[#allocation28 + $0x64] sm:$0xf]
    %v7345 = vld [vmem:[#allocation28 + $0x68] sm:$0xf]
    %v7346 = vld [vmem:[#allocation28 + $0x6c] sm:$0xf]
    %v7347 = vld [vmem:[#allocation28 + $0x70] sm:$0xf]
    %v7348 = vld [vmem:[#allocation28 + $0x74] sm:$0xf]
    %v7349 = vld [vmem:[#allocation28 + $0x78] sm:$0xf]
    %v7350 = vld [vmem:[#allocation28 + $0x7c] sm:$0xf]
    %v7351 = vld [vmem:[#allocation29] sm:$0x1]
    %v7353 = vlaneseq
    %v7354 = vshrl.u32 %v7353, 7
    %v7355 = vsub.s32 0, %v7354
    %v7356 = vrot.slane %v7351, %v7355
    %v7390 = vunpack.c.l.b16 %v7319
    %v7391 = vunpack.c.l.b16 %v7320
    %v7392 = vunpack.c.l.b16 %v7321
    %v7393 = vunpack.c.l.b16 %v7322
    %v7394 = vunpack.c.l.b16 %v7323
    %v7395 = vunpack.c.l.b16 %v7324
    %v7396 = vunpack.c.l.b16 %v7325
    %v7397 = vunpack.c.l.b16 %v7326
    %v7398 = vunpack.c.l.b16 %v7327
    %v7399 = vunpack.c.l.b16 %v7328
    %v7400 = vunpack.c.l.b16 %v7329
    %v7401 = vunpack.c.l.b16 %v7330
    %v7402 = vunpack.c.l.b16 %v7331
    %v7403 = vunpack.c.l.b16 %v7332
    %v7404 = vunpack.c.l.b16 %v7333
    %v7405 = vunpack.c.l.b16 %v7334
    %v7406 = vunpack.c.l.b16 %v7335
    %v7407 = vunpack.c.l.b16 %v7336
    %v7408 = vunpack.c.l.b16 %v7337
    %v7409 = vunpack.c.l.b16 %v7338
    %v7410 = vunpack.c.l.b16 %v7339
    %v7411 = vunpack.c.l.b16 %v7340
    %v7412 = vunpack.c.l.b16 %v7341
    %v7413 = vunpack.c.l.b16 %v7342
    %v7414 = vunpack.c.l.b16 %v7343
    %v7415 = vunpack.c.l.b16 %v7344
    %v7416 = vunpack.c.l.b16 %v7345
    %v7417 = vunpack.c.l.b16 %v7346
    %v7418 = vunpack.c.l.b16 %v7347
    %v7419 = vunpack.c.l.b16 %v7348
    %v7420 = vunpack.c.l.b16 %v7349
    %v7421 = vunpack.c.l.b16 %v7350
    %v7422 = vpack.c.b16 %v7391, %v7390
    %v7423 = vpack.c.b16 %v7393, %v7392
    %v7424 = vpack.c.b16 %v7395, %v7394
    %v7425 = vpack.c.b16 %v7397, %v7396
    %v7426 = vpack.c.b16 %v7399, %v7398
    %v7427 = vpack.c.b16 %v7401, %v7400
    %v7428 = vpack.c.b16 %v7403, %v7402
    %v7429 = vpack.c.b16 %v7405, %v7404
    %v7430 = vpack.c.b16 %v7407, %v7406
    %v7431 = vpack.c.b16 %v7409, %v7408
    %v7432 = vpack.c.b16 %v7411, %v7410
    %v7433 = vpack.c.b16 %v7413, %v7412
    %v7434 = vpack.c.b16 %v7415, %v7414
    %v7435 = vpack.c.b16 %v7417, %v7416
    %v7436 = vpack.c.b16 %v7419, %v7418
    %v7437 = vpack.c.b16 %v7421, %v7420
    %7454 = vmatprep.subr.bf16.mxu0 0
    %7455 = vmatpush1.bf16.msra.mxu0 %v7422
    %7456 = vmatprep.subr.bf16.mxu0 0
    %7457 = vmatpush1.bf16.msra.mxu0 %v7423
    %7458 = vmatprep.subr.bf16.mxu0 0
    %7459 = vmatpush1.bf16.msra.mxu0 %v7424
    %7460 = vmatprep.subr.bf16.mxu0 0
    %7461 = vmatpush1.bf16.msra.mxu0 %v7425
    %7462 = vmatprep.subr.bf16.mxu0 0
    %7463 = vmatpush1.bf16.msra.mxu0 %v7426
    %7464 = vmatprep.subr.bf16.mxu0 0
    %7465 = vmatpush1.bf16.msra.mxu0 %v7427
    %7466 = vmatprep.subr.bf16.mxu0 0
    %7467 = vmatpush1.bf16.msra.mxu0 %v7428
    %7468 = vmatprep.subr.bf16.mxu0 0
    %7469 = vmatpush1.bf16.msra.mxu0 %v7429
    %7470 = vmatprep.subr.bf16.mxu0 0
    %7471 = vmatpush1.bf16.msra.mxu0 %v7430
    %7472 = vmatprep.subr.bf16.mxu0 0
    %7473 = vmatpush1.bf16.msra.mxu0 %v7431
    %7474 = vmatprep.subr.bf16.mxu0 0
    %7475 = vmatpush1.bf16.msra.mxu0 %v7432
    %7476 = vmatprep.subr.bf16.mxu0 0
    %7477 = vmatpush1.bf16.msra.mxu0 %v7433
    %7478 = vmatprep.subr.bf16.mxu0 0
    %7479 = vmatpush1.bf16.msra.mxu0 %v7434
    %7480 = vmatprep.subr.bf16.mxu0 0
    %7481 = vmatpush1.bf16.msra.mxu0 %v7435
    %7482 = vmatprep.subr.bf16.mxu0 0
    %7483 = vmatpush1.bf16.msra.mxu0 %v7436
    %7484 = vmatprep.subr.bf16.mxu0 0
    %7485 = vmatpush1.bf16.msra.mxu0 %v7437
    %7486 = vmatprep.mubr.bf16.mxu0 %v7318
    %7487 = vmatmul.mubr.bf16.gmra.mrb[0].mxu0 %v7317
    %v7488 = vpop.f32.mrb[0].mxu0
    %v7489 = vadd.f32 %v7356, %v7488
    %v7490 = vpop.f32.mrb[0].mxu0
    %v7491 = vpop.f32.mrb[0].mxu0
    %v7492 = vpop.f32.mrb[0].mxu0
    %7493 = vdwg.mxu0
    %v7494 = vrot.slane %v7489, 4
    %v7495 = vadd.f32 %v7489, %v7494
    %v7496 = vrot.slane %v7495, 2
    %v7497 = vadd.f32 %v7495, %v7496
    %v7498 = vrot.slane %v7497, 1
    %v7499 = vadd.f32 %v7497, %v7498
    %v7500 = vmul.f32 %v7499, %v5033
    %v7501 = vmul.f32 %v7489, %v7489
    %v7502 = vrot.slane %v7501, 4
    %v7503 = vadd.f32 %v7501, %v7502
    %v7504 = vrot.slane %v7503, 2
    %v7505 = vadd.f32 %v7503, %v7504
    %v7506 = vrot.slane %v7505, 1
    %v7507 = vadd.f32 %v7505, %v7506
    %v7508 = vmul.f32 %v7507, %v5033
    %v7509 = vmul.f32 %v7500, %v7500
    %v7510 = vsub.f32 %v7508, %v7509
    %v7511 = vmax.f32 %v7510, 0.0
    %v7512 = vld [vmem:[#allocation31] sm:$0x1]
    %v7513 = vadd.f32 %v7511, 1e-05
    %v7514 = vrsqrt.pop %v7513
    %v7515 = vmul.f32 %v7512, %v7514
    %v7516 = vld [vmem:[#allocation32] sm:$0x1]
    %v7517 = vmul.f32 %v7500, %v7515
    %v7518 = vsub.f32 %v7516, %v7517
    %v7520 = vlaneseq
    %v7521 = vshrl.u32 %v7520, 7
    %v7522 = vsub.s32 0, %v7521
    %v7523 = vrot.slane %v7515, %v7522
    %v7525 = vmul.f32 %v7489, %v7523
    %v7527 = vlaneseq
    %v7528 = vshrl.u32 %v7527, 7
    %v7529 = vsub.s32 0, %v7528
    %v7530 = vrot.slane %v7518, %v7529
    %v7532 = vadd.f32 %v7525, %v7530
    %v7533 = vmax.f32 %v7532, 0.0
    %v7534 = vpack.c.bf16 %v7533, %v7533
    %v7535 = vld [vmem:[#allocation34] sm:$0xf]
    %v7536 = vld [vmem:[#allocation34 + $0x4] sm:$0xf]
    %v7537 = vld [vmem:[#allocation34 + $0x8] sm:$0xf]
    %v7538 = vld [vmem:[#allocation34 + $0xc] sm:$0xf]
    %v7539 = vld [vmem:[#allocation34 + $0x10] sm:$0xf]
    %v7540 = vld [vmem:[#allocation34 + $0x14] sm:$0xf]
    %v7541 = vld [vmem:[#allocation34 + $0x18] sm:$0xf]
    %v7542 = vld [vmem:[#allocation34 + $0x1c] sm:$0xf]
    %v7543 = vld [vmem:[#allocation34 + $0x20] sm:$0xf]
    %v7544 = vld [vmem:[#allocation34 + $0x24] sm:$0xf]
    %v7545 = vld [vmem:[#allocation34 + $0x28] sm:$0xf]
    %v7546 = vld [vmem:[#allocation34 + $0x2c] sm:$0xf]
    %v7547 = vld [vmem:[#allocation34 + $0x30] sm:$0xf]
    %v7548 = vld [vmem:[#allocation34 + $0x34] sm:$0xf]
    %v7549 = vld [vmem:[#allocation34 + $0x38] sm:$0xf]
    %v7550 = vld [vmem:[#allocation34 + $0x3c] sm:$0xf]
    %v7551 = vld [vmem:[#allocation35] sm:$0x1]
    %v7553 = vlaneseq
    %v7554 = vshrl.u32 %v7553, 7
    %v7555 = vsub.s32 0, %v7554
    %v7556 = vrot.slane %v7551, %v7555
    %v7574 = vunpack.c.l.b16 %v7535
    %v7575 = vunpack.c.l.b16 %v7536
    %v7576 = vunpack.c.l.b16 %v7537
    %v7577 = vunpack.c.l.b16 %v7538
    %v7578 = vunpack.c.l.b16 %v7539
    %v7579 = vunpack.c.l.b16 %v7540
    %v7580 = vunpack.c.l.b16 %v7541
    %v7581 = vunpack.c.l.b16 %v7542
    %v7582 = vunpack.c.l.b16 %v7543
    %v7583 = vunpack.c.l.b16 %v7544
    %v7584 = vunpack.c.l.b16 %v7545
    %v7585 = vunpack.c.l.b16 %v7546
    %v7586 = vunpack.c.l.b16 %v7547
    %v7587 = vunpack.c.l.b16 %v7548
    %v7588 = vunpack.c.l.b16 %v7549
    %v7589 = vunpack.c.l.b16 %v7550
    %v7590 = vpack.c.b16 %v7575, %v7574
    %v7591 = vpack.c.b16 %v7577, %v7576
    %v7592 = vpack.c.b16 %v7579, %v7578
    %v7593 = vpack.c.b16 %v7581, %v7580
    %v7594 = vpack.c.b16 %v7583, %v7582
    %v7595 = vpack.c.b16 %v7585, %v7584
    %v7596 = vpack.c.b16 %v7587, %v7586
    %v7597 = vpack.c.b16 %v7589, %v7588
    %7606 = vmatprep.subr.bf16.mxu0 0
    %7607 = vmatpush1.bf16.msra.mxu0 %v7590
    %7608 = vmatprep.subr.bf16.mxu0 0
    %7609 = vmatpush1.bf16.msra.mxu0 %v7591
    %7610 = vmatprep.subr.bf16.mxu0 0
    %7611 = vmatpush1.bf16.msra.mxu0 %v7592
    %7612 = vmatprep.subr.bf16.mxu0 0
    %7613 = vmatpush1.bf16.msra.mxu0 %v7593
    %7614 = vmatprep.subr.bf16.mxu0 0
    %7615 = vmatpush1.bf16.msra.mxu0 %v7594
    %7616 = vmatprep.subr.bf16.mxu0 0
    %7617 = vmatpush1.bf16.msra.mxu0 %v7595
    %7618 = vmatprep.subr.bf16.mxu0 0
    %7619 = vmatpush1.bf16.msra.mxu0 %v7596
    %7620 = vmatprep.subr.bf16.mxu0 0
    %7621 = vmatpush1.bf16.msra.mxu0 %v7597
    %7622 = vmatprep.subr.bf16.mxu0 0
    %7623 = vmatpush1.bf16.msra.mxu0 0
    %7624 = vmatprep.subr.bf16.mxu0 0
    %7625 = vmatpush1.bf16.msra.mxu0 0
    %7626 = vmatprep.subr.bf16.mxu0 0
    %7627 = vmatpush1.bf16.msra.mxu0 0
    %7628 = vmatprep.subr.bf16.mxu0 0
    %7629 = vmatpush1.bf16.msra.mxu0 0
    %7630 = vmatprep.subr.bf16.mxu0 0
    %7631 = vmatpush1.bf16.msra.mxu0 0
    %7632 = vmatprep.subr.bf16.mxu0 0
    %7633 = vmatpush1.bf16.msra.mxu0 0
    %7634 = vmatprep.subr.bf16.mxu0 0
    %7635 = vmatpush1.bf16.msra.mxu0 0
    %7636 = vmatprep.subr.bf16.mxu0 0
    %7637 = vmatpush1.bf16.msra.mxu0 0
    %7638 = vmatprep.mubr.bf16.mxu0 0
    %7639 = vmatmul.mubr.bf16.gmra.mrb[0].mxu0 %v7534
    %v7640 = vpop.f32.mrb[0].mxu0
    %v7641 = vadd.f32 %v7556, %v7640
    %v7642 = vpop.f32.mrb[0].mxu0
    %v7643 = vpop.f32.mrb[0].mxu0
    %v7644 = vpop.f32.mrb[0].mxu0
    %7645 = vdwg.mxu0
    %v7646 = vrot.slane %v7641, 4
    %v7647 = vadd.f32 %v7641, %v7646
    %v7648 = vrot.slane %v7647, 2
    %v7649 = vadd.f32 %v7647, %v7648
    %v7650 = vrot.slane %v7649, 1
    %v7651 = vadd.f32 %v7649, %v7650
    %v7652 = vmul.f32 %v7651, %v5033
    %v7653 = vmul.f32 %v7641, %v7641
    %v7654 = vrot.slane %v7653, 4
    %v7655 = vadd.f32 %v7653, %v7654
    %v7656 = vrot.slane %v7655, 2
    %v7657 = vadd.f32 %v7655, %v7656
    %v7658 = vrot.slane %v7657, 1
    %v7659 = vadd.f32 %v7657, %v7658
    %v7660 = vmul.f32 %v7659, %v5033
    %v7661 = vmul.f32 %v7652, %v7652
    %v7662 = vsub.f32 %v7660, %v7661
    %v7663 = vmax.f32 %v7662, 0.0
    %v7664 = vld [vmem:[#allocation37] sm:$0x1]
    %v7665 = vadd.f32 %v7663, 1e-05
    %v7666 = vrsqrt.pop %v7665
    %v7667 = vmul.f32 %v7664, %v7666
    %v7668 = vld [vmem:[#allocation38] sm:$0x1]
    %v7669 = vmul.f32 %v7652, %v7667
    %v7670 = vsub.f32 %v7668, %v7669
    %v7672 = vlaneseq
    %v7673 = vshrl.u32 %v7672, 7
    %v7674 = vsub.s32 0, %v7673
    %v7675 = vrot.slane %v7667, %v7674
    %v7677 = vmul.f32 %v7641, %v7675
    %v7679 = vlaneseq
    %v7680 = vshrl.u32 %v7679, 7
    %v7681 = vsub.s32 0, %v7680
    %v7682 = vrot.slane %v7670, %v7681
    %v7684 = vadd.f32 %v7677, %v7682
    %v7685 = vmax.f32 %v7684, 0.0
    %v7686 = vpack.c.bf16 %v7685, %v7685
    %v7687 = vld [vmem:[#allocation40] sm:$0xf]
    %v7688 = vld [vmem:[#allocation40 + $0x4] sm:$0xf]
    %v7689 = vld [vmem:[#allocation40 + $0x8] sm:$0xf]
    %v7690 = vld [vmem:[#allocation40 + $0xc] sm:$0xf]
    %v7691 = vld [vmem:[#allocation40 + $0x10] sm:$0xf]
    %v7692 = vld [vmem:[#allocation40 + $0x14] sm:$0xf]
    %v7693 = vld [vmem:[#allocation40 + $0x18] sm:$0xf]
    %v7694 = vld [vmem:[#allocation40 + $0x1c] sm:$0xf]
    %v7695 = vld [vmem:[#allocation40 + $0x20] sm:$0xf]
    %v7696 = vld [vmem:[#allocation40 + $0x24] sm:$0xf]
    %v7697 = vld [vmem:[#allocation40 + $0x28] sm:$0xf]
    %v7698 = vld [vmem:[#allocation40 + $0x2c] sm:$0xf]
    %v7699 = vld [vmem:[#allocation40 + $0x30] sm:$0xf]
    %v7700 = vld [vmem:[#allocation40 + $0x34] sm:$0xf]
    %v7701 = vld [vmem:[#allocation40 + $0x38] sm:$0xf]
    %v7702 = vld [vmem:[#allocation40 + $0x3c] sm:$0xf]
    %v7703 = vld [vmem:[#allocation41] sm:$0x1]
    %v7705 = vlaneseq
    %v7706 = vshrl.u32 %v7705, 7
    %v7707 = vsub.s32 0, %v7706
    %v7708 = vrot.slane %v7703, %v7707
    %v7726 = vunpack.c.l.b16 %v7687
    %v7727 = vunpack.c.l.b16 %v7688
    %v7728 = vunpack.c.l.b16 %v7689
    %v7729 = vunpack.c.l.b16 %v7690
    %v7730 = vunpack.c.l.b16 %v7691
    %v7731 = vunpack.c.l.b16 %v7692
    %v7732 = vunpack.c.l.b16 %v7693
    %v7733 = vunpack.c.l.b16 %v7694
    %v7734 = vunpack.c.l.b16 %v7695
    %v7735 = vunpack.c.l.b16 %v7696
    %v7736 = vunpack.c.l.b16 %v7697
    %v7737 = vunpack.c.l.b16 %v7698
    %v7738 = vunpack.c.l.b16 %v7699
    %v7739 = vunpack.c.l.b16 %v7700
    %v7740 = vunpack.c.l.b16 %v7701
    %v7741 = vunpack.c.l.b16 %v7702
    %v7742 = vpack.c.b16 %v7727, %v7726
    %v7743 = vpack.c.b16 %v7729, %v7728
    %v7744 = vpack.c.b16 %v7731, %v7730
    %v7745 = vpack.c.b16 %v7733, %v7732
    %v7746 = vpack.c.b16 %v7735, %v7734
    %v7747 = vpack.c.b16 %v7737, %v7736
    %v7748 = vpack.c.b16 %v7739, %v7738
    %v7749 = vpack.c.b16 %v7741, %v7740
    %7758 = vmatprep.subr.bf16.mxu0 0
    %7759 = vmatpush1.bf16.msra.mxu0 %v7742
    %7760 = vmatprep.subr.bf16.mxu0 0
    %7761 = vmatpush1.bf16.msra.mxu0 %v7743
    %7762 = vmatprep.subr.bf16.mxu0 0
    %7763 = vmatpush1.bf16.msra.mxu0 %v7744
    %7764 = vmatprep.subr.bf16.mxu0 0
    %7765 = vmatpush1.bf16.msra.mxu0 %v7745
    %7766 = vmatprep.subr.bf16.mxu0 0
    %7767 = vmatpush1.bf16.msra.mxu0 %v7746
    %7768 = vmatprep.subr.bf16.mxu0 0
    %7769 = vmatpush1.bf16.msra.mxu0 %v7747
    %7770 = vmatprep.subr.bf16.mxu0 0
    %7771 = vmatpush1.bf16.msra.mxu0 %v7748
    %7772 = vmatprep.subr.bf16.mxu0 0
    %7773 = vmatpush1.bf16.msra.mxu0 %v7749
    %7774 = vmatprep.subr.bf16.mxu0 0
    %7775 = vmatpush1.bf16.msra.mxu0 0
    %7776 = vmatprep.subr.bf16.mxu0 0
    %7777 = vmatpush1.bf16.msra.mxu0 0
    %7778 = vmatprep.subr.bf16.mxu0 0
    %7779 = vmatpush1.bf16.msra.mxu0 0
    %7780 = vmatprep.subr.bf16.mxu0 0
    %7781 = vmatpush1.bf16.msra.mxu0 0
    %7782 = vmatprep.subr.bf16.mxu0 0
    %7783 = vmatpush1.bf16.msra.mxu0 0
    %7784 = vmatprep.subr.bf16.mxu0 0
    %7785 = vmatpush1.bf16.msra.mxu0 0
    %7786 = vmatprep.subr.bf16.mxu0 0
    %7787 = vmatpush1.bf16.msra.mxu0 0
    %7788 = vmatprep.subr.bf16.mxu0 0
    %7789 = vmatpush1.bf16.msra.mxu0 0
    %7790 = vmatprep.mubr.bf16.mxu0 0
    %7791 = vmatmul.mubr.bf16.gmra.mrb[0].mxu0 %v7686
    %v7792 = vpop.f32.mrb[0].mxu0
    %v7793 = vadd.f32 %v7708, %v7792
    %v7794 = vpop.f32.mrb[0].mxu0
    %v7795 = vpop.f32.mrb[0].mxu0
    %v7796 = vpop.f32.mrb[0].mxu0
    %7797 = vdwg.mxu0
    %v7798 = vrot.slane %v7793, 4
    %v7799 = vadd.f32 %v7793, %v7798
    %v7800 = vrot.slane %v7799, 2
    %v7801 = vadd.f32 %v7799, %v7800
    %v7802 = vrot.slane %v7801, 1
    %v7803 = vadd.f32 %v7801, %v7802
    %v7804 = vmul.f32 %v7803, %v5033
    %v7805 = vmul.f32 %v7793, %v7793
    %v7806 = vrot.slane %v7805, 4
    %v7807 = vadd.f32 %v7805, %v7806
    %v7808 = vrot.slane %v7807, 2
    %v7809 = vadd.f32 %v7807, %v7808
    %v7810 = vrot.slane %v7809, 1
    %v7811 = vadd.f32 %v7809, %v7810
    %v7812 = vmul.f32 %v7811, %v5033
    %v7813 = vmul.f32 %v7804, %v7804
    %v7814 = vsub.f32 %v7812, %v7813
    %v7815 = vmax.f32 %v7814, 0.0
    %v7816 = vld [vmem:[#allocation43] sm:$0x1]
    %v7817 = vadd.f32 %v7815, 1e-05
    %v7818 = vrsqrt.pop %v7817
    %v7819 = vmul.f32 %v7816, %v7818
    %v7820 = vld [vmem:[#allocation44] sm:$0x1]
    %v7821 = vmul.f32 %v7804, %v7819
    %v7822 = vsub.f32 %v7820, %v7821
    %v7824 = vlaneseq
    %v7825 = vshrl.u32 %v7824, 7
    %v7826 = vsub.s32 0, %v7825
    %v7827 = vrot.slane %v7819, %v7826
    %v7829 = vmul.f32 %v7793, %v7827
    %v7831 = vlaneseq
    %v7832 = vshrl.u32 %v7831, 7
    %v7833 = vsub.s32 0, %v7832
    %v7834 = vrot.slane %v7822, %v7833
    %v7836 = vadd.f32 %v7829, %v7834
    %v7837 = vmax.f32 %v7836, 0.0
    %v7838 = vpack.c.bf16 %v7837, %v7837
    %v7839 = vld [vmem:[#allocation46] sm:$0xf]
    %v7840 = vld [vmem:[#allocation46 + $0x4] sm:$0xf]
    %v7841 = vld [vmem:[#allocation46 + $0x8] sm:$0xf]
    %v7842 = vld [vmem:[#allocation46 + $0xc] sm:$0xf]
    %v7843 = vld [vmem:[#allocation46 + $0x10] sm:$0xf]
    %v7844 = vld [vmem:[#allocation46 + $0x14] sm:$0xf]
    %v7845 = vld [vmem:[#allocation46 + $0x18] sm:$0xf]
    %v7846 = vld [vmem:[#allocation46 + $0x1c] sm:$0xf]
    %v7847 = vld [vmem:[#allocation46 + $0x20] sm:$0xf]
    %v7848 = vld [vmem:[#allocation46 + $0x24] sm:$0xf]
    %v7849 = vld [vmem:[#allocation46 + $0x28] sm:$0xf]
    %v7850 = vld [vmem:[#allocation46 + $0x2c] sm:$0xf]
    %v7851 = vld [vmem:[#allocation46 + $0x30] sm:$0xf]
    %v7852 = vld [vmem:[#allocation46 + $0x34] sm:$0xf]
    %v7853 = vld [vmem:[#allocation46 + $0x38] sm:$0xf]
    %v7854 = vld [vmem:[#allocation46 + $0x3c] sm:$0xf]
    %v7855 = vld [vmem:[#allocation47] sm:$0x1]
    %v7857 = vlaneseq
    %v7858 = vshrl.u32 %v7857, 7
    %v7859 = vsub.s32 0, %v7858
    %v7860 = vrot.slane %v7855, %v7859
    %v7878 = vunpack.c.l.b16 %v7839
    %v7879 = vunpack.c.l.b16 %v7840
    %v7880 = vunpack.c.l.b16 %v7841
    %v7881 = vunpack.c.l.b16 %v7842
    %v7882 = vunpack.c.l.b16 %v7843
    %v7883 = vunpack.c.l.b16 %v7844
    %v7884 = vunpack.c.l.b16 %v7845
    %v7885 = vunpack.c.l.b16 %v7846
    %v7886 = vunpack.c.l.b16 %v7847
    %v7887 = vunpack.c.l.b16 %v7848
    %v7888 = vunpack.c.l.b16 %v7849
    %v7889 = vunpack.c.l.b16 %v7850
    %v7890 = vunpack.c.l.b16 %v7851
    %v7891 = vunpack.c.l.b16 %v7852
    %v7892 = vunpack.c.l.b16 %v7853
    %v7893 = vunpack.c.l.b16 %v7854
    %v7894 = vpack.c.b16 %v7879, %v7878
    %v7895 = vpack.c.b16 %v7881, %v7880
    %v7896 = vpack.c.b16 %v7883, %v7882
    %v7897 = vpack.c.b16 %v7885, %v7884
    %v7898 = vpack.c.b16 %v7887, %v7886
    %v7899 = vpack.c.b16 %v7889, %v7888
    %v7900 = vpack.c.b16 %v7891, %v7890
    %v7901 = vpack.c.b16 %v7893, %v7892
    %7910 = vmatprep.subr.bf16.mxu0 0
    %7911 = vmatpush1.bf16.msra.mxu0 %v7894
    %7912 = vmatprep.subr.bf16.mxu0 0
    %7913 = vmatpush1.bf16.msra.mxu0 %v7895
    %7914 = vmatprep.subr.bf16.mxu0 0
    %7915 = vmatpush1.bf16.msra.mxu0 %v7896
    %7916 = vmatprep.subr.bf16.mxu0 0
    %7917 = vmatpush1.bf16.msra.mxu0 %v7897
    %7918 = vmatprep.subr.bf16.mxu0 0
    %7919 = vmatpush1.bf16.msra.mxu0 %v7898
    %7920 = vmatprep.subr.bf16.mxu0 0
    %7921 = vmatpush1.bf16.msra.mxu0 %v7899
    %7922 = vmatprep.subr.bf16.mxu0 0
    %7923 = vmatpush1.bf16.msra.mxu0 %v7900
    %7924 = vmatprep.subr.bf16.mxu0 0
    %7925 = vmatpush1.bf16.msra.mxu0 %v7901
    %7926 = vmatprep.subr.bf16.mxu0 0
    %7927 = vmatpush1.bf16.msra.mxu0 0
    %7928 = vmatprep.subr.bf16.mxu0 0
    %7929 = vmatpush1.bf16.msra.mxu0 0
    %7930 = vmatprep.subr.bf16.mxu0 0
    %7931 = vmatpush1.bf16.msra.mxu0 0
    %7932 = vmatprep.subr.bf16.mxu0 0
    %7933 = vmatpush1.bf16.msra.mxu0 0
    %7934 = vmatprep.subr.bf16.mxu0 0
    %7935 = vmatpush1.bf16.msra.mxu0 0
    %7936 = vmatprep.subr.bf16.mxu0 0
    %7937 = vmatpush1.bf16.msra.mxu0 0
    %7938 = vmatprep.subr.bf16.mxu0 0
    %7939 = vmatpush1.bf16.msra.mxu0 0
    %7940 = vmatprep.subr.bf16.mxu0 0
    %7941 = vmatpush1.bf16.msra.mxu0 0
    %7942 = vmatprep.mubr.bf16.mxu0 0
    %7943 = vmatmul.mubr.bf16.gmra.mrb[0].mxu0 %v7838
    %v7944 = vpop.f32.mrb[0].mxu0
    %v7945 = vadd.f32 %v7860, %v7944
    %v7946 = vpop.f32.mrb[0].mxu0
    %v7947 = vpop.f32.mrb[0].mxu0
    %v7948 = vpop.f32.mrb[0].mxu0
    %7949 = vdwg.mxu0
    %v7950 = vrot.slane %v7945, 4
    %v7951 = vadd.f32 %v7945, %v7950
    %v7952 = vrot.slane %v7951, 2
    %v7953 = vadd.f32 %v7951, %v7952
    %v7954 = vrot.slane %v7953, 1
    %v7955 = vadd.f32 %v7953, %v7954
    %v7956 = vmul.f32 %v7955, %v5033
    %v7957 = vmul.f32 %v7945, %v7945
    %v7958 = vrot.slane %v7957, 4
    %v7959 = vadd.f32 %v7957, %v7958
    %v7960 = vrot.slane %v7959, 2
    %v7961 = vadd.f32 %v7959, %v7960
    %v7962 = vrot.slane %v7961, 1
    %v7963 = vadd.f32 %v7961, %v7962
    %v7964 = vmul.f32 %v7963, %v5033
    %v7965 = vmul.f32 %v7956, %v7956
    %v7966 = vsub.f32 %v7964, %v7965
    %v7967 = vmax.f32 %v7966, 0.0
    %v7968 = vld [vmem:[#allocation49] sm:$0x1]
    %v7969 = vadd.f32 %v7967, 1e-05
    %v7970 = vrsqrt.pop %v7969
    %v7971 = vmul.f32 %v7968, %v7970
    %v7972 = vld [vmem:[#allocation50] sm:$0x1]
    %v7973 = vmul.f32 %v7956, %v7971
    %v7974 = vsub.f32 %v7972, %v7973
    %v7976 = vlaneseq
    %v7977 = vshrl.u32 %v7976, 7
    %v7978 = vsub.s32 0, %v7977
    %v7979 = vrot.slane %v7971, %v7978
    %v7981 = vmul.f32 %v7945, %v7979
    %v7983 = vlaneseq
    %v7984 = vshrl.u32 %v7983, 7
    %v7985 = vsub.s32 0, %v7984
    %v7986 = vrot.slane %v7974, %v7985
    %v7988 = vadd.f32 %v7981, %v7986
    %v7989 = vmax.f32 %v7988, 0.0
    %7990 = vst [vmem:[#allocation52] sm:$0xff] %v7989
    // Predicated region
    $region262: #{encoder_v2_forward.1} parent=1 // pred_check
      _
    $region263: #{encoder_v2_forward.1} parent=1 // pred_check_branch
      %7992 = sbr.rel (0) target = $region265
    $region264: #{encoder_v2_forward.1} parent=1 // pred_region
      %s7994 = ssub.s32 128, 128
      %7995 = vsyncadd [#allocation4], %s7994
      %s7997 = sshll.u32 [#allocation52], 4
      %s7998 = int_to_ptr.vmem [resolvable:$true] %s7997
      %8000 = dma.vmem_to_hbm [thread:$0]  %s7998, 128, %s67, [#allocation4]
    $region265: #{encoder_v2_forward.1} parent=1 // pred_fallthru
      _
    // Predicated region
    $region266: #{encoder_v2_forward.1} parent=1 // pred_check
      _
    $region267: #{encoder_v2_forward.1} parent=1 // pred_check_branch
      %8002 = sbr.rel (0) target = $region269
    $region268: #{encoder_v2_forward.1} parent=1 // pred_region
      %8003 = dma.done [#allocation4], 128
    $region269: #{encoder_v2_forward.1} parent=1 // pred_fallthru
      _
    %8004 = vsyncpa [#allocation3], 1
    %8005 = vsyncpa [#allocation6], 1
    %8006 = vsyncpa [#allocation9], 1
    %8007 = vsyncpa [#allocation12], 1
    %8008 = vsyncpa [#allocation15], 1
    %8009 = vsyncpa [#allocation18], 1
    %8010 = vsyncpa [#allocation21], 1
    %8011 = vsyncpa [#allocation24], 1
    %8012 = vsyncpa [#allocation27], 1
    %8013 = vsyncpa [#allocation30], 1
    %8014 = vsyncpa [#allocation33], 1
    %8015 = vsyncpa [#allocation36], 1
    %8016 = vsyncpa [#allocation39], 1
    %8017 = vsyncpa [#allocation42], 1
    %8018 = vsyncpa [#allocation45], 1
    %8019 = vsyncpa [#allocation48], 1
    %8020 = vsyncpa [#allocation51], 1
    %8021 = vsyncpa [#allocation4], 1

</llo_original>
